<compile_context>
chip_gen: v5e
topology: v5e:2x2
jax: 0.10.0
libtpu: 0.0.40
codegen_flags: <defaults>
</compile_context>

<pallas_src>
import functools

import jax
import jax.numpy as jnp
from jax.experimental import pallas as pl
from jax.experimental.pallas import tpu as pltpu

NUM_RES_BLOCKS = 9
BN_EPS = 1e-5
_VMEM_LIMIT = 32 * 1024 * 1024   # safe on v5e/v6e (128 MiB) and v7x (64 MiB)


def _round_up(x, m):
    return (x + m - 1) // m * m


# ----------------------------------------------------------------------------
# Pallas kernels
# ----------------------------------------------------------------------------
def _mm_bias_kernel(a_ref, w_ref, b_ref, o_ref, acc_ref):
    """o = a @ w + b, accumulated over the K grid axis (bf16 in, f32 acc)."""
    @pl.when(pl.program_id(2) == 0)
    def _():
        acc_ref[...] = jnp.zeros_like(acc_ref)

    acc_ref[...] += jnp.dot(a_ref[...], w_ref[...],
                            preferred_element_type=jnp.float32)

    @pl.when(pl.program_id(2) == pl.num_programs(2) - 1)
    def _():
        o_ref[...] = acc_ref[...] + b_ref[...]


def _mm_stats_kernel(a_ref, w_ref, o_ref, sum_ref, sq_ref, acc_ref):
    """o = a @ w (no bias); epilogue also emits per-column sum / sum-of-squares
    partials (per M-tile) so BatchNorm stats need no extra HBM pass."""
    @pl.when(pl.program_id(2) == 0)
    def _():
        acc_ref[...] = jnp.zeros_like(acc_ref)

    acc_ref[...] += jnp.dot(a_ref[...], w_ref[...],
                            preferred_element_type=jnp.float32)

    @pl.when(pl.program_id(2) == pl.num_programs(2) - 1)
    def _():
        acc = acc_ref[...]
        o_ref[...] = acc
        s = jnp.sum(acc, axis=0, keepdims=True)
        q = jnp.sum(acc * acc, axis=0, keepdims=True)
        sum_ref[...] = jnp.broadcast_to(s, sum_ref.shape)
        sq_ref[...] = jnp.broadcast_to(q, sq_ref.shape)


def _bn_act_kernel(x_ref, scale_ref, shift_ref, o_ref, *, relu):
    """o = x * scale + shift (then optional ReLU) — fused BN affine."""
    y = x_ref[...] * scale_ref[...] + shift_ref[...]
    if relu:
        y = jnp.maximum(y, 0.0)
    o_ref[...] = y


def _bn_act_res_kernel(x_ref, scale_ref, shift_ref, res_ref, o_ref, *, relu):
    """o = x * scale + shift + residual (then optional ReLU)."""
    y = x_ref[...] * scale_ref[...] + shift_ref[...] + res_ref[...]
    if relu:
        y = jnp.maximum(y, 0.0)
    o_ref[...] = y


# ----------------------------------------------------------------------------
# Pallas wrappers
# ----------------------------------------------------------------------------
def _pick_tk(k):
    """Pick a K tile (multiple of 128, <=512) minimizing zero padding."""
    best_pad, best_c = None, None
    for c in (512, 384, 256, 128):
        pad = _round_up(k, c) - k
        if best_pad is None or pad < best_pad:
            best_pad, best_c = pad, c
    return best_c


def pallas_matmul(a, w, bias=None, *, compute_stats=False):
    """(M,K) @ (K,N) [+ bias] with bf16 MXU operands and f32 accumulation.

    compute_stats=True drops the bias and additionally returns per-column sum
    and sum-of-squares of the product (for training-mode BatchNorm).
    """
    M, K = a.shape
    _, Ncol = w.shape
    TM = min(256, _round_up(M, 8))
    TN = min(256, _round_up(Ncol, 128))
    TK = min(_pick_tk(K), _round_up(K, 128))
    Mp, Kp, Np = _round_up(M, TM), _round_up(K, TK), _round_up(Ncol, TN)

    a_p = jnp.pad(a.astype(jnp.bfloat16), ((0, Mp - M), (0, Kp - K)))
    w_p = jnp.pad(w.astype(jnp.bfloat16), ((0, Kp - K), (0, Np - Ncol)))
    grid = (Mp // TM, Np // TN, Kp // TK)
    n_i = grid[0]

    cparams = pltpu.CompilerParams(
        dimension_semantics=("parallel", "parallel", "arbitrary"),
        vmem_limit_bytes=_VMEM_LIMIT)

    a_spec = pl.BlockSpec((TM, TK), lambda i, j, k: (i, k))
    w_spec = pl.BlockSpec((TK, TN), lambda i, j, k: (k, j))
    o_spec = pl.BlockSpec((TM, TN), lambda i, j, k: (i, j))

    if compute_stats:
        stat_spec = pl.BlockSpec((8, TN), lambda i, j, k: (i, j))
        out, s_part, q_part = pl.pallas_call(
            _mm_stats_kernel,
            out_shape=(jax.ShapeDtypeStruct((Mp, Np), jnp.float32),
                       jax.ShapeDtypeStruct((n_i * 8, Np), jnp.float32),
                       jax.ShapeDtypeStruct((n_i * 8, Np), jnp.float32)),
            grid_spec=pltpu.PrefetchScalarGridSpec(
                num_scalar_prefetch=0, grid=grid,
                in_specs=[a_spec, w_spec],
                out_specs=[o_spec, stat_spec, stat_spec],
                scratch_shapes=[pltpu.VMEM((TM, TN), jnp.float32)]),
            compiler_params=cparams,
        )(a_p, w_p)
        # One partial (broadcast over 8 sublanes) per M tile; finish the tiny
        # (n_tiles, C) reduction in glue.  Padded rows/cols contribute zeros.
        ch_sum = jnp.sum(s_part[::8], axis=0)[:Ncol]
        ch_sq = jnp.sum(q_part[::8], axis=0)[:Ncol]
        return out[:M, :Ncol], ch_sum, ch_sq

    assert bias is not None
    b_p = jnp.pad(bias.astype(jnp.float32), (0, Np - Ncol)).reshape(1, Np)
    out = pl.pallas_call(
        _mm_bias_kernel,
        out_shape=jax.ShapeDtypeStruct((Mp, Np), jnp.float32),
        grid_spec=pltpu.PrefetchScalarGridSpec(
            num_scalar_prefetch=0, grid=grid,
            in_specs=[a_spec, w_spec,
                      pl.BlockSpec((1, TN), lambda i, j, k: (0, j))],
            out_specs=o_spec,
            scratch_shapes=[pltpu.VMEM((TM, TN), jnp.float32)]),
        compiler_params=cparams,
    )(a_p, w_p, b_p)
    return out[:M, :Ncol]


def _bn_scale_shift(ch_sum, ch_sq, count, gamma, beta):
    """Training-mode BatchNorm (biased batch variance) -> per-channel affine."""
    mean = ch_sum / count
    var = jnp.maximum(ch_sq / count - mean * mean, 0.0)
    scale = gamma * jax.lax.rsqrt(var + BN_EPS)
    return scale, beta - mean * scale


def pallas_bn_act(x_flat, scale, shift, *, relu=False, residual=None):
    """Row-tiled fused BN affine + optional ReLU / residual add, f32."""
    M, C = x_flat.shape
    TR = min(512, _round_up(M, 8))
    Mp, Cp = _round_up(M, TR), _round_up(C, 128)
    x_p = jnp.pad(x_flat, ((0, Mp - M), (0, Cp - C)))
    s_p = jnp.pad(scale, (0, Cp - C)).reshape(1, Cp)
    t_p = jnp.pad(shift, (0, Cp - C)).reshape(1, Cp)

    row_spec = pl.BlockSpec((TR, Cp), lambda i: (i, 0))
    vec_spec = pl.BlockSpec((1, Cp), lambda i: (0, 0))
    cparams = pltpu.CompilerParams(dimension_semantics=("parallel",),
                                   vmem_limit_bytes=_VMEM_LIMIT)
    grid = (Mp // TR,)

    if residual is None:
        out = pl.pallas_call(
            functools.partial(_bn_act_kernel, relu=relu),
            out_shape=jax.ShapeDtypeStruct((Mp, Cp), jnp.float32),
            grid=grid,
            in_specs=[row_spec, vec_spec, vec_spec],
            out_specs=row_spec,
            compiler_params=cparams,
        )(x_p, s_p, t_p)
    else:
        r_p = jnp.pad(residual, ((0, Mp - M), (0, Cp - C)))
        out = pl.pallas_call(
            functools.partial(_bn_act_res_kernel, relu=relu),
            out_shape=jax.ShapeDtypeStruct((Mp, Cp), jnp.float32),
            grid=grid,
            in_specs=[row_spec, vec_spec, vec_spec, row_spec],
            out_specs=row_spec,
            compiler_params=cparams,
        )(x_p, s_p, t_p, r_p)
    return out[:M, :C]


# ----------------------------------------------------------------------------
# Conv layers (NHWC im2col glue + Pallas GEMM)
# ----------------------------------------------------------------------------
def conv2d_nhwc(x, w, b, *, stride=1, padding=0, pad_mode="zero",
                compute_stats=False):
    """x: (N,H,W,Cin) f32; w: (Cout,Cin,kh,kw) (PyTorch Conv2d layout).

    Returns (out_flat (M,Cout), (N,Ho,Wo)) and, if compute_stats, the
    per-channel (sum, sum_sq) of the conv output.
    """
    N, H, W, Cin = x.shape
    Cout, _, kh, kw = w.shape
    xb = x.astype(jnp.bfloat16)          # bf16 MXU operands; im2col stays bf16
    if padding:
        mode = "reflect" if pad_mode == "reflect" else "constant"
        xb = jnp.pad(xb, ((0, 0), (padding, padding), (padding, padding), (0, 0)),
                     mode=mode)
    Hp, Wp = xb.shape[1], xb.shape[2]
    Ho = (Hp - kh) // stride + 1
    Wo = (Wp - kw) // stride + 1
    # TODO(synk): implicit im2col (gathering the kh*kw shifted row windows
    # inside the GEMM via BlockSpec/Element index maps) would avoid
    # materializing the expanded patch matrix in HBM.
    cols = [xb[:, i:i + stride * Ho:stride, j:j + stride * Wo:stride, :]
            for i in range(kh) for j in range(kw)]
    patches = jnp.concatenate(cols, axis=-1).reshape(N * Ho * Wo, kh * kw * Cin)
    w_mat = jnp.transpose(w, (2, 3, 1, 0)).reshape(kh * kw * Cin, Cout)
    if compute_stats:
        out, ch_sum, ch_sq = pallas_matmul(patches, w_mat, compute_stats=True)
        return out, (N, Ho, Wo), (ch_sum, ch_sq)
    return pallas_matmul(patches, w_mat, bias=b), (N, Ho, Wo)


def conv_transpose2d_nhwc(x, w, b):
    """PyTorch ConvTranspose2d(k=3, stride=2, padding=1, output_padding=1)
    via sub-pixel decomposition: 4 stride-1 phase GEMMs + interleave.
    x: (N,H,W,Cin); w: (Cin,Cout,3,3); returns (N, 2H, 2W, Cout)."""
    N, H, W, Cin = x.shape
    _, Cout, _, _ = w.shape
    xb = x.astype(jnp.bfloat16)
    xp = jnp.pad(xb, ((0, 0), (0, 1), (0, 1), (0, 0)))      # zero bottom/right
    x00 = xp[:, :H, :W, :]
    x01 = xp[:, :H, 1:W + 1, :]
    x10 = xp[:, 1:H + 1, :W, :]
    x11 = xp[:, 1:H + 1, 1:W + 1, :]

    def a_mat(parts):
        return jnp.concatenate([p.reshape(N * H * W, Cin) for p in parts], axis=-1)

    def w_mat(taps):
        return jnp.concatenate([w[:, :, i, j] for (i, j) in taps], axis=0)

    # out[2p  ,2q  ] = x[p,q] @ w[1,1]
    # out[2p  ,2q+1] = x[p,q] @ w[1,2] + x[p,q+1] @ w[1,0]
    # out[2p+1,2q  ] = x[p,q] @ w[2,1] + x[p+1,q] @ w[0,1]
    # out[2p+1,2q+1] = x[p,q]@w[2,2] + x[p,q+1]@w[2,0] + x[p+1,q]@w[0,2] + x[p+1,q+1]@w[0,0]
    o00 = pallas_matmul(a_mat([x00]), w_mat([(1, 1)]), bias=b)
    o01 = pallas_matmul(a_mat([x00, x01]), w_mat([(1, 2), (1, 0)]), bias=b)
    o10 = pallas_matmul(a_mat([x00, x10]), w_mat([(2, 1), (0, 1)]), bias=b)
    o11 = pallas_matmul(a_mat([x00, x01, x10, x11]),
                        w_mat([(2, 2), (2, 0), (0, 2), (0, 0)]), bias=b)

    o00 = o00.reshape(N, H, W, Cout)
    o01 = o01.reshape(N, H, W, Cout)
    o10 = o10.reshape(N, H, W, Cout)
    o11 = o11.reshape(N, H, W, Cout)
    even = jnp.stack([o00, o01], axis=3).reshape(N, H, 2 * W, Cout)
    odd = jnp.stack([o10, o11], axis=3).reshape(N, H, 2 * W, Cout)
    return jnp.stack([even, odd], axis=2).reshape(N, 2 * H, 2 * W, Cout)


def residual_block(x_flat, nhw, p):
    """ReflectionPad(1)->Conv3x3->BN->ReLU->ReflectionPad(1)->Conv3x3->BN, +x.
    x_flat: (M, 256) f32, M = N*H*W (NHWC-flat).  Conv biases b1/b2 are
    unused: training-mode BatchNorm cancels a per-channel constant exactly."""
    N, H, W = nhw
    M, C = x_flat.shape
    x_img = x_flat.reshape(N, H, W, C)

    h, _, (s1, q1) = conv2d_nhwc(x_img, p["w1"], None, stride=1, padding=1,
                                 pad_mode="reflect", compute_stats=True)
    sc1, sh1 = _bn_scale_shift(s1, q1, M, p["g1"], p["be1"])
    h = pallas_bn_act(h, sc1, sh1, relu=True)

    h2, _, (s2, q2) = conv2d_nhwc(h.reshape(N, H, W, C), p["w2"], None,
                                  stride=1, padding=1, pad_mode="reflect",
                                  compute_stats=True)
    sc2, sh2 = _bn_scale_shift(s2, q2, M, p["g2"], p["be2"])
    return pallas_bn_act(h2, sc2, sh2, relu=False, residual=x_flat)


# ----------------------------------------------------------------------------
# Generator
# ----------------------------------------------------------------------------
def init_params(key, num_res_blocks=NUM_RES_BLOCKS):
    keys = iter(jax.random.split(key, 12 + 4 * num_res_blocks))

    def rnd(shape, scale=0.05):
        return scale * jax.random.normal(next(keys), shape, jnp.float32)

    params = {
        "init_w": rnd((64, 3, 7, 7)), "init_b": rnd((64,)),
        "down": [
            {"w": rnd((128, 64, 3, 3)), "b": rnd((128,))},
            {"w": rnd((256, 128, 3, 3)), "b": rnd((256,))},
        ],
        "res": [],
        "up": [
            {"w": rnd((256, 128, 3, 3)), "b": rnd((128,))},   # ConvTranspose2d(256,128)
            {"w": rnd((128, 64, 3, 3)), "b": rnd((64,))},     # ConvTranspose2d(128,64)
        ],
        "last_w": rnd((3, 64, 7, 7)), "last_b": rnd((3,)),
    }
    for _ in range(num_res_blocks):
        params["res"].append({
            "w1": rnd((256, 256, 3, 3)), "b1": rnd((256,)),   # b1 cancelled by BN
            "g1": jnp.ones((256,), jnp.float32), "be1": jnp.zeros((256,), jnp.float32),
            "w2": rnd((256, 256, 3, 3)), "b2": rnd((256,)),   # b2 cancelled by BN
            "g2": jnp.ones((256,), jnp.float32), "be2": jnp.zeros((256,), jnp.float32),
        })
    return params


def generator_forward(x, params):
    """x: (N, 3, H, W) NCHW (PyTorch convention); returns NCHW."""
    x = jnp.transpose(x, (0, 2, 3, 1)).astype(jnp.float32)     # one-time -> NHWC
    # initial 7x7 conv, zero pad 3
    flat, (N, H, W) = conv2d_nhwc(x, params["init_w"], params["init_b"],
                                  stride=1, padding=3)
    x = flat.reshape(N, H, W, -1)
    # two stride-2 downsampling 3x3 convs
    for p in params["down"]:
        flat, (N, H, W) = conv2d_nhwc(x, p["w"], p["b"], stride=2, padding=1)
        x = flat.reshape(N, H, W, -1)
    # residual blocks (stay in flat NHWC layout; reshapes are free)
    flat = x.reshape(N * H * W, x.shape[-1])
    for p in params["res"]:
        flat = residual_block(flat, (N, H, W), p)
    x = flat.reshape(N, H, W, -1)
    # two stride-2 transposed convs (sub-pixel decomposition)
    for p in params["up"]:
        x = conv_transpose2d_nhwc(x, p["w"], p["b"])
        N, H, W = x.shape[0], x.shape[1], x.shape[2]
    # final 7x7 conv, zero pad 3
    flat, (N, Ho, Wo) = conv2d_nhwc(x, params["last_w"], params["last_b"],
                                    stride=1, padding=3)
    out = flat.reshape(N, Ho, Wo, -1)
    return jnp.transpose(out, (0, 3, 1, 2))                    # one-time -> NCHW


if __name__ == "__main__":
    key = jax.random.PRNGKey(0)
    k_params, k_x = jax.random.split(key)
    params = init_params(k_params)
    x = jax.random.normal(k_x, (2, 3, 16, 16), jnp.float32)    # NCHW like PyTorch

    fwd = jax.jit(generator_forward)
    out = jax.block_until_ready(fwd(x, params))

    assert out.shape == (2, 3, 16, 16), out.shape
    assert bool(jnp.all(jnp.isfinite(out)))
    print("KERNEL_OK")
</pallas_src>

<mosaic_0001>
module attributes {stable_mosaic.version = 11 : i64} {
  func.func @_mm_bias_kernel(%arg0: i32, %arg1: i32, %arg2: i32, %arg3: memref<256x256xbf16, #tpu.memory_space<vmem>>, %arg4: memref<256x128xbf16, #tpu.memory_space<vmem>>, %arg5: memref<1x128xf32, #tpu.memory_space<vmem>>, %arg6: memref<256x128xf32, #tpu.memory_space<vmem>>, %arg7: memref<256x128xf32, #tpu.memory_space<vmem>>) attributes {dimension_semantics = [#tpu.dimension_semantics<parallel>, #tpu.dimension_semantics<parallel>, #tpu.dimension_semantics<arbitrary>], iteration_bounds = array<i64: 2, 1, 1>, scalar_prefetch = 0 : i64, scratch_operands = 1 : i64, tpu.core_type = #tpu.core_type<tc>, window_params = [{transform_indices = @transform_0, window_bounds = array<i64: 256, 256>}, {transform_indices = @transform_1, window_bounds = array<i64: 256, 128>}, {transform_indices = @transform_2, window_bounds = array<i64: 1, 128>}, {transform_indices = @transform_3, window_bounds = array<i64: 256, 128>}]} {
    %c0_i32 = arith.constant 0 : i32
    %0 = arith.cmpi eq, %arg2, %c0_i32 : i32
    %1 = arith.extui %0 : i1 to i32
    %c0_i32_0 = arith.constant 0 : i32
    %2 = arith.cmpi ne, %1, %c0_i32_0 : i32
    scf.if %2 {
      %cst_10 = arith.constant 0.000000e+00 : f32
      %12 = vector.broadcast %cst_10 : f32 to vector<256x128xf32>
      %c0_11 = arith.constant 0 : index
      %c0_12 = arith.constant 0 : index
      %13 = vector.load %arg7[%c0_11, %c0_12] : memref<256x128xf32, #tpu.memory_space<vmem>>, vector<256x128xf32>
      tpu.vector_store %arg7[%c0_11, %c0_12], %12 {strides = array<i32>} : memref<256x128xf32, #tpu.memory_space<vmem>>, vector<256x128xf32>,
    } else {
    }
    %c0 = arith.constant 0 : index
    %c0_1 = arith.constant 0 : index
    %3 = vector.load %arg7[%c0, %c0_1] : memref<256x128xf32, #tpu.memory_space<vmem>>, vector<256x128xf32>
    %c0_2 = arith.constant 0 : index
    %c0_3 = arith.constant 0 : index
    %4 = vector.load %arg3[%c0_2, %c0_3] : memref<256x256xbf16, #tpu.memory_space<vmem>>, vector<256x256xbf16>
    %c0_4 = arith.constant 0 : index
    %c0_5 = arith.constant 0 : index
    %5 = vector.load %arg4[%c0_4, %c0_5] : memref<256x128xbf16, #tpu.memory_space<vmem>>, vector<256x128xbf16>
    %cst = arith.constant dense<0.000000e+00> : vector<256x128xf32>
    %6 = tpu.matmul %4, %5, %cst {dimension_numbers = #tpu.dot_dimension_numbers<[1], [0], [0], [1], [0, 0, 1, 1], [], []>} : vector<256x256xbf16>, vector<256x128xbf16>, vector<256x128xf32> -> vector<256x128xf32>
    %7 = arith.addf %3, %6 : vector<256x128xf32>
    %c0_6 = arith.constant 0 : index
    %c0_7 = arith.constant 0 : index
    %8 = vector.load %arg7[%c0_6, %c0_7] : memref<256x128xf32, #tpu.memory_space<vmem>>, vector<256x128xf32>
    tpu.vector_store %arg7[%c0_6, %c0_7], %7 {strides = array<i32>} : memref<256x128xf32, #tpu.memory_space<vmem>>, vector<256x128xf32>,
    %c0_i32_8 = arith.constant 0 : i32
    %9 = arith.cmpi eq, %arg2, %c0_i32_8 : i32
    %10 = arith.extui %9 : i1 to i32
    %c0_i32_9 = arith.constant 0 : i32
    %11 = arith.cmpi ne, %10, %c0_i32_9 : i32
    scf.if %11 {
      %c0_10 = arith.constant 0 : index
      %c0_11 = arith.constant 0 : index
      %12 = vector.load %arg7[%c0_10, %c0_11] : memref<256x128xf32, #tpu.memory_space<vmem>>, vector<256x128xf32>
      %c0_12 = arith.constant 0 : index
      %c0_13 = arith.constant 0 : index
      %13 = vector.load %arg5[%c0_12, %c0_13] : memref<1x128xf32, #tpu.memory_space<vmem>>, vector<1x128xf32>
      %14 = vector.broadcast %13 : vector<1x128xf32> to vector<256x128xf32>
      %15 = arith.addf %12, %14 : vector<256x128xf32>
      %c0_14 = arith.constant 0 : index
      %c0_15 = arith.constant 0 : index
      %16 = vector.load %arg6[%c0_14, %c0_15] : memref<256x128xf32, #tpu.memory_space<vmem>>, vector<256x128xf32>
      tpu.vector_store %arg6[%c0_14, %c0_15], %15 {strides = array<i32>} : memref<256x128xf32, #tpu.memory_space<vmem>>, vector<256x128xf32>,
    } else {
    }
    return
  }
  func.func @transform_0(%arg0: i32, %arg1: i32, %arg2: i32) -> (i32, i32) {
    %c0_i32 = arith.constant 0 : i32
    return %arg0, %arg2 : i32, i32
  }
  func.func @transform_1(%arg0: i32, %arg1: i32, %arg2: i32) -> (i32, i32) {
    %c0_i32 = arith.constant 0 : i32
    return %arg2, %arg1 : i32, i32
  }
  func.func @transform_2(%arg0: i32, %arg1: i32, %arg2: i32) -> (i32, i32) {
    %c0_i32 = arith.constant 0 : i32
    %c0_i32_0 = arith.constant 0 : i32
    return %c0_i32, %arg1 : i32, i32
  }
  func.func @transform_3(%arg0: i32, %arg1: i32, %arg2: i32) -> (i32, i32) {
    %c0_i32 = arith.constant 0 : i32
    return %arg0, %arg1 : i32, i32
  }
}

module attributes {stable_mosaic.version = 11 : i64} {
  func.func @_mm_bias_kernel(%arg0: i32, %arg1: i32, %arg2: i32, %arg3: memref<128x128xbf16, #tpu.memory_space<vmem>>, %arg4: memref<128x128xbf16, #tpu.memory_space<vmem>>, %arg5: memref<1x128xf32, #tpu.memory_space<vmem>>, %arg6: memref<128x128xf32, #tpu.memory_space<vmem>>, %arg7: memref<128x128xf32, #tpu.memory_space<vmem>>) attributes {dimension_semantics = [#tpu.dimension_semantics<parallel>, #tpu.dimension_semantics<parallel>, #tpu.dimension_semantics<arbitrary>], iteration_bounds = array<i64: 1, 1, 5>, scalar_prefetch = 0 : i64, scratch_operands = 1 : i64, tpu.core_type = #tpu.core_type<tc>, window_params = [{transform_indices = @transform_0, window_bounds = array<i64: 128, 128>}, {transform_indices = @transform_1, window_bounds = array<i64: 128, 128>}, {transform_indices = @transform_2, window_bounds = array<i64: 1, 128>}, {transform_indices = @transform_3, window_bounds = array<i64: 128, 128>}]} {
    %c0_i32 = arith.constant 0 : i32
    %0 = arith.cmpi eq, %arg2, %c0_i32 : i32
    %1 = arith.extui %0 : i1 to i32
    %c0_i32_0 = arith.constant 0 : i32
    %2 = arith.cmpi ne, %1, %c0_i32_0 : i32
    scf.if %2 {
      %cst_9 = arith.constant 0.000000e+00 : f32
      %12 = vector.broadcast %cst_9 : f32 to vector<128x128xf32>
      %c0_10 = arith.constant 0 : index
      %c0_11 = arith.constant 0 : index
      %13 = vector.load %arg7[%c0_10, %c0_11] : memref<128x128xf32, #tpu.memory_space<vmem>>, vector<128x128xf32>
      tpu.vector_store %arg7[%c0_10, %c0_11], %12 {strides = array<i32>} : memref<128x128xf32, #tpu.memory_space<vmem>>, vector<128x128xf32>,
    } else {
    }
    %c0 = arith.constant 0 : index
    %c0_1 = arith.constant 0 : index
    %3 = vector.load %arg7[%c0, %c0_1] : memref<128x128xf32, #tpu.memory_space<vmem>>, vector<128x128xf32>
    %c0_2 = arith.constant 0 : index
    %c0_3 = arith.constant 0 : index
    %4 = vector.load %arg3[%c0_2, %c0_3] : memref<128x128xbf16, #tpu.memory_space<vmem>>, vector<128x128xbf16>
    %c0_4 = arith.constant 0 : index
    %c0_5 = arith.constant 0 : index
    %5 = vector.load %arg4[%c0_4, %c0_5] : memref<128x128xbf16, #tpu.memory_space<vmem>>, vector<128x128xbf16>
    %cst = arith.constant dense<0.000000e+00> : vector<128x128xf32>
    %6 = tpu.matmul %4, %5, %cst {dimension_numbers = #tpu.dot_dimension_numbers<[1], [0], [0], [1], [0, 0, 1, 1], [], []>} : vector<128x128xbf16>, vector<128x128xbf16>, vector<128x128xf32> -> vector<128x128xf32>
    %7 = arith.addf %3, %6 : vector<128x128xf32>
    %c0_6 = arith.constant 0 : index
    %c0_7 = arith.constant 0 : index
    %8 = vector.load %arg7[%c0_6, %c0_7] : memref<128x128xf32, #tpu.memory_space<vmem>>, vector<128x128xf32>
    tpu.vector_store %arg7[%c0_6, %c0_7], %7 {strides = array<i32>} : memref<128x128xf32, #tpu.memory_space<vmem>>, vector<128x128xf32>,
    %c4_i32 = arith.constant 4 : i32
    %9 = arith.cmpi eq, %arg2, %c4_i32 : i32
    %10 = arith.extui %9 : i1 to i32
    %c0_i32_8 = arith.constant 0 : i32
    %11 = arith.cmpi ne, %10, %c0_i32_8 : i32
    scf.if %11 {
      %c0_9 = arith.constant 0 : index
      %c0_10 = arith.constant 0 : index
      %12 = vector.load %arg7[%c0_9, %c0_10] : memref<128x128xf32, #tpu.memory_space<vmem>>, vector<128x128xf32>
      %c0_11 = arith.constant 0 : index
      %c0_12 = arith.constant 0 : index
      %13 = vector.load %arg5[%c0_11, %c0_12] : memref<1x128xf32, #tpu.memory_space<vmem>>, vector<1x128xf32>
      %14 = vector.broadcast %13 : vector<1x128xf32> to vector<128x128xf32>
      %15 = arith.addf %12, %14 : vector<128x128xf32>
      %c0_13 = arith.constant 0 : index
      %c0_14 = arith.constant 0 : index
      %16 = vector.load %arg6[%c0_13, %c0_14] : memref<128x128xf32, #tpu.memory_space<vmem>>, vector<128x128xf32>
      tpu.vector_store %arg6[%c0_13, %c0_14], %15 {strides = array<i32>} : memref<128x128xf32, #tpu.memory_space<vmem>>, vector<128x128xf32>,
    } else {
    }
    return
  }
  func.func @transform_0(%arg0: i32, %arg1: i32, %arg2: i32) -> (i32, i32) {
    %c0_i32 = arith.constant 0 : i32
    return %arg0, %arg2 : i32, i32
  }
  func.func @transform_1(%arg0: i32, %arg1: i32, %arg2: i32) -> (i32, i32) {
    %c0_i32 = arith.constant 0 : i32
    return %arg2, %arg1 : i32, i32
  }
  func.func @transform_2(%arg0: i32, %arg1: i32, %arg2: i32) -> (i32, i32) {
    %c0_i32 = arith.constant 0 : i32
    %c0_i32_0 = arith.constant 0 : i32
    return %c0_i32, %arg1 : i32, i32
  }
  func.func @transform_3(%arg0: i32, %arg1: i32, %arg2: i32) -> (i32, i32) {
    %c0_i32 = arith.constant 0 : i32
    return %arg0, %arg1 : i32, i32
  }
}

module attributes {stable_mosaic.version = 11 : i64} {
  func.func @_mm_bias_kernel(%arg0: i32, %arg1: i32, %arg2: i32, %arg3: memref<32x384xbf16, #tpu.memory_space<vmem>>, %arg4: memref<384x256xbf16, #tpu.memory_space<vmem>>, %arg5: memref<1x256xf32, #tpu.memory_space<vmem>>, %arg6: memref<32x256xf32, #tpu.memory_space<vmem>>, %arg7: memref<32x256xf32, #tpu.memory_space<vmem>>) attributes {dimension_semantics = [#tpu.dimension_semantics<parallel>, #tpu.dimension_semantics<parallel>, #tpu.dimension_semantics<arbitrary>], iteration_bounds = array<i64: 1, 1, 3>, scalar_prefetch = 0 : i64, scratch_operands = 1 : i64, tpu.core_type = #tpu.core_type<tc>, window_params = [{transform_indices = @transform_0, window_bounds = array<i64: 32, 384>}, {transform_indices = @transform_1, window_bounds = array<i64: 384, 256>}, {transform_indices = @transform_2, window_bounds = array<i64: 1, 256>}, {transform_indices = @transform_3, window_bounds = array<i64: 32, 256>}]} {
    %c0_i32 = arith.constant 0 : i32
    %0 = arith.cmpi eq, %arg2, %c0_i32 : i32
    %1 = arith.extui %0 : i1 to i32
    %c0_i32_0 = arith.constant 0 : i32
    %2 = arith.cmpi ne, %1, %c0_i32_0 : i32
    scf.if %2 {
      %cst_9 = arith.constant 0.000000e+00 : f32
      %12 = vector.broadcast %cst_9 : f32 to vector<32x256xf32>
      %c0_10 = arith.constant 0 : index
      %c0_11 = arith.constant 0 : index
      %13 = vector.load %arg7[%c0_10, %c0_11] : memref<32x256xf32, #tpu.memory_space<vmem>>, vector<32x256xf32>
      tpu.vector_store %arg7[%c0_10, %c0_11], %12 {strides = array<i32>} : memref<32x256xf32, #tpu.memory_space<vmem>>, vector<32x256xf32>,
    } else {
    }
    %c0 = arith.constant 0 : index
    %c0_1 = arith.constant 0 : index
    %3 = vector.load %arg7[%c0, %c0_1] : memref<32x256xf32, #tpu.memory_space<vmem>>, vector<32x256xf32>
    %c0_2 = arith.constant 0 : index
    %c0_3 = arith.constant 0 : index
    %4 = vector.load %arg3[%c0_2, %c0_3] : memref<32x384xbf16, #tpu.memory_space<vmem>>, vector<32x384xbf16>
    %c0_4 = arith.constant 0 : index
    %c0_5 = arith.constant 0 : index
    %5 = vector.load %arg4[%c0_4, %c0_5] : memref<384x256xbf16, #tpu.memory_space<vmem>>, vector<384x256xbf16>
    %cst = arith.constant dense<0.000000e+00> : vector<32x256xf32>
    %6 = tpu.matmul %4, %5, %cst {dimension_numbers = #tpu.dot_dimension_numbers<[1], [0], [0], [1], [0, 0, 1, 1], [], []>} : vector<32x384xbf16>, vector<384x256xbf16>, vector<32x256xf32> -> vector<32x256xf32>
    %7 = arith.addf %3, %6 : vector<32x256xf32>
    %c0_6 = arith.constant 0 : index
    %c0_7 = arith.constant 0 : index
    %8 = vector.load %arg7[%c0_6, %c0_7] : memref<32x256xf32, #tpu.memory_space<vmem>>, vector<32x256xf32>
    tpu.vector_store %arg7[%c0_6, %c0_7], %7 {strides = array<i32>} : memref<32x256xf32, #tpu.memory_space<vmem>>, vector<32x256xf32>,
    %c2_i32 = arith.constant 2 : i32
    %9 = arith.cmpi eq, %arg2, %c2_i32 : i32
    %10 = arith.extui %9 : i1 to i32
    %c0_i32_8 = arith.constant 0 : i32
    %11 = arith.cmpi ne, %10, %c0_i32_8 : i32
    scf.if %11 {
      %c0_9 = arith.constant 0 : index
      %c0_10 = arith.constant 0 : index
      %12 = vector.load %arg7[%c0_9, %c0_10] : memref<32x256xf32, #tpu.memory_space<vmem>>, vector<32x256xf32>
      %c0_11 = arith.constant 0 : index
      %c0_12 = arith.constant 0 : index
      %13 = vector.load %arg5[%c0_11, %c0_12] : memref<1x256xf32, #tpu.memory_space<vmem>>, vector<1x256xf32>
      %14 = vector.broadcast %13 : vector<1x256xf32> to vector<32x256xf32>
      %15 = arith.addf %12, %14 : vector<32x256xf32>
      %c0_13 = arith.constant 0 : index
      %c0_14 = arith.constant 0 : index
      %16 = vector.load %arg6[%c0_13, %c0_14] : memref<32x256xf32, #tpu.memory_space<vmem>>, vector<32x256xf32>
      tpu.vector_store %arg6[%c0_13, %c0_14], %15 {strides = array<i32>} : memref<32x256xf32, #tpu.memory_space<vmem>>, vector<32x256xf32>,
    } else {
    }
    return
  }
  func.func @transform_0(%arg0: i32, %arg1: i32, %arg2: i32) -> (i32, i32) {
    %c0_i32 = arith.constant 0 : i32
    return %arg0, %arg2 : i32, i32
  }
  func.func @transform_1(%arg0: i32, %arg1: i32, %arg2: i32) -> (i32, i32) {
    %c0_i32 = arith.constant 0 : i32
    return %arg2, %arg1 : i32, i32
  }
  func.func @transform_2(%arg0: i32, %arg1: i32, %arg2: i32) -> (i32, i32) {
    %c0_i32 = arith.constant 0 : i32
    %c0_i32_0 = arith.constant 0 : i32
    return %c0_i32, %arg1 : i32, i32
  }
  func.func @transform_3(%arg0: i32, %arg1: i32, %arg2: i32) -> (i32, i32) {
    %c0_i32 = arith.constant 0 : i32
    return %arg0, %arg1 : i32, i32
  }
}

module attributes {stable_mosaic.version = 11 : i64} {
  func.func @_mm_stats_kernel(%arg0: i32, %arg1: i32, %arg2: i32, %arg3: memref<32x384xbf16, #tpu.memory_space<vmem>>, %arg4: memref<384x256xbf16, #tpu.memory_space<vmem>>, %arg5: memref<32x256xf32, #tpu.memory_space<vmem>>, %arg6: memref<8x256xf32, #tpu.memory_space<vmem>>, %arg7: memref<8x256xf32, #tpu.memory_space<vmem>>, %arg8: memref<32x256xf32, #tpu.memory_space<vmem>>) attributes {dimension_semantics = [#tpu.dimension_semantics<parallel>, #tpu.dimension_semantics<parallel>, #tpu.dimension_semantics<arbitrary>], iteration_bounds = array<i64: 1, 1, 6>, scalar_prefetch = 0 : i64, scratch_operands = 1 : i64, tpu.core_type = #tpu.core_type<tc>, window_params = [{transform_indices = @transform_0, window_bounds = array<i64: 32, 384>}, {transform_indices = @transform_1, window_bounds = array<i64: 384, 256>}, {transform_indices = @transform_2, window_bounds = array<i64: 32, 256>}, {transform_indices = @transform_3, window_bounds = array<i64: 8, 256>}, {transform_indices = @transform_4, window_bounds = array<i64: 8, 256>}]} {
    %c0_i32 = arith.constant 0 : i32
    %0 = arith.cmpi eq, %arg2, %c0_i32 : i32
    %1 = arith.extui %0 : i1 to i32
    %c0_i32_0 = arith.constant 0 : i32
    %2 = arith.cmpi ne, %1, %c0_i32_0 : i32
    scf.if %2 {
      %cst_9 = arith.constant 0.000000e+00 : f32
      %12 = vector.broadcast %cst_9 : f32 to vector<32x256xf32>
      %c0_10 = arith.constant 0 : index
      %c0_11 = arith.constant 0 : index
      %13 = vector.load %arg8[%c0_10, %c0_11] : memref<32x256xf32, #tpu.memory_space<vmem>>, vector<32x256xf32>
      tpu.vector_store %arg8[%c0_10, %c0_11], %12 {strides = array<i32>} : memref<32x256xf32, #tpu.memory_space<vmem>>, vector<32x256xf32>,
    } else {
    }
    %c0 = arith.constant 0 : index
    %c0_1 = arith.constant 0 : index
    %3 = vector.load %arg8[%c0, %c0_1] : memref<32x256xf32, #tpu.memory_space<vmem>>, vector<32x256xf32>
    %c0_2 = arith.constant 0 : index
    %c0_3 = arith.constant 0 : index
    %4 = vector.load %arg3[%c0_2, %c0_3] : memref<32x384xbf16, #tpu.memory_space<vmem>>, vector<32x384xbf16>
    %c0_4 = arith.constant 0 : index
    %c0_5 = arith.constant 0 : index
    %5 = vector.load %arg4[%c0_4, %c0_5] : memref<384x256xbf16, #tpu.memory_space<vmem>>, vector<384x256xbf16>
    %cst = arith.constant dense<0.000000e+00> : vector<32x256xf32>
    %6 = tpu.matmul %4, %5, %cst {dimension_numbers = #tpu.dot_dimension_numbers<[1], [0], [0], [1], [0, 0, 1, 1], [], []>} : vector<32x384xbf16>, vector<384x256xbf16>, vector<32x256xf32> -> vector<32x256xf32>
    %7 = arith.addf %3, %6 : vector<32x256xf32>
    %c0_6 = arith.constant 0 : index
    %c0_7 = arith.constant 0 : index
    %8 = vector.load %arg8[%c0_6, %c0_7] : memref<32x256xf32, #tpu.memory_space<vmem>>, vector<32x256xf32>
    tpu.vector_store %arg8[%c0_6, %c0_7], %7 {strides = array<i32>} : memref<32x256xf32, #tpu.memory_space<vmem>>, vector<32x256xf32>,
    %c5_i32 = arith.constant 5 : i32
    %9 = arith.cmpi eq, %arg2, %c5_i32 : i32
    %10 = arith.extui %9 : i1 to i32
    %c0_i32_8 = arith.constant 0 : i32
    %11 = arith.cmpi ne, %10, %c0_i32_8 : i32
    scf.if %11 {
      %c0_9 = arith.constant 0 : index
      %c0_10 = arith.constant 0 : index
      %12 = vector.load %arg8[%c0_9, %c0_10] : memref<32x256xf32, #tpu.memory_space<vmem>>, vector<32x256xf32>
      %c0_11 = arith.constant 0 : index
      %c0_12 = arith.constant 0 : index
      %13 = vector.load %arg5[%c0_11, %c0_12] : memref<32x256xf32, #tpu.memory_space<vmem>>, vector<32x256xf32>
      tpu.vector_store %arg5[%c0_11, %c0_12], %12 {strides = array<i32>} : memref<32x256xf32, #tpu.memory_space<vmem>>, vector<32x256xf32>,
      %cst_13 = arith.constant dense<0.000000e+00> : vector<256xf32>
      %14 = vector.multi_reduction <add>, %12, %cst_13 [0] : vector<32x256xf32> to vector<256xf32>
      %15 = vector.shape_cast %14 : vector<256xf32> to vector<1x256xf32>
      %16 = arith.mulf %12, %12 : vector<32x256xf32>
      %cst_14 = arith.constant dense<0.000000e+00> : vector<256xf32>
      %17 = vector.multi_reduction <add>, %16, %cst_14 [0] : vector<32x256xf32> to vector<256xf32>
      %18 = vector.shape_cast %17 : vector<256xf32> to vector<1x256xf32>
      %19 = vector.shape_cast %15 : vector<1x256xf32> to vector<1x256xf32>
      %20 = vector.broadcast %19 : vector<1x256xf32> to vector<8x256xf32>
      %c0_15 = arith.constant 0 : index
      %c0_16 = arith.constant 0 : index
      %21 = vector.load %arg6[%c0_15, %c0_16] : memref<8x256xf32, #tpu.memory_space<vmem>>, vector<8x256xf32>
      tpu.vector_store %arg6[%c0_15, %c0_16], %20 {strides = array<i32>} : memref<8x256xf32, #tpu.memory_space<vmem>>, vector<8x256xf32>,
      %22 = vector.shape_cast %18 : vector<1x256xf32> to vector<1x256xf32>
      %23 = vector.broadcast %22 : vector<1x256xf32> to vector<8x256xf32>
      %c0_17 = arith.constant 0 : index
      %c0_18 = arith.constant 0 : index
      %24 = vector.load %arg7[%c0_17, %c0_18] : memref<8x256xf32, #tpu.memory_space<vmem>>, vector<8x256xf32>
      tpu.vector_store %arg7[%c0_17, %c0_18], %23 {strides = array<i32>} : memref<8x256xf32, #tpu.memory_space<vmem>>, vector<8x256xf32>,
    } else {
    }
    return
  }
  func.func @transform_0(%arg0: i32, %arg1: i32, %arg2: i32) -> (i32, i32) {
    %c0_i32 = arith.constant 0 : i32
    return %arg0, %arg2 : i32, i32
  }
  func.func @transform_1(%arg0: i32, %arg1: i32, %arg2: i32) -> (i32, i32) {
    %c0_i32 = arith.constant 0 : i32
    return %arg2, %arg1 : i32, i32
  }
  func.func @transform_2(%arg0: i32, %arg1: i32, %arg2: i32) -> (i32, i32) {
    %c0_i32 = arith.constant 0 : i32
    return %arg0, %arg1 : i32, i32
  }
  func.func @transform_3(%arg0: i32, %arg1: i32, %arg2: i32) -> (i32, i32) {
    %c0_i32 = arith.constant 0 : i32
    return %arg0, %arg1 : i32, i32
  }
  func.func @transform_4(%arg0: i32, %arg1: i32, %arg2: i32) -> (i32, i32) {
    %c0_i32 = arith.constant 0 : i32
    return %arg0, %arg1 : i32, i32
  }
}

module attributes {stable_mosaic.version = 11 : i64} {
  func.func @_bn_act_kernel(%arg0: i32, %arg1: memref<32x256xf32, #tpu.memory_space<vmem>>, %arg2: memref<1x256xf32, #tpu.memory_space<vmem>>, %arg3: memref<1x256xf32, #tpu.memory_space<vmem>>, %arg4: memref<32x256xf32, #tpu.memory_space<vmem>>) attributes {dimension_semantics = [#tpu.dimension_semantics<parallel>], iteration_bounds = array<i64: 1>, scalar_prefetch = 0 : i64, scratch_operands = 0 : i64, tpu.core_type = #tpu.core_type<tc>, window_params = [{transform_indices = @transform_0, window_bounds = array<i64: 32, 256>}, {pipeline_mode = #tpu.pipeline_mode<synchronous>, transform_indices = @transform_1, window_bounds = array<i64: 1, 256>}, {pipeline_mode = #tpu.pipeline_mode<synchronous>, transform_indices = @transform_2, window_bounds = array<i64: 1, 256>}, {transform_indices = @transform_3, window_bounds = array<i64: 32, 256>}]} {
    %c0 = arith.constant 0 : index
    %c0_0 = arith.constant 0 : index
    %0 = vector.load %arg1[%c0, %c0_0] : memref<32x256xf32, #tpu.memory_space<vmem>>, vector<32x256xf32>
    %c0_1 = arith.constant 0 : index
    %c0_2 = arith.constant 0 : index
    %1 = vector.load %arg2[%c0_1, %c0_2] : memref<1x256xf32, #tpu.memory_space<vmem>>, vector<1x256xf32>
    %2 = vector.broadcast %1 : vector<1x256xf32> to vector<32x256xf32>
    %3 = arith.mulf %0, %2 : vector<32x256xf32>
    %c0_3 = arith.constant 0 : index
    %c0_4 = arith.constant 0 : index
    %4 = vector.load %arg3[%c0_3, %c0_4] : memref<1x256xf32, #tpu.memory_space<vmem>>, vector<1x256xf32>
    %5 = vector.broadcast %4 : vector<1x256xf32> to vector<32x256xf32>
    %6 = arith.addf %3, %5 : vector<32x256xf32>
    %cst = arith.constant 0.000000e+00 : f32
    %7 = vector.broadcast %cst : f32 to vector<32x256xf32>
    %8 = arith.maximumf %6, %7 : vector<32x256xf32>
    %c0_5 = arith.constant 0 : index
    %c0_6 = arith.constant 0 : index
    %9 = vector.load %arg4[%c0_5, %c0_6] : memref<32x256xf32, #tpu.memory_space<vmem>>, vector<32x256xf32>
    tpu.vector_store %arg4[%c0_5, %c0_6], %8 {strides = array<i32>} : memref<32x256xf32, #tpu.memory_space<vmem>>, vector<32x256xf32>,
    return
  }
  func.func @transform_0(%arg0: i32) -> (i32, i32) {
    %c0_i32 = arith.constant 0 : i32
    %c0_i32_0 = arith.constant 0 : i32
    return %arg0, %c0_i32 : i32, i32
  }
  func.func @transform_1(%arg0: i32) -> (i32, i32) {
    %c0_i32 = arith.constant 0 : i32
    %c0_i32_0 = arith.constant 0 : i32
    %c0_i32_1 = arith.constant 0 : i32
    return %c0_i32, %c0_i32_0 : i32, i32
  }
  func.func @transform_2(%arg0: i32) -> (i32, i32) {
    %c0_i32 = arith.constant 0 : i32
    %c0_i32_0 = arith.constant 0 : i32
    %c0_i32_1 = arith.constant 0 : i32
    return %c0_i32, %c0_i32_0 : i32, i32
  }
  func.func @transform_3(%arg0: i32) -> (i32, i32) {
    %c0_i32 = arith.constant 0 : i32
    %c0_i32_0 = arith.constant 0 : i32
    return %arg0, %c0_i32 : i32, i32
  }
}

module attributes {stable_mosaic.version = 11 : i64} {
  func.func @_bn_act_res_kernel(%arg0: i32, %arg1: memref<32x256xf32, #tpu.memory_space<vmem>>, %arg2: memref<1x256xf32, #tpu.memory_space<vmem>>, %arg3: memref<1x256xf32, #tpu.memory_space<vmem>>, %arg4: memref<32x256xf32, #tpu.memory_space<vmem>>, %arg5: memref<32x256xf32, #tpu.memory_space<vmem>>) attributes {dimension_semantics = [#tpu.dimension_semantics<parallel>], iteration_bounds = array<i64: 1>, scalar_prefetch = 0 : i64, scratch_operands = 0 : i64, tpu.core_type = #tpu.core_type<tc>, window_params = [{transform_indices = @transform_0, window_bounds = array<i64: 32, 256>}, {pipeline_mode = #tpu.pipeline_mode<synchronous>, transform_indices = @transform_1, window_bounds = array<i64: 1, 256>}, {pipeline_mode = #tpu.pipeline_mode<synchronous>, transform_indices = @transform_2, window_bounds = array<i64: 1, 256>}, {transform_indices = @transform_3, window_bounds = array<i64: 32, 256>}, {transform_indices = @transform_4, window_bounds = array<i64: 32, 256>}]} {
    %c0 = arith.constant 0 : index
    %c0_0 = arith.constant 0 : index
    %0 = vector.load %arg1[%c0, %c0_0] : memref<32x256xf32, #tpu.memory_space<vmem>>, vector<32x256xf32>
    %c0_1 = arith.constant 0 : index
    %c0_2 = arith.constant 0 : index
    %1 = vector.load %arg2[%c0_1, %c0_2] : memref<1x256xf32, #tpu.memory_space<vmem>>, vector<1x256xf32>
    %2 = vector.broadcast %1 : vector<1x256xf32> to vector<32x256xf32>
    %3 = arith.mulf %0, %2 : vector<32x256xf32>
    %c0_3 = arith.constant 0 : index
    %c0_4 = arith.constant 0 : index
    %4 = vector.load %arg3[%c0_3, %c0_4] : memref<1x256xf32, #tpu.memory_space<vmem>>, vector<1x256xf32>
    %5 = vector.broadcast %4 : vector<1x256xf32> to vector<32x256xf32>
    %6 = arith.addf %3, %5 : vector<32x256xf32>
    %c0_5 = arith.constant 0 : index
    %c0_6 = arith.constant 0 : index
    %7 = vector.load %arg4[%c0_5, %c0_6] : memref<32x256xf32, #tpu.memory_space<vmem>>, vector<32x256xf32>
    %8 = arith.addf %6, %7 : vector<32x256xf32>
    %c0_7 = arith.constant 0 : index
    %c0_8 = arith.constant 0 : index
    %9 = vector.load %arg5[%c0_7, %c0_8] : memref<32x256xf32, #tpu.memory_space<vmem>>, vector<32x256xf32>
    tpu.vector_store %arg5[%c0_7, %c0_8], %8 {strides = array<i32>} : memref<32x256xf32, #tpu.memory_space<vmem>>, vector<32x256xf32>,
    return
  }
  func.func @transform_0(%arg0: i32) -> (i32, i32) {
    %c0_i32 = arith.constant 0 : i32
    %c0_i32_0 = arith.constant 0 : i32
    return %arg0, %c0_i32 : i32, i32
  }
  func.func @transform_1(%arg0: i32) -> (i32, i32) {
    %c0_i32 = arith.constant 0 : i32
    %c0_i32_0 = arith.constant 0 : i32
    %c0_i32_1 = arith.constant 0 : i32
    return %c0_i32, %c0_i32_0 : i32, i32
  }
  func.func @transform_2(%arg0: i32) -> (i32, i32) {
    %c0_i32 = arith.constant 0 : i32
    %c0_i32_0 = arith.constant 0 : i32
    %c0_i32_1 = arith.constant 0 : i32
    return %c0_i32, %c0_i32_0 : i32, i32
  }
  func.func @transform_3(%arg0: i32) -> (i32, i32) {
    %c0_i32 = arith.constant 0 : i32
    %c0_i32_0 = arith.constant 0 : i32
    return %arg0, %c0_i32 : i32, i32
  }
  func.func @transform_4(%arg0: i32) -> (i32, i32) {
    %c0_i32 = arith.constant 0 : i32
    %c0_i32_0 = arith.constant 0 : i32
    return %arg0, %c0_i32 : i32, i32
  }
}

module attributes {stable_mosaic.version = 11 : i64} {
  func.func @_mm_bias_kernel(%arg0: i32, %arg1: i32, %arg2: i32, %arg3: memref<32x512xbf16, #tpu.memory_space<vmem>>, %arg4: memref<512x128xbf16, #tpu.memory_space<vmem>>, %arg5: memref<1x128xf32, #tpu.memory_space<vmem>>, %arg6: memref<32x128xf32, #tpu.memory_space<vmem>>, %arg7: memref<32x128xf32, #tpu.memory_space<vmem>>) attributes {dimension_semantics = [#tpu.dimension_semantics<parallel>, #tpu.dimension_semantics<parallel>, #tpu.dimension_semantics<arbitrary>], iteration_bounds = array<i64: 1, 1, 1>, scalar_prefetch = 0 : i64, scratch_operands = 1 : i64, tpu.core_type = #tpu.core_type<tc>, window_params = [{transform_indices = @transform_0, window_bounds = array<i64: 32, 512>}, {transform_indices = @transform_1, window_bounds = array<i64: 512, 128>}, {transform_indices = @transform_2, window_bounds = array<i64: 1, 128>}, {transform_indices = @transform_3, window_bounds = array<i64: 32, 128>}]} {
    %c0_i32 = arith.constant 0 : i32
    %0 = arith.cmpi eq, %arg2, %c0_i32 : i32
    %1 = arith.extui %0 : i1 to i32
    %c0_i32_0 = arith.constant 0 : i32
    %2 = arith.cmpi ne, %1, %c0_i32_0 : i32
    scf.if %2 {
      %cst_10 = arith.constant 0.000000e+00 : f32
      %12 = vector.broadcast %cst_10 : f32 to vector<32x128xf32>
      %c0_11 = arith.constant 0 : index
      %c0_12 = arith.constant 0 : index
      %13 = vector.load %arg7[%c0_11, %c0_12] : memref<32x128xf32, #tpu.memory_space<vmem>>, vector<32x128xf32>
      tpu.vector_store %arg7[%c0_11, %c0_12], %12 {strides = array<i32>} : memref<32x128xf32, #tpu.memory_space<vmem>>, vector<32x128xf32>,
    } else {
    }
    %c0 = arith.constant 0 : index
    %c0_1 = arith.constant 0 : index
    %3 = vector.load %arg7[%c0, %c0_1] : memref<32x128xf32, #tpu.memory_space<vmem>>, vector<32x128xf32>
    %c0_2 = arith.constant 0 : index
    %c0_3 = arith.constant 0 : index
    %4 = vector.load %arg3[%c0_2, %c0_3] : memref<32x512xbf16, #tpu.memory_space<vmem>>, vector<32x512xbf16>
    %c0_4 = arith.constant 0 : index
    %c0_5 = arith.constant 0 : index
    %5 = vector.load %arg4[%c0_4, %c0_5] : memref<512x128xbf16, #tpu.memory_space<vmem>>, vector<512x128xbf16>
    %cst = arith.constant dense<0.000000e+00> : vector<32x128xf32>
    %6 = tpu.matmul %4, %5, %cst {dimension_numbers = #tpu.dot_dimension_numbers<[1], [0], [0], [1], [0, 0, 1, 1], [], []>} : vector<32x512xbf16>, vector<512x128xbf16>, vector<32x128xf32> -> vector<32x128xf32>
    %7 = arith.addf %3, %6 : vector<32x128xf32>
    %c0_6 = arith.constant 0 : index
    %c0_7 = arith.constant 0 : index
    %8 = vector.load %arg7[%c0_6, %c0_7] : memref<32x128xf32, #tpu.memory_space<vmem>>, vector<32x128xf32>
    tpu.vector_store %arg7[%c0_6, %c0_7], %7 {strides = array<i32>} : memref<32x128xf32, #tpu.memory_space<vmem>>, vector<32x128xf32>,
    %c0_i32_8 = arith.constant 0 : i32
    %9 = arith.cmpi eq, %arg2, %c0_i32_8 : i32
    %10 = arith.extui %9 : i1 to i32
    %c0_i32_9 = arith.constant 0 : i32
    %11 = arith.cmpi ne, %10, %c0_i32_9 : i32
    scf.if %11 {
      %c0_10 = arith.constant 0 : index
      %c0_11 = arith.constant 0 : index
      %12 = vector.load %arg7[%c0_10, %c0_11] : memref<32x128xf32, #tpu.memory_space<vmem>>, vector<32x128xf32>
      %c0_12 = arith.constant 0 : index
      %c0_13 = arith.constant 0 : index
      %13 = vector.load %arg5[%c0_12, %c0_13] : memref<1x128xf32, #tpu.memory_space<vmem>>, vector<1x128xf32>
      %14 = vector.broadcast %13 : vector<1x128xf32> to vector<32x128xf32>
      %15 = arith.addf %12, %14 : vector<32x128xf32>
      %c0_14 = arith.constant 0 : index
      %c0_15 = arith.constant 0 : index
      %16 = vector.load %arg6[%c0_14, %c0_15] : memref<32x128xf32, #tpu.memory_space<vmem>>, vector<32x128xf32>
      tpu.vector_store %arg6[%c0_14, %c0_15], %15 {strides = array<i32>} : memref<32x128xf32, #tpu.memory_space<vmem>>, vector<32x128xf32>,
    } else {
    }
    return
  }
  func.func @transform_0(%arg0: i32, %arg1: i32, %arg2: i32) -> (i32, i32) {
    %c0_i32 = arith.constant 0 : i32
    return %arg0, %arg2 : i32, i32
  }
  func.func @transform_1(%arg0: i32, %arg1: i32, %arg2: i32) -> (i32, i32) {
    %c0_i32 = arith.constant 0 : i32
    return %arg2, %arg1 : i32, i32
  }
  func.func @transform_2(%arg0: i32, %arg1: i32, %arg2: i32) -> (i32, i32) {
    %c0_i32 = arith.constant 0 : i32
    %c0_i32_0 = arith.constant 0 : i32
    return %c0_i32, %arg1 : i32, i32
  }
  func.func @transform_3(%arg0: i32, %arg1: i32, %arg2: i32) -> (i32, i32) {
    %c0_i32 = arith.constant 0 : i32
    return %arg0, %arg1 : i32, i32
  }
}

module attributes {stable_mosaic.version = 11 : i64} {
  func.func @_mm_bias_kernel(%arg0: i32, %arg1: i32, %arg2: i32, %arg3: memref<32x256xbf16, #tpu.memory_space<vmem>>, %arg4: memref<256x128xbf16, #tpu.memory_space<vmem>>, %arg5: memref<1x128xf32, #tpu.memory_space<vmem>>, %arg6: memref<32x128xf32, #tpu.memory_space<vmem>>, %arg7: memref<32x128xf32, #tpu.memory_space<vmem>>) attributes {dimension_semantics = [#tpu.dimension_semantics<parallel>, #tpu.dimension_semantics<parallel>, #tpu.dimension_semantics<arbitrary>], iteration_bounds = array<i64: 1, 1, 1>, scalar_prefetch = 0 : i64, scratch_operands = 1 : i64, tpu.core_type = #tpu.core_type<tc>, window_params = [{transform_indices = @transform_0, window_bounds = array<i64: 32, 256>}, {transform_indices = @transform_1, window_bounds = array<i64: 256, 128>}, {transform_indices = @transform_2, window_bounds = array<i64: 1, 128>}, {transform_indices = @transform_3, window_bounds = array<i64: 32, 128>}]} {
    %c0_i32 = arith.constant 0 : i32
    %0 = arith.cmpi eq, %arg2, %c0_i32 : i32
    %1 = arith.extui %0 : i1 to i32
    %c0_i32_0 = arith.constant 0 : i32
    %2 = arith.cmpi ne, %1, %c0_i32_0 : i32
    scf.if %2 {
      %cst_10 = arith.constant 0.000000e+00 : f32
      %12 = vector.broadcast %cst_10 : f32 to vector<32x128xf32>
      %c0_11 = arith.constant 0 : index
      %c0_12 = arith.constant 0 : index
      %13 = vector.load %arg7[%c0_11, %c0_12] : memref<32x128xf32, #tpu.memory_space<vmem>>, vector<32x128xf32>
      tpu.vector_store %arg7[%c0_11, %c0_12], %12 {strides = array<i32>} : memref<32x128xf32, #tpu.memory_space<vmem>>, vector<32x128xf32>,
    } else {
    }
    %c0 = arith.constant 0 : index
    %c0_1 = arith.constant 0 : index
    %3 = vector.load %arg7[%c0, %c0_1] : memref<32x128xf32, #tpu.memory_space<vmem>>, vector<32x128xf32>
    %c0_2 = arith.constant 0 : index
    %c0_3 = arith.constant 0 : index
    %4 = vector.load %arg3[%c0_2, %c0_3] : memref<32x256xbf16, #tpu.memory_space<vmem>>, vector<32x256xbf16>
    %c0_4 = arith.constant 0 : index
    %c0_5 = arith.constant 0 : index
    %5 = vector.load %arg4[%c0_4, %c0_5] : memref<256x128xbf16, #tpu.memory_space<vmem>>, vector<256x128xbf16>
    %cst = arith.constant dense<0.000000e+00> : vector<32x128xf32>
    %6 = tpu.matmul %4, %5, %cst {dimension_numbers = #tpu.dot_dimension_numbers<[1], [0], [0], [1], [0, 0, 1, 1], [], []>} : vector<32x256xbf16>, vector<256x128xbf16>, vector<32x128xf32> -> vector<32x128xf32>
    %7 = arith.addf %3, %6 : vector<32x128xf32>
    %c0_6 = arith.constant 0 : index
    %c0_7 = arith.constant 0 : index
    %8 = vector.load %arg7[%c0_6, %c0_7] : memref<32x128xf32, #tpu.memory_space<vmem>>, vector<32x128xf32>
    tpu.vector_store %arg7[%c0_6, %c0_7], %7 {strides = array<i32>} : memref<32x128xf32, #tpu.memory_space<vmem>>, vector<32x128xf32>,
    %c0_i32_8 = arith.constant 0 : i32
    %9 = arith.cmpi eq, %arg2, %c0_i32_8 : i32
    %10 = arith.extui %9 : i1 to i32
    %c0_i32_9 = arith.constant 0 : i32
    %11 = arith.cmpi ne, %10, %c0_i32_9 : i32
    scf.if %11 {
      %c0_10 = arith.constant 0 : index
      %c0_11 = arith.constant 0 : index
      %12 = vector.load %arg7[%c0_10, %c0_11] : memref<32x128xf32, #tpu.memory_space<vmem>>, vector<32x128xf32>
      %c0_12 = arith.constant 0 : index
      %c0_13 = arith.constant 0 : index
      %13 = vector.load %arg5[%c0_12, %c0_13] : memref<1x128xf32, #tpu.memory_space<vmem>>, vector<1x128xf32>
      %14 = vector.broadcast %13 : vector<1x128xf32> to vector<32x128xf32>
      %15 = arith.addf %12, %14 : vector<32x128xf32>
      %c0_14 = arith.constant 0 : index
      %c0_15 = arith.constant 0 : index
      %16 = vector.load %arg6[%c0_14, %c0_15] : memref<32x128xf32, #tpu.memory_space<vmem>>, vector<32x128xf32>
      tpu.vector_store %arg6[%c0_14, %c0_15], %15 {strides = array<i32>} : memref<32x128xf32, #tpu.memory_space<vmem>>, vector<32x128xf32>,
    } else {
    }
    return
  }
  func.func @transform_0(%arg0: i32, %arg1: i32, %arg2: i32) -> (i32, i32) {
    %c0_i32 = arith.constant 0 : i32
    return %arg0, %arg2 : i32, i32
  }
  func.func @transform_1(%arg0: i32, %arg1: i32, %arg2: i32) -> (i32, i32) {
    %c0_i32 = arith.constant 0 : i32
    return %arg2, %arg1 : i32, i32
  }
  func.func @transform_2(%arg0: i32, %arg1: i32, %arg2: i32) -> (i32, i32) {
    %c0_i32 = arith.constant 0 : i32
    %c0_i32_0 = arith.constant 0 : i32
    return %c0_i32, %arg1 : i32, i32
  }
  func.func @transform_3(%arg0: i32, %arg1: i32, %arg2: i32) -> (i32, i32) {
    %c0_i32 = arith.constant 0 : i32
    return %arg0, %arg1 : i32, i32
  }
}

module attributes {stable_mosaic.version = 11 : i64} {
  func.func @_mm_bias_kernel(%arg0: i32, %arg1: i32, %arg2: i32, %arg3: memref<32x512xbf16, #tpu.memory_space<vmem>>, %arg4: memref<512x128xbf16, #tpu.memory_space<vmem>>, %arg5: memref<1x128xf32, #tpu.memory_space<vmem>>, %arg6: memref<32x128xf32, #tpu.memory_space<vmem>>, %arg7: memref<32x128xf32, #tpu.memory_space<vmem>>) attributes {dimension_semantics = [#tpu.dimension_semantics<parallel>, #tpu.dimension_semantics<parallel>, #tpu.dimension_semantics<arbitrary>], iteration_bounds = array<i64: 1, 1, 2>, scalar_prefetch = 0 : i64, scratch_operands = 1 : i64, tpu.core_type = #tpu.core_type<tc>, window_params = [{transform_indices = @transform_0, window_bounds = array<i64: 32, 512>}, {transform_indices = @transform_1, window_bounds = array<i64: 512, 128>}, {transform_indices = @transform_2, window_bounds = array<i64: 1, 128>}, {transform_indices = @transform_3, window_bounds = array<i64: 32, 128>}]} {
    %c0_i32 = arith.constant 0 : i32
    %0 = arith.cmpi eq, %arg2, %c0_i32 : i32
    %1 = arith.extui %0 : i1 to i32
    %c0_i32_0 = arith.constant 0 : i32
    %2 = arith.cmpi ne, %1, %c0_i32_0 : i32
    scf.if %2 {
      %cst_9 = arith.constant 0.000000e+00 : f32
      %12 = vector.broadcast %cst_9 : f32 to vector<32x128xf32>
      %c0_10 = arith.constant 0 : index
      %c0_11 = arith.constant 0 : index
      %13 = vector.load %arg7[%c0_10, %c0_11] : memref<32x128xf32, #tpu.memory_space<vmem>>, vector<32x128xf32>
      tpu.vector_store %arg7[%c0_10, %c0_11], %12 {strides = array<i32>} : memref<32x128xf32, #tpu.memory_space<vmem>>, vector<32x128xf32>,
    } else {
    }
    %c0 = arith.constant 0 : index
    %c0_1 = arith.constant 0 : index
    %3 = vector.load %arg7[%c0, %c0_1] : memref<32x128xf32, #tpu.memory_space<vmem>>, vector<32x128xf32>
    %c0_2 = arith.constant 0 : index
    %c0_3 = arith.constant 0 : index
    %4 = vector.load %arg3[%c0_2, %c0_3] : memref<32x512xbf16, #tpu.memory_space<vmem>>, vector<32x512xbf16>
    %c0_4 = arith.constant 0 : index
    %c0_5 = arith.constant 0 : index
    %5 = vector.load %arg4[%c0_4, %c0_5] : memref<512x128xbf16, #tpu.memory_space<vmem>>, vector<512x128xbf16>
    %cst = arith.constant dense<0.000000e+00> : vector<32x128xf32>
    %6 = tpu.matmul %4, %5, %cst {dimension_numbers = #tpu.dot_dimension_numbers<[1], [0], [0], [1], [0, 0, 1, 1], [], []>} : vector<32x512xbf16>, vector<512x128xbf16>, vector<32x128xf32> -> vector<32x128xf32>
    %7 = arith.addf %3, %6 : vector<32x128xf32>
    %c0_6 = arith.constant 0 : index
    %c0_7 = arith.constant 0 : index
    %8 = vector.load %arg7[%c0_6, %c0_7] : memref<32x128xf32, #tpu.memory_space<vmem>>, vector<32x128xf32>
    tpu.vector_store %arg7[%c0_6, %c0_7], %7 {strides = array<i32>} : memref<32x128xf32, #tpu.memory_space<vmem>>, vector<32x128xf32>,
    %c1_i32 = arith.constant 1 : i32
    %9 = arith.cmpi eq, %arg2, %c1_i32 : i32
    %10 = arith.extui %9 : i1 to i32
    %c0_i32_8 = arith.constant 0 : i32
    %11 = arith.cmpi ne, %10, %c0_i32_8 : i32
    scf.if %11 {
      %c0_9 = arith.constant 0 : index
      %c0_10 = arith.constant 0 : index
      %12 = vector.load %arg7[%c0_9, %c0_10] : memref<32x128xf32, #tpu.memory_space<vmem>>, vector<32x128xf32>
      %c0_11 = arith.constant 0 : index
      %c0_12 = arith.constant 0 : index
      %13 = vector.load %arg5[%c0_11, %c0_12] : memref<1x128xf32, #tpu.memory_space<vmem>>, vector<1x128xf32>
      %14 = vector.broadcast %13 : vector<1x128xf32> to vector<32x128xf32>
      %15 = arith.addf %12, %14 : vector<32x128xf32>
      %c0_13 = arith.constant 0 : index
      %c0_14 = arith.constant 0 : index
      %16 = vector.load %arg6[%c0_13, %c0_14] : memref<32x128xf32, #tpu.memory_space<vmem>>, vector<32x128xf32>
      tpu.vector_store %arg6[%c0_13, %c0_14], %15 {strides = array<i32>} : memref<32x128xf32, #tpu.memory_space<vmem>>, vector<32x128xf32>,
    } else {
    }
    return
  }
  func.func @transform_0(%arg0: i32, %arg1: i32, %arg2: i32) -> (i32, i32) {
    %c0_i32 = arith.constant 0 : i32
    return %arg0, %arg2 : i32, i32
  }
  func.func @transform_1(%arg0: i32, %arg1: i32, %arg2: i32) -> (i32, i32) {
    %c0_i32 = arith.constant 0 : i32
    return %arg2, %arg1 : i32, i32
  }
  func.func @transform_2(%arg0: i32, %arg1: i32, %arg2: i32) -> (i32, i32) {
    %c0_i32 = arith.constant 0 : i32
    %c0_i32_0 = arith.constant 0 : i32
    return %c0_i32, %arg1 : i32, i32
  }
  func.func @transform_3(%arg0: i32, %arg1: i32, %arg2: i32) -> (i32, i32) {
    %c0_i32 = arith.constant 0 : i32
    return %arg0, %arg1 : i32, i32
  }
}

module attributes {stable_mosaic.version = 11 : i64} {
  func.func @_mm_bias_kernel(%arg0: i32, %arg1: i32, %arg2: i32, %arg3: memref<128x256xbf16, #tpu.memory_space<vmem>>, %arg4: memref<256x128xbf16, #tpu.memory_space<vmem>>, %arg5: memref<1x128xf32, #tpu.memory_space<vmem>>, %arg6: memref<128x128xf32, #tpu.memory_space<vmem>>, %arg7: memref<128x128xf32, #tpu.memory_space<vmem>>) attributes {dimension_semantics = [#tpu.dimension_semantics<parallel>, #tpu.dimension_semantics<parallel>, #tpu.dimension_semantics<arbitrary>], iteration_bounds = array<i64: 1, 1, 1>, scalar_prefetch = 0 : i64, scratch_operands = 1 : i64, tpu.core_type = #tpu.core_type<tc>, window_params = [{transform_indices = @transform_0, window_bounds = array<i64: 128, 256>}, {transform_indices = @transform_1, window_bounds = array<i64: 256, 128>}, {transform_indices = @transform_2, window_bounds = array<i64: 1, 128>}, {transform_indices = @transform_3, window_bounds = array<i64: 128, 128>}]} {
    %c0_i32 = arith.constant 0 : i32
    %0 = arith.cmpi eq, %arg2, %c0_i32 : i32
    %1 = arith.extui %0 : i1 to i32
    %c0_i32_0 = arith.constant 0 : i32
    %2 = arith.cmpi ne, %1, %c0_i32_0 : i32
    scf.if %2 {
      %cst_10 = arith.constant 0.000000e+00 : f32
      %12 = vector.broadcast %cst_10 : f32 to vector<128x128xf32>
      %c0_11 = arith.constant 0 : index
      %c0_12 = arith.constant 0 : index
      %13 = vector.load %arg7[%c0_11, %c0_12] : memref<128x128xf32, #tpu.memory_space<vmem>>, vector<128x128xf32>
      tpu.vector_store %arg7[%c0_11, %c0_12], %12 {strides = array<i32>} : memref<128x128xf32, #tpu.memory_space<vmem>>, vector<128x128xf32>,
    } else {
    }
    %c0 = arith.constant 0 : index
    %c0_1 = arith.constant 0 : index
    %3 = vector.load %arg7[%c0, %c0_1] : memref<128x128xf32, #tpu.memory_space<vmem>>, vector<128x128xf32>
    %c0_2 = arith.constant 0 : index
    %c0_3 = arith.constant 0 : index
    %4 = vector.load %arg3[%c0_2, %c0_3] : memref<128x256xbf16, #tpu.memory_space<vmem>>, vector<128x256xbf16>
    %c0_4 = arith.constant 0 : index
    %c0_5 = arith.constant 0 : index
    %5 = vector.load %arg4[%c0_4, %c0_5] : memref<256x128xbf16, #tpu.memory_space<vmem>>, vector<256x128xbf16>
    %cst = arith.constant dense<0.000000e+00> : vector<128x128xf32>
    %6 = tpu.matmul %4, %5, %cst {dimension_numbers = #tpu.dot_dimension_numbers<[1], [0], [0], [1], [0, 0, 1, 1], [], []>} : vector<128x256xbf16>, vector<256x128xbf16>, vector<128x128xf32> -> vector<128x128xf32>
    %7 = arith.addf %3, %6 : vector<128x128xf32>
    %c0_6 = arith.constant 0 : index
    %c0_7 = arith.constant 0 : index
    %8 = vector.load %arg7[%c0_6, %c0_7] : memref<128x128xf32, #tpu.memory_space<vmem>>, vector<128x128xf32>
    tpu.vector_store %arg7[%c0_6, %c0_7], %7 {strides = array<i32>} : memref<128x128xf32, #tpu.memory_space<vmem>>, vector<128x128xf32>,
    %c0_i32_8 = arith.constant 0 : i32
    %9 = arith.cmpi eq, %arg2, %c0_i32_8 : i32
    %10 = arith.extui %9 : i1 to i32
    %c0_i32_9 = arith.constant 0 : i32
    %11 = arith.cmpi ne, %10, %c0_i32_9 : i32
    scf.if %11 {
      %c0_10 = arith.constant 0 : index
      %c0_11 = arith.constant 0 : index
      %12 = vector.load %arg7[%c0_10, %c0_11] : memref<128x128xf32, #tpu.memory_space<vmem>>, vector<128x128xf32>
      %c0_12 = arith.constant 0 : index
      %c0_13 = arith.constant 0 : index
      %13 = vector.load %arg5[%c0_12, %c0_13] : memref<1x128xf32, #tpu.memory_space<vmem>>, vector<1x128xf32>
      %14 = vector.broadcast %13 : vector<1x128xf32> to vector<128x128xf32>
      %15 = arith.addf %12, %14 : vector<128x128xf32>
      %c0_14 = arith.constant 0 : index
      %c0_15 = arith.constant 0 : index
      %16 = vector.load %arg6[%c0_14, %c0_15] : memref<128x128xf32, #tpu.memory_space<vmem>>, vector<128x128xf32>
      tpu.vector_store %arg6[%c0_14, %c0_15], %15 {strides = array<i32>} : memref<128x128xf32, #tpu.memory_space<vmem>>, vector<128x128xf32>,
    } else {
    }
    return
  }
  func.func @transform_0(%arg0: i32, %arg1: i32, %arg2: i32) -> (i32, i32) {
    %c0_i32 = arith.constant 0 : i32
    return %arg0, %arg2 : i32, i32
  }
  func.func @transform_1(%arg0: i32, %arg1: i32, %arg2: i32) -> (i32, i32) {
    %c0_i32 = arith.constant 0 : i32
    return %arg2, %arg1 : i32, i32
  }
  func.func @transform_2(%arg0: i32, %arg1: i32, %arg2: i32) -> (i32, i32) {
    %c0_i32 = arith.constant 0 : i32
    %c0_i32_0 = arith.constant 0 : i32
    return %c0_i32, %arg1 : i32, i32
  }
  func.func @transform_3(%arg0: i32, %arg1: i32, %arg2: i32) -> (i32, i32) {
    %c0_i32 = arith.constant 0 : i32
    return %arg0, %arg1 : i32, i32
  }
}

module attributes {stable_mosaic.version = 11 : i64} {
  func.func @_mm_bias_kernel(%arg0: i32, %arg1: i32, %arg2: i32, %arg3: memref<128x128xbf16, #tpu.memory_space<vmem>>, %arg4: memref<128x128xbf16, #tpu.memory_space<vmem>>, %arg5: memref<1x128xf32, #tpu.memory_space<vmem>>, %arg6: memref<128x128xf32, #tpu.memory_space<vmem>>, %arg7: memref<128x128xf32, #tpu.memory_space<vmem>>) attributes {dimension_semantics = [#tpu.dimension_semantics<parallel>, #tpu.dimension_semantics<parallel>, #tpu.dimension_semantics<arbitrary>], iteration_bounds = array<i64: 1, 1, 1>, scalar_prefetch = 0 : i64, scratch_operands = 1 : i64, tpu.core_type = #tpu.core_type<tc>, window_params = [{transform_indices = @transform_0, window_bounds = array<i64: 128, 128>}, {transform_indices = @transform_1, window_bounds = array<i64: 128, 128>}, {transform_indices = @transform_2, window_bounds = array<i64: 1, 128>}, {transform_indices = @transform_3, window_bounds = array<i64: 128, 128>}]} {
    %c0_i32 = arith.constant 0 : i32
    %0 = arith.cmpi eq, %arg2, %c0_i32 : i32
    %1 = arith.extui %0 : i1 to i32
    %c0_i32_0 = arith.constant 0 : i32
    %2 = arith.cmpi ne, %1, %c0_i32_0 : i32
    scf.if %2 {
      %cst_10 = arith.constant 0.000000e+00 : f32
      %12 = vector.broadcast %cst_10 : f32 to vector<128x128xf32>
      %c0_11 = arith.constant 0 : index
      %c0_12 = arith.constant 0 : index
      %13 = vector.load %arg7[%c0_11, %c0_12] : memref<128x128xf32, #tpu.memory_space<vmem>>, vector<128x128xf32>
      tpu.vector_store %arg7[%c0_11, %c0_12], %12 {strides = array<i32>} : memref<128x128xf32, #tpu.memory_space<vmem>>, vector<128x128xf32>,
    } else {
    }
    %c0 = arith.constant 0 : index
    %c0_1 = arith.constant 0 : index
    %3 = vector.load %arg7[%c0, %c0_1] : memref<128x128xf32, #tpu.memory_space<vmem>>, vector<128x128xf32>
    %c0_2 = arith.constant 0 : index
    %c0_3 = arith.constant 0 : index
    %4 = vector.load %arg3[%c0_2, %c0_3] : memref<128x128xbf16, #tpu.memory_space<vmem>>, vector<128x128xbf16>
    %c0_4 = arith.constant 0 : index
    %c0_5 = arith.constant 0 : index
    %5 = vector.load %arg4[%c0_4, %c0_5] : memref<128x128xbf16, #tpu.memory_space<vmem>>, vector<128x128xbf16>
    %cst = arith.constant dense<0.000000e+00> : vector<128x128xf32>
    %6 = tpu.matmul %4, %5, %cst {dimension_numbers = #tpu.dot_dimension_numbers<[1], [0], [0], [1], [0, 0, 1, 1], [], []>} : vector<128x128xbf16>, vector<128x128xbf16>, vector<128x128xf32> -> vector<128x128xf32>
    %7 = arith.addf %3, %6 : vector<128x128xf32>
    %c0_6 = arith.constant 0 : index
    %c0_7 = arith.constant 0 : index
    %8 = vector.load %arg7[%c0_6, %c0_7] : memref<128x128xf32, #tpu.memory_space<vmem>>, vector<128x128xf32>
    tpu.vector_store %arg7[%c0_6, %c0_7], %7 {strides = array<i32>} : memref<128x128xf32, #tpu.memory_space<vmem>>, vector<128x128xf32>,
    %c0_i32_8 = arith.constant 0 : i32
    %9 = arith.cmpi eq, %arg2, %c0_i32_8 : i32
    %10 = arith.extui %9 : i1 to i32
    %c0_i32_9 = arith.constant 0 : i32
    %11 = arith.cmpi ne, %10, %c0_i32_9 : i32
    scf.if %11 {
      %c0_10 = arith.constant 0 : index
      %c0_11 = arith.constant 0 : index
      %12 = vector.load %arg7[%c0_10, %c0_11] : memref<128x128xf32, #tpu.memory_space<vmem>>, vector<128x128xf32>
      %c0_12 = arith.constant 0 : index
      %c0_13 = arith.constant 0 : index
      %13 = vector.load %arg5[%c0_12, %c0_13] : memref<1x128xf32, #tpu.memory_space<vmem>>, vector<1x128xf32>
      %14 = vector.broadcast %13 : vector<1x128xf32> to vector<128x128xf32>
      %15 = arith.addf %12, %14 : vector<128x128xf32>
      %c0_14 = arith.constant 0 : index
      %c0_15 = arith.constant 0 : index
      %16 = vector.load %arg6[%c0_14, %c0_15] : memref<128x128xf32, #tpu.memory_space<vmem>>, vector<128x128xf32>
      tpu.vector_store %arg6[%c0_14, %c0_15], %15 {strides = array<i32>} : memref<128x128xf32, #tpu.memory_space<vmem>>, vector<128x128xf32>,
    } else {
    }
    return
  }
  func.func @transform_0(%arg0: i32, %arg1: i32, %arg2: i32) -> (i32, i32) {
    %c0_i32 = arith.constant 0 : i32
    return %arg0, %arg2 : i32, i32
  }
  func.func @transform_1(%arg0: i32, %arg1: i32, %arg2: i32) -> (i32, i32) {
    %c0_i32 = arith.constant 0 : i32
    return %arg2, %arg1 : i32, i32
  }
  func.func @transform_2(%arg0: i32, %arg1: i32, %arg2: i32) -> (i32, i32) {
    %c0_i32 = arith.constant 0 : i32
    %c0_i32_0 = arith.constant 0 : i32
    return %c0_i32, %arg1 : i32, i32
  }
  func.func @transform_3(%arg0: i32, %arg1: i32, %arg2: i32) -> (i32, i32) {
    %c0_i32 = arith.constant 0 : i32
    return %arg0, %arg1 : i32, i32
  }
}

module attributes {stable_mosaic.version = 11 : i64} {
  func.func @_mm_bias_kernel(%arg0: i32, %arg1: i32, %arg2: i32, %arg3: memref<128x512xbf16, #tpu.memory_space<vmem>>, %arg4: memref<512x128xbf16, #tpu.memory_space<vmem>>, %arg5: memref<1x128xf32, #tpu.memory_space<vmem>>, %arg6: memref<128x128xf32, #tpu.memory_space<vmem>>, %arg7: memref<128x128xf32, #tpu.memory_space<vmem>>) attributes {dimension_semantics = [#tpu.dimension_semantics<parallel>, #tpu.dimension_semantics<parallel>, #tpu.dimension_semantics<arbitrary>], iteration_bounds = array<i64: 1, 1, 1>, scalar_prefetch = 0 : i64, scratch_operands = 1 : i64, tpu.core_type = #tpu.core_type<tc>, window_params = [{transform_indices = @transform_0, window_bounds = array<i64: 128, 512>}, {transform_indices = @transform_1, window_bounds = array<i64: 512, 128>}, {transform_indices = @transform_2, window_bounds = array<i64: 1, 128>}, {transform_indices = @transform_3, window_bounds = array<i64: 128, 128>}]} {
    %c0_i32 = arith.constant 0 : i32
    %0 = arith.cmpi eq, %arg2, %c0_i32 : i32
    %1 = arith.extui %0 : i1 to i32
    %c0_i32_0 = arith.constant 0 : i32
    %2 = arith.cmpi ne, %1, %c0_i32_0 : i32
    scf.if %2 {
      %cst_10 = arith.constant 0.000000e+00 : f32
      %12 = vector.broadcast %cst_10 : f32 to vector<128x128xf32>
      %c0_11 = arith.constant 0 : index
      %c0_12 = arith.constant 0 : index
      %13 = vector.load %arg7[%c0_11, %c0_12] : memref<128x128xf32, #tpu.memory_space<vmem>>, vector<128x128xf32>
      tpu.vector_store %arg7[%c0_11, %c0_12], %12 {strides = array<i32>} : memref<128x128xf32, #tpu.memory_space<vmem>>, vector<128x128xf32>,
    } else {
    }
    %c0 = arith.constant 0 : index
    %c0_1 = arith.constant 0 : index
    %3 = vector.load %arg7[%c0, %c0_1] : memref<128x128xf32, #tpu.memory_space<vmem>>, vector<128x128xf32>
    %c0_2 = arith.constant 0 : index
    %c0_3 = arith.constant 0 : index
    %4 = vector.load %arg3[%c0_2, %c0_3] : memref<128x512xbf16, #tpu.memory_space<vmem>>, vector<128x512xbf16>
    %c0_4 = arith.constant 0 : index
    %c0_5 = arith.constant 0 : index
    %5 = vector.load %arg4[%c0_4, %c0_5] : memref<512x128xbf16, #tpu.memory_space<vmem>>, vector<512x128xbf16>
    %cst = arith.constant dense<0.000000e+00> : vector<128x128xf32>
    %6 = tpu.matmul %4, %5, %cst {dimension_numbers = #tpu.dot_dimension_numbers<[1], [0], [0], [1], [0, 0, 1, 1], [], []>} : vector<128x512xbf16>, vector<512x128xbf16>, vector<128x128xf32> -> vector<128x128xf32>
    %7 = arith.addf %3, %6 : vector<128x128xf32>
    %c0_6 = arith.constant 0 : index
    %c0_7 = arith.constant 0 : index
    %8 = vector.load %arg7[%c0_6, %c0_7] : memref<128x128xf32, #tpu.memory_space<vmem>>, vector<128x128xf32>
    tpu.vector_store %arg7[%c0_6, %c0_7], %7 {strides = array<i32>} : memref<128x128xf32, #tpu.memory_space<vmem>>, vector<128x128xf32>,
    %c0_i32_8 = arith.constant 0 : i32
    %9 = arith.cmpi eq, %arg2, %c0_i32_8 : i32
    %10 = arith.extui %9 : i1 to i32
    %c0_i32_9 = arith.constant 0 : i32
    %11 = arith.cmpi ne, %10, %c0_i32_9 : i32
    scf.if %11 {
      %c0_10 = arith.constant 0 : index
      %c0_11 = arith.constant 0 : index
      %12 = vector.load %arg7[%c0_10, %c0_11] : memref<128x128xf32, #tpu.memory_space<vmem>>, vector<128x128xf32>
      %c0_12 = arith.constant 0 : index
      %c0_13 = arith.constant 0 : index
      %13 = vector.load %arg5[%c0_12, %c0_13] : memref<1x128xf32, #tpu.memory_space<vmem>>, vector<1x128xf32>
      %14 = vector.broadcast %13 : vector<1x128xf32> to vector<128x128xf32>
      %15 = arith.addf %12, %14 : vector<128x128xf32>
      %c0_14 = arith.constant 0 : index
      %c0_15 = arith.constant 0 : index
      %16 = vector.load %arg6[%c0_14, %c0_15] : memref<128x128xf32, #tpu.memory_space<vmem>>, vector<128x128xf32>
      tpu.vector_store %arg6[%c0_14, %c0_15], %15 {strides = array<i32>} : memref<128x128xf32, #tpu.memory_space<vmem>>, vector<128x128xf32>,
    } else {
    }
    return
  }
  func.func @transform_0(%arg0: i32, %arg1: i32, %arg2: i32) -> (i32, i32) {
    %c0_i32 = arith.constant 0 : i32
    return %arg0, %arg2 : i32, i32
  }
  func.func @transform_1(%arg0: i32, %arg1: i32, %arg2: i32) -> (i32, i32) {
    %c0_i32 = arith.constant 0 : i32
    return %arg2, %arg1 : i32, i32
  }
  func.func @transform_2(%arg0: i32, %arg1: i32, %arg2: i32) -> (i32, i32) {
    %c0_i32 = arith.constant 0 : i32
    %c0_i32_0 = arith.constant 0 : i32
    return %c0_i32, %arg1 : i32, i32
  }
  func.func @transform_3(%arg0: i32, %arg1: i32, %arg2: i32) -> (i32, i32) {
    %c0_i32 = arith.constant 0 : i32
    return %arg0, %arg1 : i32, i32
  }
}

module attributes {stable_mosaic.version = 11 : i64} {
  func.func @_mm_bias_kernel(%arg0: i32, %arg1: i32, %arg2: i32, %arg3: memref<256x128xbf16, #tpu.memory_space<vmem>>, %arg4: memref<128x128xbf16, #tpu.memory_space<vmem>>, %arg5: memref<1x128xf32, #tpu.memory_space<vmem>>, %arg6: memref<256x128xf32, #tpu.memory_space<vmem>>, %arg7: memref<256x128xf32, #tpu.memory_space<vmem>>) attributes {dimension_semantics = [#tpu.dimension_semantics<parallel>, #tpu.dimension_semantics<parallel>, #tpu.dimension_semantics<arbitrary>], iteration_bounds = array<i64: 2, 1, 25>, scalar_prefetch = 0 : i64, scratch_operands = 1 : i64, tpu.core_type = #tpu.core_type<tc>, window_params = [{transform_indices = @transform_0, window_bounds = array<i64: 256, 128>}, {transform_indices = @transform_1, window_bounds = array<i64: 128, 128>}, {transform_indices = @transform_2, window_bounds = array<i64: 1, 128>}, {transform_indices = @transform_3, window_bounds = array<i64: 256, 128>}]} {
    %c0_i32 = arith.constant 0 : i32
    %0 = arith.cmpi eq, %arg2, %c0_i32 : i32
    %1 = arith.extui %0 : i1 to i32
    %c0_i32_0 = arith.constant 0 : i32
    %2 = arith.cmpi ne, %1, %c0_i32_0 : i32
    scf.if %2 {
      %cst_9 = arith.constant 0.000000e+00 : f32
      %12 = vector.broadcast %cst_9 : f32 to vector<256x128xf32>
      %c0_10 = arith.constant 0 : index
      %c0_11 = arith.constant 0 : index
      %13 = vector.load %arg7[%c0_10, %c0_11] : memref<256x128xf32, #tpu.memory_space<vmem>>, vector<256x128xf32>
      tpu.vector_store %arg7[%c0_10, %c0_11], %12 {strides = array<i32>} : memref<256x128xf32, #tpu.memory_space<vmem>>, vector<256x128xf32>,
    } else {
    }
    %c0 = arith.constant 0 : index
    %c0_1 = arith.constant 0 : index
    %3 = vector.load %arg7[%c0, %c0_1] : memref<256x128xf32, #tpu.memory_space<vmem>>, vector<256x128xf32>
    %c0_2 = arith.constant 0 : index
    %c0_3 = arith.constant 0 : index
    %4 = vector.load %arg3[%c0_2, %c0_3] : memref<256x128xbf16, #tpu.memory_space<vmem>>, vector<256x128xbf16>
    %c0_4 = arith.constant 0 : index
    %c0_5 = arith.constant 0 : index
    %5 = vector.load %arg4[%c0_4, %c0_5] : memref<128x128xbf16, #tpu.memory_space<vmem>>, vector<128x128xbf16>
    %cst = arith.constant dense<0.000000e+00> : vector<256x128xf32>
    %6 = tpu.matmul %4, %5, %cst {dimension_numbers = #tpu.dot_dimension_numbers<[1], [0], [0], [1], [0, 0, 1, 1], [], []>} : vector<256x128xbf16>, vector<128x128xbf16>, vector<256x128xf32> -> vector<256x128xf32>
    %7 = arith.addf %3, %6 : vector<256x128xf32>
    %c0_6 = arith.constant 0 : index
    %c0_7 = arith.constant 0 : index
    %8 = vector.load %arg7[%c0_6, %c0_7] : memref<256x128xf32, #tpu.memory_space<vmem>>, vector<256x128xf32>
    tpu.vector_store %arg7[%c0_6, %c0_7], %7 {strides = array<i32>} : memref<256x128xf32, #tpu.memory_space<vmem>>, vector<256x128xf32>,
    %c24_i32 = arith.constant 24 : i32
    %9 = arith.cmpi eq, %arg2, %c24_i32 : i32
    %10 = arith.extui %9 : i1 to i32
    %c0_i32_8 = arith.constant 0 : i32
    %11 = arith.cmpi ne, %10, %c0_i32_8 : i32
    scf.if %11 {
      %c0_9 = arith.constant 0 : index
      %c0_10 = arith.constant 0 : index
      %12 = vector.load %arg7[%c0_9, %c0_10] : memref<256x128xf32, #tpu.memory_space<vmem>>, vector<256x128xf32>
      %c0_11 = arith.constant 0 : index
      %c0_12 = arith.constant 0 : index
      %13 = vector.load %arg5[%c0_11, %c0_12] : memref<1x128xf32, #tpu.memory_space<vmem>>, vector<1x128xf32>
      %14 = vector.broadcast %13 : vector<1x128xf32> to vector<256x128xf32>
      %15 = arith.addf %12, %14 : vector<256x128xf32>
      %c0_13 = arith.constant 0 : index
      %c0_14 = arith.constant 0 : index
      %16 = vector.load %arg6[%c0_13, %c0_14] : memref<256x128xf32, #tpu.memory_space<vmem>>, vector<256x128xf32>
      tpu.vector_store %arg6[%c0_13, %c0_14], %15 {strides = array<i32>} : memref<256x128xf32, #tpu.memory_space<vmem>>, vector<256x128xf32>,
    } else {
    }
    return
  }
  func.func @transform_0(%arg0: i32, %arg1: i32, %arg2: i32) -> (i32, i32) {
    %c0_i32 = arith.constant 0 : i32
    return %arg0, %arg2 : i32, i32
  }
  func.func @transform_1(%arg0: i32, %arg1: i32, %arg2: i32) -> (i32, i32) {
    %c0_i32 = arith.constant 0 : i32
    return %arg2, %arg1 : i32, i32
  }
  func.func @transform_2(%arg0: i32, %arg1: i32, %arg2: i32) -> (i32, i32) {
    %c0_i32 = arith.constant 0 : i32
    %c0_i32_0 = arith.constant 0 : i32
    return %c0_i32, %arg1 : i32, i32
  }
  func.func @transform_3(%arg0: i32, %arg1: i32, %arg2: i32) -> (i32, i32) {
    %c0_i32 = arith.constant 0 : i32
    return %arg0, %arg1 : i32, i32
  }
}

</mosaic_0001>

<llo_original>
// kernel: generator_forward.49
$region0: #{generator_forward.49}
  #allocation0 [shape = 'u32[]', space=smem, size = 0x4, offset = 0x4, fixed_abs, tag = 'smem constant byte address 0x4 - core index']
  #allocation1 [shape = 'u32[72,128]{1,0:T(1,128)}', space=vmem, size = 0x9000, scoped, tag = 'internal scratch']
  #allocation2 [shape = 'f32[128,128]{1,0:T(8,128)}', space=vmem, size = 0x10000, scoped, tag = 'scratch operand']
  %s0 = inlined_call_operand.vmem [shape: bf16[128,640], index: 0, kind: input, shape index: {}]
  %s1 = inlined_call_operand.vmem [shape: bf16[640,128], index: 1, kind: input, shape index: {}]
  %s2 = inlined_call_operand.vmem [shape: f32[1,128], index: 2, kind: input, shape index: {}]
  %s3 = inlined_call_operand.vmem [shape: f32[128,128], index: 3, kind: output, shape index: {}]
  %s4 = sld [smem:[#allocation0]]
  $region94: #{generator_forward.49} parent=0
    _
  %s6 = ssub.s32 1, %s4
  %s7 = scalar_select 0, %s6, %s4
  $region1: #{generator_forward.49} parent=0
    #allocation3 [shape = 'u8[65536]{0}', space=vmem, size = 0x10000, scoped, tag = 'input window, operand 0']
    loop: start=0, step=1, limit=7
    $region2: #{generator_forward.49} parent=1 // loop_pre_header
      _
    $region3: #{generator_forward.49} parent=1 // loop_header
      %s9 = sphi 0, %s13
      %p10 = scmp.ge.s32.totalorder %s9, 7
      %s16 = sphi 0, %s35
      %s17 = sphi 0, %s31
      %s18 = sphi 0, %s27
      %s19 = sphi 0, %s16
      %s20 = sphi 0, %s17
      %s21 = sphi 0, %s18
      %s22 = sphi 0, %s19
      %s23 = sphi 0, %s20
      %s24 = sphi 0, %s21
      %s40 = sphi 0, %s42
      %s43 = sphi 0, %s40
      %s44 = sphi 0, %s43
      %s60 = sphi 0, %s44
      %s68 = sphi 0, %s70
      %s71 = sphi 0, %s68
      %s72 = sphi 0, %s71
      %s88 = sphi 0, %s72
      %s94 = sphi 0, %s96
      %s97 = sphi 0, %s94
      %s98 = sphi 0, %s97
      %s114 = sphi 0, %s98
      %s122 = sphi 0, %s124
      %s125 = sphi 0, %s122
      %s126 = sphi 0, %s125
      %s142 = sphi 0, %s126
    $region4: #{generator_forward.49} parent=1 // loop_header_branch
      %12 = sbr.rel (%p10) target = $region8
    $region5: #{generator_forward.49} parent=1 // loop_body
      %s14 = ssub.s32 %s9, 1
      %s15 = ssub.s32 %s9, 2
      %s25 = sadd.s32 1, %s18
      %p26 = scmp.ge.s32.totalorder %s25, 5
      %s27 = scalar_select %p26, 0, %s25
      %s28 = sadd.s32 1, %s17
      %s29 = scalar_select %p26, %s28, %s17
      %p30 = scmp.ge.s32.totalorder %s29, 1
      %s31 = scalar_select %p30, 0, %s29
      %s32 = sadd.s32 1, %s16
      %s33 = scalar_select %p30, %s32, %s16
      %p34 = scmp.ge.s32.totalorder %s33, 1
      %s35 = scalar_select %p34, 0, %s33
      %s36 = ssub.s32 %s16, %s35
      %s37 = ssub.s32 %s18, %s27
      %s38 = sor.u32 %s36, %s37
      %p39 = scmp.eq.s32.totalorder %s38, 0
      %s41 = sadd.s32 %s40, 1
      %s42 = scalar_select %p39, %s40, %s41
      %p45 = pneg %p39
      %p46 = scmp.eq.s32.totalorder %s9, 4
      %p47 = por %p45, %p46
      %p48 = scmp.ne.s32.totalorder %s40, %s43
      %p49 = scmp.eq.s32.totalorder %s9, 0
      %p50 = por %p48, %p49
      %p51 = scmp.ne.s32.totalorder %s40, %s43
      %p52 = scmp.eq.s32.totalorder %s14, 4
      %p53 = por %p51, %p52
      %p54 = scmp.ne.s32.totalorder %s43, %s44
      %p55 = scmp.eq.s32.totalorder %s14, 0
      %p56 = por %p54, %p55
      %p57 = scmp.ne.s32.totalorder %s43, %s44
      %p58 = scmp.eq.s32.totalorder %s15, 4
      %p59 = por %p57, %p58
      %p61 = scmp.ne.s32.totalorder %s44, %s60
      %p62 = scmp.eq.s32.totalorder %s15, 0
      %p63 = por %p61, %p62
      %s64 = ssub.s32 %s18, %s27
      %s65 = ssub.s32 %s17, %s31
      %s66 = sor.u32 %s64, %s65
      %p67 = scmp.eq.s32.totalorder %s66, 0
      %s69 = sadd.s32 %s68, 1
      %s70 = scalar_select %p67, %s68, %s69
      %p73 = pneg %p67
      %p74 = scmp.eq.s32.totalorder %s9, 4
      %p75 = por %p73, %p74
      %p76 = scmp.ne.s32.totalorder %s68, %s71
      %p77 = scmp.eq.s32.totalorder %s9, 0
      %p78 = por %p76, %p77
      %p79 = scmp.ne.s32.totalorder %s68, %s71
      %p80 = scmp.eq.s32.totalorder %s14, 4
      %p81 = por %p79, %p80
      %p82 = scmp.ne.s32.totalorder %s71, %s72
      %p83 = scmp.eq.s32.totalorder %s14, 0
      %p84 = por %p82, %p83
      %p85 = scmp.ne.s32.totalorder %s71, %s72
      %p86 = scmp.eq.s32.totalorder %s15, 4
      %p87 = por %p85, %p86
      %p89 = scmp.ne.s32.totalorder %s72, %s88
      %p90 = scmp.eq.s32.totalorder %s15, 0
      %p91 = por %p89, %p90
      %s92 = ssub.s32 %s17, %s31
      %p93 = scmp.eq.s32.totalorder %s92, 0
      %s95 = sadd.s32 %s94, 1
      %s96 = scalar_select %p93, %s94, %s95
      %p99 = pneg %p93
      %p100 = scmp.eq.s32.totalorder %s9, 4
      %p101 = por %p99, %p100
      %p102 = scmp.ne.s32.totalorder %s94, %s97
      %p103 = scmp.eq.s32.totalorder %s9, 0
      %p104 = por %p102, %p103
      %p105 = scmp.ne.s32.totalorder %s94, %s97
      %p106 = scmp.eq.s32.totalorder %s14, 4
      %p107 = por %p105, %p106
      %p108 = scmp.ne.s32.totalorder %s97, %s98
      %p109 = scmp.eq.s32.totalorder %s14, 0
      %p110 = por %p108, %p109
      %p111 = scmp.ne.s32.totalorder %s97, %s98
      %p112 = scmp.eq.s32.totalorder %s15, 4
      %p113 = por %p111, %p112
      %p115 = scmp.ne.s32.totalorder %s98, %s114
      %p116 = scmp.eq.s32.totalorder %s15, 0
      %p117 = por %p115, %p116
      %s118 = ssub.s32 %s16, %s35
      %s119 = ssub.s32 %s17, %s31
      %s120 = sor.u32 %s118, %s119
      %p121 = scmp.eq.s32.totalorder %s120, 0
      %s123 = sadd.s32 %s122, 1
      %s124 = scalar_select %p121, %s122, %s123
      %p127 = pneg %p121
      %p128 = scmp.eq.s32.totalorder %s9, 4
      %p129 = por %p127, %p128
      %p130 = scmp.ne.s32.totalorder %s122, %s125
      %p131 = scmp.eq.s32.totalorder %s9, 0
      %p132 = por %p130, %p131
      %p133 = scmp.ne.s32.totalorder %s122, %s125
      %p134 = scmp.eq.s32.totalorder %s14, 4
      %p135 = por %p133, %p134
      %p136 = scmp.ne.s32.totalorder %s125, %s126
      %p137 = scmp.eq.s32.totalorder %s14, 0
      %p138 = por %p136, %p137
      %p139 = scmp.ne.s32.totalorder %s125, %s126
      %p140 = scmp.eq.s32.totalorder %s15, 4
      %p141 = por %p139, %p140
      %p143 = scmp.ne.s32.totalorder %s126, %s142
      %p144 = scmp.eq.s32.totalorder %s15, 0
      %p145 = por %p143, %p144
      %p146 = scmp.le.s32.totalorder 1, %s9
      %p147 = scmp.lt.s32.totalorder %s9, 6
      %p148 = pnand %p146, %p147
      %p149 = pneg %p148
      // Predicated region
      $region9: #{generator_forward.49} parent=5 // pred_check
        _
      $region10: #{generator_forward.49} parent=5 // pred_check_branch
        %151 = sbr.rel (%p148) target = $region12
      $region11: #{generator_forward.49} parent=5 // pred_region
        %s152 = ssub.s32 %s9, 1
        // Predicated region
        $region13: #{generator_forward.49} parent=11 // pred_check
          %p153 = pneg %p110
        $region14: #{generator_forward.49} parent=11 // pred_check_branch
          %155 = sbr.rel (%p153) target = $region16
        $region15: #{generator_forward.49} parent=11 // pred_region
          %p156 = scmp.lt.s32.totalorder %s20, 0
          %s157 = scalar_select %p156, %s20, 0
          %s158 = scalar_lea.vmem %s2, %s157
        $region16: #{generator_forward.49} parent=11 // pred_fallthru
          _
      $region12: #{generator_forward.49} parent=5 // pred_fallthru
        _
      %p159 = scmp.lt.s32.totalorder %s9, 5
      // Predicated region
      $region17: #{generator_forward.49} parent=5 // pred_check
        %p160 = pneg %p159
      $region18: #{generator_forward.49} parent=5 // pred_check_branch
        %162 = sbr.rel (%p160) target = $region20
      $region19: #{generator_forward.49} parent=5 // pred_region
        // Predicated region
        $region21: #{generator_forward.49} parent=19 // pred_check
          %p163 = pneg %p50
        $region22: #{generator_forward.49} parent=19 // pred_check_branch
          %165 = sbr.rel (%p163) target = $region24
        $region23: #{generator_forward.49} parent=19 // pred_region
          %s166 = sand.u32 %s40, 1
          %s167 = sand.u32 %s40, 1
          %s168 = smul.addr %s167, 64
          %s169 = scalar_lea.vmem [#allocation3], %s168
          %s170 = smul.u32 16, %s16
          %s171 = smul.addr %s170, 5
          %s172 = sadd.s32 %s18, %s171
          %s173 = smul.addr %s172, 4
          %s174 = scalar_lea.vmem %s0, %s173
          // Predicated region
          $region25: #{generator_forward.49} parent=23 // pred_check
            _
          $region26: #{generator_forward.49} parent=23 // pred_check_branch
            %176 = sbr.rel (0) target = $region28
          $region27: #{generator_forward.49} parent=23 // pred_region
            // Predicated region
            $region29: #{generator_forward.49} parent=27 // pred_check
              _
            $region30: #{generator_forward.49} parent=27 // pred_check_branch
              %178 = sbr.rel target = $region32
            $region31: #{generator_forward.49} parent=27 // pred_region
              // Predicated region
              $region44: #{generator_forward.49} parent=31 // pred_check
                _
              $region45: #{generator_forward.49} parent=31 // pred_check_branch
                %224 = sbr.rel (0) target = $region47
              $region46: #{generator_forward.49} parent=31 // pred_region
                loop: start=0, step=1, limit=1
                $region48: #{generator_forward.49} parent=46 // loop_pre_header
                  _
                $region49: #{generator_forward.49} parent=46 // loop_header
                  %s226 = sphi 0, %s230
                  %p227 = scmp.ge.s32.totalorder %s226, 1
                  %s231 = sphi %s174, %s174
                  %s232 = sphi %s169, %s169
                $region50: #{generator_forward.49} parent=46 // loop_header_branch
                  %229 = sbr.rel (%p227) target = $region54
                $region51: #{generator_forward.49} parent=46 // loop_body
                  _
                $region52: #{generator_forward.49} parent=46 // loop_footer
                  %s230 = sadd.s32 1, %s226
                $region53: #{generator_forward.49} parent=46 // loop_footer_branch
                  %225 = sbr.rel target = $region49
                $region54: #{generator_forward.49} parent=46 // loop_exit
                  _
                %s234 = ssub.s32 16, 1
                loop: start=0, step=1, limit=1
                $region55: #{generator_forward.49} parent=46 // loop_pre_header
                  _
                $region56: #{generator_forward.49} parent=46 // loop_header
                  %s236 = sphi 0, %s240
                  %p237 = scmp.ge.s32.totalorder %s236, 1
                  %s241 = sphi %s174, %s174
                  %s242 = sphi %s169, %s169
                $region57: #{generator_forward.49} parent=46 // loop_header_branch
                  %239 = sbr.rel (%p237) target = $region61
                $region58: #{generator_forward.49} parent=46 // loop_body
                  %v243 = vld [vmem:[%s241] sm:%s234]
                  %244 = vst [vmem:[%s242] sm:%s234] %v243
                  %v245 = vld [vmem:[%s241 + $0x14] sm:%s234]
                  %246 = vst [vmem:[%s242 + $0x4] sm:%s234] %v245
                  %v247 = vld [vmem:[%s241 + $0x28] sm:%s234]
                  %248 = vst [vmem:[%s242 + $0x8] sm:%s234] %v247
                  %v249 = vld [vmem:[%s241 + $0x3c] sm:%s234]
                  %250 = vst [vmem:[%s242 + $0xc] sm:%s234] %v249
                  %v251 = vld [vmem:[%s241 + $0x50] sm:%s234]
                  %252 = vst [vmem:[%s242 + $0x10] sm:%s234] %v251
                  %v253 = vld [vmem:[%s241 + $0x64] sm:%s234]
                  %254 = vst [vmem:[%s242 + $0x14] sm:%s234] %v253
                  %v255 = vld [vmem:[%s241 + $0x78] sm:%s234]
                  %256 = vst [vmem:[%s242 + $0x18] sm:%s234] %v255
                  %v257 = vld [vmem:[%s241 + $0x8c] sm:%s234]
                  %258 = vst [vmem:[%s242 + $0x1c] sm:%s234] %v257
                  %v259 = vld [vmem:[%s241 + $0xa0] sm:%s234]
                  %260 = vst [vmem:[%s242 + $0x20] sm:%s234] %v259
                  %v261 = vld [vmem:[%s241 + $0xb4] sm:%s234]
                  %262 = vst [vmem:[%s242 + $0x24] sm:%s234] %v261
                  %v263 = vld [vmem:[%s241 + $0xc8] sm:%s234]
                  %264 = vst [vmem:[%s242 + $0x28] sm:%s234] %v263
                  %v265 = vld [vmem:[%s241 + $0xdc] sm:%s234]
                  %266 = vst [vmem:[%s242 + $0x2c] sm:%s234] %v265
                  %v267 = vld [vmem:[%s241 + $0xf0] sm:%s234]
                  %268 = vst [vmem:[%s242 + $0x30] sm:%s234] %v267
                  %v269 = vld [vmem:[%s241 + $0x104] sm:%s234]
                  %270 = vst [vmem:[%s242 + $0x34] sm:%s234] %v269
                  %v271 = vld [vmem:[%s241 + $0x118] sm:%s234]
                  %272 = vst [vmem:[%s242 + $0x38] sm:%s234] %v271
                  %v273 = vld [vmem:[%s241 + $0x12c] sm:%s234]
                  %274 = vst [vmem:[%s242 + $0x3c] sm:%s234] %v273
                $region59: #{generator_forward.49} parent=46 // loop_footer
                  %s240 = sadd.s32 1, %s236
                $region60: #{generator_forward.49} parent=46 // loop_footer_branch
                  %235 = sbr.rel target = $region56
                $region61: #{generator_forward.49} parent=46 // loop_exit
                  _
              $region47: #{generator_forward.49} parent=31 // pred_fallthru
                _
            $region32: #{generator_forward.49} parent=27 // pred_fallthru
              _
            // Predicated region
            $region33: #{generator_forward.49} parent=27 // pred_check
              _
            $region34: #{generator_forward.49} parent=27 // pred_check_branch
              %180 = sbr.rel (0) target = $region36
            $region35: #{generator_forward.49} parent=27 // pred_region
              %s182 = ssub.s32 16, 1
              loop: start=0, step=1, limit=1
              $region37: #{generator_forward.49} parent=35 // loop_pre_header
                _
              $region38: #{generator_forward.49} parent=35 // loop_header
                %s184 = sphi 0, %s188
                %p185 = scmp.ge.s32.totalorder %s184, 1
                %s189 = sphi %s174, %s174
                %s190 = sphi %s169, %s169
              $region39: #{generator_forward.49} parent=35 // loop_header_branch
                %187 = sbr.rel (%p185) target = $region43
              $region40: #{generator_forward.49} parent=35 // loop_body
                %v191 = vld [vmem:[%s189] sm:%s182]
                %192 = vst [vmem:[%s190] sm:%s182] %v191
                %v193 = vld [vmem:[%s189 + $0x14] sm:%s182]
                %194 = vst [vmem:[%s190 + $0x4] sm:%s182] %v193
                %v195 = vld [vmem:[%s189 + $0x28] sm:%s182]
                %196 = vst [vmem:[%s190 + $0x8] sm:%s182] %v195
                %v197 = vld [vmem:[%s189 + $0x3c] sm:%s182]
                %198 = vst [vmem:[%s190 + $0xc] sm:%s182] %v197
                %v199 = vld [vmem:[%s189 + $0x50] sm:%s182]
                %200 = vst [vmem:[%s190 + $0x10] sm:%s182] %v199
                %v201 = vld [vmem:[%s189 + $0x64] sm:%s182]
                %202 = vst [vmem:[%s190 + $0x14] sm:%s182] %v201
                %v203 = vld [vmem:[%s189 + $0x78] sm:%s182]
                %204 = vst [vmem:[%s190 + $0x18] sm:%s182] %v203
                %v205 = vld [vmem:[%s189 + $0x8c] sm:%s182]
                %206 = vst [vmem:[%s190 + $0x1c] sm:%s182] %v205
                %v207 = vld [vmem:[%s189 + $0xa0] sm:%s182]
                %208 = vst [vmem:[%s190 + $0x20] sm:%s182] %v207
                %v209 = vld [vmem:[%s189 + $0xb4] sm:%s182]
                %210 = vst [vmem:[%s190 + $0x24] sm:%s182] %v209
                %v211 = vld [vmem:[%s189 + $0xc8] sm:%s182]
                %212 = vst [vmem:[%s190 + $0x28] sm:%s182] %v211
                %v213 = vld [vmem:[%s189 + $0xdc] sm:%s182]
                %214 = vst [vmem:[%s190 + $0x2c] sm:%s182] %v213
                %v215 = vld [vmem:[%s189 + $0xf0] sm:%s182]
                %216 = vst [vmem:[%s190 + $0x30] sm:%s182] %v215
                %v217 = vld [vmem:[%s189 + $0x104] sm:%s182]
                %218 = vst [vmem:[%s190 + $0x34] sm:%s182] %v217
                %v219 = vld [vmem:[%s189 + $0x118] sm:%s182]
                %220 = vst [vmem:[%s190 + $0x38] sm:%s182] %v219
                %v221 = vld [vmem:[%s189 + $0x12c] sm:%s182]
                %222 = vst [vmem:[%s190 + $0x3c] sm:%s182] %v221
              $region41: #{generator_forward.49} parent=35 // loop_footer
                %s188 = sadd.s32 1, %s184
              $region42: #{generator_forward.49} parent=35 // loop_footer_branch
                %183 = sbr.rel target = $region38
              $region43: #{generator_forward.49} parent=35 // loop_exit
                _
            $region36: #{generator_forward.49} parent=27 // pred_fallthru
              _
          $region28: #{generator_forward.49} parent=23 // pred_fallthru
            _
          %275 = vnop
        $region24: #{generator_forward.49} parent=19 // pred_fallthru
          _
        // Predicated region
        $region62: #{generator_forward.49} parent=19 // pred_check
          %p276 = pneg %p78
        $region63: #{generator_forward.49} parent=19 // pred_check_branch
          %278 = sbr.rel (%p276) target = $region65
        $region64: #{generator_forward.49} parent=19 // pred_region
          %s279 = smul.u32 16, %s18
          %p280 = scmp.lt.s32.totalorder %s279, 79
          %s281 = scalar_select %p280, %s279, 79
          %p282 = scmp.lt.s32.totalorder %s17, 0
          %s283 = scalar_select %p282, %s17, 0
          %s284 = sadd.s32 %s283, %s281
          %s285 = smul.addr %s284, 4
          %s286 = scalar_lea.vmem %s1, %s285
          %s287 = smul.u32 16, %s18
        $region65: #{generator_forward.49} parent=19 // pred_fallthru
          _
      $region20: #{generator_forward.49} parent=5 // pred_fallthru
        _
      %p288 = scmp.le.s32.totalorder 1, %s9
      %p289 = scmp.lt.s32.totalorder %s9, 6
      %p290 = pnand %p288, %p289
      %p291 = pneg %p290
      // Predicated region
      $region66: #{generator_forward.49} parent=5 // pred_check
        _
      $region67: #{generator_forward.49} parent=5 // pred_check_branch
        %293 = sbr.rel (%p290) target = $region69
      $region68: #{generator_forward.49} parent=5 // pred_region
        %s294 = ssub.s32 %s9, 1
        %s295 = sand.u32 %s43, 1
        %s296 = sand.u32 %s43, 1
        %s297 = smul.addr %s296, 64
        %s298 = scalar_lea.vmem [#allocation3], %s297
        // Predicated region
        $region70: #{generator_forward.49} parent=68 // pred_check
          %p299 = pneg %p56
        $region71: #{generator_forward.49} parent=68 // pred_check_branch
          %301 = sbr.rel (%p299) target = $region73
        $region72: #{generator_forward.49} parent=68 // pred_region
          _
        $region73: #{generator_forward.49} parent=68 // pred_fallthru
          _
        %s302 = sand.u32 %s43, 1
        %s303 = sand.u32 %s43, 1
        %s304 = smul.addr %s303, 64
        %s305 = scalar_lea.vmem [#allocation3], %s304
        %p306 = pneg %p56
        %p307 = pneg %p53
        %s308 = smul.u32 16, %s21
        %p309 = scmp.lt.s32.totalorder %s308, 79
        %s310 = scalar_select %p309, %s308, 79
        %p311 = scmp.lt.s32.totalorder %s20, 0
        %s312 = scalar_select %p311, %s20, 0
        %s313 = sadd.s32 %s312, %s310
        %s314 = smul.addr %s313, 4
        %s315 = scalar_lea.vmem %s1, %s314
        %p316 = pneg %p84
        %p317 = pneg %p81
        %p318 = scmp.lt.s32.totalorder %s20, 0
        %s319 = scalar_select %p318, %s20, 0
        %s320 = scalar_lea.vmem %s2, %s319
        %p321 = pneg %p110
        %p322 = pneg %p107
        %p323 = pneg %p138
        %p324 = pneg %p135
        %s325 = smul.u32 16, %s19
        %p326 = scmp.lt.s32.totalorder %s325, 15
        %s327 = scalar_select %p326, %s325, 15
        %p328 = scmp.lt.s32.totalorder %s20, 0
        %s329 = scalar_select %p328, %s20, 0
        %s330 = sadd.s32 %s329, %s327
        %s331 = smul.addr %s330, 8
        %s332 = scalar_lea.vmem %s3, %s331
        %s333 = smul.u32 16, %s19
        %s334 = smul.u32 16, %s21
        %p335 = scmp.lt.s32.totalorder %s334, 79
        %s336 = scalar_select %p335, %s334, 79
        %p337 = scmp.lt.s32.totalorder %s20, 0
        %s338 = scalar_select %p337, %s20, 0
        %s339 = sadd.s32 %s338, %s336
        %s340 = smul.addr %s339, 4
        %s341 = scalar_lea.vmem %s1, %s340
        %s342 = smul.u32 16, %s21
        %p343 = scmp.lt.s32.totalorder %s20, 0
        %s344 = scalar_select %p343, %s20, 0
        %s345 = scalar_lea.vmem %s2, %s344
        %s346 = smul.u32 16, %s19
        %p347 = scmp.lt.s32.totalorder %s346, 15
        %s348 = scalar_select %p347, %s346, 15
        %p349 = scmp.lt.s32.totalorder %s20, 0
        %s350 = scalar_select %p349, %s20, 0
        %s351 = sadd.s32 %s350, %s348
        %s352 = smul.addr %s351, 8
        %s353 = scalar_lea.vmem %s3, %s352
        %s354 = smul.u32 16, %s19
        %p355 = scmp.eq.s32.totalorder %s21, 0
        // Predicated region
        $region74: #{generator_forward.49} parent=68 // pred_check
          %p356 = pneg %p355
        $region75: #{generator_forward.49} parent=68 // pred_check_branch
          %358 = sbr.rel (%p356) target = $region77
        $region76: #{generator_forward.49} parent=68 // pred_region
          %359 = vst [vmem:[#allocation2] sm:$0xff] 0.0
          %360 = vst [vmem:[#allocation2 + $0x8] sm:$0xff] 0.0
          %361 = vst [vmem:[#allocation2 + $0x10] sm:$0xff] 0.0
          %362 = vst [vmem:[#allocation2 + $0x18] sm:$0xff] 0.0
          %363 = vst [vmem:[#allocation2 + $0x20] sm:$0xff] 0.0
          %364 = vst [vmem:[#allocation2 + $0x28] sm:$0xff] 0.0
          %365 = vst [vmem:[#allocation2 + $0x30] sm:$0xff] 0.0
          %366 = vst [vmem:[#allocation2 + $0x38] sm:$0xff] 0.0
          %367 = vst [vmem:[#allocation2 + $0x40] sm:$0xff] 0.0
          %368 = vst [vmem:[#allocation2 + $0x48] sm:$0xff] 0.0
          %369 = vst [vmem:[#allocation2 + $0x50] sm:$0xff] 0.0
          %370 = vst [vmem:[#allocation2 + $0x58] sm:$0xff] 0.0
          %371 = vst [vmem:[#allocation2 + $0x60] sm:$0xff] 0.0
          %372 = vst [vmem:[#allocation2 + $0x68] sm:$0xff] 0.0
          %373 = vst [vmem:[#allocation2 + $0x70] sm:$0xff] 0.0
          %374 = vst [vmem:[#allocation2 + $0x78] sm:$0xff] 0.0
        $region77: #{generator_forward.49} parent=68 // pred_fallthru
          _
        %v375 = vld [vmem:[#allocation2] sm:$0xff]
        %v376 = vld [vmem:[#allocation2 + $0x8] sm:$0xff]
        %v377 = vld [vmem:[#allocation2 + $0x10] sm:$0xff]
        %v378 = vld [vmem:[#allocation2 + $0x18] sm:$0xff]
        %v379 = vld [vmem:[#allocation2 + $0x20] sm:$0xff]
        %v380 = vld [vmem:[#allocation2 + $0x28] sm:$0xff]
        %v381 = vld [vmem:[#allocation2 + $0x30] sm:$0xff]
        %v382 = vld [vmem:[#allocation2 + $0x38] sm:$0xff]
        %v383 = vld [vmem:[#allocation2 + $0x40] sm:$0xff]
        %v384 = vld [vmem:[#allocation2 + $0x48] sm:$0xff]
        %v385 = vld [vmem:[#allocation2 + $0x50] sm:$0xff]
        %v386 = vld [vmem:[#allocation2 + $0x58] sm:$0xff]
        %v387 = vld [vmem:[#allocation2 + $0x60] sm:$0xff]
        %v388 = vld [vmem:[#allocation2 + $0x68] sm:$0xff]
        %v389 = vld [vmem:[#allocation2 + $0x70] sm:$0xff]
        %v390 = vld [vmem:[#allocation2 + $0x78] sm:$0xff]
        %v391 = vld [vmem:[%s298] sm:$0xf]
        %v392 = vld [vmem:[%s298 + $0x4] sm:$0xf]
        %v393 = vld [vmem:[%s298 + $0x8] sm:$0xf]
        %v394 = vld [vmem:[%s298 + $0xc] sm:$0xf]
        %v395 = vld [vmem:[%s298 + $0x10] sm:$0xf]
        %v396 = vld [vmem:[%s298 + $0x14] sm:$0xf]
        %v397 = vld [vmem:[%s298 + $0x18] sm:$0xf]
        %v398 = vld [vmem:[%s298 + $0x1c] sm:$0xf]
        %v399 = vld [vmem:[%s298 + $0x20] sm:$0xf]
        %v400 = vld [vmem:[%s298 + $0x24] sm:$0xf]
        %v401 = vld [vmem:[%s298 + $0x28] sm:$0xf]
        %v402 = vld [vmem:[%s298 + $0x2c] sm:$0xf]
        %v403 = vld [vmem:[%s298 + $0x30] sm:$0xf]
        %v404 = vld [vmem:[%s298 + $0x34] sm:$0xf]
        %v405 = vld [vmem:[%s298 + $0x38] sm:$0xf]
        %v406 = vld [vmem:[%s298 + $0x3c] sm:$0xf]
        %v407 = vld [vmem:[%s341] sm:$0xf]
        %v408 = vld [vmem:[%s341 + $0x4] sm:$0xf]
        %v409 = vld [vmem:[%s341 + $0x8] sm:$0xf]
        %v410 = vld [vmem:[%s341 + $0xc] sm:$0xf]
        %v411 = vld [vmem:[%s341 + $0x10] sm:$0xf]
        %v412 = vld [vmem:[%s341 + $0x14] sm:$0xf]
        %v413 = vld [vmem:[%s341 + $0x18] sm:$0xf]
        %v414 = vld [vmem:[%s341 + $0x1c] sm:$0xf]
        %v415 = vld [vmem:[%s341 + $0x20] sm:$0xf]
        %v416 = vld [vmem:[%s341 + $0x24] sm:$0xf]
        %v417 = vld [vmem:[%s341 + $0x28] sm:$0xf]
        %v418 = vld [vmem:[%s341 + $0x2c] sm:$0xf]
        %v419 = vld [vmem:[%s341 + $0x30] sm:$0xf]
        %v420 = vld [vmem:[%s341 + $0x34] sm:$0xf]
        %v421 = vld [vmem:[%s341 + $0x38] sm:$0xf]
        %v422 = vld [vmem:[%s341 + $0x3c] sm:$0xf]
        %v439 = vunpack.c.l.b16 %v391
        %v440 = vunpack.c.l.b16 %v392
        %v441 = vunpack.c.l.b16 %v393
        %v442 = vunpack.c.l.b16 %v394
        %v443 = vunpack.c.l.b16 %v395
        %v444 = vunpack.c.l.b16 %v396
        %v445 = vunpack.c.l.b16 %v397
        %v446 = vunpack.c.l.b16 %v398
        %v447 = vunpack.c.l.b16 %v399
        %v448 = vunpack.c.l.b16 %v400
        %v449 = vunpack.c.l.b16 %v401
        %v450 = vunpack.c.l.b16 %v402
        %v451 = vunpack.c.l.b16 %v403
        %v452 = vunpack.c.l.b16 %v404
        %v453 = vunpack.c.l.b16 %v405
        %v454 = vunpack.c.l.b16 %v406
        %v455 = vpack.c.b16 %v440, %v439
        %v456 = vpack.c.b16 %v442, %v441
        %v457 = vpack.c.b16 %v444, %v443
        %v458 = vpack.c.b16 %v446, %v445
        %v459 = vpack.c.b16 %v448, %v447
        %v460 = vpack.c.b16 %v450, %v449
        %v461 = vpack.c.b16 %v452, %v451
        %v462 = vpack.c.b16 %v454, %v453
        %v487 = vunpack.c.l.b16 %v407
        %v488 = vunpack.c.l.b16 %v408
        %v489 = vunpack.c.l.b16 %v409
        %v490 = vunpack.c.l.b16 %v410
        %v491 = vunpack.c.l.b16 %v411
        %v492 = vunpack.c.l.b16 %v412
        %v493 = vunpack.c.l.b16 %v413
        %v494 = vunpack.c.l.b16 %v414
        %v495 = vunpack.c.l.b16 %v415
        %v496 = vunpack.c.l.b16 %v416
        %v497 = vunpack.c.l.b16 %v417
        %v498 = vunpack.c.l.b16 %v418
        %v499 = vunpack.c.l.b16 %v419
        %v500 = vunpack.c.l.b16 %v420
        %v501 = vunpack.c.l.b16 %v421
        %v502 = vunpack.c.l.b16 %v422
        %v503 = vpack.c.b16 %v488, %v487
        %v504 = vpack.c.b16 %v490, %v489
        %v505 = vpack.c.b16 %v492, %v491
        %v506 = vpack.c.b16 %v494, %v493
        %v507 = vpack.c.b16 %v496, %v495
        %v508 = vpack.c.b16 %v498, %v497
        %v509 = vpack.c.b16 %v500, %v499
        %v510 = vpack.c.b16 %v502, %v501
        %519 = vmatpush.bf16.msra.mxu0 %v510
        %520 = vmatpush.bf16.msra.mxu0 %v509
        %521 = vmatpush.bf16.msra.mxu0 %v508
        %522 = vmatpush.bf16.msra.mxu0 %v507
        %523 = vmatpush.bf16.msra.mxu0 %v506
        %524 = vmatpush.bf16.msra.mxu0 %v505
        %525 = vmatpush.bf16.msra.mxu0 %v504
        %526 = vmatpush.bf16.msra.mxu0 %v503
        %527 = vmatmul.bf16.gmra.mxu0 %v455
        %v528 = vpop.f32.mrf.mxu0
        %v529 = vadd.f32 0.0, %v528
        %v530 = vpop.f32.mrf.mxu0
        %v531 = vadd.f32 0.0, %v530
        %532 = vmatmul.bf16.gmra.mxu0 %v456
        %v533 = vpop.f32.mrf.mxu0
        %v534 = vadd.f32 0.0, %v533
        %v535 = vpop.f32.mrf.mxu0
        %v536 = vadd.f32 0.0, %v535
        %537 = vmatmul.bf16.gmra.mxu0 %v457
        %v538 = vpop.f32.mrf.mxu0
        %v539 = vadd.f32 0.0, %v538
        %v540 = vpop.f32.mrf.mxu0
        %v541 = vadd.f32 0.0, %v540
        %542 = vmatmul.bf16.gmra.mxu0 %v458
        %v543 = vpop.f32.mrf.mxu0
        %v544 = vadd.f32 0.0, %v543
        %v545 = vpop.f32.mrf.mxu0
        %v546 = vadd.f32 0.0, %v545
        %547 = vmatmul.bf16.gmra.mxu0 %v459
        %v548 = vpop.f32.mrf.mxu0
        %v549 = vadd.f32 0.0, %v548
        %v550 = vpop.f32.mrf.mxu0
        %v551 = vadd.f32 0.0, %v550
        %552 = vmatmul.bf16.gmra.mxu0 %v460
        %v553 = vpop.f32.mrf.mxu0
        %v554 = vadd.f32 0.0, %v553
        %v555 = vpop.f32.mrf.mxu0
        %v556 = vadd.f32 0.0, %v555
        %557 = vmatmul.bf16.gmra.mxu0 %v461
        %v558 = vpop.f32.mrf.mxu0
        %v559 = vadd.f32 0.0, %v558
        %v560 = vpop.f32.mrf.mxu0
        %v561 = vadd.f32 0.0, %v560
        %562 = vmatmul.bf16.gmra.mxu0 %v462
        %v563 = vpop.f32.mrf.mxu0
        %v564 = vadd.f32 0.0, %v563
        %v565 = vpop.f32.mrf.mxu0
        %v566 = vadd.f32 0.0, %v565
        %567 = vdwg.mxu0
        %v568 = vadd.f32 %v375, %v529
        %v569 = vadd.f32 %v376, %v531
        %v570 = vadd.f32 %v377, %v534
        %v571 = vadd.f32 %v378, %v536
        %v572 = vadd.f32 %v379, %v539
        %v573 = vadd.f32 %v380, %v541
        %v574 = vadd.f32 %v381, %v544
        %v575 = vadd.f32 %v382, %v546
        %v576 = vadd.f32 %v383, %v549
        %v577 = vadd.f32 %v384, %v551
        %v578 = vadd.f32 %v385, %v554
        %v579 = vadd.f32 %v386, %v556
        %v580 = vadd.f32 %v387, %v559
        %v581 = vadd.f32 %v388, %v561
        %v582 = vadd.f32 %v389, %v564
        %v583 = vadd.f32 %v390, %v566
        %584 = vst [vmem:[#allocation2] sm:$0xff] %v568
        %585 = vst [vmem:[#allocation2 + $0x8] sm:$0xff] %v569
        %586 = vst [vmem:[#allocation2 + $0x10] sm:$0xff] %v570
        %587 = vst [vmem:[#allocation2 + $0x18] sm:$0xff] %v571
        %588 = vst [vmem:[#allocation2 + $0x20] sm:$0xff] %v572
        %589 = vst [vmem:[#allocation2 + $0x28] sm:$0xff] %v573
        %590 = vst [vmem:[#allocation2 + $0x30] sm:$0xff] %v574
        %591 = vst [vmem:[#allocation2 + $0x38] sm:$0xff] %v575
        %592 = vst [vmem:[#allocation2 + $0x40] sm:$0xff] %v576
        %593 = vst [vmem:[#allocation2 + $0x48] sm:$0xff] %v577
        %594 = vst [vmem:[#allocation2 + $0x50] sm:$0xff] %v578
        %595 = vst [vmem:[#allocation2 + $0x58] sm:$0xff] %v579
        %596 = vst [vmem:[#allocation2 + $0x60] sm:$0xff] %v580
        %597 = vst [vmem:[#allocation2 + $0x68] sm:$0xff] %v581
        %598 = vst [vmem:[#allocation2 + $0x70] sm:$0xff] %v582
        %599 = vst [vmem:[#allocation2 + $0x78] sm:$0xff] %v583
        %p600 = scmp.eq.s32.totalorder %s21, 4
        // Predicated region
        $region78: #{generator_forward.49} parent=68 // pred_check
          %p601 = pneg %p600
        $region79: #{generator_forward.49} parent=68 // pred_check_branch
          %603 = sbr.rel (%p601) target = $region81
        $region80: #{generator_forward.49} parent=68 // pred_region
          %v604 = vld [vmem:[#allocation2] sm:$0xff]
          %v605 = vld [vmem:[#allocation2 + $0x8] sm:$0xff]
          %v606 = vld [vmem:[#allocation2 + $0x10] sm:$0xff]
          %v607 = vld [vmem:[#allocation2 + $0x18] sm:$0xff]
          %v608 = vld [vmem:[#allocation2 + $0x20] sm:$0xff]
          %v609 = vld [vmem:[#allocation2 + $0x28] sm:$0xff]
          %v610 = vld [vmem:[#allocation2 + $0x30] sm:$0xff]
          %v611 = vld [vmem:[#allocation2 + $0x38] sm:$0xff]
          %v612 = vld [vmem:[#allocation2 + $0x40] sm:$0xff]
          %v613 = vld [vmem:[#allocation2 + $0x48] sm:$0xff]
          %v614 = vld [vmem:[#allocation2 + $0x50] sm:$0xff]
          %v615 = vld [vmem:[#allocation2 + $0x58] sm:$0xff]
          %v616 = vld [vmem:[#allocation2 + $0x60] sm:$0xff]
          %v617 = vld [vmem:[#allocation2 + $0x68] sm:$0xff]
          %v618 = vld [vmem:[#allocation2 + $0x70] sm:$0xff]
          %v619 = vld [vmem:[#allocation2 + $0x78] sm:$0xff]
          %v620 = vld [vmem:[%s345] sm:$0x1]
          %v622 = vperm.slane %v620, 0
          %v624 = vadd.f32 %v604, %v622
          %v625 = vadd.f32 %v605, %v622
          %v626 = vadd.f32 %v606, %v622
          %v627 = vadd.f32 %v607, %v622
          %v628 = vadd.f32 %v608, %v622
          %v629 = vadd.f32 %v609, %v622
          %v630 = vadd.f32 %v610, %v622
          %v631 = vadd.f32 %v611, %v622
          %v632 = vadd.f32 %v612, %v622
          %v633 = vadd.f32 %v613, %v622
          %v634 = vadd.f32 %v614, %v622
          %v635 = vadd.f32 %v615, %v622
          %v636 = vadd.f32 %v616, %v622
          %v637 = vadd.f32 %v617, %v622
          %v638 = vadd.f32 %v618, %v622
          %v639 = vadd.f32 %v619, %v622
          %640 = vst [vmem:[%s353] sm:$0xff] %v624
          %641 = vst [vmem:[%s353 + $0x8] sm:$0xff] %v625
          %642 = vst [vmem:[%s353 + $0x10] sm:$0xff] %v626
          %643 = vst [vmem:[%s353 + $0x18] sm:$0xff] %v627
          %644 = vst [vmem:[%s353 + $0x20] sm:$0xff] %v628
          %645 = vst [vmem:[%s353 + $0x28] sm:$0xff] %v629
          %646 = vst [vmem:[%s353 + $0x30] sm:$0xff] %v630
          %647 = vst [vmem:[%s353 + $0x38] sm:$0xff] %v631
          %648 = vst [vmem:[%s353 + $0x40] sm:$0xff] %v632
          %649 = vst [vmem:[%s353 + $0x48] sm:$0xff] %v633
          %650 = vst [vmem:[%s353 + $0x50] sm:$0xff] %v634
          %651 = vst [vmem:[%s353 + $0x58] sm:$0xff] %v635
          %652 = vst [vmem:[%s353 + $0x60] sm:$0xff] %v636
          %653 = vst [vmem:[%s353 + $0x68] sm:$0xff] %v637
          %654 = vst [vmem:[%s353 + $0x70] sm:$0xff] %v638
          %655 = vst [vmem:[%s353 + $0x78] sm:$0xff] %v639
        $region81: #{generator_forward.49} parent=68 // pred_fallthru
          _
        %s656 = smul.u32 16, %s19
        %p657 = scmp.lt.s32.totalorder %s656, 15
        %s658 = scalar_select %p657, %s656, 15
        %p659 = scmp.lt.s32.totalorder %s20, 0
        %s660 = scalar_select %p659, %s20, 0
        %s661 = sadd.s32 %s660, %s658
        %s662 = smul.addr %s661, 8
        %s663 = scalar_lea.vmem %s3, %s662
        // Predicated region
        $region82: #{generator_forward.49} parent=68 // pred_check
          %p664 = pneg %p135
        $region83: #{generator_forward.49} parent=68 // pred_check_branch
          %666 = sbr.rel (%p664) target = $region85
        $region84: #{generator_forward.49} parent=68 // pred_region
          %s667 = smul.u32 16, %s19
        $region85: #{generator_forward.49} parent=68 // pred_fallthru
          _
        // Predicated region
        $region86: #{generator_forward.49} parent=68 // pred_check
          %p668 = pneg %p135
        $region87: #{generator_forward.49} parent=68 // pred_check_branch
          %670 = sbr.rel (%p668) target = $region89
        $region88: #{generator_forward.49} parent=68 // pred_region
          %s671 = smul.u32 16, %s19
          %p672 = scmp.lt.s32.totalorder %s671, 15
          %s673 = scalar_select %p672, %s671, 15
          %p674 = scmp.lt.s32.totalorder %s20, 0
          %s675 = scalar_select %p674, %s20, 0
          %s676 = sadd.s32 %s675, %s673
          %s677 = smul.addr %s676, 8
          %s678 = scalar_lea.vmem %s3, %s677
        $region89: #{generator_forward.49} parent=68 // pred_fallthru
          _
      $region69: #{generator_forward.49} parent=5 // pred_fallthru
        _
      %p679 = scmp.le.s32.totalorder 2, %s9
      // Predicated region
      $region90: #{generator_forward.49} parent=5 // pred_check
        %p680 = pneg %p679
      $region91: #{generator_forward.49} parent=5 // pred_check_branch
        %682 = sbr.rel (%p680) target = $region93
      $region92: #{generator_forward.49} parent=5 // pred_region
        %s683 = ssub.s32 %s9, 2
      $region93: #{generator_forward.49} parent=5 // pred_fallthru
        _
    $region6: #{generator_forward.49} parent=1 // loop_footer
      %s13 = sadd.s32 1, %s9
    $region7: #{generator_forward.49} parent=1 // loop_footer_branch
      %8 = sbr.rel target = $region3
    $region8: #{generator_forward.49} parent=1 // loop_exit
      _

// kernel: generator_forward.48
$region0: #{generator_forward.48}
  #allocation0 [shape = 'u32[]', space=smem, size = 0x4, offset = 0x4, fixed_abs, tag = 'smem constant byte address 0x4 - core index']
  #allocation1 [shape = 'u32[72,128]{1,0:T(1,128)}', space=vmem, size = 0x9000, scoped, tag = 'internal scratch']
  #allocation2 [shape = 'f32[256,128]{1,0:T(8,128)}', space=vmem, size = 0x20000, scoped, tag = 'scratch operand']
  %s0 = inlined_call_operand.vmem [shape: bf16[512,256], index: 0, kind: input, shape index: {}]
  %s1 = inlined_call_operand.vmem [shape: bf16[256,128], index: 1, kind: input, shape index: {}]
  %s2 = inlined_call_operand.vmem [shape: f32[1,128], index: 2, kind: input, shape index: {}]
  %s3 = inlined_call_operand.vmem [shape: f32[512,128], index: 3, kind: output, shape index: {}]
  %s4 = sld [smem:[#allocation0]]
  $region53: #{generator_forward.48} parent=0
    _
  %s6 = ssub.s32 1, %s4
  %s7 = scalar_select 0, %s6, %s4
  loop: start=0, step=1, limit=4
  $region2: #{generator_forward.48} parent=0 // loop_pre_header
    _
  $region3: #{generator_forward.48} parent=0 // loop_header
    %s9 = sphi 0, %s13
    %p10 = scmp.ge.s32.totalorder %s9, 4
    %s16 = sphi 0, %s35
    %s17 = sphi 0, %s31
    %s18 = sphi 0, %s27
    %s19 = sphi 0, %s16
    %s20 = sphi 0, %s17
    %s21 = sphi 0, %s18
    %s22 = sphi 0, %s19
    %s23 = sphi 0, %s20
    %s24 = sphi 0, %s21
    %s40 = sphi 0, %s42
    %s43 = sphi 0, %s40
    %s44 = sphi 0, %s43
    %s60 = sphi 0, %s44
    %s68 = sphi 0, %s70
    %s71 = sphi 0, %s68
    %s72 = sphi 0, %s71
    %s88 = sphi 0, %s72
    %s94 = sphi 0, %s96
    %s97 = sphi 0, %s94
    %s98 = sphi 0, %s97
    %s114 = sphi 0, %s98
    %s122 = sphi 0, %s124
    %s125 = sphi 0, %s122
    %s126 = sphi 0, %s125
    %s142 = sphi 0, %s126
  $region4: #{generator_forward.48} parent=0 // loop_header_branch
    %12 = sbr.rel (%p10) target = $region8
  $region5: #{generator_forward.48} parent=0 // loop_body
    %s14 = ssub.s32 %s9, 1
    %s15 = ssub.s32 %s9, 2
    %s25 = sadd.s32 1, %s18
    %p26 = scmp.ge.s32.totalorder %s25, 1
    %s27 = scalar_select %p26, 0, %s25
    %s28 = sadd.s32 1, %s17
    %s29 = scalar_select %p26, %s28, %s17
    %p30 = scmp.ge.s32.totalorder %s29, 1
    %s31 = scalar_select %p30, 0, %s29
    %s32 = sadd.s32 1, %s16
    %s33 = scalar_select %p30, %s32, %s16
    %p34 = scmp.ge.s32.totalorder %s33, 2
    %s35 = scalar_select %p34, 0, %s33
    %s36 = ssub.s32 %s16, %s35
    %s37 = ssub.s32 %s18, %s27
    %s38 = sor.u32 %s36, %s37
    %p39 = scmp.eq.s32.totalorder %s38, 0
    %s41 = sadd.s32 %s40, 1
    %s42 = scalar_select %p39, %s40, %s41
    %p45 = pneg %p39
    %p46 = scmp.eq.s32.totalorder %s9, 1
    %p47 = por %p45, %p46
    %p48 = scmp.ne.s32.totalorder %s40, %s43
    %p49 = scmp.eq.s32.totalorder %s9, 0
    %p50 = por %p48, %p49
    %p51 = scmp.ne.s32.totalorder %s40, %s43
    %p52 = scmp.eq.s32.totalorder %s14, 1
    %p53 = por %p51, %p52
    %p54 = scmp.ne.s32.totalorder %s43, %s44
    %p55 = scmp.eq.s32.totalorder %s14, 0
    %p56 = por %p54, %p55
    %p57 = scmp.ne.s32.totalorder %s43, %s44
    %p58 = scmp.eq.s32.totalorder %s15, 1
    %p59 = por %p57, %p58
    %p61 = scmp.ne.s32.totalorder %s44, %s60
    %p62 = scmp.eq.s32.totalorder %s15, 0
    %p63 = por %p61, %p62
    %s64 = ssub.s32 %s18, %s27
    %s65 = ssub.s32 %s17, %s31
    %s66 = sor.u32 %s64, %s65
    %p67 = scmp.eq.s32.totalorder %s66, 0
    %s69 = sadd.s32 %s68, 1
    %s70 = scalar_select %p67, %s68, %s69
    %p73 = pneg %p67
    %p74 = scmp.eq.s32.totalorder %s9, 1
    %p75 = por %p73, %p74
    %p76 = scmp.ne.s32.totalorder %s68, %s71
    %p77 = scmp.eq.s32.totalorder %s9, 0
    %p78 = por %p76, %p77
    %p79 = scmp.ne.s32.totalorder %s68, %s71
    %p80 = scmp.eq.s32.totalorder %s14, 1
    %p81 = por %p79, %p80
    %p82 = scmp.ne.s32.totalorder %s71, %s72
    %p83 = scmp.eq.s32.totalorder %s14, 0
    %p84 = por %p82, %p83
    %p85 = scmp.ne.s32.totalorder %s71, %s72
    %p86 = scmp.eq.s32.totalorder %s15, 1
    %p87 = por %p85, %p86
    %p89 = scmp.ne.s32.totalorder %s72, %s88
    %p90 = scmp.eq.s32.totalorder %s15, 0
    %p91 = por %p89, %p90
    %s92 = ssub.s32 %s17, %s31
    %p93 = scmp.eq.s32.totalorder %s92, 0
    %s95 = sadd.s32 %s94, 1
    %s96 = scalar_select %p93, %s94, %s95
    %p99 = pneg %p93
    %p100 = scmp.eq.s32.totalorder %s9, 1
    %p101 = por %p99, %p100
    %p102 = scmp.ne.s32.totalorder %s94, %s97
    %p103 = scmp.eq.s32.totalorder %s9, 0
    %p104 = por %p102, %p103
    %p105 = scmp.ne.s32.totalorder %s94, %s97
    %p106 = scmp.eq.s32.totalorder %s14, 1
    %p107 = por %p105, %p106
    %p108 = scmp.ne.s32.totalorder %s97, %s98
    %p109 = scmp.eq.s32.totalorder %s14, 0
    %p110 = por %p108, %p109
    %p111 = scmp.ne.s32.totalorder %s97, %s98
    %p112 = scmp.eq.s32.totalorder %s15, 1
    %p113 = por %p111, %p112
    %p115 = scmp.ne.s32.totalorder %s98, %s114
    %p116 = scmp.eq.s32.totalorder %s15, 0
    %p117 = por %p115, %p116
    %s118 = ssub.s32 %s16, %s35
    %s119 = ssub.s32 %s17, %s31
    %s120 = sor.u32 %s118, %s119
    %p121 = scmp.eq.s32.totalorder %s120, 0
    %s123 = sadd.s32 %s122, 1
    %s124 = scalar_select %p121, %s122, %s123
    %p127 = pneg %p121
    %p128 = scmp.eq.s32.totalorder %s9, 1
    %p129 = por %p127, %p128
    %p130 = scmp.ne.s32.totalorder %s122, %s125
    %p131 = scmp.eq.s32.totalorder %s9, 0
    %p132 = por %p130, %p131
    %p133 = scmp.ne.s32.totalorder %s122, %s125
    %p134 = scmp.eq.s32.totalorder %s14, 1
    %p135 = por %p133, %p134
    %p136 = scmp.ne.s32.totalorder %s125, %s126
    %p137 = scmp.eq.s32.totalorder %s14, 0
    %p138 = por %p136, %p137
    %p139 = scmp.ne.s32.totalorder %s125, %s126
    %p140 = scmp.eq.s32.totalorder %s15, 1
    %p141 = por %p139, %p140
    %p143 = scmp.ne.s32.totalorder %s126, %s142
    %p144 = scmp.eq.s32.totalorder %s15, 0
    %p145 = por %p143, %p144
    %p146 = scmp.le.s32.totalorder 1, %s9
    %p147 = scmp.lt.s32.totalorder %s9, 3
    %p148 = pnand %p146, %p147
    %p149 = pneg %p148
    // Predicated region
    $region9: #{generator_forward.48} parent=5 // pred_check
      _
    $region10: #{generator_forward.48} parent=5 // pred_check_branch
      %151 = sbr.rel (%p148) target = $region12
    $region11: #{generator_forward.48} parent=5 // pred_region
      %s152 = ssub.s32 %s9, 1
      // Predicated region
      $region13: #{generator_forward.48} parent=11 // pred_check
        %p153 = pneg %p84
      $region14: #{generator_forward.48} parent=11 // pred_check_branch
        %155 = sbr.rel (%p153) target = $region16
      $region15: #{generator_forward.48} parent=11 // pred_region
        %s156 = smul.u32 32, %s21
        %p157 = scmp.lt.s32.totalorder %s156, 31
        %s158 = scalar_select %p157, %s156, 31
        %p159 = scmp.lt.s32.totalorder %s20, 0
        %s160 = scalar_select %p159, %s20, 0
        %s161 = sadd.s32 %s160, %s158
        %s162 = smul.addr %s161, 4
        %s163 = scalar_lea.vmem %s1, %s162
        %s164 = smul.u32 32, %s21
      $region16: #{generator_forward.48} parent=11 // pred_fallthru
        _
      // Predicated region
      $region17: #{generator_forward.48} parent=11 // pred_check
        %p165 = pneg %p110
      $region18: #{generator_forward.48} parent=11 // pred_check_branch
        %167 = sbr.rel (%p165) target = $region20
      $region19: #{generator_forward.48} parent=11 // pred_region
        %p168 = scmp.lt.s32.totalorder %s20, 0
        %s169 = scalar_select %p168, %s20, 0
        %s170 = scalar_lea.vmem %s2, %s169
      $region20: #{generator_forward.48} parent=11 // pred_fallthru
        _
    $region12: #{generator_forward.48} parent=5 // pred_fallthru
      _
    %p171 = scmp.lt.s32.totalorder %s9, 2
    // Predicated region
    $region21: #{generator_forward.48} parent=5 // pred_check
      %p172 = pneg %p171
    $region22: #{generator_forward.48} parent=5 // pred_check_branch
      %174 = sbr.rel (%p172) target = $region24
    $region23: #{generator_forward.48} parent=5 // pred_region
      // Predicated region
      $region25: #{generator_forward.48} parent=23 // pred_check
        %p175 = pneg %p50
      $region26: #{generator_forward.48} parent=23 // pred_check_branch
        %177 = sbr.rel (%p175) target = $region28
      $region27: #{generator_forward.48} parent=23 // pred_region
        %s178 = smul.u32 32, %s16
        %s179 = smul.u32 2, %s18
        %p180 = scmp.lt.s32.totalorder %s178, 63
        %s181 = scalar_select %p180, %s178, 63
        %p182 = scmp.lt.s32.totalorder %s179, 1
        %s183 = scalar_select %p182, %s179, 1
        %s184 = smul.addr %s181, 2
        %s185 = sadd.s32 %s183, %s184
        %s186 = smul.addr %s185, 4
        %s187 = scalar_lea.vmem %s0, %s186
        %s188 = smul.u32 32, %s16
        %s189 = smul.u32 2, %s18
      $region28: #{generator_forward.48} parent=23 // pred_fallthru
        _
    $region24: #{generator_forward.48} parent=5 // pred_fallthru
      _
    %p190 = scmp.le.s32.totalorder 1, %s9
    %p191 = scmp.lt.s32.totalorder %s9, 3
    %p192 = pnand %p190, %p191
    %p193 = pneg %p192
    // Predicated region
    $region29: #{generator_forward.48} parent=5 // pred_check
      _
    $region30: #{generator_forward.48} parent=5 // pred_check_branch
      %195 = sbr.rel (%p192) target = $region32
    $region31: #{generator_forward.48} parent=5 // pred_region
      %s196 = ssub.s32 %s9, 1
      %s197 = smul.u32 32, %s19
      %s198 = smul.u32 2, %s21
      %p199 = scmp.lt.s32.totalorder %s197, 63
      %s200 = scalar_select %p199, %s197, 63
      %p201 = scmp.lt.s32.totalorder %s198, 1
      %s202 = scalar_select %p201, %s198, 1
      %s203 = smul.addr %s200, 2
      %s204 = sadd.s32 %s202, %s203
      %s205 = smul.addr %s204, 4
      %s206 = scalar_lea.vmem %s0, %s205
      %p207 = pneg %p56
      %p208 = pneg %p53
      %s209 = smul.u32 32, %s21
      %p210 = scmp.lt.s32.totalorder %s209, 31
      %s211 = scalar_select %p210, %s209, 31
      %p212 = scmp.lt.s32.totalorder %s20, 0
      %s213 = scalar_select %p212, %s20, 0
      %s214 = sadd.s32 %s213, %s211
      %s215 = smul.addr %s214, 4
      %s216 = scalar_lea.vmem %s1, %s215
      %p217 = pneg %p84
      %p218 = pneg %p81
      %p219 = scmp.lt.s32.totalorder %s20, 0
      %s220 = scalar_select %p219, %s20, 0
      %s221 = scalar_lea.vmem %s2, %s220
      %p222 = pneg %p110
      %p223 = pneg %p107
      %p224 = pneg %p138
      %p225 = pneg %p135
      %s226 = smul.u32 32, %s19
      %p227 = scmp.lt.s32.totalorder %s226, 63
      %s228 = scalar_select %p227, %s226, 63
      %p229 = scmp.lt.s32.totalorder %s20, 0
      %s230 = scalar_select %p229, %s20, 0
      %s231 = sadd.s32 %s230, %s228
      %s232 = smul.addr %s231, 8
      %s233 = scalar_lea.vmem %s3, %s232
      %s234 = smul.u32 32, %s19
      %s235 = smul.u32 2, %s21
      %p236 = scmp.lt.s32.totalorder %s234, 63
      %s237 = scalar_select %p236, %s234, 63
      %p238 = scmp.lt.s32.totalorder %s235, 1
      %s239 = scalar_select %p238, %s235, 1
      %s240 = smul.addr %s237, 2
      %s241 = sadd.s32 %s239, %s240
      %s242 = smul.addr %s241, 4
      %s243 = scalar_lea.vmem %s0, %s242
      %s244 = smul.u32 32, %s19
      %s245 = smul.u32 2, %s21
      %s246 = smul.u32 32, %s21
      %p247 = scmp.lt.s32.totalorder %s246, 31
      %s248 = scalar_select %p247, %s246, 31
      %p249 = scmp.lt.s32.totalorder %s20, 0
      %s250 = scalar_select %p249, %s20, 0
      %s251 = sadd.s32 %s250, %s248
      %s252 = smul.addr %s251, 4
      %s253 = scalar_lea.vmem %s1, %s252
      %s254 = smul.u32 32, %s21
      %p255 = scmp.lt.s32.totalorder %s20, 0
      %s256 = scalar_select %p255, %s20, 0
      %s257 = scalar_lea.vmem %s2, %s256
      %s258 = smul.u32 32, %s19
      %p259 = scmp.lt.s32.totalorder %s258, 63
      %s260 = scalar_select %p259, %s258, 63
      %p261 = scmp.lt.s32.totalorder %s20, 0
      %s262 = scalar_select %p261, %s20, 0
      %s263 = sadd.s32 %s262, %s260
      %s264 = smul.addr %s263, 8
      %s265 = scalar_lea.vmem %s3, %s264
      %s266 = smul.u32 32, %s19
      %p267 = scmp.eq.s32.totalorder %s21, 0
      // Predicated region
      $region33: #{generator_forward.48} parent=31 // pred_check
        %p268 = pneg %p267
      $region34: #{generator_forward.48} parent=31 // pred_check_branch
        %270 = sbr.rel (%p268) target = $region36
      $region35: #{generator_forward.48} parent=31 // pred_region
        %271 = vst [vmem:[#allocation2] sm:$0xff] 0.0
        %272 = vst [vmem:[#allocation2 + $0x8] sm:$0xff] 0.0
        %273 = vst [vmem:[#allocation2 + $0x10] sm:$0xff] 0.0
        %274 = vst [vmem:[#allocation2 + $0x18] sm:$0xff] 0.0
        %275 = vst [vmem:[#allocation2 + $0x20] sm:$0xff] 0.0
        %276 = vst [vmem:[#allocation2 + $0x28] sm:$0xff] 0.0
        %277 = vst [vmem:[#allocation2 + $0x30] sm:$0xff] 0.0
        %278 = vst [vmem:[#allocation2 + $0x38] sm:$0xff] 0.0
        %279 = vst [vmem:[#allocation2 + $0x40] sm:$0xff] 0.0
        %280 = vst [vmem:[#allocation2 + $0x48] sm:$0xff] 0.0
        %281 = vst [vmem:[#allocation2 + $0x50] sm:$0xff] 0.0
        %282 = vst [vmem:[#allocation2 + $0x58] sm:$0xff] 0.0
        %283 = vst [vmem:[#allocation2 + $0x60] sm:$0xff] 0.0
        %284 = vst [vmem:[#allocation2 + $0x68] sm:$0xff] 0.0
        %285 = vst [vmem:[#allocation2 + $0x70] sm:$0xff] 0.0
        %286 = vst [vmem:[#allocation2 + $0x78] sm:$0xff] 0.0
        %287 = vst [vmem:[#allocation2 + $0x80] sm:$0xff] 0.0
        %288 = vst [vmem:[#allocation2 + $0x88] sm:$0xff] 0.0
        %289 = vst [vmem:[#allocation2 + $0x90] sm:$0xff] 0.0
        %290 = vst [vmem:[#allocation2 + $0x98] sm:$0xff] 0.0
        %291 = vst [vmem:[#allocation2 + $0xa0] sm:$0xff] 0.0
        %292 = vst [vmem:[#allocation2 + $0xa8] sm:$0xff] 0.0
        %293 = vst [vmem:[#allocation2 + $0xb0] sm:$0xff] 0.0
        %294 = vst [vmem:[#allocation2 + $0xb8] sm:$0xff] 0.0
        %295 = vst [vmem:[#allocation2 + $0xc0] sm:$0xff] 0.0
        %296 = vst [vmem:[#allocation2 + $0xc8] sm:$0xff] 0.0
        %297 = vst [vmem:[#allocation2 + $0xd0] sm:$0xff] 0.0
        %298 = vst [vmem:[#allocation2 + $0xd8] sm:$0xff] 0.0
        %299 = vst [vmem:[#allocation2 + $0xe0] sm:$0xff] 0.0
        %300 = vst [vmem:[#allocation2 + $0xe8] sm:$0xff] 0.0
        %301 = vst [vmem:[#allocation2 + $0xf0] sm:$0xff] 0.0
        %302 = vst [vmem:[#allocation2 + $0xf8] sm:$0xff] 0.0
      $region36: #{generator_forward.48} parent=31 // pred_fallthru
        _
      %v303 = vld [vmem:[#allocation2] sm:$0xff]
      %v304 = vld [vmem:[#allocation2 + $0x8] sm:$0xff]
      %v305 = vld [vmem:[#allocation2 + $0x10] sm:$0xff]
      %v306 = vld [vmem:[#allocation2 + $0x18] sm:$0xff]
      %v307 = vld [vmem:[#allocation2 + $0x20] sm:$0xff]
      %v308 = vld [vmem:[#allocation2 + $0x28] sm:$0xff]
      %v309 = vld [vmem:[#allocation2 + $0x30] sm:$0xff]
      %v310 = vld [vmem:[#allocation2 + $0x38] sm:$0xff]
      %v311 = vld [vmem:[#allocation2 + $0x40] sm:$0xff]
      %v312 = vld [vmem:[#allocation2 + $0x48] sm:$0xff]
      %v313 = vld [vmem:[#allocation2 + $0x50] sm:$0xff]
      %v314 = vld [vmem:[#allocation2 + $0x58] sm:$0xff]
      %v315 = vld [vmem:[#allocation2 + $0x60] sm:$0xff]
      %v316 = vld [vmem:[#allocation2 + $0x68] sm:$0xff]
      %v317 = vld [vmem:[#allocation2 + $0x70] sm:$0xff]
      %v318 = vld [vmem:[#allocation2 + $0x78] sm:$0xff]
      %v319 = vld [vmem:[#allocation2 + $0x80] sm:$0xff]
      %v320 = vld [vmem:[#allocation2 + $0x88] sm:$0xff]
      %v321 = vld [vmem:[#allocation2 + $0x90] sm:$0xff]
      %v322 = vld [vmem:[#allocation2 + $0x98] sm:$0xff]
      %v323 = vld [vmem:[#allocation2 + $0xa0] sm:$0xff]
      %v324 = vld [vmem:[#allocation2 + $0xa8] sm:$0xff]
      %v325 = vld [vmem:[#allocation2 + $0xb0] sm:$0xff]
      %v326 = vld [vmem:[#allocation2 + $0xb8] sm:$0xff]
      %v327 = vld [vmem:[#allocation2 + $0xc0] sm:$0xff]
      %v328 = vld [vmem:[#allocation2 + $0xc8] sm:$0xff]
      %v329 = vld [vmem:[#allocation2 + $0xd0] sm:$0xff]
      %v330 = vld [vmem:[#allocation2 + $0xd8] sm:$0xff]
      %v331 = vld [vmem:[#allocation2 + $0xe0] sm:$0xff]
      %v332 = vld [vmem:[#allocation2 + $0xe8] sm:$0xff]
      %v333 = vld [vmem:[#allocation2 + $0xf0] sm:$0xff]
      %v334 = vld [vmem:[#allocation2 + $0xf8] sm:$0xff]
      %v335 = vld [vmem:[%s243] sm:$0xff]
      %v336 = vld [vmem:[%s243 + $0x8] sm:$0xff]
      %v337 = vld [vmem:[%s243 + $0x10] sm:$0xff]
      %v338 = vld [vmem:[%s243 + $0x18] sm:$0xff]
      %v339 = vld [vmem:[%s243 + $0x20] sm:$0xff]
      %v340 = vld [vmem:[%s243 + $0x28] sm:$0xff]
      %v341 = vld [vmem:[%s243 + $0x30] sm:$0xff]
      %v342 = vld [vmem:[%s243 + $0x38] sm:$0xff]
      %v343 = vld [vmem:[%s243 + $0x40] sm:$0xff]
      %v344 = vld [vmem:[%s243 + $0x48] sm:$0xff]
      %v345 = vld [vmem:[%s243 + $0x50] sm:$0xff]
      %v346 = vld [vmem:[%s243 + $0x58] sm:$0xff]
      %v347 = vld [vmem:[%s243 + $0x60] sm:$0xff]
      %v348 = vld [vmem:[%s243 + $0x68] sm:$0xff]
      %v349 = vld [vmem:[%s243 + $0x70] sm:$0xff]
      %v350 = vld [vmem:[%s243 + $0x78] sm:$0xff]
      %v351 = vld [vmem:[%s243 + $0x80] sm:$0xff]
      %v352 = vld [vmem:[%s243 + $0x88] sm:$0xff]
      %v353 = vld [vmem:[%s243 + $0x90] sm:$0xff]
      %v354 = vld [vmem:[%s243 + $0x98] sm:$0xff]
      %v355 = vld [vmem:[%s243 + $0xa0] sm:$0xff]
      %v356 = vld [vmem:[%s243 + $0xa8] sm:$0xff]
      %v357 = vld [vmem:[%s243 + $0xb0] sm:$0xff]
      %v358 = vld [vmem:[%s243 + $0xb8] sm:$0xff]
      %v359 = vld [vmem:[%s243 + $0xc0] sm:$0xff]
      %v360 = vld [vmem:[%s243 + $0xc8] sm:$0xff]
      %v361 = vld [vmem:[%s243 + $0xd0] sm:$0xff]
      %v362 = vld [vmem:[%s243 + $0xd8] sm:$0xff]
      %v363 = vld [vmem:[%s243 + $0xe0] sm:$0xff]
      %v364 = vld [vmem:[%s243 + $0xe8] sm:$0xff]
      %v365 = vld [vmem:[%s243 + $0xf0] sm:$0xff]
      %v366 = vld [vmem:[%s243 + $0xf8] sm:$0xff]
      %v367 = vld [vmem:[%s253] sm:$0xf]
      %v368 = vld [vmem:[%s253 + $0x4] sm:$0xf]
      %v369 = vld [vmem:[%s253 + $0x8] sm:$0xf]
      %v370 = vld [vmem:[%s253 + $0xc] sm:$0xf]
      %v371 = vld [vmem:[%s253 + $0x10] sm:$0xf]
      %v372 = vld [vmem:[%s253 + $0x14] sm:$0xf]
      %v373 = vld [vmem:[%s253 + $0x18] sm:$0xf]
      %v374 = vld [vmem:[%s253 + $0x1c] sm:$0xf]
      %v375 = vld [vmem:[%s253 + $0x20] sm:$0xf]
      %v376 = vld [vmem:[%s253 + $0x24] sm:$0xf]
      %v377 = vld [vmem:[%s253 + $0x28] sm:$0xf]
      %v378 = vld [vmem:[%s253 + $0x2c] sm:$0xf]
      %v379 = vld [vmem:[%s253 + $0x30] sm:$0xf]
      %v380 = vld [vmem:[%s253 + $0x34] sm:$0xf]
      %v381 = vld [vmem:[%s253 + $0x38] sm:$0xf]
      %v382 = vld [vmem:[%s253 + $0x3c] sm:$0xf]
      %v383 = vld [vmem:[%s253 + $0x40] sm:$0xf]
      %v384 = vld [vmem:[%s253 + $0x44] sm:$0xf]
      %v385 = vld [vmem:[%s253 + $0x48] sm:$0xf]
      %v386 = vld [vmem:[%s253 + $0x4c] sm:$0xf]
      %v387 = vld [vmem:[%s253 + $0x50] sm:$0xf]
      %v388 = vld [vmem:[%s253 + $0x54] sm:$0xf]
      %v389 = vld [vmem:[%s253 + $0x58] sm:$0xf]
      %v390 = vld [vmem:[%s253 + $0x5c] sm:$0xf]
      %v391 = vld [vmem:[%s253 + $0x60] sm:$0xf]
      %v392 = vld [vmem:[%s253 + $0x64] sm:$0xf]
      %v393 = vld [vmem:[%s253 + $0x68] sm:$0xf]
      %v394 = vld [vmem:[%s253 + $0x6c] sm:$0xf]
      %v395 = vld [vmem:[%s253 + $0x70] sm:$0xf]
      %v396 = vld [vmem:[%s253 + $0x74] sm:$0xf]
      %v397 = vld [vmem:[%s253 + $0x78] sm:$0xf]
      %v398 = vld [vmem:[%s253 + $0x7c] sm:$0xf]
      %v431 = vunpack.c.l.b16 %v335
      %v432 = vunpack.c.h.b16 %v335
      %v433 = vunpack.c.l.b16 %v336
      %v434 = vunpack.c.h.b16 %v336
      %v435 = vunpack.c.l.b16 %v337
      %v436 = vunpack.c.h.b16 %v337
      %v437 = vunpack.c.l.b16 %v338
      %v438 = vunpack.c.h.b16 %v338
      %v439 = vunpack.c.l.b16 %v339
      %v440 = vunpack.c.h.b16 %v339
      %v441 = vunpack.c.l.b16 %v340
      %v442 = vunpack.c.h.b16 %v340
      %v443 = vunpack.c.l.b16 %v341
      %v444 = vunpack.c.h.b16 %v341
      %v445 = vunpack.c.l.b16 %v342
      %v446 = vunpack.c.h.b16 %v342
      %v447 = vunpack.c.l.b16 %v343
      %v448 = vunpack.c.h.b16 %v343
      %v449 = vunpack.c.l.b16 %v344
      %v450 = vunpack.c.h.b16 %v344
      %v451 = vunpack.c.l.b16 %v345
      %v452 = vunpack.c.h.b16 %v345
      %v453 = vunpack.c.l.b16 %v346
      %v454 = vunpack.c.h.b16 %v346
      %v455 = vunpack.c.l.b16 %v347
      %v456 = vunpack.c.h.b16 %v347
      %v457 = vunpack.c.l.b16 %v348
      %v458 = vunpack.c.h.b16 %v348
      %v459 = vunpack.c.l.b16 %v349
      %v460 = vunpack.c.h.b16 %v349
      %v461 = vunpack.c.l.b16 %v350
      %v462 = vunpack.c.h.b16 %v350
      %v463 = vunpack.c.l.b16 %v351
      %v464 = vunpack.c.h.b16 %v351
      %v465 = vunpack.c.l.b16 %v352
      %v466 = vunpack.c.h.b16 %v352
      %v467 = vunpack.c.l.b16 %v353
      %v468 = vunpack.c.h.b16 %v353
      %v469 = vunpack.c.l.b16 %v354
      %v470 = vunpack.c.h.b16 %v354
      %v471 = vunpack.c.l.b16 %v355
      %v472 = vunpack.c.h.b16 %v355
      %v473 = vunpack.c.l.b16 %v356
      %v474 = vunpack.c.h.b16 %v356
      %v475 = vunpack.c.l.b16 %v357
      %v476 = vunpack.c.h.b16 %v357
      %v477 = vunpack.c.l.b16 %v358
      %v478 = vunpack.c.h.b16 %v358
      %v479 = vunpack.c.l.b16 %v359
      %v480 = vunpack.c.h.b16 %v359
      %v481 = vunpack.c.l.b16 %v360
      %v482 = vunpack.c.h.b16 %v360
      %v483 = vunpack.c.l.b16 %v361
      %v484 = vunpack.c.h.b16 %v361
      %v485 = vunpack.c.l.b16 %v362
      %v486 = vunpack.c.h.b16 %v362
      %v487 = vunpack.c.l.b16 %v363
      %v488 = vunpack.c.h.b16 %v363
      %v489 = vunpack.c.l.b16 %v364
      %v490 = vunpack.c.h.b16 %v364
      %v491 = vunpack.c.l.b16 %v365
      %v492 = vunpack.c.h.b16 %v365
      %v493 = vunpack.c.l.b16 %v366
      %v494 = vunpack.c.h.b16 %v366
      %v495 = vpack.c.b16 %v433, %v431
      %v496 = vpack.c.b16 %v434, %v432
      %v497 = vpack.c.b16 %v437, %v435
      %v498 = vpack.c.b16 %v438, %v436
      %v499 = vpack.c.b16 %v441, %v439
      %v500 = vpack.c.b16 %v442, %v440
      %v501 = vpack.c.b16 %v445, %v443
      %v502 = vpack.c.b16 %v446, %v444
      %v503 = vpack.c.b16 %v449, %v447
      %v504 = vpack.c.b16 %v450, %v448
      %v505 = vpack.c.b16 %v453, %v451
      %v506 = vpack.c.b16 %v454, %v452
      %v507 = vpack.c.b16 %v457, %v455
      %v508 = vpack.c.b16 %v458, %v456
      %v509 = vpack.c.b16 %v461, %v459
      %v510 = vpack.c.b16 %v462, %v460
      %v511 = vpack.c.b16 %v465, %v463
      %v512 = vpack.c.b16 %v466, %v464
      %v513 = vpack.c.b16 %v469, %v467
      %v514 = vpack.c.b16 %v470, %v468
      %v515 = vpack.c.b16 %v473, %v471
      %v516 = vpack.c.b16 %v474, %v472
      %v517 = vpack.c.b16 %v477, %v475
      %v518 = vpack.c.b16 %v478, %v476
      %v519 = vpack.c.b16 %v481, %v479
      %v520 = vpack.c.b16 %v482, %v480
      %v521 = vpack.c.b16 %v485, %v483
      %v522 = vpack.c.b16 %v486, %v484
      %v523 = vpack.c.b16 %v489, %v487
      %v524 = vpack.c.b16 %v490, %v488
      %v525 = vpack.c.b16 %v493, %v491
      %v526 = vpack.c.b16 %v494, %v492
      %v591 = vunpack.c.l.b16 %v367
      %v592 = vunpack.c.l.b16 %v368
      %v593 = vunpack.c.l.b16 %v369
      %v594 = vunpack.c.l.b16 %v370
      %v595 = vunpack.c.l.b16 %v371
      %v596 = vunpack.c.l.b16 %v372
      %v597 = vunpack.c.l.b16 %v373
      %v598 = vunpack.c.l.b16 %v374
      %v599 = vunpack.c.l.b16 %v375
      %v600 = vunpack.c.l.b16 %v376
      %v601 = vunpack.c.l.b16 %v377
      %v602 = vunpack.c.l.b16 %v378
      %v603 = vunpack.c.l.b16 %v379
      %v604 = vunpack.c.l.b16 %v380
      %v605 = vunpack.c.l.b16 %v381
      %v606 = vunpack.c.l.b16 %v382
      %v607 = vunpack.c.l.b16 %v383
      %v608 = vunpack.c.l.b16 %v384
      %v609 = vunpack.c.l.b16 %v385
      %v610 = vunpack.c.l.b16 %v386
      %v611 = vunpack.c.l.b16 %v387
      %v612 = vunpack.c.l.b16 %v388
      %v613 = vunpack.c.l.b16 %v389
      %v614 = vunpack.c.l.b16 %v390
      %v615 = vunpack.c.l.b16 %v391
      %v616 = vunpack.c.l.b16 %v392
      %v617 = vunpack.c.l.b16 %v393
      %v618 = vunpack.c.l.b16 %v394
      %v619 = vunpack.c.l.b16 %v395
      %v620 = vunpack.c.l.b16 %v396
      %v621 = vunpack.c.l.b16 %v397
      %v622 = vunpack.c.l.b16 %v398
      %v623 = vpack.c.b16 %v592, %v591
      %v624 = vpack.c.b16 %v594, %v593
      %v625 = vpack.c.b16 %v596, %v595
      %v626 = vpack.c.b16 %v598, %v597
      %v627 = vpack.c.b16 %v600, %v599
      %v628 = vpack.c.b16 %v602, %v601
      %v629 = vpack.c.b16 %v604, %v603
      %v630 = vpack.c.b16 %v606, %v605
      %v631 = vpack.c.b16 %v608, %v607
      %v632 = vpack.c.b16 %v610, %v609
      %v633 = vpack.c.b16 %v612, %v611
      %v634 = vpack.c.b16 %v614, %v613
      %v635 = vpack.c.b16 %v616, %v615
      %v636 = vpack.c.b16 %v618, %v617
      %v637 = vpack.c.b16 %v620, %v619
      %v638 = vpack.c.b16 %v622, %v621
      %655 = vmatpush.bf16.msra.mxu0 %v630
      %656 = vmatpush.bf16.msra.mxu0 %v629
      %657 = vmatpush.bf16.msra.mxu0 %v628
      %658 = vmatpush.bf16.msra.mxu0 %v627
      %659 = vmatpush.bf16.msra.mxu0 %v626
      %660 = vmatpush.bf16.msra.mxu0 %v625
      %661 = vmatpush.bf16.msra.mxu0 %v624
      %662 = vmatpush.bf16.msra.mxu0 %v623
      %663 = vmatmul.bf16.gmra.mxu0 %v495
      %v664 = vpop.f32.mrf.mxu0
      %v665 = vadd.f32 0.0, %v664
      %v666 = vpop.f32.mrf.mxu0
      %v667 = vadd.f32 0.0, %v666
      %668 = vmatmul.bf16.gmra.mxu0 %v497
      %v669 = vpop.f32.mrf.mxu0
      %v670 = vadd.f32 0.0, %v669
      %v671 = vpop.f32.mrf.mxu0
      %v672 = vadd.f32 0.0, %v671
      %673 = vmatmul.bf16.gmra.mxu0 %v499
      %v674 = vpop.f32.mrf.mxu0
      %v675 = vadd.f32 0.0, %v674
      %v676 = vpop.f32.mrf.mxu0
      %v677 = vadd.f32 0.0, %v676
      %678 = vmatmul.bf16.gmra.mxu0 %v501
      %v679 = vpop.f32.mrf.mxu0
      %v680 = vadd.f32 0.0, %v679
      %v681 = vpop.f32.mrf.mxu0
      %v682 = vadd.f32 0.0, %v681
      %683 = vmatmul.bf16.gmra.mxu0 %v503
      %v684 = vpop.f32.mrf.mxu0
      %v685 = vadd.f32 0.0, %v684
      %v686 = vpop.f32.mrf.mxu0
      %v687 = vadd.f32 0.0, %v686
      %688 = vmatmul.bf16.gmra.mxu0 %v505
      %v689 = vpop.f32.mrf.mxu0
      %v690 = vadd.f32 0.0, %v689
      %v691 = vpop.f32.mrf.mxu0
      %v692 = vadd.f32 0.0, %v691
      %693 = vmatmul.bf16.gmra.mxu0 %v507
      %v694 = vpop.f32.mrf.mxu0
      %v695 = vadd.f32 0.0, %v694
      %v696 = vpop.f32.mrf.mxu0
      %v697 = vadd.f32 0.0, %v696
      %698 = vmatmul.bf16.gmra.mxu0 %v509
      %v699 = vpop.f32.mrf.mxu0
      %v700 = vadd.f32 0.0, %v699
      %v701 = vpop.f32.mrf.mxu0
      %v702 = vadd.f32 0.0, %v701
      %703 = vmatmul.bf16.gmra.mxu0 %v511
      %v704 = vpop.f32.mrf.mxu0
      %v705 = vadd.f32 0.0, %v704
      %v706 = vpop.f32.mrf.mxu0
      %v707 = vadd.f32 0.0, %v706
      %708 = vmatmul.bf16.gmra.mxu0 %v513
      %v709 = vpop.f32.mrf.mxu0
      %v710 = vadd.f32 0.0, %v709
      %v711 = vpop.f32.mrf.mxu0
      %v712 = vadd.f32 0.0, %v711
      %713 = vmatmul.bf16.gmra.mxu0 %v515
      %v714 = vpop.f32.mrf.mxu0
      %v715 = vadd.f32 0.0, %v714
      %v716 = vpop.f32.mrf.mxu0
      %v717 = vadd.f32 0.0, %v716
      %718 = vmatmul.bf16.gmra.mxu0 %v517
      %v719 = vpop.f32.mrf.mxu0
      %v720 = vadd.f32 0.0, %v719
      %v721 = vpop.f32.mrf.mxu0
      %v722 = vadd.f32 0.0, %v721
      %723 = vmatmul.bf16.gmra.mxu0 %v519
      %v724 = vpop.f32.mrf.mxu0
      %v725 = vadd.f32 0.0, %v724
      %v726 = vpop.f32.mrf.mxu0
      %v727 = vadd.f32 0.0, %v726
      %728 = vmatmul.bf16.gmra.mxu0 %v521
      %v729 = vpop.f32.mrf.mxu0
      %v730 = vadd.f32 0.0, %v729
      %v731 = vpop.f32.mrf.mxu0
      %v732 = vadd.f32 0.0, %v731
      %733 = vmatmul.bf16.gmra.mxu0 %v523
      %v734 = vpop.f32.mrf.mxu0
      %v735 = vadd.f32 0.0, %v734
      %v736 = vpop.f32.mrf.mxu0
      %v737 = vadd.f32 0.0, %v736
      %738 = vmatmul.bf16.gmra.mxu0 %v525
      %v739 = vpop.f32.mrf.mxu0
      %v740 = vadd.f32 0.0, %v739
      %v741 = vpop.f32.mrf.mxu0
      %v742 = vadd.f32 0.0, %v741
      %743 = vdwg.mxu0
      %744 = vmatpush.bf16.msra.mxu0 %v638
      %745 = vmatpush.bf16.msra.mxu0 %v637
      %746 = vmatpush.bf16.msra.mxu0 %v636
      %747 = vmatpush.bf16.msra.mxu0 %v635
      %748 = vmatpush.bf16.msra.mxu0 %v634
      %749 = vmatpush.bf16.msra.mxu0 %v633
      %750 = vmatpush.bf16.msra.mxu0 %v632
      %751 = vmatpush.bf16.msra.mxu0 %v631
      %752 = vmatmul.bf16.gmra.mxu0 %v496
      %v753 = vpop.f32.mrf.mxu0
      %v754 = vadd.f32 %v665, %v753
      %v755 = vpop.f32.mrf.mxu0
      %v756 = vadd.f32 %v667, %v755
      %757 = vmatmul.bf16.gmra.mxu0 %v498
      %v758 = vpop.f32.mrf.mxu0
      %v759 = vadd.f32 %v670, %v758
      %v760 = vpop.f32.mrf.mxu0
      %v761 = vadd.f32 %v672, %v760
      %762 = vmatmul.bf16.gmra.mxu0 %v500
      %v763 = vpop.f32.mrf.mxu0
      %v764 = vadd.f32 %v675, %v763
      %v765 = vpop.f32.mrf.mxu0
      %v766 = vadd.f32 %v677, %v765
      %767 = vmatmul.bf16.gmra.mxu0 %v502
      %v768 = vpop.f32.mrf.mxu0
      %v769 = vadd.f32 %v680, %v768
      %v770 = vpop.f32.mrf.mxu0
      %v771 = vadd.f32 %v682, %v770
      %772 = vmatmul.bf16.gmra.mxu0 %v504
      %v773 = vpop.f32.mrf.mxu0
      %v774 = vadd.f32 %v685, %v773
      %v775 = vpop.f32.mrf.mxu0
      %v776 = vadd.f32 %v687, %v775
      %777 = vmatmul.bf16.gmra.mxu0 %v506
      %v778 = vpop.f32.mrf.mxu0
      %v779 = vadd.f32 %v690, %v778
      %v780 = vpop.f32.mrf.mxu0
      %v781 = vadd.f32 %v692, %v780
      %782 = vmatmul.bf16.gmra.mxu0 %v508
      %v783 = vpop.f32.mrf.mxu0
      %v784 = vadd.f32 %v695, %v783
      %v785 = vpop.f32.mrf.mxu0
      %v786 = vadd.f32 %v697, %v785
      %787 = vmatmul.bf16.gmra.mxu0 %v510
      %v788 = vpop.f32.mrf.mxu0
      %v789 = vadd.f32 %v700, %v788
      %v790 = vpop.f32.mrf.mxu0
      %v791 = vadd.f32 %v702, %v790
      %792 = vmatmul.bf16.gmra.mxu0 %v512
      %v793 = vpop.f32.mrf.mxu0
      %v794 = vadd.f32 %v705, %v793
      %v795 = vpop.f32.mrf.mxu0
      %v796 = vadd.f32 %v707, %v795
      %797 = vmatmul.bf16.gmra.mxu0 %v514
      %v798 = vpop.f32.mrf.mxu0
      %v799 = vadd.f32 %v710, %v798
      %v800 = vpop.f32.mrf.mxu0
      %v801 = vadd.f32 %v712, %v800
      %802 = vmatmul.bf16.gmra.mxu0 %v516
      %v803 = vpop.f32.mrf.mxu0
      %v804 = vadd.f32 %v715, %v803
      %v805 = vpop.f32.mrf.mxu0
      %v806 = vadd.f32 %v717, %v805
      %807 = vmatmul.bf16.gmra.mxu0 %v518
      %v808 = vpop.f32.mrf.mxu0
      %v809 = vadd.f32 %v720, %v808
      %v810 = vpop.f32.mrf.mxu0
      %v811 = vadd.f32 %v722, %v810
      %812 = vmatmul.bf16.gmra.mxu0 %v520
      %v813 = vpop.f32.mrf.mxu0
      %v814 = vadd.f32 %v725, %v813
      %v815 = vpop.f32.mrf.mxu0
      %v816 = vadd.f32 %v727, %v815
      %817 = vmatmul.bf16.gmra.mxu0 %v522
      %v818 = vpop.f32.mrf.mxu0
      %v819 = vadd.f32 %v730, %v818
      %v820 = vpop.f32.mrf.mxu0
      %v821 = vadd.f32 %v732, %v820
      %822 = vmatmul.bf16.gmra.mxu0 %v524
      %v823 = vpop.f32.mrf.mxu0
      %v824 = vadd.f32 %v735, %v823
      %v825 = vpop.f32.mrf.mxu0
      %v826 = vadd.f32 %v737, %v825
      %827 = vmatmul.bf16.gmra.mxu0 %v526
      %v828 = vpop.f32.mrf.mxu0
      %v829 = vadd.f32 %v740, %v828
      %v830 = vpop.f32.mrf.mxu0
      %v831 = vadd.f32 %v742, %v830
      %832 = vdwg.mxu0
      %v833 = vadd.f32 %v303, %v754
      %v834 = vadd.f32 %v304, %v756
      %v835 = vadd.f32 %v305, %v759
      %v836 = vadd.f32 %v306, %v761
      %v837 = vadd.f32 %v307, %v764
      %v838 = vadd.f32 %v308, %v766
      %v839 = vadd.f32 %v309, %v769
      %v840 = vadd.f32 %v310, %v771
      %v841 = vadd.f32 %v311, %v774
      %v842 = vadd.f32 %v312, %v776
      %v843 = vadd.f32 %v313, %v779
      %v844 = vadd.f32 %v314, %v781
      %v845 = vadd.f32 %v315, %v784
      %v846 = vadd.f32 %v316, %v786
      %v847 = vadd.f32 %v317, %v789
      %v848 = vadd.f32 %v318, %v791
      %v849 = vadd.f32 %v319, %v794
      %v850 = vadd.f32 %v320, %v796
      %v851 = vadd.f32 %v321, %v799
      %v852 = vadd.f32 %v322, %v801
      %v853 = vadd.f32 %v323, %v804
      %v854 = vadd.f32 %v324, %v806
      %v855 = vadd.f32 %v325, %v809
      %v856 = vadd.f32 %v326, %v811
      %v857 = vadd.f32 %v327, %v814
      %v858 = vadd.f32 %v328, %v816
      %v859 = vadd.f32 %v329, %v819
      %v860 = vadd.f32 %v330, %v821
      %v861 = vadd.f32 %v331, %v824
      %v862 = vadd.f32 %v332, %v826
      %v863 = vadd.f32 %v333, %v829
      %v864 = vadd.f32 %v334, %v831
      %865 = vst [vmem:[#allocation2] sm:$0xff] %v833
      %866 = vst [vmem:[#allocation2 + $0x8] sm:$0xff] %v834
      %867 = vst [vmem:[#allocation2 + $0x10] sm:$0xff] %v835
      %868 = vst [vmem:[#allocation2 + $0x18] sm:$0xff] %v836
      %869 = vst [vmem:[#allocation2 + $0x20] sm:$0xff] %v837
      %870 = vst [vmem:[#allocation2 + $0x28] sm:$0xff] %v838
      %871 = vst [vmem:[#allocation2 + $0x30] sm:$0xff] %v839
      %872 = vst [vmem:[#allocation2 + $0x38] sm:$0xff] %v840
      %873 = vst [vmem:[#allocation2 + $0x40] sm:$0xff] %v841
      %874 = vst [vmem:[#allocation2 + $0x48] sm:$0xff] %v842
      %875 = vst [vmem:[#allocation2 + $0x50] sm:$0xff] %v843
      %876 = vst [vmem:[#allocation2 + $0x58] sm:$0xff] %v844
      %877 = vst [vmem:[#allocation2 + $0x60] sm:$0xff] %v845
      %878 = vst [vmem:[#allocation2 + $0x68] sm:$0xff] %v846
      %879 = vst [vmem:[#allocation2 + $0x70] sm:$0xff] %v847
      %880 = vst [vmem:[#allocation2 + $0x78] sm:$0xff] %v848
      %881 = vst [vmem:[#allocation2 + $0x80] sm:$0xff] %v849
      %882 = vst [vmem:[#allocation2 + $0x88] sm:$0xff] %v850
      %883 = vst [vmem:[#allocation2 + $0x90] sm:$0xff] %v851
      %884 = vst [vmem:[#allocation2 + $0x98] sm:$0xff] %v852
      %885 = vst [vmem:[#allocation2 + $0xa0] sm:$0xff] %v853
      %886 = vst [vmem:[#allocation2 + $0xa8] sm:$0xff] %v854
      %887 = vst [vmem:[#allocation2 + $0xb0] sm:$0xff] %v855
      %888 = vst [vmem:[#allocation2 + $0xb8] sm:$0xff] %v856
      %889 = vst [vmem:[#allocation2 + $0xc0] sm:$0xff] %v857
      %890 = vst [vmem:[#allocation2 + $0xc8] sm:$0xff] %v858
      %891 = vst [vmem:[#allocation2 + $0xd0] sm:$0xff] %v859
      %892 = vst [vmem:[#allocation2 + $0xd8] sm:$0xff] %v860
      %893 = vst [vmem:[#allocation2 + $0xe0] sm:$0xff] %v861
      %894 = vst [vmem:[#allocation2 + $0xe8] sm:$0xff] %v862
      %895 = vst [vmem:[#allocation2 + $0xf0] sm:$0xff] %v863
      %896 = vst [vmem:[#allocation2 + $0xf8] sm:$0xff] %v864
      // Predicated region
      $region37: #{generator_forward.48} parent=31 // pred_check
        %p897 = pneg %p267
      $region38: #{generator_forward.48} parent=31 // pred_check_branch
        %899 = sbr.rel (%p897) target = $region40
      $region39: #{generator_forward.48} parent=31 // pred_region
        %v900 = vld [vmem:[#allocation2] sm:$0xff]
        %v901 = vld [vmem:[#allocation2 + $0x8] sm:$0xff]
        %v902 = vld [vmem:[#allocation2 + $0x10] sm:$0xff]
        %v903 = vld [vmem:[#allocation2 + $0x18] sm:$0xff]
        %v904 = vld [vmem:[#allocation2 + $0x20] sm:$0xff]
        %v905 = vld [vmem:[#allocation2 + $0x28] sm:$0xff]
        %v906 = vld [vmem:[#allocation2 + $0x30] sm:$0xff]
        %v907 = vld [vmem:[#allocation2 + $0x38] sm:$0xff]
        %v908 = vld [vmem:[#allocation2 + $0x40] sm:$0xff]
        %v909 = vld [vmem:[#allocation2 + $0x48] sm:$0xff]
        %v910 = vld [vmem:[#allocation2 + $0x50] sm:$0xff]
        %v911 = vld [vmem:[#allocation2 + $0x58] sm:$0xff]
        %v912 = vld [vmem:[#allocation2 + $0x60] sm:$0xff]
        %v913 = vld [vmem:[#allocation2 + $0x68] sm:$0xff]
        %v914 = vld [vmem:[#allocation2 + $0x70] sm:$0xff]
        %v915 = vld [vmem:[#allocation2 + $0x78] sm:$0xff]
        %v916 = vld [vmem:[#allocation2 + $0x80] sm:$0xff]
        %v917 = vld [vmem:[#allocation2 + $0x88] sm:$0xff]
        %v918 = vld [vmem:[#allocation2 + $0x90] sm:$0xff]
        %v919 = vld [vmem:[#allocation2 + $0x98] sm:$0xff]
        %v920 = vld [vmem:[#allocation2 + $0xa0] sm:$0xff]
        %v921 = vld [vmem:[#allocation2 + $0xa8] sm:$0xff]
        %v922 = vld [vmem:[#allocation2 + $0xb0] sm:$0xff]
        %v923 = vld [vmem:[#allocation2 + $0xb8] sm:$0xff]
        %v924 = vld [vmem:[#allocation2 + $0xc0] sm:$0xff]
        %v925 = vld [vmem:[#allocation2 + $0xc8] sm:$0xff]
        %v926 = vld [vmem:[#allocation2 + $0xd0] sm:$0xff]
        %v927 = vld [vmem:[#allocation2 + $0xd8] sm:$0xff]
        %v928 = vld [vmem:[#allocation2 + $0xe0] sm:$0xff]
        %v929 = vld [vmem:[#allocation2 + $0xe8] sm:$0xff]
        %v930 = vld [vmem:[#allocation2 + $0xf0] sm:$0xff]
        %v931 = vld [vmem:[#allocation2 + $0xf8] sm:$0xff]
        %v932 = vld [vmem:[%s257] sm:$0x1]
        %v934 = vperm.slane %v932, 0
        %v936 = vadd.f32 %v900, %v934
        %v937 = vadd.f32 %v901, %v934
        %v938 = vadd.f32 %v902, %v934
        %v939 = vadd.f32 %v903, %v934
        %v940 = vadd.f32 %v904, %v934
        %v941 = vadd.f32 %v905, %v934
        %v942 = vadd.f32 %v906, %v934
        %v943 = vadd.f32 %v907, %v934
        %v944 = vadd.f32 %v908, %v934
        %v945 = vadd.f32 %v909, %v934
        %v946 = vadd.f32 %v910, %v934
        %v947 = vadd.f32 %v911, %v934
        %v948 = vadd.f32 %v912, %v934
        %v949 = vadd.f32 %v913, %v934
        %v950 = vadd.f32 %v914, %v934
        %v951 = vadd.f32 %v915, %v934
        %v952 = vadd.f32 %v916, %v934
        %v953 = vadd.f32 %v917, %v934
        %v954 = vadd.f32 %v918, %v934
        %v955 = vadd.f32 %v919, %v934
        %v956 = vadd.f32 %v920, %v934
        %v957 = vadd.f32 %v921, %v934
        %v958 = vadd.f32 %v922, %v934
        %v959 = vadd.f32 %v923, %v934
        %v960 = vadd.f32 %v924, %v934
        %v961 = vadd.f32 %v925, %v934
        %v962 = vadd.f32 %v926, %v934
        %v963 = vadd.f32 %v927, %v934
        %v964 = vadd.f32 %v928, %v934
        %v965 = vadd.f32 %v929, %v934
        %v966 = vadd.f32 %v930, %v934
        %v967 = vadd.f32 %v931, %v934
        %968 = vst [vmem:[%s265] sm:$0xff] %v936
        %969 = vst [vmem:[%s265 + $0x8] sm:$0xff] %v937
        %970 = vst [vmem:[%s265 + $0x10] sm:$0xff] %v938
        %971 = vst [vmem:[%s265 + $0x18] sm:$0xff] %v939
        %972 = vst [vmem:[%s265 + $0x20] sm:$0xff] %v940
        %973 = vst [vmem:[%s265 + $0x28] sm:$0xff] %v941
        %974 = vst [vmem:[%s265 + $0x30] sm:$0xff] %v942
        %975 = vst [vmem:[%s265 + $0x38] sm:$0xff] %v943
        %976 = vst [vmem:[%s265 + $0x40] sm:$0xff] %v944
        %977 = vst [vmem:[%s265 + $0x48] sm:$0xff] %v945
        %978 = vst [vmem:[%s265 + $0x50] sm:$0xff] %v946
        %979 = vst [vmem:[%s265 + $0x58] sm:$0xff] %v947
        %980 = vst [vmem:[%s265 + $0x60] sm:$0xff] %v948
        %981 = vst [vmem:[%s265 + $0x68] sm:$0xff] %v949
        %982 = vst [vmem:[%s265 + $0x70] sm:$0xff] %v950
        %983 = vst [vmem:[%s265 + $0x78] sm:$0xff] %v951
        %984 = vst [vmem:[%s265 + $0x80] sm:$0xff] %v952
        %985 = vst [vmem:[%s265 + $0x88] sm:$0xff] %v953
        %986 = vst [vmem:[%s265 + $0x90] sm:$0xff] %v954
        %987 = vst [vmem:[%s265 + $0x98] sm:$0xff] %v955
        %988 = vst [vmem:[%s265 + $0xa0] sm:$0xff] %v956
        %989 = vst [vmem:[%s265 + $0xa8] sm:$0xff] %v957
        %990 = vst [vmem:[%s265 + $0xb0] sm:$0xff] %v958
        %991 = vst [vmem:[%s265 + $0xb8] sm:$0xff] %v959
        %992 = vst [vmem:[%s265 + $0xc0] sm:$0xff] %v960
        %993 = vst [vmem:[%s265 + $0xc8] sm:$0xff] %v961
        %994 = vst [vmem:[%s265 + $0xd0] sm:$0xff] %v962
        %995 = vst [vmem:[%s265 + $0xd8] sm:$0xff] %v963
        %996 = vst [vmem:[%s265 + $0xe0] sm:$0xff] %v964
        %997 = vst [vmem:[%s265 + $0xe8] sm:$0xff] %v965
        %998 = vst [vmem:[%s265 + $0xf0] sm:$0xff] %v966
        %999 = vst [vmem:[%s265 + $0xf8] sm:$0xff] %v967
      $region40: #{generator_forward.48} parent=31 // pred_fallthru
        _
      %s1000 = smul.u32 32, %s19
      %p1001 = scmp.lt.s32.totalorder %s1000, 63
      %s1002 = scalar_select %p1001, %s1000, 63
      %p1003 = scmp.lt.s32.totalorder %s20, 0
      %s1004 = scalar_select %p1003, %s20, 0
      %s1005 = sadd.s32 %s1004, %s1002
      %s1006 = smul.addr %s1005, 8
      %s1007 = scalar_lea.vmem %s3, %s1006
      // Predicated region
      $region41: #{generator_forward.48} parent=31 // pred_check
        %p1008 = pneg %p135
      $region42: #{generator_forward.48} parent=31 // pred_check_branch
        %1010 = sbr.rel (%p1008) target = $region44
      $region43: #{generator_forward.48} parent=31 // pred_region
        %s1011 = smul.u32 32, %s19
      $region44: #{generator_forward.48} parent=31 // pred_fallthru
        _
    $region32: #{generator_forward.48} parent=5 // pred_fallthru
      _
    %p1012 = scmp.le.s32.totalorder 2, %s9
    // Predicated region
    $region45: #{generator_forward.48} parent=5 // pred_check
      %p1013 = pneg %p1012
    $region46: #{generator_forward.48} parent=5 // pred_check_branch
      %1015 = sbr.rel (%p1013) target = $region48
    $region47: #{generator_forward.48} parent=5 // pred_region
      %s1016 = ssub.s32 %s9, 2
      // Predicated region
      $region49: #{generator_forward.48} parent=47 // pred_check
        %p1017 = pneg %p141
      $region50: #{generator_forward.48} parent=47 // pred_check_branch
        %1019 = sbr.rel (%p1017) target = $region52
      $region51: #{generator_forward.48} parent=47 // pred_region
        %s1020 = smul.u32 32, %s22
        %p1021 = scmp.lt.s32.totalorder %s1020, 63
        %s1022 = scalar_select %p1021, %s1020, 63
        %p1023 = scmp.lt.s32.totalorder %s23, 0
        %s1024 = scalar_select %p1023, %s23, 0
        %s1025 = sadd.s32 %s1024, %s1022
        %s1026 = smul.addr %s1025, 8
        %s1027 = scalar_lea.vmem %s3, %s1026
      $region52: #{generator_forward.48} parent=47 // pred_fallthru
        _
    $region48: #{generator_forward.48} parent=5 // pred_fallthru
      _
  $region6: #{generator_forward.48} parent=0 // loop_footer
    %s13 = sadd.s32 1, %s9
  $region7: #{generator_forward.48} parent=0 // loop_footer_branch
    %8 = sbr.rel target = $region3
  $region8: #{generator_forward.48} parent=0 // loop_exit
    _

// kernel: generator_forward.50
$region0: #{generator_forward.50}
  #allocation0 [shape = 'u32[]', space=smem, size = 0x4, offset = 0x4, fixed_abs, tag = 'smem constant byte address 0x4 - core index']
  #allocation1 [shape = 'u32[72,128]{1,0:T(1,128)}', space=vmem, size = 0x9000, scoped, tag = 'internal scratch']
  #allocation2 [shape = 'f32[32,256]{1,0:T(8,128)}', space=vmem, size = 0x8000, scoped, tag = 'scratch operand']
  %s0 = inlined_call_operand.vmem [shape: bf16[32,1152], index: 0, kind: input, shape index: {}]
  %s1 = inlined_call_operand.vmem [shape: bf16[1152,256], index: 1, kind: input, shape index: {}]
  %s2 = inlined_call_operand.vmem [shape: f32[1,256], index: 2, kind: input, shape index: {}]
  %s3 = inlined_call_operand.vmem [shape: f32[32,256], index: 3, kind: output, shape index: {}]
  %s4 = sld [smem:[#allocation0]]
  $region79: #{generator_forward.50} parent=0
    _
  %s6 = ssub.s32 1, %s4
  %s7 = scalar_select 0, %s6, %s4
  $region1: #{generator_forward.50} parent=0
    #allocation3 [shape = 'u8[49152]{0}', space=vmem, size = 0xc000, scoped, tag = 'input window, operand 0']
    loop: start=0, step=1, limit=5
    $region2: #{generator_forward.50} parent=1 // loop_pre_header
      _
    $region3: #{generator_forward.50} parent=1 // loop_header
      %s9 = sphi 0, %s13
      %p10 = scmp.ge.s32.totalorder %s9, 5
      %s16 = sphi 0, %s35
      %s17 = sphi 0, %s31
      %s18 = sphi 0, %s27
      %s19 = sphi 0, %s16
      %s20 = sphi 0, %s17
      %s21 = sphi 0, %s18
      %s22 = sphi 0, %s19
      %s23 = sphi 0, %s20
      %s24 = sphi 0, %s21
      %s40 = sphi 0, %s42
      %s43 = sphi 0, %s40
      %s44 = sphi 0, %s43
      %s60 = sphi 0, %s44
      %s68 = sphi 0, %s70
      %s71 = sphi 0, %s68
      %s72 = sphi 0, %s71
      %s88 = sphi 0, %s72
      %s94 = sphi 0, %s96
      %s97 = sphi 0, %s94
      %s98 = sphi 0, %s97
      %s114 = sphi 0, %s98
      %s122 = sphi 0, %s124
      %s125 = sphi 0, %s122
      %s126 = sphi 0, %s125
      %s142 = sphi 0, %s126
    $region4: #{generator_forward.50} parent=1 // loop_header_branch
      %12 = sbr.rel (%p10) target = $region8
    $region5: #{generator_forward.50} parent=1 // loop_body
      %s14 = ssub.s32 %s9, 1
      %s15 = ssub.s32 %s9, 2
      %s25 = sadd.s32 1, %s18
      %p26 = scmp.ge.s32.totalorder %s25, 3
      %s27 = scalar_select %p26, 0, %s25
      %s28 = sadd.s32 1, %s17
      %s29 = scalar_select %p26, %s28, %s17
      %p30 = scmp.ge.s32.totalorder %s29, 1
      %s31 = scalar_select %p30, 0, %s29
      %s32 = sadd.s32 1, %s16
      %s33 = scalar_select %p30, %s32, %s16
      %p34 = scmp.ge.s32.totalorder %s33, 1
      %s35 = scalar_select %p34, 0, %s33
      %s36 = ssub.s32 %s16, %s35
      %s37 = ssub.s32 %s18, %s27
      %s38 = sor.u32 %s36, %s37
      %p39 = scmp.eq.s32.totalorder %s38, 0
      %s41 = sadd.s32 %s40, 1
      %s42 = scalar_select %p39, %s40, %s41
      %p45 = pneg %p39
      %p46 = scmp.eq.s32.totalorder %s9, 2
      %p47 = por %p45, %p46
      %p48 = scmp.ne.s32.totalorder %s40, %s43
      %p49 = scmp.eq.s32.totalorder %s9, 0
      %p50 = por %p48, %p49
      %p51 = scmp.ne.s32.totalorder %s40, %s43
      %p52 = scmp.eq.s32.totalorder %s14, 2
      %p53 = por %p51, %p52
      %p54 = scmp.ne.s32.totalorder %s43, %s44
      %p55 = scmp.eq.s32.totalorder %s14, 0
      %p56 = por %p54, %p55
      %p57 = scmp.ne.s32.totalorder %s43, %s44
      %p58 = scmp.eq.s32.totalorder %s15, 2
      %p59 = por %p57, %p58
      %p61 = scmp.ne.s32.totalorder %s44, %s60
      %p62 = scmp.eq.s32.totalorder %s15, 0
      %p63 = por %p61, %p62
      %s64 = ssub.s32 %s18, %s27
      %s65 = ssub.s32 %s17, %s31
      %s66 = sor.u32 %s64, %s65
      %p67 = scmp.eq.s32.totalorder %s66, 0
      %s69 = sadd.s32 %s68, 1
      %s70 = scalar_select %p67, %s68, %s69
      %p73 = pneg %p67
      %p74 = scmp.eq.s32.totalorder %s9, 2
      %p75 = por %p73, %p74
      %p76 = scmp.ne.s32.totalorder %s68, %s71
      %p77 = scmp.eq.s32.totalorder %s9, 0
      %p78 = por %p76, %p77
      %p79 = scmp.ne.s32.totalorder %s68, %s71
      %p80 = scmp.eq.s32.totalorder %s14, 2
      %p81 = por %p79, %p80
      %p82 = scmp.ne.s32.totalorder %s71, %s72
      %p83 = scmp.eq.s32.totalorder %s14, 0
      %p84 = por %p82, %p83
      %p85 = scmp.ne.s32.totalorder %s71, %s72
      %p86 = scmp.eq.s32.totalorder %s15, 2
      %p87 = por %p85, %p86
      %p89 = scmp.ne.s32.totalorder %s72, %s88
      %p90 = scmp.eq.s32.totalorder %s15, 0
      %p91 = por %p89, %p90
      %s92 = ssub.s32 %s17, %s31
      %p93 = scmp.eq.s32.totalorder %s92, 0
      %s95 = sadd.s32 %s94, 1
      %s96 = scalar_select %p93, %s94, %s95
      %p99 = pneg %p93
      %p100 = scmp.eq.s32.totalorder %s9, 2
      %p101 = por %p99, %p100
      %p102 = scmp.ne.s32.totalorder %s94, %s97
      %p103 = scmp.eq.s32.totalorder %s9, 0
      %p104 = por %p102, %p103
      %p105 = scmp.ne.s32.totalorder %s94, %s97
      %p106 = scmp.eq.s32.totalorder %s14, 2
      %p107 = por %p105, %p106
      %p108 = scmp.ne.s32.totalorder %s97, %s98
      %p109 = scmp.eq.s32.totalorder %s14, 0
      %p110 = por %p108, %p109
      %p111 = scmp.ne.s32.totalorder %s97, %s98
      %p112 = scmp.eq.s32.totalorder %s15, 2
      %p113 = por %p111, %p112
      %p115 = scmp.ne.s32.totalorder %s98, %s114
      %p116 = scmp.eq.s32.totalorder %s15, 0
      %p117 = por %p115, %p116
      %s118 = ssub.s32 %s16, %s35
      %s119 = ssub.s32 %s17, %s31
      %s120 = sor.u32 %s118, %s119
      %p121 = scmp.eq.s32.totalorder %s120, 0
      %s123 = sadd.s32 %s122, 1
      %s124 = scalar_select %p121, %s122, %s123
      %p127 = pneg %p121
      %p128 = scmp.eq.s32.totalorder %s9, 2
      %p129 = por %p127, %p128
      %p130 = scmp.ne.s32.totalorder %s122, %s125
      %p131 = scmp.eq.s32.totalorder %s9, 0
      %p132 = por %p130, %p131
      %p133 = scmp.ne.s32.totalorder %s122, %s125
      %p134 = scmp.eq.s32.totalorder %s14, 2
      %p135 = por %p133, %p134
      %p136 = scmp.ne.s32.totalorder %s125, %s126
      %p137 = scmp.eq.s32.totalorder %s14, 0
      %p138 = por %p136, %p137
      %p139 = scmp.ne.s32.totalorder %s125, %s126
      %p140 = scmp.eq.s32.totalorder %s15, 2
      %p141 = por %p139, %p140
      %p143 = scmp.ne.s32.totalorder %s126, %s142
      %p144 = scmp.eq.s32.totalorder %s15, 0
      %p145 = por %p143, %p144
      %p146 = scmp.le.s32.totalorder 1, %s9
      %p147 = scmp.lt.s32.totalorder %s9, 4
      %p148 = pnand %p146, %p147
      %p149 = pneg %p148
      // Predicated region
      $region9: #{generator_forward.50} parent=5 // pred_check
        _
      $region10: #{generator_forward.50} parent=5 // pred_check_branch
        %151 = sbr.rel (%p148) target = $region12
      $region11: #{generator_forward.50} parent=5 // pred_region
        %s152 = ssub.s32 %s9, 1
        // Predicated region
        $region13: #{generator_forward.50} parent=11 // pred_check
          %p153 = pneg %p110
        $region14: #{generator_forward.50} parent=11 // pred_check_branch
          %155 = sbr.rel (%p153) target = $region16
        $region15: #{generator_forward.50} parent=11 // pred_region
          %s156 = smul.u32 2, %s20
          %p157 = scmp.lt.s32.totalorder %s156, 1
          %s158 = scalar_select %p157, %s156, 1
          %s159 = scalar_lea.vmem %s2, %s158
          %s160 = smul.u32 2, %s20
        $region16: #{generator_forward.50} parent=11 // pred_fallthru
          _
      $region12: #{generator_forward.50} parent=5 // pred_fallthru
        _
      %p161 = scmp.lt.s32.totalorder %s9, 3
      // Predicated region
      $region17: #{generator_forward.50} parent=5 // pred_check
        %p162 = pneg %p161
      $region18: #{generator_forward.50} parent=5 // pred_check_branch
        %164 = sbr.rel (%p162) target = $region20
      $region19: #{generator_forward.50} parent=5 // pred_region
        // Predicated region
        $region21: #{generator_forward.50} parent=19 // pred_check
          %p165 = pneg %p50
        $region22: #{generator_forward.50} parent=19 // pred_check_branch
          %167 = sbr.rel (%p165) target = $region24
        $region23: #{generator_forward.50} parent=19 // pred_region
          %s168 = sand.u32 %s40, 1
          %s169 = sand.u32 %s40, 1
          %s170 = smul.addr %s169, 48
          %s171 = scalar_lea.vmem [#allocation3], %s170
          %s172 = smul.u32 4, %s16
          %s173 = smul.u32 3, %s18
          %s174 = smul.addr %s172, 9
          %s175 = sadd.s32 %s173, %s174
          %s176 = smul.addr %s175, 4
          %s177 = scalar_lea.vmem %s0, %s176
          // Predicated region
          $region25: #{generator_forward.50} parent=23 // pred_check
            _
          $region26: #{generator_forward.50} parent=23 // pred_check_branch
            %179 = sbr.rel (0) target = $region28
          $region27: #{generator_forward.50} parent=23 // pred_region
            // Predicated region
            $region29: #{generator_forward.50} parent=27 // pred_check
              _
            $region30: #{generator_forward.50} parent=27 // pred_check_branch
              %181 = sbr.rel (0) target = $region32
            $region31: #{generator_forward.50} parent=27 // pred_region
              %s182 = scalar_lea.vmem %s177, 8
              %s183 = scalar_lea.vmem %s171, 8 [#allocation3]
              loop: start=0, step=1, limit=1
              $region33: #{generator_forward.50} parent=31 // loop_pre_header
                _
              $region34: #{generator_forward.50} parent=31 // loop_header
                %s185 = sphi 0, %s189
                %p186 = scmp.ge.s32.totalorder %s185, 1
                %s190 = sphi %s177, %s177
                %s191 = sphi %s171, %s171
              $region35: #{generator_forward.50} parent=31 // loop_header_branch
                %188 = sbr.rel (%p186) target = $region39
              $region36: #{generator_forward.50} parent=31 // loop_body
                %v192 = vld [vmem:[%s190] sm:$0xff]
                %193 = vst [vmem:[%s191] sm:$0xff] %v192
                %v194 = vld [vmem:[%s190 + $0x24] sm:$0xff]
                %195 = vst [vmem:[%s191 + $0xc] sm:$0xff] %v194
                %v196 = vld [vmem:[%s190 + $0x48] sm:$0xff]
                %197 = vst [vmem:[%s191 + $0x18] sm:$0xff] %v196
                %v198 = vld [vmem:[%s190 + $0x6c] sm:$0xff]
                %199 = vst [vmem:[%s191 + $0x24] sm:$0xff] %v198
              $region37: #{generator_forward.50} parent=31 // loop_footer
                %s189 = sadd.s32 1, %s185
              $region38: #{generator_forward.50} parent=31 // loop_footer_branch
                %184 = sbr.rel target = $region34
              $region39: #{generator_forward.50} parent=31 // loop_exit
                _
              %s201 = ssub.s32 16, 1
              loop: start=0, step=1, limit=1
              $region40: #{generator_forward.50} parent=31 // loop_pre_header
                _
              $region41: #{generator_forward.50} parent=31 // loop_header
                %s203 = sphi 0, %s207
                %p204 = scmp.ge.s32.totalorder %s203, 1
                %s208 = sphi %s182, %s182
                %s209 = sphi %s183, %s183
              $region42: #{generator_forward.50} parent=31 // loop_header_branch
                %206 = sbr.rel (%p204) target = $region46
              $region43: #{generator_forward.50} parent=31 // loop_body
                %v210 = vld [vmem:[%s208] sm:%s201]
                %211 = vst [vmem:[%s209] sm:%s201] %v210
                %v212 = vld [vmem:[%s208 + $0x24] sm:%s201]
                %213 = vst [vmem:[%s209 + $0xc] sm:%s201] %v212
                %v214 = vld [vmem:[%s208 + $0x48] sm:%s201]
                %215 = vst [vmem:[%s209 + $0x18] sm:%s201] %v214
                %v216 = vld [vmem:[%s208 + $0x6c] sm:%s201]
                %217 = vst [vmem:[%s209 + $0x24] sm:%s201] %v216
              $region44: #{generator_forward.50} parent=31 // loop_footer
                %s207 = sadd.s32 1, %s203
              $region45: #{generator_forward.50} parent=31 // loop_footer_branch
                %202 = sbr.rel target = $region41
              $region46: #{generator_forward.50} parent=31 // loop_exit
                _
            $region32: #{generator_forward.50} parent=27 // pred_fallthru
              _
          $region28: #{generator_forward.50} parent=23 // pred_fallthru
            _
          %218 = vnop
        $region24: #{generator_forward.50} parent=19 // pred_fallthru
          _
        // Predicated region
        $region47: #{generator_forward.50} parent=19 // pred_check
          %p219 = pneg %p78
        $region48: #{generator_forward.50} parent=19 // pred_check_branch
          %221 = sbr.rel (%p219) target = $region50
        $region49: #{generator_forward.50} parent=19 // pred_region
          %s222 = smul.u32 48, %s18
          %s223 = smul.u32 2, %s17
          %p224 = scmp.lt.s32.totalorder %s222, 143
          %s225 = scalar_select %p224, %s222, 143
          %p226 = scmp.lt.s32.totalorder %s223, 1
          %s227 = scalar_select %p226, %s223, 1
          %s228 = smul.addr %s225, 2
          %s229 = sadd.s32 %s227, %s228
          %s230 = smul.addr %s229, 4
          %s231 = scalar_lea.vmem %s1, %s230
          %s232 = smul.u32 48, %s18
          %s233 = smul.u32 2, %s17
        $region50: #{generator_forward.50} parent=19 // pred_fallthru
          _
      $region20: #{generator_forward.50} parent=5 // pred_fallthru
        _
      %p234 = scmp.le.s32.totalorder 1, %s9
      %p235 = scmp.lt.s32.totalorder %s9, 4
      %p236 = pnand %p234, %p235
      %p237 = pneg %p236
      // Predicated region
      $region51: #{generator_forward.50} parent=5 // pred_check
        _
      $region52: #{generator_forward.50} parent=5 // pred_check_branch
        %239 = sbr.rel (%p236) target = $region54
      $region53: #{generator_forward.50} parent=5 // pred_region
        %s240 = ssub.s32 %s9, 1
        %s241 = sand.u32 %s43, 1
        %s242 = sand.u32 %s43, 1
        %s243 = smul.addr %s242, 48
        %s244 = scalar_lea.vmem [#allocation3], %s243
        // Predicated region
        $region55: #{generator_forward.50} parent=53 // pred_check
          %p245 = pneg %p56
        $region56: #{generator_forward.50} parent=53 // pred_check_branch
          %247 = sbr.rel (%p245) target = $region58
        $region57: #{generator_forward.50} parent=53 // pred_region
          _
        $region58: #{generator_forward.50} parent=53 // pred_fallthru
          _
        %s248 = sand.u32 %s43, 1
        %s249 = sand.u32 %s43, 1
        %s250 = smul.addr %s249, 48
        %s251 = scalar_lea.vmem [#allocation3], %s250
        %p252 = pneg %p56
        %p253 = pneg %p53
        %s254 = smul.u32 48, %s21
        %s255 = smul.u32 2, %s20
        %p256 = scmp.lt.s32.totalorder %s254, 143
        %s257 = scalar_select %p256, %s254, 143
        %p258 = scmp.lt.s32.totalorder %s255, 1
        %s259 = scalar_select %p258, %s255, 1
        %s260 = smul.addr %s257, 2
        %s261 = sadd.s32 %s259, %s260
        %s262 = smul.addr %s261, 4
        %s263 = scalar_lea.vmem %s1, %s262
        %p264 = pneg %p84
        %p265 = pneg %p81
        %s266 = smul.u32 2, %s20
        %p267 = scmp.lt.s32.totalorder %s266, 1
        %s268 = scalar_select %p267, %s266, 1
        %s269 = scalar_lea.vmem %s2, %s268
        %p270 = pneg %p110
        %p271 = pneg %p107
        %p272 = pneg %p138
        %p273 = pneg %p135
        %s274 = smul.u32 4, %s19
        %s275 = smul.u32 2, %s20
        %p276 = scmp.lt.s32.totalorder %s274, 3
        %s277 = scalar_select %p276, %s274, 3
        %p278 = scmp.lt.s32.totalorder %s275, 1
        %s279 = scalar_select %p278, %s275, 1
        %s280 = smul.addr %s277, 2
        %s281 = sadd.s32 %s279, %s280
        %s282 = smul.addr %s281, 8
        %s283 = scalar_lea.vmem %s3, %s282
        %s284 = smul.u32 4, %s19
        %s285 = smul.u32 3, %s21
        %s286 = smul.u32 48, %s21
        %s287 = smul.u32 2, %s20
        %p288 = scmp.lt.s32.totalorder %s286, 143
        %s289 = scalar_select %p288, %s286, 143
        %p290 = scmp.lt.s32.totalorder %s287, 1
        %s291 = scalar_select %p290, %s287, 1
        %s292 = smul.addr %s289, 2
        %s293 = sadd.s32 %s291, %s292
        %s294 = smul.addr %s293, 4
        %s295 = scalar_lea.vmem %s1, %s294
        %s296 = smul.u32 48, %s21
        %s297 = smul.u32 2, %s20
        %s298 = smul.u32 2, %s20
        %p299 = scmp.lt.s32.totalorder %s298, 1
        %s300 = scalar_select %p299, %s298, 1
        %s301 = scalar_lea.vmem %s2, %s300
        %s302 = smul.u32 2, %s20
        %s303 = smul.u32 4, %s19
        %s304 = smul.u32 2, %s20
        %p305 = scmp.lt.s32.totalorder %s303, 3
        %s306 = scalar_select %p305, %s303, 3
        %p307 = scmp.lt.s32.totalorder %s304, 1
        %s308 = scalar_select %p307, %s304, 1
        %s309 = smul.addr %s306, 2
        %s310 = sadd.s32 %s308, %s309
        %s311 = smul.addr %s310, 8
        %s312 = scalar_lea.vmem %s3, %s311
        %s313 = smul.u32 4, %s19
        %s314 = smul.u32 2, %s20
        %p315 = scmp.eq.s32.totalorder %s21, 0
        // Predicated region
        $region59: #{generator_forward.50} parent=53 // pred_check
          %p316 = pneg %p315
        $region60: #{generator_forward.50} parent=53 // pred_check_branch
          %318 = sbr.rel (%p316) target = $region62
        $region61: #{generator_forward.50} parent=53 // pred_region
          %319 = vst [vmem:[#allocation2] sm:$0xff] 0.0
          %320 = vst [vmem:[#allocation2 + $0x8] sm:$0xff] 0.0
          %321 = vst [vmem:[#allocation2 + $0x10] sm:$0xff] 0.0
          %322 = vst [vmem:[#allocation2 + $0x18] sm:$0xff] 0.0
          %323 = vst [vmem:[#allocation2 + $0x20] sm:$0xff] 0.0
          %324 = vst [vmem:[#allocation2 + $0x28] sm:$0xff] 0.0
          %325 = vst [vmem:[#allocation2 + $0x30] sm:$0xff] 0.0
          %326 = vst [vmem:[#allocation2 + $0x38] sm:$0xff] 0.0
        $region62: #{generator_forward.50} parent=53 // pred_fallthru
          _
        %v327 = vld [vmem:[#allocation2] sm:$0xff]
        %v328 = vld [vmem:[#allocation2 + $0x8] sm:$0xff]
        %v329 = vld [vmem:[#allocation2 + $0x10] sm:$0xff]
        %v330 = vld [vmem:[#allocation2 + $0x18] sm:$0xff]
        %v331 = vld [vmem:[#allocation2 + $0x20] sm:$0xff]
        %v332 = vld [vmem:[#allocation2 + $0x28] sm:$0xff]
        %v333 = vld [vmem:[#allocation2 + $0x30] sm:$0xff]
        %v334 = vld [vmem:[#allocation2 + $0x38] sm:$0xff]
        %v335 = vld [vmem:[%s244] sm:$0xff]
        %v336 = vld [vmem:[%s244 + $0x8] sm:$0xf]
        %v337 = vld [vmem:[%s244 + $0xc] sm:$0xff]
        %v338 = vld [vmem:[%s244 + $0x14] sm:$0xf]
        %v339 = vld [vmem:[%s244 + $0x18] sm:$0xff]
        %v340 = vld [vmem:[%s244 + $0x20] sm:$0xf]
        %v341 = vld [vmem:[%s244 + $0x24] sm:$0xff]
        %v342 = vld [vmem:[%s244 + $0x2c] sm:$0xf]
        %v343 = vld [vmem:[%s295] sm:$0xff]
        %v344 = vld [vmem:[%s295 + $0x8] sm:$0xff]
        %v345 = vld [vmem:[%s295 + $0x10] sm:$0xff]
        %v346 = vld [vmem:[%s295 + $0x18] sm:$0xff]
        %v347 = vld [vmem:[%s295 + $0x20] sm:$0xff]
        %v348 = vld [vmem:[%s295 + $0x28] sm:$0xff]
        %v349 = vld [vmem:[%s295 + $0x30] sm:$0xff]
        %v350 = vld [vmem:[%s295 + $0x38] sm:$0xff]
        %v351 = vld [vmem:[%s295 + $0x40] sm:$0xff]
        %v352 = vld [vmem:[%s295 + $0x48] sm:$0xff]
        %v353 = vld [vmem:[%s295 + $0x50] sm:$0xff]
        %v354 = vld [vmem:[%s295 + $0x58] sm:$0xff]
        %v355 = vld [vmem:[%s295 + $0x60] sm:$0xff]
        %v356 = vld [vmem:[%s295 + $0x68] sm:$0xff]
        %v357 = vld [vmem:[%s295 + $0x70] sm:$0xff]
        %v358 = vld [vmem:[%s295 + $0x78] sm:$0xff]
        %v359 = vld [vmem:[%s295 + $0x80] sm:$0xff]
        %v360 = vld [vmem:[%s295 + $0x88] sm:$0xff]
        %v361 = vld [vmem:[%s295 + $0x90] sm:$0xff]
        %v362 = vld [vmem:[%s295 + $0x98] sm:$0xff]
        %v363 = vld [vmem:[%s295 + $0xa0] sm:$0xff]
        %v364 = vld [vmem:[%s295 + $0xa8] sm:$0xff]
        %v365 = vld [vmem:[%s295 + $0xb0] sm:$0xff]
        %v366 = vld [vmem:[%s295 + $0xb8] sm:$0xff]
        %v367 = vld [vmem:[%s295 + $0xc0] sm:$0xff]
        %v368 = vld [vmem:[%s295 + $0xc8] sm:$0xff]
        %v369 = vld [vmem:[%s295 + $0xd0] sm:$0xff]
        %v370 = vld [vmem:[%s295 + $0xd8] sm:$0xff]
        %v371 = vld [vmem:[%s295 + $0xe0] sm:$0xff]
        %v372 = vld [vmem:[%s295 + $0xe8] sm:$0xff]
        %v373 = vld [vmem:[%s295 + $0xf0] sm:$0xff]
        %v374 = vld [vmem:[%s295 + $0xf8] sm:$0xff]
        %v375 = vld [vmem:[%s295 + $0x100] sm:$0xff]
        %v376 = vld [vmem:[%s295 + $0x108] sm:$0xff]
        %v377 = vld [vmem:[%s295 + $0x110] sm:$0xff]
        %v378 = vld [vmem:[%s295 + $0x118] sm:$0xff]
        %v379 = vld [vmem:[%s295 + $0x120] sm:$0xff]
        %v380 = vld [vmem:[%s295 + $0x128] sm:$0xff]
        %v381 = vld [vmem:[%s295 + $0x130] sm:$0xff]
        %v382 = vld [vmem:[%s295 + $0x138] sm:$0xff]
        %v383 = vld [vmem:[%s295 + $0x140] sm:$0xff]
        %v384 = vld [vmem:[%s295 + $0x148] sm:$0xff]
        %v385 = vld [vmem:[%s295 + $0x150] sm:$0xff]
        %v386 = vld [vmem:[%s295 + $0x158] sm:$0xff]
        %v387 = vld [vmem:[%s295 + $0x160] sm:$0xff]
        %v388 = vld [vmem:[%s295 + $0x168] sm:$0xff]
        %v389 = vld [vmem:[%s295 + $0x170] sm:$0xff]
        %v390 = vld [vmem:[%s295 + $0x178] sm:$0xff]
        %v399 = vunpack.c.l.b16 %v335
        %v400 = vunpack.c.h.b16 %v335
        %v401 = vunpack.c.l.b16 %v336
        %v402 = vunpack.c.l.b16 %v337
        %v403 = vunpack.c.h.b16 %v337
        %v404 = vunpack.c.l.b16 %v338
        %v405 = vunpack.c.l.b16 %v339
        %v406 = vunpack.c.h.b16 %v339
        %v407 = vunpack.c.l.b16 %v340
        %v408 = vunpack.c.l.b16 %v341
        %v409 = vunpack.c.h.b16 %v341
        %v410 = vunpack.c.l.b16 %v342
        %v411 = vpack.c.b16 %v402, %v399
        %v412 = vpack.c.b16 %v403, %v400
        %v413 = vpack.c.b16 %v404, %v401
        %v414 = vpack.c.b16 %v408, %v405
        %v415 = vpack.c.b16 %v409, %v406
        %v416 = vpack.c.b16 %v410, %v407
        %v471 = vunpack.c.l.b16 %v343
        %v472 = vunpack.c.h.b16 %v343
        %v473 = vunpack.c.l.b16 %v344
        %v474 = vunpack.c.h.b16 %v344
        %v475 = vunpack.c.l.b16 %v345
        %v476 = vunpack.c.h.b16 %v345
        %v477 = vunpack.c.l.b16 %v346
        %v478 = vunpack.c.h.b16 %v346
        %v479 = vunpack.c.l.b16 %v347
        %v480 = vunpack.c.h.b16 %v347
        %v481 = vunpack.c.l.b16 %v348
        %v482 = vunpack.c.h.b16 %v348
        %v483 = vunpack.c.l.b16 %v349
        %v484 = vunpack.c.h.b16 %v349
        %v485 = vunpack.c.l.b16 %v350
        %v486 = vunpack.c.h.b16 %v350
        %v487 = vunpack.c.l.b16 %v351
        %v488 = vunpack.c.h.b16 %v351
        %v489 = vunpack.c.l.b16 %v352
        %v490 = vunpack.c.h.b16 %v352
        %v491 = vunpack.c.l.b16 %v353
        %v492 = vunpack.c.h.b16 %v353
        %v493 = vunpack.c.l.b16 %v354
        %v494 = vunpack.c.h.b16 %v354
        %v495 = vunpack.c.l.b16 %v355
        %v496 = vunpack.c.h.b16 %v355
        %v497 = vunpack.c.l.b16 %v356
        %v498 = vunpack.c.h.b16 %v356
        %v499 = vunpack.c.l.b16 %v357
        %v500 = vunpack.c.h.b16 %v357
        %v501 = vunpack.c.l.b16 %v358
        %v502 = vunpack.c.h.b16 %v358
        %v503 = vunpack.c.l.b16 %v359
        %v504 = vunpack.c.h.b16 %v359
        %v505 = vunpack.c.l.b16 %v360
        %v506 = vunpack.c.h.b16 %v360
        %v507 = vunpack.c.l.b16 %v361
        %v508 = vunpack.c.h.b16 %v361
        %v509 = vunpack.c.l.b16 %v362
        %v510 = vunpack.c.h.b16 %v362
        %v511 = vunpack.c.l.b16 %v363
        %v512 = vunpack.c.h.b16 %v363
        %v513 = vunpack.c.l.b16 %v364
        %v514 = vunpack.c.h.b16 %v364
        %v515 = vunpack.c.l.b16 %v365
        %v516 = vunpack.c.h.b16 %v365
        %v517 = vunpack.c.l.b16 %v366
        %v518 = vunpack.c.h.b16 %v366
        %v519 = vunpack.c.l.b16 %v367
        %v520 = vunpack.c.h.b16 %v367
        %v521 = vunpack.c.l.b16 %v368
        %v522 = vunpack.c.h.b16 %v368
        %v523 = vunpack.c.l.b16 %v369
        %v524 = vunpack.c.h.b16 %v369
        %v525 = vunpack.c.l.b16 %v370
        %v526 = vunpack.c.h.b16 %v370
        %v527 = vunpack.c.l.b16 %v371
        %v528 = vunpack.c.h.b16 %v371
        %v529 = vunpack.c.l.b16 %v372
        %v530 = vunpack.c.h.b16 %v372
        %v531 = vunpack.c.l.b16 %v373
        %v532 = vunpack.c.h.b16 %v373
        %v533 = vunpack.c.l.b16 %v374
        %v534 = vunpack.c.h.b16 %v374
        %v535 = vunpack.c.l.b16 %v375
        %v536 = vunpack.c.h.b16 %v375
        %v537 = vunpack.c.l.b16 %v376
        %v538 = vunpack.c.h.b16 %v376
        %v539 = vunpack.c.l.b16 %v377
        %v540 = vunpack.c.h.b16 %v377
        %v541 = vunpack.c.l.b16 %v378
        %v542 = vunpack.c.h.b16 %v378
        %v543 = vunpack.c.l.b16 %v379
        %v544 = vunpack.c.h.b16 %v379
        %v545 = vunpack.c.l.b16 %v380
        %v546 = vunpack.c.h.b16 %v380
        %v547 = vunpack.c.l.b16 %v381
        %v548 = vunpack.c.h.b16 %v381
        %v549 = vunpack.c.l.b16 %v382
        %v550 = vunpack.c.h.b16 %v382
        %v551 = vunpack.c.l.b16 %v383
        %v552 = vunpack.c.h.b16 %v383
        %v553 = vunpack.c.l.b16 %v384
        %v554 = vunpack.c.h.b16 %v384
        %v555 = vunpack.c.l.b16 %v385
        %v556 = vunpack.c.h.b16 %v385
        %v557 = vunpack.c.l.b16 %v386
        %v558 = vunpack.c.h.b16 %v386
        %v559 = vunpack.c.l.b16 %v387
        %v560 = vunpack.c.h.b16 %v387
        %v561 = vunpack.c.l.b16 %v388
        %v562 = vunpack.c.h.b16 %v388
        %v563 = vunpack.c.l.b16 %v389
        %v564 = vunpack.c.h.b16 %v389
        %v565 = vunpack.c.l.b16 %v390
        %v566 = vunpack.c.h.b16 %v390
        %v567 = vpack.c.b16 %v473, %v471
        %v568 = vpack.c.b16 %v474, %v472
        %v569 = vpack.c.b16 %v477, %v475
        %v570 = vpack.c.b16 %v478, %v476
        %v571 = vpack.c.b16 %v481, %v479
        %v572 = vpack.c.b16 %v482, %v480
        %v573 = vpack.c.b16 %v485, %v483
        %v574 = vpack.c.b16 %v486, %v484
        %v575 = vpack.c.b16 %v489, %v487
        %v576 = vpack.c.b16 %v490, %v488
        %v577 = vpack.c.b16 %v493, %v491
        %v578 = vpack.c.b16 %v494, %v492
        %v579 = vpack.c.b16 %v497, %v495
        %v580 = vpack.c.b16 %v498, %v496
        %v581 = vpack.c.b16 %v501, %v499
        %v582 = vpack.c.b16 %v502, %v500
        %v583 = vpack.c.b16 %v505, %v503
        %v584 = vpack.c.b16 %v506, %v504
        %v585 = vpack.c.b16 %v509, %v507
        %v586 = vpack.c.b16 %v510, %v508
        %v587 = vpack.c.b16 %v513, %v511
        %v588 = vpack.c.b16 %v514, %v512
        %v589 = vpack.c.b16 %v517, %v515
        %v590 = vpack.c.b16 %v518, %v516
        %v591 = vpack.c.b16 %v521, %v519
        %v592 = vpack.c.b16 %v522, %v520
        %v593 = vpack.c.b16 %v525, %v523
        %v594 = vpack.c.b16 %v526, %v524
        %v595 = vpack.c.b16 %v529, %v527
        %v596 = vpack.c.b16 %v530, %v528
        %v597 = vpack.c.b16 %v533, %v531
        %v598 = vpack.c.b16 %v534, %v532
        %v599 = vpack.c.b16 %v537, %v535
        %v600 = vpack.c.b16 %v538, %v536
        %v601 = vpack.c.b16 %v541, %v539
        %v602 = vpack.c.b16 %v542, %v540
        %v603 = vpack.c.b16 %v545, %v543
        %v604 = vpack.c.b16 %v546, %v544
        %v605 = vpack.c.b16 %v549, %v547
        %v606 = vpack.c.b16 %v550, %v548
        %v607 = vpack.c.b16 %v553, %v551
        %v608 = vpack.c.b16 %v554, %v552
        %v609 = vpack.c.b16 %v557, %v555
        %v610 = vpack.c.b16 %v558, %v556
        %v611 = vpack.c.b16 %v561, %v559
        %v612 = vpack.c.b16 %v562, %v560
        %v613 = vpack.c.b16 %v565, %v563
        %v614 = vpack.c.b16 %v566, %v564
        %663 = vmatpush.bf16.msra.mxu0 %v581
        %664 = vmatpush.bf16.msra.mxu0 %v579
        %665 = vmatpush.bf16.msra.mxu0 %v577
        %666 = vmatpush.bf16.msra.mxu0 %v575
        %667 = vmatpush.bf16.msra.mxu0 %v573
        %668 = vmatpush.bf16.msra.mxu0 %v571
        %669 = vmatpush.bf16.msra.mxu0 %v569
        %670 = vmatpush.bf16.msra.mxu0 %v567
        %671 = vmatmul.bf16.gmra.mxu0 %v411
        %v672 = vpop.f32.mrf.mxu0
        %v673 = vadd.f32 0.0, %v672
        %v674 = vpop.f32.mrf.mxu0
        %v675 = vadd.f32 0.0, %v674
        %676 = vmatmul.bf16.gmra.mxu0 %v414
        %v677 = vpop.f32.mrf.mxu0
        %v678 = vadd.f32 0.0, %v677
        %v679 = vpop.f32.mrf.mxu0
        %v680 = vadd.f32 0.0, %v679
        %681 = vdwg.mxu0
        %682 = vmatpush.bf16.msra.mxu0 %v597
        %683 = vmatpush.bf16.msra.mxu0 %v595
        %684 = vmatpush.bf16.msra.mxu0 %v593
        %685 = vmatpush.bf16.msra.mxu0 %v591
        %686 = vmatpush.bf16.msra.mxu0 %v589
        %687 = vmatpush.bf16.msra.mxu0 %v587
        %688 = vmatpush.bf16.msra.mxu0 %v585
        %689 = vmatpush.bf16.msra.mxu0 %v583
        %690 = vmatmul.bf16.gmra.mxu0 %v412
        %v691 = vpop.f32.mrf.mxu0
        %v692 = vadd.f32 %v673, %v691
        %v693 = vpop.f32.mrf.mxu0
        %v694 = vadd.f32 %v675, %v693
        %695 = vmatmul.bf16.gmra.mxu0 %v415
        %v696 = vpop.f32.mrf.mxu0
        %v697 = vadd.f32 %v678, %v696
        %v698 = vpop.f32.mrf.mxu0
        %v699 = vadd.f32 %v680, %v698
        %700 = vdwg.mxu0
        %701 = vmatpush.bf16.msra.mxu0 %v613
        %702 = vmatpush.bf16.msra.mxu0 %v611
        %703 = vmatpush.bf16.msra.mxu0 %v609
        %704 = vmatpush.bf16.msra.mxu0 %v607
        %705 = vmatpush.bf16.msra.mxu0 %v605
        %706 = vmatpush.bf16.msra.mxu0 %v603
        %707 = vmatpush.bf16.msra.mxu0 %v601
        %708 = vmatpush.bf16.msra.mxu0 %v599
        %709 = vmatmul.bf16.gmra.mxu0 %v413
        %v710 = vpop.f32.mrf.mxu0
        %v711 = vadd.f32 %v692, %v710
        %v712 = vpop.f32.mrf.mxu0
        %v713 = vadd.f32 %v694, %v712
        %714 = vmatmul.bf16.gmra.mxu0 %v416
        %v715 = vpop.f32.mrf.mxu0
        %v716 = vadd.f32 %v697, %v715
        %v717 = vpop.f32.mrf.mxu0
        %v718 = vadd.f32 %v699, %v717
        %719 = vdwg.mxu0
        %720 = vmatpush.bf16.msra.mxu0 %v582
        %721 = vmatpush.bf16.msra.mxu0 %v580
        %722 = vmatpush.bf16.msra.mxu0 %v578
        %723 = vmatpush.bf16.msra.mxu0 %v576
        %724 = vmatpush.bf16.msra.mxu0 %v574
        %725 = vmatpush.bf16.msra.mxu0 %v572
        %726 = vmatpush.bf16.msra.mxu0 %v570
        %727 = vmatpush.bf16.msra.mxu0 %v568
        %728 = vmatmul.bf16.gmra.mxu0 %v411
        %v729 = vpop.f32.mrf.mxu0
        %v730 = vadd.f32 0.0, %v729
        %v731 = vpop.f32.mrf.mxu0
        %v732 = vadd.f32 0.0, %v731
        %733 = vmatmul.bf16.gmra.mxu0 %v414
        %v734 = vpop.f32.mrf.mxu0
        %v735 = vadd.f32 0.0, %v734
        %v736 = vpop.f32.mrf.mxu0
        %v737 = vadd.f32 0.0, %v736
        %738 = vdwg.mxu0
        %739 = vmatpush.bf16.msra.mxu0 %v598
        %740 = vmatpush.bf16.msra.mxu0 %v596
        %741 = vmatpush.bf16.msra.mxu0 %v594
        %742 = vmatpush.bf16.msra.mxu0 %v592
        %743 = vmatpush.bf16.msra.mxu0 %v590
        %744 = vmatpush.bf16.msra.mxu0 %v588
        %745 = vmatpush.bf16.msra.mxu0 %v586
        %746 = vmatpush.bf16.msra.mxu0 %v584
        %747 = vmatmul.bf16.gmra.mxu0 %v412
        %v748 = vpop.f32.mrf.mxu0
        %v749 = vadd.f32 %v730, %v748
        %v750 = vpop.f32.mrf.mxu0
        %v751 = vadd.f32 %v732, %v750
        %752 = vmatmul.bf16.gmra.mxu0 %v415
        %v753 = vpop.f32.mrf.mxu0
        %v754 = vadd.f32 %v735, %v753
        %v755 = vpop.f32.mrf.mxu0
        %v756 = vadd.f32 %v737, %v755
        %757 = vdwg.mxu0
        %758 = vmatpush.bf16.msra.mxu0 %v614
        %759 = vmatpush.bf16.msra.mxu0 %v612
        %760 = vmatpush.bf16.msra.mxu0 %v610
        %761 = vmatpush.bf16.msra.mxu0 %v608
        %762 = vmatpush.bf16.msra.mxu0 %v606
        %763 = vmatpush.bf16.msra.mxu0 %v604
        %764 = vmatpush.bf16.msra.mxu0 %v602
        %765 = vmatpush.bf16.msra.mxu0 %v600
        %766 = vmatmul.bf16.gmra.mxu0 %v413
        %v767 = vpop.f32.mrf.mxu0
        %v768 = vadd.f32 %v749, %v767
        %v769 = vpop.f32.mrf.mxu0
        %v770 = vadd.f32 %v751, %v769
        %771 = vmatmul.bf16.gmra.mxu0 %v416
        %v772 = vpop.f32.mrf.mxu0
        %v773 = vadd.f32 %v754, %v772
        %v774 = vpop.f32.mrf.mxu0
        %v775 = vadd.f32 %v756, %v774
        %776 = vdwg.mxu0
        %v777 = vadd.f32 %v327, %v711
        %v778 = vadd.f32 %v328, %v768
        %v779 = vadd.f32 %v329, %v713
        %v780 = vadd.f32 %v330, %v770
        %v781 = vadd.f32 %v331, %v716
        %v782 = vadd.f32 %v332, %v773
        %v783 = vadd.f32 %v333, %v718
        %v784 = vadd.f32 %v334, %v775
        %785 = vst [vmem:[#allocation2] sm:$0xff] %v777
        %786 = vst [vmem:[#allocation2 + $0x8] sm:$0xff] %v778
        %787 = vst [vmem:[#allocation2 + $0x10] sm:$0xff] %v779
        %788 = vst [vmem:[#allocation2 + $0x18] sm:$0xff] %v780
        %789 = vst [vmem:[#allocation2 + $0x20] sm:$0xff] %v781
        %790 = vst [vmem:[#allocation2 + $0x28] sm:$0xff] %v782
        %791 = vst [vmem:[#allocation2 + $0x30] sm:$0xff] %v783
        %792 = vst [vmem:[#allocation2 + $0x38] sm:$0xff] %v784
        %p793 = scmp.eq.s32.totalorder %s21, 2
        // Predicated region
        $region63: #{generator_forward.50} parent=53 // pred_check
          %p794 = pneg %p793
        $region64: #{generator_forward.50} parent=53 // pred_check_branch
          %796 = sbr.rel (%p794) target = $region66
        $region65: #{generator_forward.50} parent=53 // pred_region
          %v797 = vld [vmem:[#allocation2] sm:$0xff]
          %v798 = vld [vmem:[#allocation2 + $0x8] sm:$0xff]
          %v799 = vld [vmem:[#allocation2 + $0x10] sm:$0xff]
          %v800 = vld [vmem:[#allocation2 + $0x18] sm:$0xff]
          %v801 = vld [vmem:[#allocation2 + $0x20] sm:$0xff]
          %v802 = vld [vmem:[#allocation2 + $0x28] sm:$0xff]
          %v803 = vld [vmem:[#allocation2 + $0x30] sm:$0xff]
          %v804 = vld [vmem:[#allocation2 + $0x38] sm:$0xff]
          %v805 = vld [vmem:[%s301] sm:$0x3]
          %v807 = vperm.slane %v805, 0
          %v808 = vperm.slane %v805, 1
          %v811 = vadd.f32 %v797, %v807
          %v812 = vadd.f32 %v798, %v808
          %v813 = vadd.f32 %v799, %v807
          %v814 = vadd.f32 %v800, %v808
          %v815 = vadd.f32 %v801, %v807
          %v816 = vadd.f32 %v802, %v808
          %v817 = vadd.f32 %v803, %v807
          %v818 = vadd.f32 %v804, %v808
          %819 = vst [vmem:[%s312] sm:$0xff] %v811
          %820 = vst [vmem:[%s312 + $0x8] sm:$0xff] %v812
          %821 = vst [vmem:[%s312 + $0x10] sm:$0xff] %v813
          %822 = vst [vmem:[%s312 + $0x18] sm:$0xff] %v814
          %823 = vst [vmem:[%s312 + $0x20] sm:$0xff] %v815
          %824 = vst [vmem:[%s312 + $0x28] sm:$0xff] %v816
          %825 = vst [vmem:[%s312 + $0x30] sm:$0xff] %v817
          %826 = vst [vmem:[%s312 + $0x38] sm:$0xff] %v818
        $region66: #{generator_forward.50} parent=53 // pred_fallthru
          _
        %s827 = smul.u32 4, %s19
        %s828 = smul.u32 2, %s20
        %p829 = scmp.lt.s32.totalorder %s827, 3
        %s830 = scalar_select %p829, %s827, 3
        %p831 = scmp.lt.s32.totalorder %s828, 1
        %s832 = scalar_select %p831, %s828, 1
        %s833 = smul.addr %s830, 2
        %s834 = sadd.s32 %s832, %s833
        %s835 = smul.addr %s834, 8
        %s836 = scalar_lea.vmem %s3, %s835
        // Predicated region
        $region67: #{generator_forward.50} parent=53 // pred_check
          %p837 = pneg %p135
        $region68: #{generator_forward.50} parent=53 // pred_check_branch
          %839 = sbr.rel (%p837) target = $region70
        $region69: #{generator_forward.50} parent=53 // pred_region
          %s840 = smul.u32 4, %s19
          %s841 = smul.u32 2, %s20
        $region70: #{generator_forward.50} parent=53 // pred_fallthru
          _
        // Predicated region
        $region71: #{generator_forward.50} parent=53 // pred_check
          %p842 = pneg %p135
        $region72: #{generator_forward.50} parent=53 // pred_check_branch
          %844 = sbr.rel (%p842) target = $region74
        $region73: #{generator_forward.50} parent=53 // pred_region
          %s845 = smul.u32 4, %s19
          %s846 = smul.u32 2, %s20
          %p847 = scmp.lt.s32.totalorder %s845, 3
          %s848 = scalar_select %p847, %s845, 3
          %p849 = scmp.lt.s32.totalorder %s846, 1
          %s850 = scalar_select %p849, %s846, 1
          %s851 = smul.addr %s848, 2
          %s852 = sadd.s32 %s850, %s851
          %s853 = smul.addr %s852, 8
          %s854 = scalar_lea.vmem %s3, %s853
        $region74: #{generator_forward.50} parent=53 // pred_fallthru
          _
      $region54: #{generator_forward.50} parent=5 // pred_fallthru
        _
      %p855 = scmp.le.s32.totalorder 2, %s9
      // Predicated region
      $region75: #{generator_forward.50} parent=5 // pred_check
        %p856 = pneg %p855
      $region76: #{generator_forward.50} parent=5 // pred_check_branch
        %858 = sbr.rel (%p856) target = $region78
      $region77: #{generator_forward.50} parent=5 // pred_region
        %s859 = ssub.s32 %s9, 2
      $region78: #{generator_forward.50} parent=5 // pred_fallthru
        _
    $region6: #{generator_forward.50} parent=1 // loop_footer
      %s13 = sadd.s32 1, %s9
    $region7: #{generator_forward.50} parent=1 // loop_footer_branch
      %8 = sbr.rel target = $region3
    $region8: #{generator_forward.50} parent=1 // loop_exit
      _

// kernel: generator_forward.52
$region0: #{generator_forward.52}
  #allocation0 [shape = 'u32[]', space=smem, size = 0x4, offset = 0x4, fixed_abs, tag = 'smem constant byte address 0x4 - core index']
  #allocation1 [shape = 'u32[72,128]{1,0:T(1,128)}', space=vmem, size = 0x9000, scoped, tag = 'internal scratch']
  %s0 = inlined_call_operand.vmem [shape: f32[32,256], index: 0, kind: input, shape index: {}]
  %s1 = inlined_call_operand.vmem [shape: f32[1,256], index: 1, kind: input, shape index: {}]
  %s2 = inlined_call_operand.vmem [shape: f32[1,256], index: 2, kind: input, shape index: {}]
  %s3 = inlined_call_operand.vmem [shape: f32[32,256], index: 3, kind: output, shape index: {}]
  %s4 = sld [smem:[#allocation0]]
  $region22: #{generator_forward.52} parent=0
    _
  %s6 = ssub.s32 1, %s4
  %s7 = scalar_select 0, %s6, %s4
  // Predicated region
  $region2: #{generator_forward.52} parent=0 // pred_check
    _
  $region3: #{generator_forward.52} parent=0 // pred_check_branch
    %9 = sbr.rel (0) target = $region5
  $region4: #{generator_forward.52} parent=0 // pred_region
    _
  $region5: #{generator_forward.52} parent=0 // pred_fallthru
    _
  // Predicated region
  $region6: #{generator_forward.52} parent=0 // pred_check
    _
  $region7: #{generator_forward.52} parent=0 // pred_check_branch
    %11 = sbr.rel (0) target = $region9
  $region8: #{generator_forward.52} parent=0 // pred_region
    _
  $region9: #{generator_forward.52} parent=0 // pred_fallthru
    _
  // Predicated region
  $region10: #{generator_forward.52} parent=0 // pred_check
    _
  $region11: #{generator_forward.52} parent=0 // pred_check_branch
    %13 = sbr.rel (0) target = $region13
  $region12: #{generator_forward.52} parent=0 // pred_region
    _
  $region13: #{generator_forward.52} parent=0 // pred_fallthru
    _
  %v14 = vld [vmem:[%s0] sm:$0xff]
  %v15 = vld [vmem:[%s0 + $0x8] sm:$0xff]
  %v16 = vld [vmem:[%s0 + $0x10] sm:$0xff]
  %v17 = vld [vmem:[%s0 + $0x18] sm:$0xff]
  %v18 = vld [vmem:[%s0 + $0x20] sm:$0xff]
  %v19 = vld [vmem:[%s0 + $0x28] sm:$0xff]
  %v20 = vld [vmem:[%s0 + $0x30] sm:$0xff]
  %v21 = vld [vmem:[%s0 + $0x38] sm:$0xff]
  %v22 = vld [vmem:[%s1] sm:$0x3]
  %v24 = vperm.slane %v22, 0
  %v25 = vperm.slane %v22, 1
  %v28 = vmul.f32 %v14, %v24
  %v29 = vmul.f32 %v15, %v25
  %v30 = vmul.f32 %v16, %v24
  %v31 = vmul.f32 %v17, %v25
  %v32 = vmul.f32 %v18, %v24
  %v33 = vmul.f32 %v19, %v25
  %v34 = vmul.f32 %v20, %v24
  %v35 = vmul.f32 %v21, %v25
  %v36 = vld [vmem:[%s2] sm:$0x3]
  %v38 = vperm.slane %v36, 0
  %v39 = vperm.slane %v36, 1
  %v42 = vadd.f32 %v28, %v38
  %v43 = vadd.f32 %v29, %v39
  %v44 = vadd.f32 %v30, %v38
  %v45 = vadd.f32 %v31, %v39
  %v46 = vadd.f32 %v32, %v38
  %v47 = vadd.f32 %v33, %v39
  %v48 = vadd.f32 %v34, %v38
  %v49 = vadd.f32 %v35, %v39
  %v50 = vmax.f32 %v42, 0.0
  %v51 = vmax.f32 %v43, 0.0
  %v52 = vmax.f32 %v44, 0.0
  %v53 = vmax.f32 %v45, 0.0
  %v54 = vmax.f32 %v46, 0.0
  %v55 = vmax.f32 %v47, 0.0
  %v56 = vmax.f32 %v48, 0.0
  %v57 = vmax.f32 %v49, 0.0
  %58 = vst [vmem:[%s3] sm:$0xff] %v50
  %59 = vst [vmem:[%s3 + $0x8] sm:$0xff] %v51
  %60 = vst [vmem:[%s3 + $0x10] sm:$0xff] %v52
  %61 = vst [vmem:[%s3 + $0x18] sm:$0xff] %v53
  %62 = vst [vmem:[%s3 + $0x20] sm:$0xff] %v54
  %63 = vst [vmem:[%s3 + $0x28] sm:$0xff] %v55
  %64 = vst [vmem:[%s3 + $0x30] sm:$0xff] %v56
  %65 = vst [vmem:[%s3 + $0x38] sm:$0xff] %v57
  // Predicated region
  $region14: #{generator_forward.52} parent=0 // pred_check
    _
  $region15: #{generator_forward.52} parent=0 // pred_check_branch
    %67 = sbr.rel (0) target = $region17
  $region16: #{generator_forward.52} parent=0 // pred_region
    _
  $region17: #{generator_forward.52} parent=0 // pred_fallthru
    _
  // Predicated region
  $region18: #{generator_forward.52} parent=0 // pred_check
    _
  $region19: #{generator_forward.52} parent=0 // pred_check_branch
    %69 = sbr.rel (0) target = $region21
  $region20: #{generator_forward.52} parent=0 // pred_region
    _
  $region21: #{generator_forward.52} parent=0 // pred_fallthru
    _

// kernel: generator_forward.54
$region0: #{generator_forward.54}
  #allocation0 [shape = 'u32[]', space=smem, size = 0x4, offset = 0x4, fixed_abs, tag = 'smem constant byte address 0x4 - core index']
  #allocation1 [shape = 'u32[72,128]{1,0:T(1,128)}', space=vmem, size = 0x9000, scoped, tag = 'internal scratch']
  %s0 = inlined_call_operand.vmem [shape: f32[32,256], index: 0, kind: input, shape index: {}]
  %s1 = inlined_call_operand.vmem [shape: f32[1,256], index: 1, kind: input, shape index: {}]
  %s2 = inlined_call_operand.vmem [shape: f32[1,256], index: 2, kind: input, shape index: {}]
  %s3 = inlined_call_operand.vmem [shape: f32[32,256], index: 3, kind: input, shape index: {}]
  %s4 = inlined_call_operand.vmem [shape: f32[32,256], index: 4, kind: output, shape index: {}]
  %s5 = sld [smem:[#allocation0]]
  $region26: #{generator_forward.54} parent=0
    _
  %s7 = ssub.s32 1, %s5
  %s8 = scalar_select 0, %s7, %s5
  // Predicated region
  $region2: #{generator_forward.54} parent=0 // pred_check
    _
  $region3: #{generator_forward.54} parent=0 // pred_check_branch
    %10 = sbr.rel (0) target = $region5
  $region4: #{generator_forward.54} parent=0 // pred_region
    _
  $region5: #{generator_forward.54} parent=0 // pred_fallthru
    _
  // Predicated region
  $region6: #{generator_forward.54} parent=0 // pred_check
    _
  $region7: #{generator_forward.54} parent=0 // pred_check_branch
    %12 = sbr.rel (0) target = $region9
  $region8: #{generator_forward.54} parent=0 // pred_region
    _
  $region9: #{generator_forward.54} parent=0 // pred_fallthru
    _
  // Predicated region
  $region10: #{generator_forward.54} parent=0 // pred_check
    _
  $region11: #{generator_forward.54} parent=0 // pred_check_branch
    %14 = sbr.rel (0) target = $region13
  $region12: #{generator_forward.54} parent=0 // pred_region
    _
  $region13: #{generator_forward.54} parent=0 // pred_fallthru
    _
  // Predicated region
  $region14: #{generator_forward.54} parent=0 // pred_check
    _
  $region15: #{generator_forward.54} parent=0 // pred_check_branch
    %16 = sbr.rel (0) target = $region17
  $region16: #{generator_forward.54} parent=0 // pred_region
    _
  $region17: #{generator_forward.54} parent=0 // pred_fallthru
    _
  %v17 = vld [vmem:[%s0] sm:$0xff]
  %v18 = vld [vmem:[%s0 + $0x8] sm:$0xff]
  %v19 = vld [vmem:[%s0 + $0x10] sm:$0xff]
  %v20 = vld [vmem:[%s0 + $0x18] sm:$0xff]
  %v21 = vld [vmem:[%s0 + $0x20] sm:$0xff]
  %v22 = vld [vmem:[%s0 + $0x28] sm:$0xff]
  %v23 = vld [vmem:[%s0 + $0x30] sm:$0xff]
  %v24 = vld [vmem:[%s0 + $0x38] sm:$0xff]
  %v25 = vld [vmem:[%s1] sm:$0x3]
  %v27 = vperm.slane %v25, 0
  %v28 = vperm.slane %v25, 1
  %v31 = vmul.f32 %v17, %v27
  %v32 = vmul.f32 %v18, %v28
  %v33 = vmul.f32 %v19, %v27
  %v34 = vmul.f32 %v20, %v28
  %v35 = vmul.f32 %v21, %v27
  %v36 = vmul.f32 %v22, %v28
  %v37 = vmul.f32 %v23, %v27
  %v38 = vmul.f32 %v24, %v28
  %v39 = vld [vmem:[%s2] sm:$0x3]
  %v41 = vperm.slane %v39, 0
  %v42 = vperm.slane %v39, 1
  %v45 = vadd.f32 %v31, %v41
  %v46 = vadd.f32 %v32, %v42
  %v47 = vadd.f32 %v33, %v41
  %v48 = vadd.f32 %v34, %v42
  %v49 = vadd.f32 %v35, %v41
  %v50 = vadd.f32 %v36, %v42
  %v51 = vadd.f32 %v37, %v41
  %v52 = vadd.f32 %v38, %v42
  %v53 = vld [vmem:[%s3] sm:$0xff]
  %v54 = vld [vmem:[%s3 + $0x8] sm:$0xff]
  %v55 = vld [vmem:[%s3 + $0x10] sm:$0xff]
  %v56 = vld [vmem:[%s3 + $0x18] sm:$0xff]
  %v57 = vld [vmem:[%s3 + $0x20] sm:$0xff]
  %v58 = vld [vmem:[%s3 + $0x28] sm:$0xff]
  %v59 = vld [vmem:[%s3 + $0x30] sm:$0xff]
  %v60 = vld [vmem:[%s3 + $0x38] sm:$0xff]
  %v61 = vadd.f32 %v45, %v53
  %v62 = vadd.f32 %v46, %v54
  %v63 = vadd.f32 %v47, %v55
  %v64 = vadd.f32 %v48, %v56
  %v65 = vadd.f32 %v49, %v57
  %v66 = vadd.f32 %v50, %v58
  %v67 = vadd.f32 %v51, %v59
  %v68 = vadd.f32 %v52, %v60
  %69 = vst [vmem:[%s4] sm:$0xff] %v61
  %70 = vst [vmem:[%s4 + $0x8] sm:$0xff] %v62
  %71 = vst [vmem:[%s4 + $0x10] sm:$0xff] %v63
  %72 = vst [vmem:[%s4 + $0x18] sm:$0xff] %v64
  %73 = vst [vmem:[%s4 + $0x20] sm:$0xff] %v65
  %74 = vst [vmem:[%s4 + $0x28] sm:$0xff] %v66
  %75 = vst [vmem:[%s4 + $0x30] sm:$0xff] %v67
  %76 = vst [vmem:[%s4 + $0x38] sm:$0xff] %v68
  // Predicated region
  $region18: #{generator_forward.54} parent=0 // pred_check
    _
  $region19: #{generator_forward.54} parent=0 // pred_check_branch
    %78 = sbr.rel (0) target = $region21
  $region20: #{generator_forward.54} parent=0 // pred_region
    _
  $region21: #{generator_forward.54} parent=0 // pred_fallthru
    _
  // Predicated region
  $region22: #{generator_forward.54} parent=0 // pred_check
    _
  $region23: #{generator_forward.54} parent=0 // pred_check_branch
    %80 = sbr.rel (0) target = $region25
  $region24: #{generator_forward.54} parent=0 // pred_region
    _
  $region25: #{generator_forward.54} parent=0 // pred_fallthru
    _

// kernel: generator_forward.51
$region0: #{generator_forward.51}
  #allocation0 [shape = 'u32[]', space=smem, size = 0x4, offset = 0x4, fixed_abs, tag = 'smem constant byte address 0x4 - core index']
  #allocation1 [shape = 'u32[72,128]{1,0:T(1,128)}', space=vmem, size = 0x9000, scoped, tag = 'internal scratch']
  #allocation2 [shape = 'f32[32,256]{1,0:T(8,128)}', space=vmem, size = 0x8000, scoped, tag = 'scratch operand']
  %s0 = inlined_call_operand.vmem [shape: bf16[32,2304], index: 0, kind: input, shape index: {}]
  %s1 = inlined_call_operand.vmem [shape: bf16[2304,256], index: 1, kind: input, shape index: {}]
  %s2 = inlined_call_operand.vmem [shape: f32[32,256], index: 2, kind: output, shape index: {0}]
  %s3 = inlined_call_operand.vmem [shape: f32[8,256], index: 3, kind: output, shape index: {1}]
  %s4 = inlined_call_operand.vmem [shape: f32[8,256], index: 4, kind: output, shape index: {2}]
  %5 = xla_tuple %s2, %s3, %s4
  %s6 = sld [smem:[#allocation0]]
  $region91: #{generator_forward.51} parent=0
    _
  %s8 = ssub.s32 1, %s6
  %s9 = scalar_select 0, %s8, %s6
  $region1: #{generator_forward.51} parent=0
    #allocation3 [shape = 'u8[49152]{0}', space=vmem, size = 0xc000, scoped, tag = 'input window, operand 0']
    loop: start=0, step=1, limit=8
    $region2: #{generator_forward.51} parent=1 // loop_pre_header
      _
    $region3: #{generator_forward.51} parent=1 // loop_header
      %s11 = sphi 0, %s15
      %p12 = scmp.ge.s32.totalorder %s11, 8
      %s18 = sphi 0, %s37
      %s19 = sphi 0, %s33
      %s20 = sphi 0, %s29
      %s21 = sphi 0, %s18
      %s22 = sphi 0, %s19
      %s23 = sphi 0, %s20
      %s24 = sphi 0, %s21
      %s25 = sphi 0, %s22
      %s26 = sphi 0, %s23
      %s42 = sphi 0, %s44
      %s45 = sphi 0, %s42
      %s46 = sphi 0, %s45
      %s62 = sphi 0, %s46
      %s70 = sphi 0, %s72
      %s73 = sphi 0, %s70
      %s74 = sphi 0, %s73
      %s90 = sphi 0, %s74
      %s98 = sphi 0, %s100
      %s101 = sphi 0, %s98
      %s102 = sphi 0, %s101
      %s118 = sphi 0, %s102
      %s126 = sphi 0, %s128
      %s129 = sphi 0, %s126
      %s130 = sphi 0, %s129
      %s146 = sphi 0, %s130
      %s154 = sphi 0, %s156
      %s157 = sphi 0, %s154
      %s158 = sphi 0, %s157
      %s174 = sphi 0, %s158
    $region4: #{generator_forward.51} parent=1 // loop_header_branch
      %14 = sbr.rel (%p12) target = $region8
    $region5: #{generator_forward.51} parent=1 // loop_body
      %s16 = ssub.s32 %s11, 1
      %s17 = ssub.s32 %s11, 2
      %s27 = sadd.s32 1, %s20
      %p28 = scmp.ge.s32.totalorder %s27, 6
      %s29 = scalar_select %p28, 0, %s27
      %s30 = sadd.s32 1, %s19
      %s31 = scalar_select %p28, %s30, %s19
      %p32 = scmp.ge.s32.totalorder %s31, 1
      %s33 = scalar_select %p32, 0, %s31
      %s34 = sadd.s32 1, %s18
      %s35 = scalar_select %p32, %s34, %s18
      %p36 = scmp.ge.s32.totalorder %s35, 1
      %s37 = scalar_select %p36, 0, %s35
      %s38 = ssub.s32 %s18, %s37
      %s39 = ssub.s32 %s20, %s29
      %s40 = sor.u32 %s38, %s39
      %p41 = scmp.eq.s32.totalorder %s40, 0
      %s43 = sadd.s32 %s42, 1
      %s44 = scalar_select %p41, %s42, %s43
      %p47 = pneg %p41
      %p48 = scmp.eq.s32.totalorder %s11, 5
      %p49 = por %p47, %p48
      %p50 = scmp.ne.s32.totalorder %s42, %s45
      %p51 = scmp.eq.s32.totalorder %s11, 0
      %p52 = por %p50, %p51
      %p53 = scmp.ne.s32.totalorder %s42, %s45
      %p54 = scmp.eq.s32.totalorder %s16, 5
      %p55 = por %p53, %p54
      %p56 = scmp.ne.s32.totalorder %s45, %s46
      %p57 = scmp.eq.s32.totalorder %s16, 0
      %p58 = por %p56, %p57
      %p59 = scmp.ne.s32.totalorder %s45, %s46
      %p60 = scmp.eq.s32.totalorder %s17, 5
      %p61 = por %p59, %p60
      %p63 = scmp.ne.s32.totalorder %s46, %s62
      %p64 = scmp.eq.s32.totalorder %s17, 0
      %p65 = por %p63, %p64
      %s66 = ssub.s32 %s20, %s29
      %s67 = ssub.s32 %s19, %s33
      %s68 = sor.u32 %s66, %s67
      %p69 = scmp.eq.s32.totalorder %s68, 0
      %s71 = sadd.s32 %s70, 1
      %s72 = scalar_select %p69, %s70, %s71
      %p75 = pneg %p69
      %p76 = scmp.eq.s32.totalorder %s11, 5
      %p77 = por %p75, %p76
      %p78 = scmp.ne.s32.totalorder %s70, %s73
      %p79 = scmp.eq.s32.totalorder %s11, 0
      %p80 = por %p78, %p79
      %p81 = scmp.ne.s32.totalorder %s70, %s73
      %p82 = scmp.eq.s32.totalorder %s16, 5
      %p83 = por %p81, %p82
      %p84 = scmp.ne.s32.totalorder %s73, %s74
      %p85 = scmp.eq.s32.totalorder %s16, 0
      %p86 = por %p84, %p85
      %p87 = scmp.ne.s32.totalorder %s73, %s74
      %p88 = scmp.eq.s32.totalorder %s17, 5
      %p89 = por %p87, %p88
      %p91 = scmp.ne.s32.totalorder %s74, %s90
      %p92 = scmp.eq.s32.totalorder %s17, 0
      %p93 = por %p91, %p92
      %s94 = ssub.s32 %s18, %s37
      %s95 = ssub.s32 %s19, %s33
      %s96 = sor.u32 %s94, %s95
      %p97 = scmp.eq.s32.totalorder %s96, 0
      %s99 = sadd.s32 %s98, 1
      %s100 = scalar_select %p97, %s98, %s99
      %p103 = pneg %p97
      %p104 = scmp.eq.s32.totalorder %s11, 5
      %p105 = por %p103, %p104
      %p106 = scmp.ne.s32.totalorder %s98, %s101
      %p107 = scmp.eq.s32.totalorder %s11, 0
      %p108 = por %p106, %p107
      %p109 = scmp.ne.s32.totalorder %s98, %s101
      %p110 = scmp.eq.s32.totalorder %s16, 5
      %p111 = por %p109, %p110
      %p112 = scmp.ne.s32.totalorder %s101, %s102
      %p113 = scmp.eq.s32.totalorder %s16, 0
      %p114 = por %p112, %p113
      %p115 = scmp.ne.s32.totalorder %s101, %s102
      %p116 = scmp.eq.s32.totalorder %s17, 5
      %p117 = por %p115, %p116
      %p119 = scmp.ne.s32.totalorder %s102, %s118
      %p120 = scmp.eq.s32.totalorder %s17, 0
      %p121 = por %p119, %p120
      %s122 = ssub.s32 %s18, %s37
      %s123 = ssub.s32 %s19, %s33
      %s124 = sor.u32 %s122, %s123
      %p125 = scmp.eq.s32.totalorder %s124, 0
      %s127 = sadd.s32 %s126, 1
      %s128 = scalar_select %p125, %s126, %s127
      %p131 = pneg %p125
      %p132 = scmp.eq.s32.totalorder %s11, 5
      %p133 = por %p131, %p132
      %p134 = scmp.ne.s32.totalorder %s126, %s129
      %p135 = scmp.eq.s32.totalorder %s11, 0
      %p136 = por %p134, %p135
      %p137 = scmp.ne.s32.totalorder %s126, %s129
      %p138 = scmp.eq.s32.totalorder %s16, 5
      %p139 = por %p137, %p138
      %p140 = scmp.ne.s32.totalorder %s129, %s130
      %p141 = scmp.eq.s32.totalorder %s16, 0
      %p142 = por %p140, %p141
      %p143 = scmp.ne.s32.totalorder %s129, %s130
      %p144 = scmp.eq.s32.totalorder %s17, 5
      %p145 = por %p143, %p144
      %p147 = scmp.ne.s32.totalorder %s130, %s146
      %p148 = scmp.eq.s32.totalorder %s17, 0
      %p149 = por %p147, %p148
      %s150 = ssub.s32 %s18, %s37
      %s151 = ssub.s32 %s19, %s33
      %s152 = sor.u32 %s150, %s151
      %p153 = scmp.eq.s32.totalorder %s152, 0
      %s155 = sadd.s32 %s154, 1
      %s156 = scalar_select %p153, %s154, %s155
      %p159 = pneg %p153
      %p160 = scmp.eq.s32.totalorder %s11, 5
      %p161 = por %p159, %p160
      %p162 = scmp.ne.s32.totalorder %s154, %s157
      %p163 = scmp.eq.s32.totalorder %s11, 0
      %p164 = por %p162, %p163
      %p165 = scmp.ne.s32.totalorder %s154, %s157
      %p166 = scmp.eq.s32.totalorder %s16, 5
      %p167 = por %p165, %p166
      %p168 = scmp.ne.s32.totalorder %s157, %s158
      %p169 = scmp.eq.s32.totalorder %s16, 0
      %p170 = por %p168, %p169
      %p171 = scmp.ne.s32.totalorder %s157, %s158
      %p172 = scmp.eq.s32.totalorder %s17, 5
      %p173 = por %p171, %p172
      %p175 = scmp.ne.s32.totalorder %s158, %s174
      %p176 = scmp.eq.s32.totalorder %s17, 0
      %p177 = por %p175, %p176
      %p178 = scmp.le.s32.totalorder 1, %s11
      %p179 = scmp.lt.s32.totalorder %s11, 7
      %p180 = pnand %p178, %p179
      %p181 = pneg %p180
      // Predicated region
      $region9: #{generator_forward.51} parent=5 // pred_check
        _
      $region10: #{generator_forward.51} parent=5 // pred_check_branch
        %183 = sbr.rel (%p180) target = $region12
      $region11: #{generator_forward.51} parent=5 // pred_region
        %s184 = ssub.s32 %s11, 1
      $region12: #{generator_forward.51} parent=5 // pred_fallthru
        _
      %p185 = scmp.lt.s32.totalorder %s11, 6
      // Predicated region
      $region13: #{generator_forward.51} parent=5 // pred_check
        %p186 = pneg %p185
      $region14: #{generator_forward.51} parent=5 // pred_check_branch
        %188 = sbr.rel (%p186) target = $region16
      $region15: #{generator_forward.51} parent=5 // pred_region
        // Predicated region
        $region17: #{generator_forward.51} parent=15 // pred_check
          %p189 = pneg %p52
        $region18: #{generator_forward.51} parent=15 // pred_check_branch
          %191 = sbr.rel (%p189) target = $region20
        $region19: #{generator_forward.51} parent=15 // pred_region
          %s192 = sand.u32 %s42, 1
          %s193 = sand.u32 %s42, 1
          %s194 = smul.addr %s193, 48
          %s195 = scalar_lea.vmem [#allocation3], %s194
          %s196 = smul.u32 4, %s18
          %s197 = smul.u32 3, %s20
          %s198 = smul.addr %s196, 18
          %s199 = sadd.s32 %s197, %s198
          %s200 = smul.addr %s199, 4
          %s201 = scalar_lea.vmem %s0, %s200
          // Predicated region
          $region21: #{generator_forward.51} parent=19 // pred_check
            _
          $region22: #{generator_forward.51} parent=19 // pred_check_branch
            %203 = sbr.rel (0) target = $region24
          $region23: #{generator_forward.51} parent=19 // pred_region
            // Predicated region
            $region25: #{generator_forward.51} parent=23 // pred_check
              _
            $region26: #{generator_forward.51} parent=23 // pred_check_branch
              %205 = sbr.rel (0) target = $region28
            $region27: #{generator_forward.51} parent=23 // pred_region
              %s206 = scalar_lea.vmem %s201, 8
              %s207 = scalar_lea.vmem %s195, 8 [#allocation3]
              loop: start=0, step=1, limit=1
              $region29: #{generator_forward.51} parent=27 // loop_pre_header
                _
              $region30: #{generator_forward.51} parent=27 // loop_header
                %s209 = sphi 0, %s213
                %p210 = scmp.ge.s32.totalorder %s209, 1
                %s214 = sphi %s201, %s201
                %s215 = sphi %s195, %s195
              $region31: #{generator_forward.51} parent=27 // loop_header_branch
                %212 = sbr.rel (%p210) target = $region35
              $region32: #{generator_forward.51} parent=27 // loop_body
                %v216 = vld [vmem:[%s214] sm:$0xff]
                %217 = vst [vmem:[%s215] sm:$0xff] %v216
                %v218 = vld [vmem:[%s214 + $0x48] sm:$0xff]
                %219 = vst [vmem:[%s215 + $0xc] sm:$0xff] %v218
                %v220 = vld [vmem:[%s214 + $0x90] sm:$0xff]
                %221 = vst [vmem:[%s215 + $0x18] sm:$0xff] %v220
                %v222 = vld [vmem:[%s214 + $0xd8] sm:$0xff]
                %223 = vst [vmem:[%s215 + $0x24] sm:$0xff] %v222
              $region33: #{generator_forward.51} parent=27 // loop_footer
                %s213 = sadd.s32 1, %s209
              $region34: #{generator_forward.51} parent=27 // loop_footer_branch
                %208 = sbr.rel target = $region30
              $region35: #{generator_forward.51} parent=27 // loop_exit
                _
              %s225 = ssub.s32 16, 1
              loop: start=0, step=1, limit=1
              $region36: #{generator_forward.51} parent=27 // loop_pre_header
                _
              $region37: #{generator_forward.51} parent=27 // loop_header
                %s227 = sphi 0, %s231
                %p228 = scmp.ge.s32.totalorder %s227, 1
                %s232 = sphi %s206, %s206
                %s233 = sphi %s207, %s207
              $region38: #{generator_forward.51} parent=27 // loop_header_branch
                %230 = sbr.rel (%p228) target = $region42
              $region39: #{generator_forward.51} parent=27 // loop_body
                %v234 = vld [vmem:[%s232] sm:%s225]
                %235 = vst [vmem:[%s233] sm:%s225] %v234
                %v236 = vld [vmem:[%s232 + $0x48] sm:%s225]
                %237 = vst [vmem:[%s233 + $0xc] sm:%s225] %v236
                %v238 = vld [vmem:[%s232 + $0x90] sm:%s225]
                %239 = vst [vmem:[%s233 + $0x18] sm:%s225] %v238
                %v240 = vld [vmem:[%s232 + $0xd8] sm:%s225]
                %241 = vst [vmem:[%s233 + $0x24] sm:%s225] %v240
              $region40: #{generator_forward.51} parent=27 // loop_footer
                %s231 = sadd.s32 1, %s227
              $region41: #{generator_forward.51} parent=27 // loop_footer_branch
                %226 = sbr.rel target = $region37
              $region42: #{generator_forward.51} parent=27 // loop_exit
                _
            $region28: #{generator_forward.51} parent=23 // pred_fallthru
              _
          $region24: #{generator_forward.51} parent=19 // pred_fallthru
            _
          %242 = vnop
        $region20: #{generator_forward.51} parent=15 // pred_fallthru
          _
        // Predicated region
        $region43: #{generator_forward.51} parent=15 // pred_check
          %p243 = pneg %p80
        $region44: #{generator_forward.51} parent=15 // pred_check_branch
          %245 = sbr.rel (%p243) target = $region46
        $region45: #{generator_forward.51} parent=15 // pred_region
          %s246 = smul.u32 48, %s20
          %s247 = smul.u32 2, %s19
          %p248 = scmp.lt.s32.totalorder %s246, 287
          %s249 = scalar_select %p248, %s246, 287
          %p250 = scmp.lt.s32.totalorder %s247, 1
          %s251 = scalar_select %p250, %s247, 1
          %s252 = smul.addr %s249, 2
          %s253 = sadd.s32 %s251, %s252
          %s254 = smul.addr %s253, 4
          %s255 = scalar_lea.vmem %s1, %s254
          %s256 = smul.u32 48, %s20
          %s257 = smul.u32 2, %s19
        $region46: #{generator_forward.51} parent=15 // pred_fallthru
          _
      $region16: #{generator_forward.51} parent=5 // pred_fallthru
        _
      %p258 = scmp.le.s32.totalorder 1, %s11
      %p259 = scmp.lt.s32.totalorder %s11, 7
      %p260 = pnand %p258, %p259
      %p261 = pneg %p260
      // Predicated region
      $region47: #{generator_forward.51} parent=5 // pred_check
        _
      $region48: #{generator_forward.51} parent=5 // pred_check_branch
        %263 = sbr.rel (%p260) target = $region50
      $region49: #{generator_forward.51} parent=5 // pred_region
        %s264 = ssub.s32 %s11, 1
        %s265 = sand.u32 %s45, 1
        %s266 = sand.u32 %s45, 1
        %s267 = smul.addr %s266, 48
        %s268 = scalar_lea.vmem [#allocation3], %s267
        // Predicated region
        $region51: #{generator_forward.51} parent=49 // pred_check
          %p269 = pneg %p58
        $region52: #{generator_forward.51} parent=49 // pred_check_branch
          %271 = sbr.rel (%p269) target = $region54
        $region53: #{generator_forward.51} parent=49 // pred_region
          _
        $region54: #{generator_forward.51} parent=49 // pred_fallthru
          _
        %s272 = sand.u32 %s45, 1
        %s273 = sand.u32 %s45, 1
        %s274 = smul.addr %s273, 48
        %s275 = scalar_lea.vmem [#allocation3], %s274
        %p276 = pneg %p58
        %p277 = pneg %p55
        %s278 = smul.u32 48, %s23
        %s279 = smul.u32 2, %s22
        %p280 = scmp.lt.s32.totalorder %s278, 287
        %s281 = scalar_select %p280, %s278, 287
        %p282 = scmp.lt.s32.totalorder %s279, 1
        %s283 = scalar_select %p282, %s279, 1
        %s284 = smul.addr %s281, 2
        %s285 = sadd.s32 %s283, %s284
        %s286 = smul.addr %s285, 4
        %s287 = scalar_lea.vmem %s1, %s286
        %p288 = pneg %p86
        %p289 = pneg %p83
        %p290 = pneg %p114
        %p291 = pneg %p111
        %s292 = smul.u32 4, %s21
        %s293 = smul.u32 2, %s22
        %p294 = scmp.lt.s32.totalorder %s292, 3
        %s295 = scalar_select %p294, %s292, 3
        %p296 = scmp.lt.s32.totalorder %s293, 1
        %s297 = scalar_select %p296, %s293, 1
        %s298 = smul.addr %s295, 2
        %s299 = sadd.s32 %s297, %s298
        %s300 = smul.addr %s299, 8
        %s301 = scalar_lea.vmem %s2, %s300
        %p302 = pneg %p142
        %p303 = pneg %p139
        %s304 = smul.u32 2, %s22
        %p305 = scmp.lt.s32.totalorder %s21, 0
        %s306 = scalar_select %p305, %s21, 0
        %p307 = scmp.lt.s32.totalorder %s304, 1
        %s308 = scalar_select %p307, %s304, 1
        %s309 = smul.addr %s306, 2
        %s310 = sadd.s32 %s308, %s309
        %s311 = smul.addr %s310, 8
        %s312 = scalar_lea.vmem %s3, %s311
        %p313 = pneg %p170
        %p314 = pneg %p167
        %s315 = smul.u32 2, %s22
        %p316 = scmp.lt.s32.totalorder %s21, 0
        %s317 = scalar_select %p316, %s21, 0
        %p318 = scmp.lt.s32.totalorder %s315, 1
        %s319 = scalar_select %p318, %s315, 1
        %s320 = smul.addr %s317, 2
        %s321 = sadd.s32 %s319, %s320
        %s322 = smul.addr %s321, 8
        %s323 = scalar_lea.vmem %s4, %s322
        %s324 = smul.u32 4, %s21
        %s325 = smul.u32 3, %s23
        %s326 = smul.u32 48, %s23
        %s327 = smul.u32 2, %s22
        %p328 = scmp.lt.s32.totalorder %s326, 287
        %s329 = scalar_select %p328, %s326, 287
        %p330 = scmp.lt.s32.totalorder %s327, 1
        %s331 = scalar_select %p330, %s327, 1
        %s332 = smul.addr %s329, 2
        %s333 = sadd.s32 %s331, %s332
        %s334 = smul.addr %s333, 4
        %s335 = scalar_lea.vmem %s1, %s334
        %s336 = smul.u32 48, %s23
        %s337 = smul.u32 2, %s22
        %s338 = smul.u32 4, %s21
        %s339 = smul.u32 2, %s22
        %p340 = scmp.lt.s32.totalorder %s338, 3
        %s341 = scalar_select %p340, %s338, 3
        %p342 = scmp.lt.s32.totalorder %s339, 1
        %s343 = scalar_select %p342, %s339, 1
        %s344 = smul.addr %s341, 2
        %s345 = sadd.s32 %s343, %s344
        %s346 = smul.addr %s345, 8
        %s347 = scalar_lea.vmem %s2, %s346
        %s348 = smul.u32 4, %s21
        %s349 = smul.u32 2, %s22
        %s350 = smul.u32 2, %s22
        %p351 = scmp.lt.s32.totalorder %s21, 0
        %s352 = scalar_select %p351, %s21, 0
        %p353 = scmp.lt.s32.totalorder %s350, 1
        %s354 = scalar_select %p353, %s350, 1
        %s355 = smul.addr %s352, 2
        %s356 = sadd.s32 %s354, %s355
        %s357 = smul.addr %s356, 8
        %s358 = scalar_lea.vmem %s3, %s357
        %s359 = smul.u32 2, %s22
        %s360 = smul.u32 2, %s22
        %p361 = scmp.lt.s32.totalorder %s21, 0
        %s362 = scalar_select %p361, %s21, 0
        %p363 = scmp.lt.s32.totalorder %s360, 1
        %s364 = scalar_select %p363, %s360, 1
        %s365 = smul.addr %s362, 2
        %s366 = sadd.s32 %s364, %s365
        %s367 = smul.addr %s366, 8
        %s368 = scalar_lea.vmem %s4, %s367
        %s369 = smul.u32 2, %s22
        %p370 = scmp.eq.s32.totalorder %s23, 0
        // Predicated region
        $region55: #{generator_forward.51} parent=49 // pred_check
          %p371 = pneg %p370
        $region56: #{generator_forward.51} parent=49 // pred_check_branch
          %373 = sbr.rel (%p371) target = $region58
        $region57: #{generator_forward.51} parent=49 // pred_region
          %374 = vst [vmem:[#allocation2] sm:$0xff] 0.0
          %375 = vst [vmem:[#allocation2 + $0x8] sm:$0xff] 0.0
          %376 = vst [vmem:[#allocation2 + $0x10] sm:$0xff] 0.0
          %377 = vst [vmem:[#allocation2 + $0x18] sm:$0xff] 0.0
          %378 = vst [vmem:[#allocation2 + $0x20] sm:$0xff] 0.0
          %379 = vst [vmem:[#allocation2 + $0x28] sm:$0xff] 0.0
          %380 = vst [vmem:[#allocation2 + $0x30] sm:$0xff] 0.0
          %381 = vst [vmem:[#allocation2 + $0x38] sm:$0xff] 0.0
        $region58: #{generator_forward.51} parent=49 // pred_fallthru
          _
        %v382 = vld [vmem:[#allocation2] sm:$0xff]
        %v383 = vld [vmem:[#allocation2 + $0x8] sm:$0xff]
        %v384 = vld [vmem:[#allocation2 + $0x10] sm:$0xff]
        %v385 = vld [vmem:[#allocation2 + $0x18] sm:$0xff]
        %v386 = vld [vmem:[#allocation2 + $0x20] sm:$0xff]
        %v387 = vld [vmem:[#allocation2 + $0x28] sm:$0xff]
        %v388 = vld [vmem:[#allocation2 + $0x30] sm:$0xff]
        %v389 = vld [vmem:[#allocation2 + $0x38] sm:$0xff]
        %v390 = vld [vmem:[%s268] sm:$0xff]
        %v391 = vld [vmem:[%s268 + $0x8] sm:$0xf]
        %v392 = vld [vmem:[%s268 + $0xc] sm:$0xff]
        %v393 = vld [vmem:[%s268 + $0x14] sm:$0xf]
        %v394 = vld [vmem:[%s268 + $0x18] sm:$0xff]
        %v395 = vld [vmem:[%s268 + $0x20] sm:$0xf]
        %v396 = vld [vmem:[%s268 + $0x24] sm:$0xff]
        %v397 = vld [vmem:[%s268 + $0x2c] sm:$0xf]
        %v398 = vld [vmem:[%s335] sm:$0xff]
        %v399 = vld [vmem:[%s335 + $0x8] sm:$0xff]
        %v400 = vld [vmem:[%s335 + $0x10] sm:$0xff]
        %v401 = vld [vmem:[%s335 + $0x18] sm:$0xff]
        %v402 = vld [vmem:[%s335 + $0x20] sm:$0xff]
        %v403 = vld [vmem:[%s335 + $0x28] sm:$0xff]
        %v404 = vld [vmem:[%s335 + $0x30] sm:$0xff]
        %v405 = vld [vmem:[%s335 + $0x38] sm:$0xff]
        %v406 = vld [vmem:[%s335 + $0x40] sm:$0xff]
        %v407 = vld [vmem:[%s335 + $0x48] sm:$0xff]
        %v408 = vld [vmem:[%s335 + $0x50] sm:$0xff]
        %v409 = vld [vmem:[%s335 + $0x58] sm:$0xff]
        %v410 = vld [vmem:[%s335 + $0x60] sm:$0xff]
        %v411 = vld [vmem:[%s335 + $0x68] sm:$0xff]
        %v412 = vld [vmem:[%s335 + $0x70] sm:$0xff]
        %v413 = vld [vmem:[%s335 + $0x78] sm:$0xff]
        %v414 = vld [vmem:[%s335 + $0x80] sm:$0xff]
        %v415 = vld [vmem:[%s335 + $0x88] sm:$0xff]
        %v416 = vld [vmem:[%s335 + $0x90] sm:$0xff]
        %v417 = vld [vmem:[%s335 + $0x98] sm:$0xff]
        %v418 = vld [vmem:[%s335 + $0xa0] sm:$0xff]
        %v419 = vld [vmem:[%s335 + $0xa8] sm:$0xff]
        %v420 = vld [vmem:[%s335 + $0xb0] sm:$0xff]
        %v421 = vld [vmem:[%s335 + $0xb8] sm:$0xff]
        %v422 = vld [vmem:[%s335 + $0xc0] sm:$0xff]
        %v423 = vld [vmem:[%s335 + $0xc8] sm:$0xff]
        %v424 = vld [vmem:[%s335 + $0xd0] sm:$0xff]
        %v425 = vld [vmem:[%s335 + $0xd8] sm:$0xff]
        %v426 = vld [vmem:[%s335 + $0xe0] sm:$0xff]
        %v427 = vld [vmem:[%s335 + $0xe8] sm:$0xff]
        %v428 = vld [vmem:[%s335 + $0xf0] sm:$0xff]
        %v429 = vld [vmem:[%s335 + $0xf8] sm:$0xff]
        %v430 = vld [vmem:[%s335 + $0x100] sm:$0xff]
        %v431 = vld [vmem:[%s335 + $0x108] sm:$0xff]
        %v432 = vld [vmem:[%s335 + $0x110] sm:$0xff]
        %v433 = vld [vmem:[%s335 + $0x118] sm:$0xff]
        %v434 = vld [vmem:[%s335 + $0x120] sm:$0xff]
        %v435 = vld [vmem:[%s335 + $0x128] sm:$0xff]
        %v436 = vld [vmem:[%s335 + $0x130] sm:$0xff]
        %v437 = vld [vmem:[%s335 + $0x138] sm:$0xff]
        %v438 = vld [vmem:[%s335 + $0x140] sm:$0xff]
        %v439 = vld [vmem:[%s335 + $0x148] sm:$0xff]
        %v440 = vld [vmem:[%s335 + $0x150] sm:$0xff]
        %v441 = vld [vmem:[%s335 + $0x158] sm:$0xff]
        %v442 = vld [vmem:[%s335 + $0x160] sm:$0xff]
        %v443 = vld [vmem:[%s335 + $0x168] sm:$0xff]
        %v444 = vld [vmem:[%s335 + $0x170] sm:$0xff]
        %v445 = vld [vmem:[%s335 + $0x178] sm:$0xff]
        %v454 = vunpack.c.l.b16 %v390
        %v455 = vunpack.c.h.b16 %v390
        %v456 = vunpack.c.l.b16 %v391
        %v457 = vunpack.c.l.b16 %v392
        %v458 = vunpack.c.h.b16 %v392
        %v459 = vunpack.c.l.b16 %v393
        %v460 = vunpack.c.l.b16 %v394
        %v461 = vunpack.c.h.b16 %v394
        %v462 = vunpack.c.l.b16 %v395
        %v463 = vunpack.c.l.b16 %v396
        %v464 = vunpack.c.h.b16 %v396
        %v465 = vunpack.c.l.b16 %v397
        %v466 = vpack.c.b16 %v457, %v454
        %v467 = vpack.c.b16 %v458, %v455
        %v468 = vpack.c.b16 %v459, %v456
        %v469 = vpack.c.b16 %v463, %v460
        %v470 = vpack.c.b16 %v464, %v461
        %v471 = vpack.c.b16 %v465, %v462
        %v526 = vunpack.c.l.b16 %v398
        %v527 = vunpack.c.h.b16 %v398
        %v528 = vunpack.c.l.b16 %v399
        %v529 = vunpack.c.h.b16 %v399
        %v530 = vunpack.c.l.b16 %v400
        %v531 = vunpack.c.h.b16 %v400
        %v532 = vunpack.c.l.b16 %v401
        %v533 = vunpack.c.h.b16 %v401
        %v534 = vunpack.c.l.b16 %v402
        %v535 = vunpack.c.h.b16 %v402
        %v536 = vunpack.c.l.b16 %v403
        %v537 = vunpack.c.h.b16 %v403
        %v538 = vunpack.c.l.b16 %v404
        %v539 = vunpack.c.h.b16 %v404
        %v540 = vunpack.c.l.b16 %v405
        %v541 = vunpack.c.h.b16 %v405
        %v542 = vunpack.c.l.b16 %v406
        %v543 = vunpack.c.h.b16 %v406
        %v544 = vunpack.c.l.b16 %v407
        %v545 = vunpack.c.h.b16 %v407
        %v546 = vunpack.c.l.b16 %v408
        %v547 = vunpack.c.h.b16 %v408
        %v548 = vunpack.c.l.b16 %v409
        %v549 = vunpack.c.h.b16 %v409
        %v550 = vunpack.c.l.b16 %v410
        %v551 = vunpack.c.h.b16 %v410
        %v552 = vunpack.c.l.b16 %v411
        %v553 = vunpack.c.h.b16 %v411
        %v554 = vunpack.c.l.b16 %v412
        %v555 = vunpack.c.h.b16 %v412
        %v556 = vunpack.c.l.b16 %v413
        %v557 = vunpack.c.h.b16 %v413
        %v558 = vunpack.c.l.b16 %v414
        %v559 = vunpack.c.h.b16 %v414
        %v560 = vunpack.c.l.b16 %v415
        %v561 = vunpack.c.h.b16 %v415
        %v562 = vunpack.c.l.b16 %v416
        %v563 = vunpack.c.h.b16 %v416
        %v564 = vunpack.c.l.b16 %v417
        %v565 = vunpack.c.h.b16 %v417
        %v566 = vunpack.c.l.b16 %v418
        %v567 = vunpack.c.h.b16 %v418
        %v568 = vunpack.c.l.b16 %v419
        %v569 = vunpack.c.h.b16 %v419
        %v570 = vunpack.c.l.b16 %v420
        %v571 = vunpack.c.h.b16 %v420
        %v572 = vunpack.c.l.b16 %v421
        %v573 = vunpack.c.h.b16 %v421
        %v574 = vunpack.c.l.b16 %v422
        %v575 = vunpack.c.h.b16 %v422
        %v576 = vunpack.c.l.b16 %v423
        %v577 = vunpack.c.h.b16 %v423
        %v578 = vunpack.c.l.b16 %v424
        %v579 = vunpack.c.h.b16 %v424
        %v580 = vunpack.c.l.b16 %v425
        %v581 = vunpack.c.h.b16 %v425
        %v582 = vunpack.c.l.b16 %v426
        %v583 = vunpack.c.h.b16 %v426
        %v584 = vunpack.c.l.b16 %v427
        %v585 = vunpack.c.h.b16 %v427
        %v586 = vunpack.c.l.b16 %v428
        %v587 = vunpack.c.h.b16 %v428
        %v588 = vunpack.c.l.b16 %v429
        %v589 = vunpack.c.h.b16 %v429
        %v590 = vunpack.c.l.b16 %v430
        %v591 = vunpack.c.h.b16 %v430
        %v592 = vunpack.c.l.b16 %v431
        %v593 = vunpack.c.h.b16 %v431
        %v594 = vunpack.c.l.b16 %v432
        %v595 = vunpack.c.h.b16 %v432
        %v596 = vunpack.c.l.b16 %v433
        %v597 = vunpack.c.h.b16 %v433
        %v598 = vunpack.c.l.b16 %v434
        %v599 = vunpack.c.h.b16 %v434
        %v600 = vunpack.c.l.b16 %v435
        %v601 = vunpack.c.h.b16 %v435
        %v602 = vunpack.c.l.b16 %v436
        %v603 = vunpack.c.h.b16 %v436
        %v604 = vunpack.c.l.b16 %v437
        %v605 = vunpack.c.h.b16 %v437
        %v606 = vunpack.c.l.b16 %v438
        %v607 = vunpack.c.h.b16 %v438
        %v608 = vunpack.c.l.b16 %v439
        %v609 = vunpack.c.h.b16 %v439
        %v610 = vunpack.c.l.b16 %v440
        %v611 = vunpack.c.h.b16 %v440
        %v612 = vunpack.c.l.b16 %v441
        %v613 = vunpack.c.h.b16 %v441
        %v614 = vunpack.c.l.b16 %v442
        %v615 = vunpack.c.h.b16 %v442
        %v616 = vunpack.c.l.b16 %v443
        %v617 = vunpack.c.h.b16 %v443
        %v618 = vunpack.c.l.b16 %v444
        %v619 = vunpack.c.h.b16 %v444
        %v620 = vunpack.c.l.b16 %v445
        %v621 = vunpack.c.h.b16 %v445
        %v622 = vpack.c.b16 %v528, %v526
        %v623 = vpack.c.b16 %v529, %v527
        %v624 = vpack.c.b16 %v532, %v530
        %v625 = vpack.c.b16 %v533, %v531
        %v626 = vpack.c.b16 %v536, %v534
        %v627 = vpack.c.b16 %v537, %v535
        %v628 = vpack.c.b16 %v540, %v538
        %v629 = vpack.c.b16 %v541, %v539
        %v630 = vpack.c.b16 %v544, %v542
        %v631 = vpack.c.b16 %v545, %v543
        %v632 = vpack.c.b16 %v548, %v546
        %v633 = vpack.c.b16 %v549, %v547
        %v634 = vpack.c.b16 %v552, %v550
        %v635 = vpack.c.b16 %v553, %v551
        %v636 = vpack.c.b16 %v556, %v554
        %v637 = vpack.c.b16 %v557, %v555
        %v638 = vpack.c.b16 %v560, %v558
        %v639 = vpack.c.b16 %v561, %v559
        %v640 = vpack.c.b16 %v564, %v562
        %v641 = vpack.c.b16 %v565, %v563
        %v642 = vpack.c.b16 %v568, %v566
        %v643 = vpack.c.b16 %v569, %v567
        %v644 = vpack.c.b16 %v572, %v570
        %v645 = vpack.c.b16 %v573, %v571
        %v646 = vpack.c.b16 %v576, %v574
        %v647 = vpack.c.b16 %v577, %v575
        %v648 = vpack.c.b16 %v580, %v578
        %v649 = vpack.c.b16 %v581, %v579
        %v650 = vpack.c.b16 %v584, %v582
        %v651 = vpack.c.b16 %v585, %v583
        %v652 = vpack.c.b16 %v588, %v586
        %v653 = vpack.c.b16 %v589, %v587
        %v654 = vpack.c.b16 %v592, %v590
        %v655 = vpack.c.b16 %v593, %v591
        %v656 = vpack.c.b16 %v596, %v594
        %v657 = vpack.c.b16 %v597, %v595
        %v658 = vpack.c.b16 %v600, %v598
        %v659 = vpack.c.b16 %v601, %v599
        %v660 = vpack.c.b16 %v604, %v602
        %v661 = vpack.c.b16 %v605, %v603
        %v662 = vpack.c.b16 %v608, %v606
        %v663 = vpack.c.b16 %v609, %v607
        %v664 = vpack.c.b16 %v612, %v610
        %v665 = vpack.c.b16 %v613, %v611
        %v666 = vpack.c.b16 %v616, %v614
        %v667 = vpack.c.b16 %v617, %v615
        %v668 = vpack.c.b16 %v620, %v618
        %v669 = vpack.c.b16 %v621, %v619
        %718 = vmatpush.bf16.msra.mxu0 %v636
        %719 = vmatpush.bf16.msra.mxu0 %v634
        %720 = vmatpush.bf16.msra.mxu0 %v632
        %721 = vmatpush.bf16.msra.mxu0 %v630
        %722 = vmatpush.bf16.msra.mxu0 %v628
        %723 = vmatpush.bf16.msra.mxu0 %v626
        %724 = vmatpush.bf16.msra.mxu0 %v624
        %725 = vmatpush.bf16.msra.mxu0 %v622
        %726 = vmatmul.bf16.gmra.mxu0 %v466
        %v727 = vpop.f32.mrf.mxu0
        %v728 = vadd.f32 0.0, %v727
        %v729 = vpop.f32.mrf.mxu0
        %v730 = vadd.f32 0.0, %v729
        %731 = vmatmul.bf16.gmra.mxu0 %v469
        %v732 = vpop.f32.mrf.mxu0
        %v733 = vadd.f32 0.0, %v732
        %v734 = vpop.f32.mrf.mxu0
        %v735 = vadd.f32 0.0, %v734
        %736 = vdwg.mxu0
        %737 = vmatpush.bf16.msra.mxu0 %v652
        %738 = vmatpush.bf16.msra.mxu0 %v650
        %739 = vmatpush.bf16.msra.mxu0 %v648
        %740 = vmatpush.bf16.msra.mxu0 %v646
        %741 = vmatpush.bf16.msra.mxu0 %v644
        %742 = vmatpush.bf16.msra.mxu0 %v642
        %743 = vmatpush.bf16.msra.mxu0 %v640
        %744 = vmatpush.bf16.msra.mxu0 %v638
        %745 = vmatmul.bf16.gmra.mxu0 %v467
        %v746 = vpop.f32.mrf.mxu0
        %v747 = vadd.f32 %v728, %v746
        %v748 = vpop.f32.mrf.mxu0
        %v749 = vadd.f32 %v730, %v748
        %750 = vmatmul.bf16.gmra.mxu0 %v470
        %v751 = vpop.f32.mrf.mxu0
        %v752 = vadd.f32 %v733, %v751
        %v753 = vpop.f32.mrf.mxu0
        %v754 = vadd.f32 %v735, %v753
        %755 = vdwg.mxu0
        %756 = vmatpush.bf16.msra.mxu0 %v668
        %757 = vmatpush.bf16.msra.mxu0 %v666
        %758 = vmatpush.bf16.msra.mxu0 %v664
        %759 = vmatpush.bf16.msra.mxu0 %v662
        %760 = vmatpush.bf16.msra.mxu0 %v660
        %761 = vmatpush.bf16.msra.mxu0 %v658
        %762 = vmatpush.bf16.msra.mxu0 %v656
        %763 = vmatpush.bf16.msra.mxu0 %v654
        %764 = vmatmul.bf16.gmra.mxu0 %v468
        %v765 = vpop.f32.mrf.mxu0
        %v766 = vadd.f32 %v747, %v765
        %v767 = vpop.f32.mrf.mxu0
        %v768 = vadd.f32 %v749, %v767
        %769 = vmatmul.bf16.gmra.mxu0 %v471
        %v770 = vpop.f32.mrf.mxu0
        %v771 = vadd.f32 %v752, %v770
        %v772 = vpop.f32.mrf.mxu0
        %v773 = vadd.f32 %v754, %v772
        %774 = vdwg.mxu0
        %775 = vmatpush.bf16.msra.mxu0 %v637
        %776 = vmatpush.bf16.msra.mxu0 %v635
        %777 = vmatpush.bf16.msra.mxu0 %v633
        %778 = vmatpush.bf16.msra.mxu0 %v631
        %779 = vmatpush.bf16.msra.mxu0 %v629
        %780 = vmatpush.bf16.msra.mxu0 %v627
        %781 = vmatpush.bf16.msra.mxu0 %v625
        %782 = vmatpush.bf16.msra.mxu0 %v623
        %783 = vmatmul.bf16.gmra.mxu0 %v466
        %v784 = vpop.f32.mrf.mxu0
        %v785 = vadd.f32 0.0, %v784
        %v786 = vpop.f32.mrf.mxu0
        %v787 = vadd.f32 0.0, %v786
        %788 = vmatmul.bf16.gmra.mxu0 %v469
        %v789 = vpop.f32.mrf.mxu0
        %v790 = vadd.f32 0.0, %v789
        %v791 = vpop.f32.mrf.mxu0
        %v792 = vadd.f32 0.0, %v791
        %793 = vdwg.mxu0
        %794 = vmatpush.bf16.msra.mxu0 %v653
        %795 = vmatpush.bf16.msra.mxu0 %v651
        %796 = vmatpush.bf16.msra.mxu0 %v649
        %797 = vmatpush.bf16.msra.mxu0 %v647
        %798 = vmatpush.bf16.msra.mxu0 %v645
        %799 = vmatpush.bf16.msra.mxu0 %v643
        %800 = vmatpush.bf16.msra.mxu0 %v641
        %801 = vmatpush.bf16.msra.mxu0 %v639
        %802 = vmatmul.bf16.gmra.mxu0 %v467
        %v803 = vpop.f32.mrf.mxu0
        %v804 = vadd.f32 %v785, %v803
        %v805 = vpop.f32.mrf.mxu0
        %v806 = vadd.f32 %v787, %v805
        %807 = vmatmul.bf16.gmra.mxu0 %v470
        %v808 = vpop.f32.mrf.mxu0
        %v809 = vadd.f32 %v790, %v808
        %v810 = vpop.f32.mrf.mxu0
        %v811 = vadd.f32 %v792, %v810
        %812 = vdwg.mxu0
        %813 = vmatpush.bf16.msra.mxu0 %v669
        %814 = vmatpush.bf16.msra.mxu0 %v667
        %815 = vmatpush.bf16.msra.mxu0 %v665
        %816 = vmatpush.bf16.msra.mxu0 %v663
        %817 = vmatpush.bf16.msra.mxu0 %v661
        %818 = vmatpush.bf16.msra.mxu0 %v659
        %819 = vmatpush.bf16.msra.mxu0 %v657
        %820 = vmatpush.bf16.msra.mxu0 %v655
        %821 = vmatmul.bf16.gmra.mxu0 %v468
        %v822 = vpop.f32.mrf.mxu0
        %v823 = vadd.f32 %v804, %v822
        %v824 = vpop.f32.mrf.mxu0
        %v825 = vadd.f32 %v806, %v824
        %826 = vmatmul.bf16.gmra.mxu0 %v471
        %v827 = vpop.f32.mrf.mxu0
        %v828 = vadd.f32 %v809, %v827
        %v829 = vpop.f32.mrf.mxu0
        %v830 = vadd.f32 %v811, %v829
        %831 = vdwg.mxu0
        %v832 = vadd.f32 %v382, %v766
        %v833 = vadd.f32 %v383, %v823
        %v834 = vadd.f32 %v384, %v768
        %v835 = vadd.f32 %v385, %v825
        %v836 = vadd.f32 %v386, %v771
        %v837 = vadd.f32 %v387, %v828
        %v838 = vadd.f32 %v388, %v773
        %v839 = vadd.f32 %v389, %v830
        %840 = vst [vmem:[#allocation2] sm:$0xff] %v832
        %841 = vst [vmem:[#allocation2 + $0x8] sm:$0xff] %v833
        %842 = vst [vmem:[#allocation2 + $0x10] sm:$0xff] %v834
        %843 = vst [vmem:[#allocation2 + $0x18] sm:$0xff] %v835
        %844 = vst [vmem:[#allocation2 + $0x20] sm:$0xff] %v836
        %845 = vst [vmem:[#allocation2 + $0x28] sm:$0xff] %v837
        %846 = vst [vmem:[#allocation2 + $0x30] sm:$0xff] %v838
        %847 = vst [vmem:[#allocation2 + $0x38] sm:$0xff] %v839
        %p848 = scmp.eq.s32.totalorder %s23, 5
        // Predicated region
        $region59: #{generator_forward.51} parent=49 // pred_check
          %p849 = pneg %p848
        $region60: #{generator_forward.51} parent=49 // pred_check_branch
          %851 = sbr.rel (%p849) target = $region62
        $region61: #{generator_forward.51} parent=49 // pred_region
          %v852 = vld [vmem:[#allocation2] sm:$0xff]
          %v853 = vld [vmem:[#allocation2 + $0x8] sm:$0xff]
          %v854 = vld [vmem:[#allocation2 + $0x10] sm:$0xff]
          %v855 = vld [vmem:[#allocation2 + $0x18] sm:$0xff]
          %v856 = vld [vmem:[#allocation2 + $0x20] sm:$0xff]
          %v857 = vld [vmem:[#allocation2 + $0x28] sm:$0xff]
          %v858 = vld [vmem:[#allocation2 + $0x30] sm:$0xff]
          %v859 = vld [vmem:[#allocation2 + $0x38] sm:$0xff]
          %860 = vst [vmem:[%s347] sm:$0xff] %v852
          %861 = vst [vmem:[%s347 + $0x8] sm:$0xff] %v853
          %862 = vst [vmem:[%s347 + $0x10] sm:$0xff] %v854
          %863 = vst [vmem:[%s347 + $0x18] sm:$0xff] %v855
          %864 = vst [vmem:[%s347 + $0x20] sm:$0xff] %v856
          %865 = vst [vmem:[%s347 + $0x28] sm:$0xff] %v857
          %866 = vst [vmem:[%s347 + $0x30] sm:$0xff] %v858
          %867 = vst [vmem:[%s347 + $0x38] sm:$0xff] %v859
          %v868 = vadd.f32 %v852, %v854
          %v869 = vadd.f32 %v868, %v856
          %v870 = vadd.f32 %v869, %v858
          %v871 = vrot.slane %v870, 4
          %v872 = vadd.f32 %v870, %v871
          %v873 = vrot.slane %v872, 2
          %v874 = vadd.f32 %v872, %v873
          %v875 = vrot.slane %v874, 1
          %v876 = vadd.f32 %v874, %v875
          %v877 = vadd.f32 %v853, %v855
          %v878 = vadd.f32 %v877, %v857
          %v879 = vadd.f32 %v878, %v859
          %v880 = vrot.slane %v879, 4
          %v881 = vadd.f32 %v879, %v880
          %v882 = vrot.slane %v881, 2
          %v883 = vadd.f32 %v881, %v882
          %v884 = vrot.slane %v883, 1
          %v885 = vadd.f32 %v883, %v884
          %v886 = vmul.f32 %v852, %v852
          %v887 = vmul.f32 %v853, %v853
          %v888 = vmul.f32 %v854, %v854
          %v889 = vmul.f32 %v855, %v855
          %v890 = vmul.f32 %v856, %v856
          %v891 = vmul.f32 %v857, %v857
          %v892 = vmul.f32 %v858, %v858
          %v893 = vmul.f32 %v859, %v859
          %v894 = vadd.f32 %v886, %v888
          %v895 = vadd.f32 %v894, %v890
          %v896 = vadd.f32 %v895, %v892
          %v897 = vrot.slane %v896, 4
          %v898 = vadd.f32 %v896, %v897
          %v899 = vrot.slane %v898, 2
          %v900 = vadd.f32 %v898, %v899
          %v901 = vrot.slane %v900, 1
          %v902 = vadd.f32 %v900, %v901
          %v903 = vadd.f32 %v887, %v889
          %v904 = vadd.f32 %v903, %v891
          %v905 = vadd.f32 %v904, %v893
          %v906 = vrot.slane %v905, 4
          %v907 = vadd.f32 %v905, %v906
          %v908 = vrot.slane %v907, 2
          %v909 = vadd.f32 %v907, %v908
          %v910 = vrot.slane %v909, 1
          %v911 = vadd.f32 %v909, %v910
          %912 = vst [vmem:[%s358] sm:$0xff] %v876
          %913 = vst [vmem:[%s358 + $0x8] sm:$0xff] %v885
          %914 = vst [vmem:[%s368] sm:$0xff] %v902
          %915 = vst [vmem:[%s368 + $0x8] sm:$0xff] %v911
        $region62: #{generator_forward.51} parent=49 // pred_fallthru
          _
        %s916 = smul.u32 4, %s21
        %s917 = smul.u32 2, %s22
        %p918 = scmp.lt.s32.totalorder %s916, 3
        %s919 = scalar_select %p918, %s916, 3
        %p920 = scmp.lt.s32.totalorder %s917, 1
        %s921 = scalar_select %p920, %s917, 1
        %s922 = smul.addr %s919, 2
        %s923 = sadd.s32 %s921, %s922
        %s924 = smul.addr %s923, 8
        %s925 = scalar_lea.vmem %s2, %s924
        %s926 = smul.u32 2, %s22
        %p927 = scmp.lt.s32.totalorder %s21, 0
        %s928 = scalar_select %p927, %s21, 0
        %p929 = scmp.lt.s32.totalorder %s926, 1
        %s930 = scalar_select %p929, %s926, 1
        %s931 = smul.addr %s928, 2
        %s932 = sadd.s32 %s930, %s931
        %s933 = smul.addr %s932, 8
        %s934 = scalar_lea.vmem %s3, %s933
        %s935 = smul.u32 2, %s22
        %p936 = scmp.lt.s32.totalorder %s21, 0
        %s937 = scalar_select %p936, %s21, 0
        %p938 = scmp.lt.s32.totalorder %s935, 1
        %s939 = scalar_select %p938, %s935, 1
        %s940 = smul.addr %s937, 2
        %s941 = sadd.s32 %s939, %s940
        %s942 = smul.addr %s941, 8
        %s943 = scalar_lea.vmem %s4, %s942
        // Predicated region
        $region63: #{generator_forward.51} parent=49 // pred_check
          %p944 = pneg %p111
        $region64: #{generator_forward.51} parent=49 // pred_check_branch
          %946 = sbr.rel (%p944) target = $region66
        $region65: #{generator_forward.51} parent=49 // pred_region
          %s947 = smul.u32 4, %s21
          %s948 = smul.u32 2, %s22
        $region66: #{generator_forward.51} parent=49 // pred_fallthru
          _
        // Predicated region
        $region67: #{generator_forward.51} parent=49 // pred_check
          %p949 = pneg %p139
        $region68: #{generator_forward.51} parent=49 // pred_check_branch
          %951 = sbr.rel (%p949) target = $region70
        $region69: #{generator_forward.51} parent=49 // pred_region
          %s952 = smul.u32 2, %s22
        $region70: #{generator_forward.51} parent=49 // pred_fallthru
          _
        // Predicated region
        $region71: #{generator_forward.51} parent=49 // pred_check
          %p953 = pneg %p167
        $region72: #{generator_forward.51} parent=49 // pred_check_branch
          %955 = sbr.rel (%p953) target = $region74
        $region73: #{generator_forward.51} parent=49 // pred_region
          %s956 = smul.u32 2, %s22
        $region74: #{generator_forward.51} parent=49 // pred_fallthru
          _
        // Predicated region
        $region75: #{generator_forward.51} parent=49 // pred_check
          %p957 = pneg %p111
        $region76: #{generator_forward.51} parent=49 // pred_check_branch
          %959 = sbr.rel (%p957) target = $region78
        $region77: #{generator_forward.51} parent=49 // pred_region
          %s960 = smul.u32 4, %s21
          %s961 = smul.u32 2, %s22
          %p962 = scmp.lt.s32.totalorder %s960, 3
          %s963 = scalar_select %p962, %s960, 3
          %p964 = scmp.lt.s32.totalorder %s961, 1
          %s965 = scalar_select %p964, %s961, 1
          %s966 = smul.addr %s963, 2
          %s967 = sadd.s32 %s965, %s966
          %s968 = smul.addr %s967, 8
          %s969 = scalar_lea.vmem %s2, %s968
        $region78: #{generator_forward.51} parent=49 // pred_fallthru
          _
        // Predicated region
        $region79: #{generator_forward.51} parent=49 // pred_check
          %p970 = pneg %p139
        $region80: #{generator_forward.51} parent=49 // pred_check_branch
          %972 = sbr.rel (%p970) target = $region82
        $region81: #{generator_forward.51} parent=49 // pred_region
          %s973 = smul.u32 2, %s22
          %p974 = scmp.lt.s32.totalorder %s21, 0
          %s975 = scalar_select %p974, %s21, 0
          %p976 = scmp.lt.s32.totalorder %s973, 1
          %s977 = scalar_select %p976, %s973, 1
          %s978 = smul.addr %s975, 2
          %s979 = sadd.s32 %s977, %s978
          %s980 = smul.addr %s979, 8
          %s981 = scalar_lea.vmem %s3, %s980
        $region82: #{generator_forward.51} parent=49 // pred_fallthru
          _
        // Predicated region
        $region83: #{generator_forward.51} parent=49 // pred_check
          %p982 = pneg %p167
        $region84: #{generator_forward.51} parent=49 // pred_check_branch
          %984 = sbr.rel (%p982) target = $region86
        $region85: #{generator_forward.51} parent=49 // pred_region
          %s985 = smul.u32 2, %s22
          %p986 = scmp.lt.s32.totalorder %s21, 0
          %s987 = scalar_select %p986, %s21, 0
          %p988 = scmp.lt.s32.totalorder %s985, 1
          %s989 = scalar_select %p988, %s985, 1
          %s990 = smul.addr %s987, 2
          %s991 = sadd.s32 %s989, %s990
          %s992 = smul.addr %s991, 8
          %s993 = scalar_lea.vmem %s4, %s992
        $region86: #{generator_forward.51} parent=49 // pred_fallthru
          _
      $region50: #{generator_forward.51} parent=5 // pred_fallthru
        _
      %p994 = scmp.le.s32.totalorder 2, %s11
      // Predicated region
      $region87: #{generator_forward.51} parent=5 // pred_check
        %p995 = pneg %p994
      $region88: #{generator_forward.51} parent=5 // pred_check_branch
        %997 = sbr.rel (%p995) target = $region90
      $region89: #{generator_forward.51} parent=5 // pred_region
        %s998 = ssub.s32 %s11, 2
      $region90: #{generator_forward.51} parent=5 // pred_fallthru
        _
    $region6: #{generator_forward.51} parent=1 // loop_footer
      %s15 = sadd.s32 1, %s11
    $region7: #{generator_forward.51} parent=1 // loop_footer_branch
      %10 = sbr.rel target = $region3
    $region8: #{generator_forward.51} parent=1 // loop_exit
      _

// kernel: generator_forward.87
$region0: #{generator_forward.87}
  #allocation0 [shape = 'u32[]', space=smem, size = 0x4, offset = 0x4, fixed_abs, tag = 'smem constant byte address 0x4 - core index']
  #allocation1 [shape = 'u32[72,128]{1,0:T(1,128)}', space=vmem, size = 0x9000, scoped, tag = 'internal scratch']
  #allocation2 [shape = 'f32[32,128]{1,0:T(8,128)}', space=vmem, size = 0x4000, scoped, tag = 'scratch operand']
  %s0 = inlined_call_operand.vmem [shape: bf16[32,256], index: 0, kind: input, shape index: {}]
  %s1 = inlined_call_operand.vmem [shape: bf16[256,128], index: 1, kind: input, shape index: {}]
  %s2 = inlined_call_operand.vmem [shape: f32[1,128], index: 2, kind: input, shape index: {}]
  %s3 = inlined_call_operand.vmem [shape: f32[32,128], index: 3, kind: output, shape index: {}]
  %s4 = sld [smem:[#allocation0]]
  $region30: #{generator_forward.87} parent=0
    _
  %s6 = ssub.s32 1, %s4
  %s7 = scalar_select 0, %s6, %s4
  // Predicated region
  $region2: #{generator_forward.87} parent=0 // pred_check
    _
  $region3: #{generator_forward.87} parent=0 // pred_check_branch
    %9 = sbr.rel (0) target = $region5
  $region4: #{generator_forward.87} parent=0 // pred_region
    _
  $region5: #{generator_forward.87} parent=0 // pred_fallthru
    _
  // Predicated region
  $region6: #{generator_forward.87} parent=0 // pred_check
    _
  $region7: #{generator_forward.87} parent=0 // pred_check_branch
    %11 = sbr.rel (0) target = $region9
  $region8: #{generator_forward.87} parent=0 // pred_region
    _
  $region9: #{generator_forward.87} parent=0 // pred_fallthru
    _
  // Predicated region
  $region10: #{generator_forward.87} parent=0 // pred_check
    _
  $region11: #{generator_forward.87} parent=0 // pred_check_branch
    %13 = sbr.rel (0) target = $region13
  $region12: #{generator_forward.87} parent=0 // pred_region
    _
  $region13: #{generator_forward.87} parent=0 // pred_fallthru
    _
  %p14 = scmp.eq.s32.totalorder 0, 0
  // Predicated region
  $region14: #{generator_forward.87} parent=0 // pred_check
    %p15 = pneg %p14
  $region15: #{generator_forward.87} parent=0 // pred_check_branch
    %17 = sbr.rel (%p15) target = $region17
  $region16: #{generator_forward.87} parent=0 // pred_region
    %18 = vst [vmem:[#allocation2] sm:$0xff] 0.0
    %19 = vst [vmem:[#allocation2 + $0x8] sm:$0xff] 0.0
    %20 = vst [vmem:[#allocation2 + $0x10] sm:$0xff] 0.0
    %21 = vst [vmem:[#allocation2 + $0x18] sm:$0xff] 0.0
  $region17: #{generator_forward.87} parent=0 // pred_fallthru
    _
  %v22 = vld [vmem:[#allocation2] sm:$0xff]
  %v23 = vld [vmem:[#allocation2 + $0x8] sm:$0xff]
  %v24 = vld [vmem:[#allocation2 + $0x10] sm:$0xff]
  %v25 = vld [vmem:[#allocation2 + $0x18] sm:$0xff]
  %v26 = vld [vmem:[%s0] sm:$0xff]
  %v27 = vld [vmem:[%s0 + $0x8] sm:$0xff]
  %v28 = vld [vmem:[%s0 + $0x10] sm:$0xff]
  %v29 = vld [vmem:[%s0 + $0x18] sm:$0xff]
  %v30 = vld [vmem:[%s1] sm:$0xf]
  %v31 = vld [vmem:[%s1 + $0x4] sm:$0xf]
  %v32 = vld [vmem:[%s1 + $0x8] sm:$0xf]
  %v33 = vld [vmem:[%s1 + $0xc] sm:$0xf]
  %v34 = vld [vmem:[%s1 + $0x10] sm:$0xf]
  %v35 = vld [vmem:[%s1 + $0x14] sm:$0xf]
  %v36 = vld [vmem:[%s1 + $0x18] sm:$0xf]
  %v37 = vld [vmem:[%s1 + $0x1c] sm:$0xf]
  %v38 = vld [vmem:[%s1 + $0x20] sm:$0xf]
  %v39 = vld [vmem:[%s1 + $0x24] sm:$0xf]
  %v40 = vld [vmem:[%s1 + $0x28] sm:$0xf]
  %v41 = vld [vmem:[%s1 + $0x2c] sm:$0xf]
  %v42 = vld [vmem:[%s1 + $0x30] sm:$0xf]
  %v43 = vld [vmem:[%s1 + $0x34] sm:$0xf]
  %v44 = vld [vmem:[%s1 + $0x38] sm:$0xf]
  %v45 = vld [vmem:[%s1 + $0x3c] sm:$0xf]
  %v46 = vld [vmem:[%s1 + $0x40] sm:$0xf]
  %v47 = vld [vmem:[%s1 + $0x44] sm:$0xf]
  %v48 = vld [vmem:[%s1 + $0x48] sm:$0xf]
  %v49 = vld [vmem:[%s1 + $0x4c] sm:$0xf]
  %v50 = vld [vmem:[%s1 + $0x50] sm:$0xf]
  %v51 = vld [vmem:[%s1 + $0x54] sm:$0xf]
  %v52 = vld [vmem:[%s1 + $0x58] sm:$0xf]
  %v53 = vld [vmem:[%s1 + $0x5c] sm:$0xf]
  %v54 = vld [vmem:[%s1 + $0x60] sm:$0xf]
  %v55 = vld [vmem:[%s1 + $0x64] sm:$0xf]
  %v56 = vld [vmem:[%s1 + $0x68] sm:$0xf]
  %v57 = vld [vmem:[%s1 + $0x6c] sm:$0xf]
  %v58 = vld [vmem:[%s1 + $0x70] sm:$0xf]
  %v59 = vld [vmem:[%s1 + $0x74] sm:$0xf]
  %v60 = vld [vmem:[%s1 + $0x78] sm:$0xf]
  %v61 = vld [vmem:[%s1 + $0x7c] sm:$0xf]
  %v66 = vunpack.c.l.b16 %v26
  %v67 = vunpack.c.h.b16 %v26
  %v68 = vunpack.c.l.b16 %v27
  %v69 = vunpack.c.h.b16 %v27
  %v70 = vunpack.c.l.b16 %v28
  %v71 = vunpack.c.h.b16 %v28
  %v72 = vunpack.c.l.b16 %v29
  %v73 = vunpack.c.h.b16 %v29
  %v74 = vpack.c.b16 %v68, %v66
  %v75 = vpack.c.b16 %v69, %v67
  %v76 = vpack.c.b16 %v72, %v70
  %v77 = vpack.c.b16 %v73, %v71
  %v114 = vunpack.c.l.b16 %v30
  %v115 = vunpack.c.l.b16 %v31
  %v116 = vunpack.c.l.b16 %v32
  %v117 = vunpack.c.l.b16 %v33
  %v118 = vunpack.c.l.b16 %v34
  %v119 = vunpack.c.l.b16 %v35
  %v120 = vunpack.c.l.b16 %v36
  %v121 = vunpack.c.l.b16 %v37
  %v122 = vunpack.c.l.b16 %v38
  %v123 = vunpack.c.l.b16 %v39
  %v124 = vunpack.c.l.b16 %v40
  %v125 = vunpack.c.l.b16 %v41
  %v126 = vunpack.c.l.b16 %v42
  %v127 = vunpack.c.l.b16 %v43
  %v128 = vunpack.c.l.b16 %v44
  %v129 = vunpack.c.l.b16 %v45
  %v130 = vunpack.c.l.b16 %v46
  %v131 = vunpack.c.l.b16 %v47
  %v132 = vunpack.c.l.b16 %v48
  %v133 = vunpack.c.l.b16 %v49
  %v134 = vunpack.c.l.b16 %v50
  %v135 = vunpack.c.l.b16 %v51
  %v136 = vunpack.c.l.b16 %v52
  %v137 = vunpack.c.l.b16 %v53
  %v138 = vunpack.c.l.b16 %v54
  %v139 = vunpack.c.l.b16 %v55
  %v140 = vunpack.c.l.b16 %v56
  %v141 = vunpack.c.l.b16 %v57
  %v142 = vunpack.c.l.b16 %v58
  %v143 = vunpack.c.l.b16 %v59
  %v144 = vunpack.c.l.b16 %v60
  %v145 = vunpack.c.l.b16 %v61
  %v146 = vpack.c.b16 %v115, %v114
  %v147 = vpack.c.b16 %v117, %v116
  %v148 = vpack.c.b16 %v119, %v118
  %v149 = vpack.c.b16 %v121, %v120
  %v150 = vpack.c.b16 %v123, %v122
  %v151 = vpack.c.b16 %v125, %v124
  %v152 = vpack.c.b16 %v127, %v126
  %v153 = vpack.c.b16 %v129, %v128
  %v154 = vpack.c.b16 %v131, %v130
  %v155 = vpack.c.b16 %v133, %v132
  %v156 = vpack.c.b16 %v135, %v134
  %v157 = vpack.c.b16 %v137, %v136
  %v158 = vpack.c.b16 %v139, %v138
  %v159 = vpack.c.b16 %v141, %v140
  %v160 = vpack.c.b16 %v143, %v142
  %v161 = vpack.c.b16 %v145, %v144
  %178 = vmatpush.bf16.msra.mxu0 %v153
  %179 = vmatpush.bf16.msra.mxu0 %v152
  %180 = vmatpush.bf16.msra.mxu0 %v151
  %181 = vmatpush.bf16.msra.mxu0 %v150
  %182 = vmatpush.bf16.msra.mxu0 %v149
  %183 = vmatpush.bf16.msra.mxu0 %v148
  %184 = vmatpush.bf16.msra.mxu0 %v147
  %185 = vmatpush.bf16.msra.mxu0 %v146
  %186 = vmatmul.bf16.gmra.mxu0 %v74
  %v187 = vpop.f32.mrf.mxu0
  %v188 = vadd.f32 0.0, %v187
  %v189 = vpop.f32.mrf.mxu0
  %v190 = vadd.f32 0.0, %v189
  %191 = vmatmul.bf16.gmra.mxu0 %v76
  %v192 = vpop.f32.mrf.mxu0
  %v193 = vadd.f32 0.0, %v192
  %v194 = vpop.f32.mrf.mxu0
  %v195 = vadd.f32 0.0, %v194
  %196 = vdwg.mxu0
  %197 = vmatpush.bf16.msra.mxu0 %v161
  %198 = vmatpush.bf16.msra.mxu0 %v160
  %199 = vmatpush.bf16.msra.mxu0 %v159
  %200 = vmatpush.bf16.msra.mxu0 %v158
  %201 = vmatpush.bf16.msra.mxu0 %v157
  %202 = vmatpush.bf16.msra.mxu0 %v156
  %203 = vmatpush.bf16.msra.mxu0 %v155
  %204 = vmatpush.bf16.msra.mxu0 %v154
  %205 = vmatmul.bf16.gmra.mxu0 %v75
  %v206 = vpop.f32.mrf.mxu0
  %v207 = vadd.f32 %v188, %v206
  %v208 = vpop.f32.mrf.mxu0
  %v209 = vadd.f32 %v190, %v208
  %210 = vmatmul.bf16.gmra.mxu0 %v77
  %v211 = vpop.f32.mrf.mxu0
  %v212 = vadd.f32 %v193, %v211
  %v213 = vpop.f32.mrf.mxu0
  %v214 = vadd.f32 %v195, %v213
  %215 = vdwg.mxu0
  %v216 = vadd.f32 %v22, %v207
  %v217 = vadd.f32 %v23, %v209
  %v218 = vadd.f32 %v24, %v212
  %v219 = vadd.f32 %v25, %v214
  %220 = vst [vmem:[#allocation2] sm:$0xff] %v216
  %221 = vst [vmem:[#allocation2 + $0x8] sm:$0xff] %v217
  %222 = vst [vmem:[#allocation2 + $0x10] sm:$0xff] %v218
  %223 = vst [vmem:[#allocation2 + $0x18] sm:$0xff] %v219
  // Predicated region
  $region18: #{generator_forward.87} parent=0 // pred_check
    %p224 = pneg %p14
  $region19: #{generator_forward.87} parent=0 // pred_check_branch
    %226 = sbr.rel (%p224) target = $region21
  $region20: #{generator_forward.87} parent=0 // pred_region
    %v227 = vld [vmem:[#allocation2] sm:$0xff]
    %v228 = vld [vmem:[#allocation2 + $0x8] sm:$0xff]
    %v229 = vld [vmem:[#allocation2 + $0x10] sm:$0xff]
    %v230 = vld [vmem:[#allocation2 + $0x18] sm:$0xff]
    %v231 = vld [vmem:[%s2] sm:$0x1]
    %v233 = vperm.slane %v231, 0
    %v235 = vadd.f32 %v227, %v233
    %v236 = vadd.f32 %v228, %v233
    %v237 = vadd.f32 %v229, %v233
    %v238 = vadd.f32 %v230, %v233
    %239 = vst [vmem:[%s3] sm:$0xff] %v235
    %240 = vst [vmem:[%s3 + $0x8] sm:$0xff] %v236
    %241 = vst [vmem:[%s3 + $0x10] sm:$0xff] %v237
    %242 = vst [vmem:[%s3 + $0x18] sm:$0xff] %v238
  $region21: #{generator_forward.87} parent=0 // pred_fallthru
    _
  // Predicated region
  $region22: #{generator_forward.87} parent=0 // pred_check
    _
  $region23: #{generator_forward.87} parent=0 // pred_check_branch
    %244 = sbr.rel (0) target = $region25
  $region24: #{generator_forward.87} parent=0 // pred_region
    _
  $region25: #{generator_forward.87} parent=0 // pred_fallthru
    _
  // Predicated region
  $region26: #{generator_forward.87} parent=0 // pred_check
    _
  $region27: #{generator_forward.87} parent=0 // pred_check_branch
    %246 = sbr.rel (0) target = $region29
  $region28: #{generator_forward.87} parent=0 // pred_region
    _
  $region29: #{generator_forward.87} parent=0 // pred_fallthru
    _

// kernel: generator_forward.88
$region0: #{generator_forward.88}
  #allocation0 [shape = 'u32[]', space=smem, size = 0x4, offset = 0x4, fixed_abs, tag = 'smem constant byte address 0x4 - core index']
  #allocation1 [shape = 'u32[72,128]{1,0:T(1,128)}', space=vmem, size = 0x9000, scoped, tag = 'internal scratch']
  #allocation2 [shape = 'f32[32,128]{1,0:T(8,128)}', space=vmem, size = 0x4000, scoped, tag = 'scratch operand']
  %s0 = inlined_call_operand.vmem [shape: bf16[32,512], index: 0, kind: input, shape index: {}]
  %s1 = inlined_call_operand.vmem [shape: bf16[512,128], index: 1, kind: input, shape index: {}]
  %s2 = inlined_call_operand.vmem [shape: f32[1,128], index: 2, kind: input, shape index: {}]
  %s3 = inlined_call_operand.vmem [shape: f32[32,128], index: 3, kind: output, shape index: {}]
  %s4 = sld [smem:[#allocation0]]
  $region30: #{generator_forward.88} parent=0
    _
  %s6 = ssub.s32 1, %s4
  %s7 = scalar_select 0, %s6, %s4
  // Predicated region
  $region2: #{generator_forward.88} parent=0 // pred_check
    _
  $region3: #{generator_forward.88} parent=0 // pred_check_branch
    %9 = sbr.rel (0) target = $region5
  $region4: #{generator_forward.88} parent=0 // pred_region
    _
  $region5: #{generator_forward.88} parent=0 // pred_fallthru
    _
  // Predicated region
  $region6: #{generator_forward.88} parent=0 // pred_check
    _
  $region7: #{generator_forward.88} parent=0 // pred_check_branch
    %11 = sbr.rel (0) target = $region9
  $region8: #{generator_forward.88} parent=0 // pred_region
    _
  $region9: #{generator_forward.88} parent=0 // pred_fallthru
    _
  // Predicated region
  $region10: #{generator_forward.88} parent=0 // pred_check
    _
  $region11: #{generator_forward.88} parent=0 // pred_check_branch
    %13 = sbr.rel (0) target = $region13
  $region12: #{generator_forward.88} parent=0 // pred_region
    _
  $region13: #{generator_forward.88} parent=0 // pred_fallthru
    _
  %p14 = scmp.eq.s32.totalorder 0, 0
  // Predicated region
  $region14: #{generator_forward.88} parent=0 // pred_check
    %p15 = pneg %p14
  $region15: #{generator_forward.88} parent=0 // pred_check_branch
    %17 = sbr.rel (%p15) target = $region17
  $region16: #{generator_forward.88} parent=0 // pred_region
    %18 = vst [vmem:[#allocation2] sm:$0xff] 0.0
    %19 = vst [vmem:[#allocation2 + $0x8] sm:$0xff] 0.0
    %20 = vst [vmem:[#allocation2 + $0x10] sm:$0xff] 0.0
    %21 = vst [vmem:[#allocation2 + $0x18] sm:$0xff] 0.0
  $region17: #{generator_forward.88} parent=0 // pred_fallthru
    _
  %v22 = vld [vmem:[#allocation2] sm:$0xff]
  %v23 = vld [vmem:[#allocation2 + $0x8] sm:$0xff]
  %v24 = vld [vmem:[#allocation2 + $0x10] sm:$0xff]
  %v25 = vld [vmem:[#allocation2 + $0x18] sm:$0xff]
  %v26 = vld [vmem:[%s0] sm:$0xff]
  %v27 = vld [vmem:[%s0 + $0x8] sm:$0xff]
  %v28 = vld [vmem:[%s0 + $0x10] sm:$0xff]
  %v29 = vld [vmem:[%s0 + $0x18] sm:$0xff]
  %v30 = vld [vmem:[%s0 + $0x20] sm:$0xff]
  %v31 = vld [vmem:[%s0 + $0x28] sm:$0xff]
  %v32 = vld [vmem:[%s0 + $0x30] sm:$0xff]
  %v33 = vld [vmem:[%s0 + $0x38] sm:$0xff]
  %v34 = vld [vmem:[%s1] sm:$0xf]
  %v35 = vld [vmem:[%s1 + $0x4] sm:$0xf]
  %v36 = vld [vmem:[%s1 + $0x8] sm:$0xf]
  %v37 = vld [vmem:[%s1 + $0xc] sm:$0xf]
  %v38 = vld [vmem:[%s1 + $0x10] sm:$0xf]
  %v39 = vld [vmem:[%s1 + $0x14] sm:$0xf]
  %v40 = vld [vmem:[%s1 + $0x18] sm:$0xf]
  %v41 = vld [vmem:[%s1 + $0x1c] sm:$0xf]
  %v42 = vld [vmem:[%s1 + $0x20] sm:$0xf]
  %v43 = vld [vmem:[%s1 + $0x24] sm:$0xf]
  %v44 = vld [vmem:[%s1 + $0x28] sm:$0xf]
  %v45 = vld [vmem:[%s1 + $0x2c] sm:$0xf]
  %v46 = vld [vmem:[%s1 + $0x30] sm:$0xf]
  %v47 = vld [vmem:[%s1 + $0x34] sm:$0xf]
  %v48 = vld [vmem:[%s1 + $0x38] sm:$0xf]
  %v49 = vld [vmem:[%s1 + $0x3c] sm:$0xf]
  %v50 = vld [vmem:[%s1 + $0x40] sm:$0xf]
  %v51 = vld [vmem:[%s1 + $0x44] sm:$0xf]
  %v52 = vld [vmem:[%s1 + $0x48] sm:$0xf]
  %v53 = vld [vmem:[%s1 + $0x4c] sm:$0xf]
  %v54 = vld [vmem:[%s1 + $0x50] sm:$0xf]
  %v55 = vld [vmem:[%s1 + $0x54] sm:$0xf]
  %v56 = vld [vmem:[%s1 + $0x58] sm:$0xf]
  %v57 = vld [vmem:[%s1 + $0x5c] sm:$0xf]
  %v58 = vld [vmem:[%s1 + $0x60] sm:$0xf]
  %v59 = vld [vmem:[%s1 + $0x64] sm:$0xf]
  %v60 = vld [vmem:[%s1 + $0x68] sm:$0xf]
  %v61 = vld [vmem:[%s1 + $0x6c] sm:$0xf]
  %v62 = vld [vmem:[%s1 + $0x70] sm:$0xf]
  %v63 = vld [vmem:[%s1 + $0x74] sm:$0xf]
  %v64 = vld [vmem:[%s1 + $0x78] sm:$0xf]
  %v65 = vld [vmem:[%s1 + $0x7c] sm:$0xf]
  %v66 = vld [vmem:[%s1 + $0x80] sm:$0xf]
  %v67 = vld [vmem:[%s1 + $0x84] sm:$0xf]
  %v68 = vld [vmem:[%s1 + $0x88] sm:$0xf]
  %v69 = vld [vmem:[%s1 + $0x8c] sm:$0xf]
  %v70 = vld [vmem:[%s1 + $0x90] sm:$0xf]
  %v71 = vld [vmem:[%s1 + $0x94] sm:$0xf]
  %v72 = vld [vmem:[%s1 + $0x98] sm:$0xf]
  %v73 = vld [vmem:[%s1 + $0x9c] sm:$0xf]
  %v74 = vld [vmem:[%s1 + $0xa0] sm:$0xf]
  %v75 = vld [vmem:[%s1 + $0xa4] sm:$0xf]
  %v76 = vld [vmem:[%s1 + $0xa8] sm:$0xf]
  %v77 = vld [vmem:[%s1 + $0xac] sm:$0xf]
  %v78 = vld [vmem:[%s1 + $0xb0] sm:$0xf]
  %v79 = vld [vmem:[%s1 + $0xb4] sm:$0xf]
  %v80 = vld [vmem:[%s1 + $0xb8] sm:$0xf]
  %v81 = vld [vmem:[%s1 + $0xbc] sm:$0xf]
  %v82 = vld [vmem:[%s1 + $0xc0] sm:$0xf]
  %v83 = vld [vmem:[%s1 + $0xc4] sm:$0xf]
  %v84 = vld [vmem:[%s1 + $0xc8] sm:$0xf]
  %v85 = vld [vmem:[%s1 + $0xcc] sm:$0xf]
  %v86 = vld [vmem:[%s1 + $0xd0] sm:$0xf]
  %v87 = vld [vmem:[%s1 + $0xd4] sm:$0xf]
  %v88 = vld [vmem:[%s1 + $0xd8] sm:$0xf]
  %v89 = vld [vmem:[%s1 + $0xdc] sm:$0xf]
  %v90 = vld [vmem:[%s1 + $0xe0] sm:$0xf]
  %v91 = vld [vmem:[%s1 + $0xe4] sm:$0xf]
  %v92 = vld [vmem:[%s1 + $0xe8] sm:$0xf]
  %v93 = vld [vmem:[%s1 + $0xec] sm:$0xf]
  %v94 = vld [vmem:[%s1 + $0xf0] sm:$0xf]
  %v95 = vld [vmem:[%s1 + $0xf4] sm:$0xf]
  %v96 = vld [vmem:[%s1 + $0xf8] sm:$0xf]
  %v97 = vld [vmem:[%s1 + $0xfc] sm:$0xf]
  %v106 = vunpack.c.l.b16 %v26
  %v107 = vunpack.c.h.b16 %v26
  %v108 = vunpack.c.l.b16 %v27
  %v109 = vunpack.c.h.b16 %v27
  %v110 = vunpack.c.l.b16 %v28
  %v111 = vunpack.c.h.b16 %v28
  %v112 = vunpack.c.l.b16 %v29
  %v113 = vunpack.c.h.b16 %v29
  %v114 = vunpack.c.l.b16 %v30
  %v115 = vunpack.c.h.b16 %v30
  %v116 = vunpack.c.l.b16 %v31
  %v117 = vunpack.c.h.b16 %v31
  %v118 = vunpack.c.l.b16 %v32
  %v119 = vunpack.c.h.b16 %v32
  %v120 = vunpack.c.l.b16 %v33
  %v121 = vunpack.c.h.b16 %v33
  %v122 = vpack.c.b16 %v110, %v106
  %v123 = vpack.c.b16 %v111, %v107
  %v124 = vpack.c.b16 %v112, %v108
  %v125 = vpack.c.b16 %v113, %v109
  %v126 = vpack.c.b16 %v118, %v114
  %v127 = vpack.c.b16 %v119, %v115
  %v128 = vpack.c.b16 %v120, %v116
  %v129 = vpack.c.b16 %v121, %v117
  %v202 = vunpack.c.l.b16 %v34
  %v203 = vunpack.c.l.b16 %v35
  %v204 = vunpack.c.l.b16 %v36
  %v205 = vunpack.c.l.b16 %v37
  %v206 = vunpack.c.l.b16 %v38
  %v207 = vunpack.c.l.b16 %v39
  %v208 = vunpack.c.l.b16 %v40
  %v209 = vunpack.c.l.b16 %v41
  %v210 = vunpack.c.l.b16 %v42
  %v211 = vunpack.c.l.b16 %v43
  %v212 = vunpack.c.l.b16 %v44
  %v213 = vunpack.c.l.b16 %v45
  %v214 = vunpack.c.l.b16 %v46
  %v215 = vunpack.c.l.b16 %v47
  %v216 = vunpack.c.l.b16 %v48
  %v217 = vunpack.c.l.b16 %v49
  %v218 = vunpack.c.l.b16 %v50
  %v219 = vunpack.c.l.b16 %v51
  %v220 = vunpack.c.l.b16 %v52
  %v221 = vunpack.c.l.b16 %v53
  %v222 = vunpack.c.l.b16 %v54
  %v223 = vunpack.c.l.b16 %v55
  %v224 = vunpack.c.l.b16 %v56
  %v225 = vunpack.c.l.b16 %v57
  %v226 = vunpack.c.l.b16 %v58
  %v227 = vunpack.c.l.b16 %v59
  %v228 = vunpack.c.l.b16 %v60
  %v229 = vunpack.c.l.b16 %v61
  %v230 = vunpack.c.l.b16 %v62
  %v231 = vunpack.c.l.b16 %v63
  %v232 = vunpack.c.l.b16 %v64
  %v233 = vunpack.c.l.b16 %v65
  %v234 = vunpack.c.l.b16 %v66
  %v235 = vunpack.c.l.b16 %v67
  %v236 = vunpack.c.l.b16 %v68
  %v237 = vunpack.c.l.b16 %v69
  %v238 = vunpack.c.l.b16 %v70
  %v239 = vunpack.c.l.b16 %v71
  %v240 = vunpack.c.l.b16 %v72
  %v241 = vunpack.c.l.b16 %v73
  %v242 = vunpack.c.l.b16 %v74
  %v243 = vunpack.c.l.b16 %v75
  %v244 = vunpack.c.l.b16 %v76
  %v245 = vunpack.c.l.b16 %v77
  %v246 = vunpack.c.l.b16 %v78
  %v247 = vunpack.c.l.b16 %v79
  %v248 = vunpack.c.l.b16 %v80
  %v249 = vunpack.c.l.b16 %v81
  %v250 = vunpack.c.l.b16 %v82
  %v251 = vunpack.c.l.b16 %v83
  %v252 = vunpack.c.l.b16 %v84
  %v253 = vunpack.c.l.b16 %v85
  %v254 = vunpack.c.l.b16 %v86
  %v255 = vunpack.c.l.b16 %v87
  %v256 = vunpack.c.l.b16 %v88
  %v257 = vunpack.c.l.b16 %v89
  %v258 = vunpack.c.l.b16 %v90
  %v259 = vunpack.c.l.b16 %v91
  %v260 = vunpack.c.l.b16 %v92
  %v261 = vunpack.c.l.b16 %v93
  %v262 = vunpack.c.l.b16 %v94
  %v263 = vunpack.c.l.b16 %v95
  %v264 = vunpack.c.l.b16 %v96
  %v265 = vunpack.c.l.b16 %v97
  %v266 = vpack.c.b16 %v203, %v202
  %v267 = vpack.c.b16 %v205, %v204
  %v268 = vpack.c.b16 %v207, %v206
  %v269 = vpack.c.b16 %v209, %v208
  %v270 = vpack.c.b16 %v211, %v210
  %v271 = vpack.c.b16 %v213, %v212
  %v272 = vpack.c.b16 %v215, %v214
  %v273 = vpack.c.b16 %v217, %v216
  %v274 = vpack.c.b16 %v219, %v218
  %v275 = vpack.c.b16 %v221, %v220
  %v276 = vpack.c.b16 %v223, %v222
  %v277 = vpack.c.b16 %v225, %v224
  %v278 = vpack.c.b16 %v227, %v226
  %v279 = vpack.c.b16 %v229, %v228
  %v280 = vpack.c.b16 %v231, %v230
  %v281 = vpack.c.b16 %v233, %v232
  %v282 = vpack.c.b16 %v235, %v234
  %v283 = vpack.c.b16 %v237, %v236
  %v284 = vpack.c.b16 %v239, %v238
  %v285 = vpack.c.b16 %v241, %v240
  %v286 = vpack.c.b16 %v243, %v242
  %v287 = vpack.c.b16 %v245, %v244
  %v288 = vpack.c.b16 %v247, %v246
  %v289 = vpack.c.b16 %v249, %v248
  %v290 = vpack.c.b16 %v251, %v250
  %v291 = vpack.c.b16 %v253, %v252
  %v292 = vpack.c.b16 %v255, %v254
  %v293 = vpack.c.b16 %v257, %v256
  %v294 = vpack.c.b16 %v259, %v258
  %v295 = vpack.c.b16 %v261, %v260
  %v296 = vpack.c.b16 %v263, %v262
  %v297 = vpack.c.b16 %v265, %v264
  %330 = vmatpush.bf16.msra.mxu0 %v273
  %331 = vmatpush.bf16.msra.mxu0 %v272
  %332 = vmatpush.bf16.msra.mxu0 %v271
  %333 = vmatpush.bf16.msra.mxu0 %v270
  %334 = vmatpush.bf16.msra.mxu0 %v269
  %335 = vmatpush.bf16.msra.mxu0 %v268
  %336 = vmatpush.bf16.msra.mxu0 %v267
  %337 = vmatpush.bf16.msra.mxu0 %v266
  %338 = vmatmul.bf16.gmra.mxu0 %v122
  %v339 = vpop.f32.mrf.mxu0
  %v340 = vadd.f32 0.0, %v339
  %v341 = vpop.f32.mrf.mxu0
  %v342 = vadd.f32 0.0, %v341
  %343 = vmatmul.bf16.gmra.mxu0 %v126
  %v344 = vpop.f32.mrf.mxu0
  %v345 = vadd.f32 0.0, %v344
  %v346 = vpop.f32.mrf.mxu0
  %v347 = vadd.f32 0.0, %v346
  %348 = vdwg.mxu0
  %349 = vmatpush.bf16.msra.mxu0 %v281
  %350 = vmatpush.bf16.msra.mxu0 %v280
  %351 = vmatpush.bf16.msra.mxu0 %v279
  %352 = vmatpush.bf16.msra.mxu0 %v278
  %353 = vmatpush.bf16.msra.mxu0 %v277
  %354 = vmatpush.bf16.msra.mxu0 %v276
  %355 = vmatpush.bf16.msra.mxu0 %v275
  %356 = vmatpush.bf16.msra.mxu0 %v274
  %357 = vmatmul.bf16.gmra.mxu0 %v123
  %v358 = vpop.f32.mrf.mxu0
  %v359 = vadd.f32 %v340, %v358
  %v360 = vpop.f32.mrf.mxu0
  %v361 = vadd.f32 %v342, %v360
  %362 = vmatmul.bf16.gmra.mxu0 %v127
  %v363 = vpop.f32.mrf.mxu0
  %v364 = vadd.f32 %v345, %v363
  %v365 = vpop.f32.mrf.mxu0
  %v366 = vadd.f32 %v347, %v365
  %367 = vdwg.mxu0
  %368 = vmatpush.bf16.msra.mxu0 %v289
  %369 = vmatpush.bf16.msra.mxu0 %v288
  %370 = vmatpush.bf16.msra.mxu0 %v287
  %371 = vmatpush.bf16.msra.mxu0 %v286
  %372 = vmatpush.bf16.msra.mxu0 %v285
  %373 = vmatpush.bf16.msra.mxu0 %v284
  %374 = vmatpush.bf16.msra.mxu0 %v283
  %375 = vmatpush.bf16.msra.mxu0 %v282
  %376 = vmatmul.bf16.gmra.mxu0 %v124
  %v377 = vpop.f32.mrf.mxu0
  %v378 = vadd.f32 %v359, %v377
  %v379 = vpop.f32.mrf.mxu0
  %v380 = vadd.f32 %v361, %v379
  %381 = vmatmul.bf16.gmra.mxu0 %v128
  %v382 = vpop.f32.mrf.mxu0
  %v383 = vadd.f32 %v364, %v382
  %v384 = vpop.f32.mrf.mxu0
  %v385 = vadd.f32 %v366, %v384
  %386 = vdwg.mxu0
  %387 = vmatpush.bf16.msra.mxu0 %v297
  %388 = vmatpush.bf16.msra.mxu0 %v296
  %389 = vmatpush.bf16.msra.mxu0 %v295
  %390 = vmatpush.bf16.msra.mxu0 %v294
  %391 = vmatpush.bf16.msra.mxu0 %v293
  %392 = vmatpush.bf16.msra.mxu0 %v292
  %393 = vmatpush.bf16.msra.mxu0 %v291
  %394 = vmatpush.bf16.msra.mxu0 %v290
  %395 = vmatmul.bf16.gmra.mxu0 %v125
  %v396 = vpop.f32.mrf.mxu0
  %v397 = vadd.f32 %v378, %v396
  %v398 = vpop.f32.mrf.mxu0
  %v399 = vadd.f32 %v380, %v398
  %400 = vmatmul.bf16.gmra.mxu0 %v129
  %v401 = vpop.f32.mrf.mxu0
  %v402 = vadd.f32 %v383, %v401
  %v403 = vpop.f32.mrf.mxu0
  %v404 = vadd.f32 %v385, %v403
  %405 = vdwg.mxu0
  %v406 = vadd.f32 %v22, %v397
  %v407 = vadd.f32 %v23, %v399
  %v408 = vadd.f32 %v24, %v402
  %v409 = vadd.f32 %v25, %v404
  %410 = vst [vmem:[#allocation2] sm:$0xff] %v406
  %411 = vst [vmem:[#allocation2 + $0x8] sm:$0xff] %v407
  %412 = vst [vmem:[#allocation2 + $0x10] sm:$0xff] %v408
  %413 = vst [vmem:[#allocation2 + $0x18] sm:$0xff] %v409
  // Predicated region
  $region18: #{generator_forward.88} parent=0 // pred_check
    %p414 = pneg %p14
  $region19: #{generator_forward.88} parent=0 // pred_check_branch
    %416 = sbr.rel (%p414) target = $region21
  $region20: #{generator_forward.88} parent=0 // pred_region
    %v417 = vld [vmem:[#allocation2] sm:$0xff]
    %v418 = vld [vmem:[#allocation2 + $0x8] sm:$0xff]
    %v419 = vld [vmem:[#allocation2 + $0x10] sm:$0xff]
    %v420 = vld [vmem:[#allocation2 + $0x18] sm:$0xff]
    %v421 = vld [vmem:[%s2] sm:$0x1]
    %v423 = vperm.slane %v421, 0
    %v425 = vadd.f32 %v417, %v423
    %v426 = vadd.f32 %v418, %v423
    %v427 = vadd.f32 %v419, %v423
    %v428 = vadd.f32 %v420, %v423
    %429 = vst [vmem:[%s3] sm:$0xff] %v425
    %430 = vst [vmem:[%s3 + $0x8] sm:$0xff] %v426
    %431 = vst [vmem:[%s3 + $0x10] sm:$0xff] %v427
    %432 = vst [vmem:[%s3 + $0x18] sm:$0xff] %v428
  $region21: #{generator_forward.88} parent=0 // pred_fallthru
    _
  // Predicated region
  $region22: #{generator_forward.88} parent=0 // pred_check
    _
  $region23: #{generator_forward.88} parent=0 // pred_check_branch
    %434 = sbr.rel (0) target = $region25
  $region24: #{generator_forward.88} parent=0 // pred_region
    _
  $region25: #{generator_forward.88} parent=0 // pred_fallthru
    _
  // Predicated region
  $region26: #{generator_forward.88} parent=0 // pred_check
    _
  $region27: #{generator_forward.88} parent=0 // pred_check_branch
    %436 = sbr.rel (0) target = $region29
  $region28: #{generator_forward.88} parent=0 // pred_region
    _
  $region29: #{generator_forward.88} parent=0 // pred_fallthru
    _

// kernel: generator_forward.90
$region0: #{generator_forward.90}
  #allocation0 [shape = 'u32[]', space=smem, size = 0x4, offset = 0x4, fixed_abs, tag = 'smem constant byte address 0x4 - core index']
  #allocation1 [shape = 'u32[72,128]{1,0:T(1,128)}', space=vmem, size = 0x9000, scoped, tag = 'internal scratch']
  #allocation2 [shape = 'f32[32,128]{1,0:T(8,128)}', space=vmem, size = 0x4000, scoped, tag = 'scratch operand']
  %s0 = inlined_call_operand.vmem [shape: bf16[32,1024], index: 0, kind: input, shape index: {}]
  %s1 = inlined_call_operand.vmem [shape: bf16[1024,128], index: 1, kind: input, shape index: {}]
  %s2 = inlined_call_operand.vmem [shape: f32[1,128], index: 2, kind: input, shape index: {}]
  %s3 = inlined_call_operand.vmem [shape: f32[32,128], index: 3, kind: output, shape index: {}]
  %s4 = sld [smem:[#allocation0]]
  $region76: #{generator_forward.90} parent=0
    _
  %s6 = ssub.s32 1, %s4
  %s7 = scalar_select 0, %s6, %s4
  $region1: #{generator_forward.90} parent=0
    #allocation3 [shape = 'u8[65536]{0}', space=vmem, size = 0x10000, scoped, tag = 'input window, operand 0']
    loop: start=0, step=1, limit=4
    $region2: #{generator_forward.90} parent=1 // loop_pre_header
      _
    $region3: #{generator_forward.90} parent=1 // loop_header
      %s9 = sphi 0, %s13
      %p10 = scmp.ge.s32.totalorder %s9, 4
      %s16 = sphi 0, %s35
      %s17 = sphi 0, %s31
      %s18 = sphi 0, %s27
      %s19 = sphi 0, %s16
      %s20 = sphi 0, %s17
      %s21 = sphi 0, %s18
      %s22 = sphi 0, %s19
      %s23 = sphi 0, %s20
      %s24 = sphi 0, %s21
      %s40 = sphi 0, %s42
      %s43 = sphi 0, %s40
      %s44 = sphi 0, %s43
      %s60 = sphi 0, %s44
      %s68 = sphi 0, %s70
      %s71 = sphi 0, %s68
      %s72 = sphi 0, %s71
      %s88 = sphi 0, %s72
      %s94 = sphi 0, %s96
      %s97 = sphi 0, %s94
      %s98 = sphi 0, %s97
      %s114 = sphi 0, %s98
      %s122 = sphi 0, %s124
      %s125 = sphi 0, %s122
      %s126 = sphi 0, %s125
      %s142 = sphi 0, %s126
    $region4: #{generator_forward.90} parent=1 // loop_header_branch
      %12 = sbr.rel (%p10) target = $region8
    $region5: #{generator_forward.90} parent=1 // loop_body
      %s14 = ssub.s32 %s9, 1
      %s15 = ssub.s32 %s9, 2
      %s25 = sadd.s32 1, %s18
      %p26 = scmp.ge.s32.totalorder %s25, 2
      %s27 = scalar_select %p26, 0, %s25
      %s28 = sadd.s32 1, %s17
      %s29 = scalar_select %p26, %s28, %s17
      %p30 = scmp.ge.s32.totalorder %s29, 1
      %s31 = scalar_select %p30, 0, %s29
      %s32 = sadd.s32 1, %s16
      %s33 = scalar_select %p30, %s32, %s16
      %p34 = scmp.ge.s32.totalorder %s33, 1
      %s35 = scalar_select %p34, 0, %s33
      %s36 = ssub.s32 %s16, %s35
      %s37 = ssub.s32 %s18, %s27
      %s38 = sor.u32 %s36, %s37
      %p39 = scmp.eq.s32.totalorder %s38, 0
      %s41 = sadd.s32 %s40, 1
      %s42 = scalar_select %p39, %s40, %s41
      %p45 = pneg %p39
      %p46 = scmp.eq.s32.totalorder %s9, 1
      %p47 = por %p45, %p46
      %p48 = scmp.ne.s32.totalorder %s40, %s43
      %p49 = scmp.eq.s32.totalorder %s9, 0
      %p50 = por %p48, %p49
      %p51 = scmp.ne.s32.totalorder %s40, %s43
      %p52 = scmp.eq.s32.totalorder %s14, 1
      %p53 = por %p51, %p52
      %p54 = scmp.ne.s32.totalorder %s43, %s44
      %p55 = scmp.eq.s32.totalorder %s14, 0
      %p56 = por %p54, %p55
      %p57 = scmp.ne.s32.totalorder %s43, %s44
      %p58 = scmp.eq.s32.totalorder %s15, 1
      %p59 = por %p57, %p58
      %p61 = scmp.ne.s32.totalorder %s44, %s60
      %p62 = scmp.eq.s32.totalorder %s15, 0
      %p63 = por %p61, %p62
      %s64 = ssub.s32 %s18, %s27
      %s65 = ssub.s32 %s17, %s31
      %s66 = sor.u32 %s64, %s65
      %p67 = scmp.eq.s32.totalorder %s66, 0
      %s69 = sadd.s32 %s68, 1
      %s70 = scalar_select %p67, %s68, %s69
      %p73 = pneg %p67
      %p74 = scmp.eq.s32.totalorder %s9, 1
      %p75 = por %p73, %p74
      %p76 = scmp.ne.s32.totalorder %s68, %s71
      %p77 = scmp.eq.s32.totalorder %s9, 0
      %p78 = por %p76, %p77
      %p79 = scmp.ne.s32.totalorder %s68, %s71
      %p80 = scmp.eq.s32.totalorder %s14, 1
      %p81 = por %p79, %p80
      %p82 = scmp.ne.s32.totalorder %s71, %s72
      %p83 = scmp.eq.s32.totalorder %s14, 0
      %p84 = por %p82, %p83
      %p85 = scmp.ne.s32.totalorder %s71, %s72
      %p86 = scmp.eq.s32.totalorder %s15, 1
      %p87 = por %p85, %p86
      %p89 = scmp.ne.s32.totalorder %s72, %s88
      %p90 = scmp.eq.s32.totalorder %s15, 0
      %p91 = por %p89, %p90
      %s92 = ssub.s32 %s17, %s31
      %p93 = scmp.eq.s32.totalorder %s92, 0
      %s95 = sadd.s32 %s94, 1
      %s96 = scalar_select %p93, %s94, %s95
      %p99 = pneg %p93
      %p100 = scmp.eq.s32.totalorder %s9, 1
      %p101 = por %p99, %p100
      %p102 = scmp.ne.s32.totalorder %s94, %s97
      %p103 = scmp.eq.s32.totalorder %s9, 0
      %p104 = por %p102, %p103
      %p105 = scmp.ne.s32.totalorder %s94, %s97
      %p106 = scmp.eq.s32.totalorder %s14, 1
      %p107 = por %p105, %p106
      %p108 = scmp.ne.s32.totalorder %s97, %s98
      %p109 = scmp.eq.s32.totalorder %s14, 0
      %p110 = por %p108, %p109
      %p111 = scmp.ne.s32.totalorder %s97, %s98
      %p112 = scmp.eq.s32.totalorder %s15, 1
      %p113 = por %p111, %p112
      %p115 = scmp.ne.s32.totalorder %s98, %s114
      %p116 = scmp.eq.s32.totalorder %s15, 0
      %p117 = por %p115, %p116
      %s118 = ssub.s32 %s16, %s35
      %s119 = ssub.s32 %s17, %s31
      %s120 = sor.u32 %s118, %s119
      %p121 = scmp.eq.s32.totalorder %s120, 0
      %s123 = sadd.s32 %s122, 1
      %s124 = scalar_select %p121, %s122, %s123
      %p127 = pneg %p121
      %p128 = scmp.eq.s32.totalorder %s9, 1
      %p129 = por %p127, %p128
      %p130 = scmp.ne.s32.totalorder %s122, %s125
      %p131 = scmp.eq.s32.totalorder %s9, 0
      %p132 = por %p130, %p131
      %p133 = scmp.ne.s32.totalorder %s122, %s125
      %p134 = scmp.eq.s32.totalorder %s14, 1
      %p135 = por %p133, %p134
      %p136 = scmp.ne.s32.totalorder %s125, %s126
      %p137 = scmp.eq.s32.totalorder %s14, 0
      %p138 = por %p136, %p137
      %p139 = scmp.ne.s32.totalorder %s125, %s126
      %p140 = scmp.eq.s32.totalorder %s15, 1
      %p141 = por %p139, %p140
      %p143 = scmp.ne.s32.totalorder %s126, %s142
      %p144 = scmp.eq.s32.totalorder %s15, 0
      %p145 = por %p143, %p144
      %p146 = scmp.le.s32.totalorder 1, %s9
      %p147 = scmp.lt.s32.totalorder %s9, 3
      %p148 = pnand %p146, %p147
      %p149 = pneg %p148
      // Predicated region
      $region9: #{generator_forward.90} parent=5 // pred_check
        _
      $region10: #{generator_forward.90} parent=5 // pred_check_branch
        %151 = sbr.rel (%p148) target = $region12
      $region11: #{generator_forward.90} parent=5 // pred_region
        %s152 = ssub.s32 %s9, 1
        // Predicated region
        $region13: #{generator_forward.90} parent=11 // pred_check
          %p153 = pneg %p110
        $region14: #{generator_forward.90} parent=11 // pred_check_branch
          %155 = sbr.rel (%p153) target = $region16
        $region15: #{generator_forward.90} parent=11 // pred_region
          %p156 = scmp.lt.s32.totalorder %s20, 0
          %s157 = scalar_select %p156, %s20, 0
          %s158 = scalar_lea.vmem %s2, %s157
        $region16: #{generator_forward.90} parent=11 // pred_fallthru
          _
      $region12: #{generator_forward.90} parent=5 // pred_fallthru
        _
      %p159 = scmp.lt.s32.totalorder %s9, 2
      // Predicated region
      $region17: #{generator_forward.90} parent=5 // pred_check
        %p160 = pneg %p159
      $region18: #{generator_forward.90} parent=5 // pred_check_branch
        %162 = sbr.rel (%p160) target = $region20
      $region19: #{generator_forward.90} parent=5 // pred_region
        // Predicated region
        $region21: #{generator_forward.90} parent=19 // pred_check
          %p163 = pneg %p50
        $region22: #{generator_forward.90} parent=19 // pred_check_branch
          %165 = sbr.rel (%p163) target = $region24
        $region23: #{generator_forward.90} parent=19 // pred_region
          %s166 = sand.u32 %s40, 1
          %s167 = sand.u32 %s40, 1
          %s168 = smul.addr %s167, 64
          %s169 = scalar_lea.vmem [#allocation3], %s168
          %s170 = smul.u32 4, %s16
          %s171 = smul.u32 4, %s18
          %s172 = smul.addr %s170, 8
          %s173 = sadd.s32 %s171, %s172
          %s174 = smul.addr %s173, 4
          %s175 = scalar_lea.vmem %s0, %s174
          // Predicated region
          $region25: #{generator_forward.90} parent=23 // pred_check
            _
          $region26: #{generator_forward.90} parent=23 // pred_check_branch
            %177 = sbr.rel (0) target = $region28
          $region27: #{generator_forward.90} parent=23 // pred_region
            // Predicated region
            $region29: #{generator_forward.90} parent=27 // pred_check
              _
            $region30: #{generator_forward.90} parent=27 // pred_check_branch
              %179 = sbr.rel (0) target = $region32
            $region31: #{generator_forward.90} parent=27 // pred_region
              loop: start=0, step=1, limit=1
              $region33: #{generator_forward.90} parent=31 // loop_pre_header
                _
              $region34: #{generator_forward.90} parent=31 // loop_header
                %s181 = sphi 0, %s185
                %p182 = scmp.ge.s32.totalorder %s181, 1
                %s186 = sphi %s175, %s175
                %s187 = sphi %s169, %s169
              $region35: #{generator_forward.90} parent=31 // loop_header_branch
                %184 = sbr.rel (%p182) target = $region39
              $region36: #{generator_forward.90} parent=31 // loop_body
                %v188 = vld [vmem:[%s186] sm:$0xff]
                %189 = vst [vmem:[%s187] sm:$0xff] %v188
                %v190 = vld [vmem:[%s186 + $0x8] sm:$0xff]
                %191 = vst [vmem:[%s187 + $0x8] sm:$0xff] %v190
                %v192 = vld [vmem:[%s186 + $0x20] sm:$0xff]
                %193 = vst [vmem:[%s187 + $0x10] sm:$0xff] %v192
                %v194 = vld [vmem:[%s186 + $0x28] sm:$0xff]
                %195 = vst [vmem:[%s187 + $0x18] sm:$0xff] %v194
                %v196 = vld [vmem:[%s186 + $0x40] sm:$0xff]
                %197 = vst [vmem:[%s187 + $0x20] sm:$0xff] %v196
                %v198 = vld [vmem:[%s186 + $0x48] sm:$0xff]
                %199 = vst [vmem:[%s187 + $0x28] sm:$0xff] %v198
                %v200 = vld [vmem:[%s186 + $0x60] sm:$0xff]
                %201 = vst [vmem:[%s187 + $0x30] sm:$0xff] %v200
                %v202 = vld [vmem:[%s186 + $0x68] sm:$0xff]
                %203 = vst [vmem:[%s187 + $0x38] sm:$0xff] %v202
              $region37: #{generator_forward.90} parent=31 // loop_footer
                %s185 = sadd.s32 1, %s181
              $region38: #{generator_forward.90} parent=31 // loop_footer_branch
                %180 = sbr.rel target = $region34
              $region39: #{generator_forward.90} parent=31 // loop_exit
                _
            $region32: #{generator_forward.90} parent=27 // pred_fallthru
              _
            // Predicated region
            $region40: #{generator_forward.90} parent=27 // pred_check
              _
            $region41: #{generator_forward.90} parent=27 // pred_check_branch
              %205 = sbr.rel target = $region43
            $region42: #{generator_forward.90} parent=27 // pred_region
              _
            $region43: #{generator_forward.90} parent=27 // pred_fallthru
              _
          $region28: #{generator_forward.90} parent=23 // pred_fallthru
            _
          %206 = vnop
        $region24: #{generator_forward.90} parent=19 // pred_fallthru
          _
        // Predicated region
        $region44: #{generator_forward.90} parent=19 // pred_check
          %p207 = pneg %p78
        $region45: #{generator_forward.90} parent=19 // pred_check_branch
          %209 = sbr.rel (%p207) target = $region47
        $region46: #{generator_forward.90} parent=19 // pred_region
          %s210 = smul.u32 64, %s18
          %p211 = scmp.lt.s32.totalorder %s210, 127
          %s212 = scalar_select %p211, %s210, 127
          %p213 = scmp.lt.s32.totalorder %s17, 0
          %s214 = scalar_select %p213, %s17, 0
          %s215 = sadd.s32 %s214, %s212
          %s216 = smul.addr %s215, 4
          %s217 = scalar_lea.vmem %s1, %s216
          %s218 = smul.u32 64, %s18
        $region47: #{generator_forward.90} parent=19 // pred_fallthru
          _
      $region20: #{generator_forward.90} parent=5 // pred_fallthru
        _
      %p219 = scmp.le.s32.totalorder 1, %s9
      %p220 = scmp.lt.s32.totalorder %s9, 3
      %p221 = pnand %p219, %p220
      %p222 = pneg %p221
      // Predicated region
      $region48: #{generator_forward.90} parent=5 // pred_check
        _
      $region49: #{generator_forward.90} parent=5 // pred_check_branch
        %224 = sbr.rel (%p221) target = $region51
      $region50: #{generator_forward.90} parent=5 // pred_region
        %s225 = ssub.s32 %s9, 1
        %s226 = sand.u32 %s43, 1
        %s227 = sand.u32 %s43, 1
        %s228 = smul.addr %s227, 64
        %s229 = scalar_lea.vmem [#allocation3], %s228
        // Predicated region
        $region52: #{generator_forward.90} parent=50 // pred_check
          %p230 = pneg %p56
        $region53: #{generator_forward.90} parent=50 // pred_check_branch
          %232 = sbr.rel (%p230) target = $region55
        $region54: #{generator_forward.90} parent=50 // pred_region
          _
        $region55: #{generator_forward.90} parent=50 // pred_fallthru
          _
        %s233 = sand.u32 %s43, 1
        %s234 = sand.u32 %s43, 1
        %s235 = smul.addr %s234, 64
        %s236 = scalar_lea.vmem [#allocation3], %s235
        %p237 = pneg %p56
        %p238 = pneg %p53
        %s239 = smul.u32 64, %s21
        %p240 = scmp.lt.s32.totalorder %s239, 127
        %s241 = scalar_select %p240, %s239, 127
        %p242 = scmp.lt.s32.totalorder %s20, 0
        %s243 = scalar_select %p242, %s20, 0
        %s244 = sadd.s32 %s243, %s241
        %s245 = smul.addr %s244, 4
        %s246 = scalar_lea.vmem %s1, %s245
        %p247 = pneg %p84
        %p248 = pneg %p81
        %p249 = scmp.lt.s32.totalorder %s20, 0
        %s250 = scalar_select %p249, %s20, 0
        %s251 = scalar_lea.vmem %s2, %s250
        %p252 = pneg %p110
        %p253 = pneg %p107
        %p254 = pneg %p138
        %p255 = pneg %p135
        %s256 = smul.u32 4, %s19
        %p257 = scmp.lt.s32.totalorder %s256, 3
        %s258 = scalar_select %p257, %s256, 3
        %p259 = scmp.lt.s32.totalorder %s20, 0
        %s260 = scalar_select %p259, %s20, 0
        %s261 = sadd.s32 %s260, %s258
        %s262 = smul.addr %s261, 8
        %s263 = scalar_lea.vmem %s3, %s262
        %s264 = smul.u32 4, %s19
        %s265 = smul.u32 4, %s21
        %s266 = smul.u32 64, %s21
        %p267 = scmp.lt.s32.totalorder %s266, 127
        %s268 = scalar_select %p267, %s266, 127
        %p269 = scmp.lt.s32.totalorder %s20, 0
        %s270 = scalar_select %p269, %s20, 0
        %s271 = sadd.s32 %s270, %s268
        %s272 = smul.addr %s271, 4
        %s273 = scalar_lea.vmem %s1, %s272
        %s274 = smul.u32 64, %s21
        %p275 = scmp.lt.s32.totalorder %s20, 0
        %s276 = scalar_select %p275, %s20, 0
        %s277 = scalar_lea.vmem %s2, %s276
        %s278 = smul.u32 4, %s19
        %p279 = scmp.lt.s32.totalorder %s278, 3
        %s280 = scalar_select %p279, %s278, 3
        %p281 = scmp.lt.s32.totalorder %s20, 0
        %s282 = scalar_select %p281, %s20, 0
        %s283 = sadd.s32 %s282, %s280
        %s284 = smul.addr %s283, 8
        %s285 = scalar_lea.vmem %s3, %s284
        %s286 = smul.u32 4, %s19
        %p287 = scmp.eq.s32.totalorder %s21, 0
        // Predicated region
        $region56: #{generator_forward.90} parent=50 // pred_check
          %p288 = pneg %p287
        $region57: #{generator_forward.90} parent=50 // pred_check_branch
          %290 = sbr.rel (%p288) target = $region59
        $region58: #{generator_forward.90} parent=50 // pred_region
          %291 = vst [vmem:[#allocation2] sm:$0xff] 0.0
          %292 = vst [vmem:[#allocation2 + $0x8] sm:$0xff] 0.0
          %293 = vst [vmem:[#allocation2 + $0x10] sm:$0xff] 0.0
          %294 = vst [vmem:[#allocation2 + $0x18] sm:$0xff] 0.0
        $region59: #{generator_forward.90} parent=50 // pred_fallthru
          _
        %v295 = vld [vmem:[#allocation2] sm:$0xff]
        %v296 = vld [vmem:[#allocation2 + $0x8] sm:$0xff]
        %v297 = vld [vmem:[#allocation2 + $0x10] sm:$0xff]
        %v298 = vld [vmem:[#allocation2 + $0x18] sm:$0xff]
        %v299 = vld [vmem:[%s229] sm:$0xff]
        %v300 = vld [vmem:[%s229 + $0x8] sm:$0xff]
        %v301 = vld [vmem:[%s229 + $0x10] sm:$0xff]
        %v302 = vld [vmem:[%s229 + $0x18] sm:$0xff]
        %v303 = vld [vmem:[%s229 + $0x20] sm:$0xff]
        %v304 = vld [vmem:[%s229 + $0x28] sm:$0xff]
        %v305 = vld [vmem:[%s229 + $0x30] sm:$0xff]
        %v306 = vld [vmem:[%s229 + $0x38] sm:$0xff]
        %v307 = vld [vmem:[%s273] sm:$0xf]
        %v308 = vld [vmem:[%s273 + $0x4] sm:$0xf]
        %v309 = vld [vmem:[%s273 + $0x8] sm:$0xf]
        %v310 = vld [vmem:[%s273 + $0xc] sm:$0xf]
        %v311 = vld [vmem:[%s273 + $0x10] sm:$0xf]
        %v312 = vld [vmem:[%s273 + $0x14] sm:$0xf]
        %v313 = vld [vmem:[%s273 + $0x18] sm:$0xf]
        %v314 = vld [vmem:[%s273 + $0x1c] sm:$0xf]
        %v315 = vld [vmem:[%s273 + $0x20] sm:$0xf]
        %v316 = vld [vmem:[%s273 + $0x24] sm:$0xf]
        %v317 = vld [vmem:[%s273 + $0x28] sm:$0xf]
        %v318 = vld [vmem:[%s273 + $0x2c] sm:$0xf]
        %v319 = vld [vmem:[%s273 + $0x30] sm:$0xf]
        %v320 = vld [vmem:[%s273 + $0x34] sm:$0xf]
        %v321 = vld [vmem:[%s273 + $0x38] sm:$0xf]
        %v322 = vld [vmem:[%s273 + $0x3c] sm:$0xf]
        %v323 = vld [vmem:[%s273 + $0x40] sm:$0xf]
        %v324 = vld [vmem:[%s273 + $0x44] sm:$0xf]
        %v325 = vld [vmem:[%s273 + $0x48] sm:$0xf]
        %v326 = vld [vmem:[%s273 + $0x4c] sm:$0xf]
        %v327 = vld [vmem:[%s273 + $0x50] sm:$0xf]
        %v328 = vld [vmem:[%s273 + $0x54] sm:$0xf]
        %v329 = vld [vmem:[%s273 + $0x58] sm:$0xf]
        %v330 = vld [vmem:[%s273 + $0x5c] sm:$0xf]
        %v331 = vld [vmem:[%s273 + $0x60] sm:$0xf]
        %v332 = vld [vmem:[%s273 + $0x64] sm:$0xf]
        %v333 = vld [vmem:[%s273 + $0x68] sm:$0xf]
        %v334 = vld [vmem:[%s273 + $0x6c] sm:$0xf]
        %v335 = vld [vmem:[%s273 + $0x70] sm:$0xf]
        %v336 = vld [vmem:[%s273 + $0x74] sm:$0xf]
        %v337 = vld [vmem:[%s273 + $0x78] sm:$0xf]
        %v338 = vld [vmem:[%s273 + $0x7c] sm:$0xf]
        %v339 = vld [vmem:[%s273 + $0x80] sm:$0xf]
        %v340 = vld [vmem:[%s273 + $0x84] sm:$0xf]
        %v341 = vld [vmem:[%s273 + $0x88] sm:$0xf]
        %v342 = vld [vmem:[%s273 + $0x8c] sm:$0xf]
        %v343 = vld [vmem:[%s273 + $0x90] sm:$0xf]
        %v344 = vld [vmem:[%s273 + $0x94] sm:$0xf]
        %v345 = vld [vmem:[%s273 + $0x98] sm:$0xf]
        %v346 = vld [vmem:[%s273 + $0x9c] sm:$0xf]
        %v347 = vld [vmem:[%s273 + $0xa0] sm:$0xf]
        %v348 = vld [vmem:[%s273 + $0xa4] sm:$0xf]
        %v349 = vld [vmem:[%s273 + $0xa8] sm:$0xf]
        %v350 = vld [vmem:[%s273 + $0xac] sm:$0xf]
        %v351 = vld [vmem:[%s273 + $0xb0] sm:$0xf]
        %v352 = vld [vmem:[%s273 + $0xb4] sm:$0xf]
        %v353 = vld [vmem:[%s273 + $0xb8] sm:$0xf]
        %v354 = vld [vmem:[%s273 + $0xbc] sm:$0xf]
        %v355 = vld [vmem:[%s273 + $0xc0] sm:$0xf]
        %v356 = vld [vmem:[%s273 + $0xc4] sm:$0xf]
        %v357 = vld [vmem:[%s273 + $0xc8] sm:$0xf]
        %v358 = vld [vmem:[%s273 + $0xcc] sm:$0xf]
        %v359 = vld [vmem:[%s273 + $0xd0] sm:$0xf]
        %v360 = vld [vmem:[%s273 + $0xd4] sm:$0xf]
        %v361 = vld [vmem:[%s273 + $0xd8] sm:$0xf]
        %v362 = vld [vmem:[%s273 + $0xdc] sm:$0xf]
        %v363 = vld [vmem:[%s273 + $0xe0] sm:$0xf]
        %v364 = vld [vmem:[%s273 + $0xe4] sm:$0xf]
        %v365 = vld [vmem:[%s273 + $0xe8] sm:$0xf]
        %v366 = vld [vmem:[%s273 + $0xec] sm:$0xf]
        %v367 = vld [vmem:[%s273 + $0xf0] sm:$0xf]
        %v368 = vld [vmem:[%s273 + $0xf4] sm:$0xf]
        %v369 = vld [vmem:[%s273 + $0xf8] sm:$0xf]
        %v370 = vld [vmem:[%s273 + $0xfc] sm:$0xf]
        %v379 = vunpack.c.l.b16 %v299
        %v380 = vunpack.c.h.b16 %v299
        %v381 = vunpack.c.l.b16 %v300
        %v382 = vunpack.c.h.b16 %v300
        %v383 = vunpack.c.l.b16 %v301
        %v384 = vunpack.c.h.b16 %v301
        %v385 = vunpack.c.l.b16 %v302
        %v386 = vunpack.c.h.b16 %v302
        %v387 = vunpack.c.l.b16 %v303
        %v388 = vunpack.c.h.b16 %v303
        %v389 = vunpack.c.l.b16 %v304
        %v390 = vunpack.c.h.b16 %v304
        %v391 = vunpack.c.l.b16 %v305
        %v392 = vunpack.c.h.b16 %v305
        %v393 = vunpack.c.l.b16 %v306
        %v394 = vunpack.c.h.b16 %v306
        %v395 = vpack.c.b16 %v383, %v379
        %v396 = vpack.c.b16 %v384, %v380
        %v397 = vpack.c.b16 %v385, %v381
        %v398 = vpack.c.b16 %v386, %v382
        %v399 = vpack.c.b16 %v391, %v387
        %v400 = vpack.c.b16 %v392, %v388
        %v401 = vpack.c.b16 %v393, %v389
        %v402 = vpack.c.b16 %v394, %v390
        %v475 = vunpack.c.l.b16 %v307
        %v476 = vunpack.c.l.b16 %v308
        %v477 = vunpack.c.l.b16 %v309
        %v478 = vunpack.c.l.b16 %v310
        %v479 = vunpack.c.l.b16 %v311
        %v480 = vunpack.c.l.b16 %v312
        %v481 = vunpack.c.l.b16 %v313
        %v482 = vunpack.c.l.b16 %v314
        %v483 = vunpack.c.l.b16 %v315
        %v484 = vunpack.c.l.b16 %v316
        %v485 = vunpack.c.l.b16 %v317
        %v486 = vunpack.c.l.b16 %v318
        %v487 = vunpack.c.l.b16 %v319
        %v488 = vunpack.c.l.b16 %v320
        %v489 = vunpack.c.l.b16 %v321
        %v490 = vunpack.c.l.b16 %v322
        %v491 = vunpack.c.l.b16 %v323
        %v492 = vunpack.c.l.b16 %v324
        %v493 = vunpack.c.l.b16 %v325
        %v494 = vunpack.c.l.b16 %v326
        %v495 = vunpack.c.l.b16 %v327
        %v496 = vunpack.c.l.b16 %v328
        %v497 = vunpack.c.l.b16 %v329
        %v498 = vunpack.c.l.b16 %v330
        %v499 = vunpack.c.l.b16 %v331
        %v500 = vunpack.c.l.b16 %v332
        %v501 = vunpack.c.l.b16 %v333
        %v502 = vunpack.c.l.b16 %v334
        %v503 = vunpack.c.l.b16 %v335
        %v504 = vunpack.c.l.b16 %v336
        %v505 = vunpack.c.l.b16 %v337
        %v506 = vunpack.c.l.b16 %v338
        %v507 = vunpack.c.l.b16 %v339
        %v508 = vunpack.c.l.b16 %v340
        %v509 = vunpack.c.l.b16 %v341
        %v510 = vunpack.c.l.b16 %v342
        %v511 = vunpack.c.l.b16 %v343
        %v512 = vunpack.c.l.b16 %v344
        %v513 = vunpack.c.l.b16 %v345
        %v514 = vunpack.c.l.b16 %v346
        %v515 = vunpack.c.l.b16 %v347
        %v516 = vunpack.c.l.b16 %v348
        %v517 = vunpack.c.l.b16 %v349
        %v518 = vunpack.c.l.b16 %v350
        %v519 = vunpack.c.l.b16 %v351
        %v520 = vunpack.c.l.b16 %v352
        %v521 = vunpack.c.l.b16 %v353
        %v522 = vunpack.c.l.b16 %v354
        %v523 = vunpack.c.l.b16 %v355
        %v524 = vunpack.c.l.b16 %v356
        %v525 = vunpack.c.l.b16 %v357
        %v526 = vunpack.c.l.b16 %v358
        %v527 = vunpack.c.l.b16 %v359
        %v528 = vunpack.c.l.b16 %v360
        %v529 = vunpack.c.l.b16 %v361
        %v530 = vunpack.c.l.b16 %v362
        %v531 = vunpack.c.l.b16 %v363
        %v532 = vunpack.c.l.b16 %v364
        %v533 = vunpack.c.l.b16 %v365
        %v534 = vunpack.c.l.b16 %v366
        %v535 = vunpack.c.l.b16 %v367
        %v536 = vunpack.c.l.b16 %v368
        %v537 = vunpack.c.l.b16 %v369
        %v538 = vunpack.c.l.b16 %v370
        %v539 = vpack.c.b16 %v476, %v475
        %v540 = vpack.c.b16 %v478, %v477
        %v541 = vpack.c.b16 %v480, %v479
        %v542 = vpack.c.b16 %v482, %v481
        %v543 = vpack.c.b16 %v484, %v483
        %v544 = vpack.c.b16 %v486, %v485
        %v545 = vpack.c.b16 %v488, %v487
        %v546 = vpack.c.b16 %v490, %v489
        %v547 = vpack.c.b16 %v492, %v491
        %v548 = vpack.c.b16 %v494, %v493
        %v549 = vpack.c.b16 %v496, %v495
        %v550 = vpack.c.b16 %v498, %v497
        %v551 = vpack.c.b16 %v500, %v499
        %v552 = vpack.c.b16 %v502, %v501
        %v553 = vpack.c.b16 %v504, %v503
        %v554 = vpack.c.b16 %v506, %v505
        %v555 = vpack.c.b16 %v508, %v507
        %v556 = vpack.c.b16 %v510, %v509
        %v557 = vpack.c.b16 %v512, %v511
        %v558 = vpack.c.b16 %v514, %v513
        %v559 = vpack.c.b16 %v516, %v515
        %v560 = vpack.c.b16 %v518, %v517
        %v561 = vpack.c.b16 %v520, %v519
        %v562 = vpack.c.b16 %v522, %v521
        %v563 = vpack.c.b16 %v524, %v523
        %v564 = vpack.c.b16 %v526, %v525
        %v565 = vpack.c.b16 %v528, %v527
        %v566 = vpack.c.b16 %v530, %v529
        %v567 = vpack.c.b16 %v532, %v531
        %v568 = vpack.c.b16 %v534, %v533
        %v569 = vpack.c.b16 %v536, %v535
        %v570 = vpack.c.b16 %v538, %v537
        %603 = vmatpush.bf16.msra.mxu0 %v546
        %604 = vmatpush.bf16.msra.mxu0 %v545
        %605 = vmatpush.bf16.msra.mxu0 %v544
        %606 = vmatpush.bf16.msra.mxu0 %v543
        %607 = vmatpush.bf16.msra.mxu0 %v542
        %608 = vmatpush.bf16.msra.mxu0 %v541
        %609 = vmatpush.bf16.msra.mxu0 %v540
        %610 = vmatpush.bf16.msra.mxu0 %v539
        %611 = vmatmul.bf16.gmra.mxu0 %v395
        %v612 = vpop.f32.mrf.mxu0
        %v613 = vadd.f32 0.0, %v612
        %v614 = vpop.f32.mrf.mxu0
        %v615 = vadd.f32 0.0, %v614
        %616 = vmatmul.bf16.gmra.mxu0 %v399
        %v617 = vpop.f32.mrf.mxu0
        %v618 = vadd.f32 0.0, %v617
        %v619 = vpop.f32.mrf.mxu0
        %v620 = vadd.f32 0.0, %v619
        %621 = vdwg.mxu0
        %622 = vmatpush.bf16.msra.mxu0 %v554
        %623 = vmatpush.bf16.msra.mxu0 %v553
        %624 = vmatpush.bf16.msra.mxu0 %v552
        %625 = vmatpush.bf16.msra.mxu0 %v551
        %626 = vmatpush.bf16.msra.mxu0 %v550
        %627 = vmatpush.bf16.msra.mxu0 %v549
        %628 = vmatpush.bf16.msra.mxu0 %v548
        %629 = vmatpush.bf16.msra.mxu0 %v547
        %630 = vmatmul.bf16.gmra.mxu0 %v396
        %v631 = vpop.f32.mrf.mxu0
        %v632 = vadd.f32 %v613, %v631
        %v633 = vpop.f32.mrf.mxu0
        %v634 = vadd.f32 %v615, %v633
        %635 = vmatmul.bf16.gmra.mxu0 %v400
        %v636 = vpop.f32.mrf.mxu0
        %v637 = vadd.f32 %v618, %v636
        %v638 = vpop.f32.mrf.mxu0
        %v639 = vadd.f32 %v620, %v638
        %640 = vdwg.mxu0
        %641 = vmatpush.bf16.msra.mxu0 %v562
        %642 = vmatpush.bf16.msra.mxu0 %v561
        %643 = vmatpush.bf16.msra.mxu0 %v560
        %644 = vmatpush.bf16.msra.mxu0 %v559
        %645 = vmatpush.bf16.msra.mxu0 %v558
        %646 = vmatpush.bf16.msra.mxu0 %v557
        %647 = vmatpush.bf16.msra.mxu0 %v556
        %648 = vmatpush.bf16.msra.mxu0 %v555
        %649 = vmatmul.bf16.gmra.mxu0 %v397
        %v650 = vpop.f32.mrf.mxu0
        %v651 = vadd.f32 %v632, %v650
        %v652 = vpop.f32.mrf.mxu0
        %v653 = vadd.f32 %v634, %v652
        %654 = vmatmul.bf16.gmra.mxu0 %v401
        %v655 = vpop.f32.mrf.mxu0
        %v656 = vadd.f32 %v637, %v655
        %v657 = vpop.f32.mrf.mxu0
        %v658 = vadd.f32 %v639, %v657
        %659 = vdwg.mxu0
        %660 = vmatpush.bf16.msra.mxu0 %v570
        %661 = vmatpush.bf16.msra.mxu0 %v569
        %662 = vmatpush.bf16.msra.mxu0 %v568
        %663 = vmatpush.bf16.msra.mxu0 %v567
        %664 = vmatpush.bf16.msra.mxu0 %v566
        %665 = vmatpush.bf16.msra.mxu0 %v565
        %666 = vmatpush.bf16.msra.mxu0 %v564
        %667 = vmatpush.bf16.msra.mxu0 %v563
        %668 = vmatmul.bf16.gmra.mxu0 %v398
        %v669 = vpop.f32.mrf.mxu0
        %v670 = vadd.f32 %v651, %v669
        %v671 = vpop.f32.mrf.mxu0
        %v672 = vadd.f32 %v653, %v671
        %673 = vmatmul.bf16.gmra.mxu0 %v402
        %v674 = vpop.f32.mrf.mxu0
        %v675 = vadd.f32 %v656, %v674
        %v676 = vpop.f32.mrf.mxu0
        %v677 = vadd.f32 %v658, %v676
        %678 = vdwg.mxu0
        %v679 = vadd.f32 %v295, %v670
        %v680 = vadd.f32 %v296, %v672
        %v681 = vadd.f32 %v297, %v675
        %v682 = vadd.f32 %v298, %v677
        %683 = vst [vmem:[#allocation2] sm:$0xff] %v679
        %684 = vst [vmem:[#allocation2 + $0x8] sm:$0xff] %v680
        %685 = vst [vmem:[#allocation2 + $0x10] sm:$0xff] %v681
        %686 = vst [vmem:[#allocation2 + $0x18] sm:$0xff] %v682
        %p687 = scmp.eq.s32.totalorder %s21, 1
        // Predicated region
        $region60: #{generator_forward.90} parent=50 // pred_check
          %p688 = pneg %p687
        $region61: #{generator_forward.90} parent=50 // pred_check_branch
          %690 = sbr.rel (%p688) target = $region63
        $region62: #{generator_forward.90} parent=50 // pred_region
          %v691 = vld [vmem:[#allocation2] sm:$0xff]
          %v692 = vld [vmem:[#allocation2 + $0x8] sm:$0xff]
          %v693 = vld [vmem:[#allocation2 + $0x10] sm:$0xff]
          %v694 = vld [vmem:[#allocation2 + $0x18] sm:$0xff]
          %v695 = vld [vmem:[%s277] sm:$0x1]
          %v697 = vperm.slane %v695, 0
          %v699 = vadd.f32 %v691, %v697
          %v700 = vadd.f32 %v692, %v697
          %v701 = vadd.f32 %v693, %v697
          %v702 = vadd.f32 %v694, %v697
          %703 = vst [vmem:[%s285] sm:$0xff] %v699
          %704 = vst [vmem:[%s285 + $0x8] sm:$0xff] %v700
          %705 = vst [vmem:[%s285 + $0x10] sm:$0xff] %v701
          %706 = vst [vmem:[%s285 + $0x18] sm:$0xff] %v702
        $region63: #{generator_forward.90} parent=50 // pred_fallthru
          _
        %s707 = smul.u32 4, %s19
        %p708 = scmp.lt.s32.totalorder %s707, 3
        %s709 = scalar_select %p708, %s707, 3
        %p710 = scmp.lt.s32.totalorder %s20, 0
        %s711 = scalar_select %p710, %s20, 0
        %s712 = sadd.s32 %s711, %s709
        %s713 = smul.addr %s712, 8
        %s714 = scalar_lea.vmem %s3, %s713
        // Predicated region
        $region64: #{generator_forward.90} parent=50 // pred_check
          %p715 = pneg %p135
        $region65: #{generator_forward.90} parent=50 // pred_check_branch
          %717 = sbr.rel (%p715) target = $region67
        $region66: #{generator_forward.90} parent=50 // pred_region
          %s718 = smul.u32 4, %s19
        $region67: #{generator_forward.90} parent=50 // pred_fallthru
          _
        // Predicated region
        $region68: #{generator_forward.90} parent=50 // pred_check
          %p719 = pneg %p135
        $region69: #{generator_forward.90} parent=50 // pred_check_branch
          %721 = sbr.rel (%p719) target = $region71
        $region70: #{generator_forward.90} parent=50 // pred_region
          %s722 = smul.u32 4, %s19
          %p723 = scmp.lt.s32.totalorder %s722, 3
          %s724 = scalar_select %p723, %s722, 3
          %p725 = scmp.lt.s32.totalorder %s20, 0
          %s726 = scalar_select %p725, %s20, 0
          %s727 = sadd.s32 %s726, %s724
          %s728 = smul.addr %s727, 8
          %s729 = scalar_lea.vmem %s3, %s728
        $region71: #{generator_forward.90} parent=50 // pred_fallthru
          _
      $region51: #{generator_forward.90} parent=5 // pred_fallthru
        _
      %p730 = scmp.le.s32.totalorder 2, %s9
      // Predicated region
      $region72: #{generator_forward.90} parent=5 // pred_check
        %p731 = pneg %p730
      $region73: #{generator_forward.90} parent=5 // pred_check_branch
        %733 = sbr.rel (%p731) target = $region75
      $region74: #{generator_forward.90} parent=5 // pred_region
        %s734 = ssub.s32 %s9, 2
      $region75: #{generator_forward.90} parent=5 // pred_fallthru
        _
    $region6: #{generator_forward.90} parent=1 // loop_footer
      %s13 = sadd.s32 1, %s9
    $region7: #{generator_forward.90} parent=1 // loop_footer_branch
      %8 = sbr.rel target = $region3
    $region8: #{generator_forward.90} parent=1 // loop_exit
      _

// kernel: generator_forward.92
$region0: #{generator_forward.92}
  #allocation0 [shape = 'u32[]', space=smem, size = 0x4, offset = 0x4, fixed_abs, tag = 'smem constant byte address 0x4 - core index']
  #allocation1 [shape = 'u32[72,128]{1,0:T(1,128)}', space=vmem, size = 0x9000, scoped, tag = 'internal scratch']
  #allocation2 [shape = 'f32[128,128]{1,0:T(8,128)}', space=vmem, size = 0x10000, scoped, tag = 'scratch operand']
  %s0 = inlined_call_operand.vmem [shape: bf16[128,256], index: 0, kind: input, shape index: {}]
  %s1 = inlined_call_operand.vmem [shape: bf16[256,128], index: 1, kind: input, shape index: {}]
  %s2 = inlined_call_operand.vmem [shape: f32[1,128], index: 2, kind: input, shape index: {}]
  %s3 = inlined_call_operand.vmem [shape: f32[128,128], index: 3, kind: output, shape index: {}]
  %s4 = sld [smem:[#allocation0]]
  $region30: #{generator_forward.92} parent=0
    _
  %s6 = ssub.s32 1, %s4
  %s7 = scalar_select 0, %s6, %s4
  // Predicated region
  $region2: #{generator_forward.92} parent=0 // pred_check
    _
  $region3: #{generator_forward.92} parent=0 // pred_check_branch
    %9 = sbr.rel (0) target = $region5
  $region4: #{generator_forward.92} parent=0 // pred_region
    _
  $region5: #{generator_forward.92} parent=0 // pred_fallthru
    _
  // Predicated region
  $region6: #{generator_forward.92} parent=0 // pred_check
    _
  $region7: #{generator_forward.92} parent=0 // pred_check_branch
    %11 = sbr.rel (0) target = $region9
  $region8: #{generator_forward.92} parent=0 // pred_region
    _
  $region9: #{generator_forward.92} parent=0 // pred_fallthru
    _
  // Predicated region
  $region10: #{generator_forward.92} parent=0 // pred_check
    _
  $region11: #{generator_forward.92} parent=0 // pred_check_branch
    %13 = sbr.rel (0) target = $region13
  $region12: #{generator_forward.92} parent=0 // pred_region
    _
  $region13: #{generator_forward.92} parent=0 // pred_fallthru
    _
  %p14 = scmp.eq.s32.totalorder 0, 0
  // Predicated region
  $region14: #{generator_forward.92} parent=0 // pred_check
    %p15 = pneg %p14
  $region15: #{generator_forward.92} parent=0 // pred_check_branch
    %17 = sbr.rel (%p15) target = $region17
  $region16: #{generator_forward.92} parent=0 // pred_region
    %18 = vst [vmem:[#allocation2] sm:$0xff] 0.0
    %19 = vst [vmem:[#allocation2 + $0x8] sm:$0xff] 0.0
    %20 = vst [vmem:[#allocation2 + $0x10] sm:$0xff] 0.0
    %21 = vst [vmem:[#allocation2 + $0x18] sm:$0xff] 0.0
    %22 = vst [vmem:[#allocation2 + $0x20] sm:$0xff] 0.0
    %23 = vst [vmem:[#allocation2 + $0x28] sm:$0xff] 0.0
    %24 = vst [vmem:[#allocation2 + $0x30] sm:$0xff] 0.0
    %25 = vst [vmem:[#allocation2 + $0x38] sm:$0xff] 0.0
    %26 = vst [vmem:[#allocation2 + $0x40] sm:$0xff] 0.0
    %27 = vst [vmem:[#allocation2 + $0x48] sm:$0xff] 0.0
    %28 = vst [vmem:[#allocation2 + $0x50] sm:$0xff] 0.0
    %29 = vst [vmem:[#allocation2 + $0x58] sm:$0xff] 0.0
    %30 = vst [vmem:[#allocation2 + $0x60] sm:$0xff] 0.0
    %31 = vst [vmem:[#allocation2 + $0x68] sm:$0xff] 0.0
    %32 = vst [vmem:[#allocation2 + $0x70] sm:$0xff] 0.0
    %33 = vst [vmem:[#allocation2 + $0x78] sm:$0xff] 0.0
  $region17: #{generator_forward.92} parent=0 // pred_fallthru
    _
  %v34 = vld [vmem:[#allocation2] sm:$0xff]
  %v35 = vld [vmem:[#allocation2 + $0x8] sm:$0xff]
  %v36 = vld [vmem:[#allocation2 + $0x10] sm:$0xff]
  %v37 = vld [vmem:[#allocation2 + $0x18] sm:$0xff]
  %v38 = vld [vmem:[#allocation2 + $0x20] sm:$0xff]
  %v39 = vld [vmem:[#allocation2 + $0x28] sm:$0xff]
  %v40 = vld [vmem:[#allocation2 + $0x30] sm:$0xff]
  %v41 = vld [vmem:[#allocation2 + $0x38] sm:$0xff]
  %v42 = vld [vmem:[#allocation2 + $0x40] sm:$0xff]
  %v43 = vld [vmem:[#allocation2 + $0x48] sm:$0xff]
  %v44 = vld [vmem:[#allocation2 + $0x50] sm:$0xff]
  %v45 = vld [vmem:[#allocation2 + $0x58] sm:$0xff]
  %v46 = vld [vmem:[#allocation2 + $0x60] sm:$0xff]
  %v47 = vld [vmem:[#allocation2 + $0x68] sm:$0xff]
  %v48 = vld [vmem:[#allocation2 + $0x70] sm:$0xff]
  %v49 = vld [vmem:[#allocation2 + $0x78] sm:$0xff]
  %v50 = vld [vmem:[%s0] sm:$0xff]
  %v51 = vld [vmem:[%s0 + $0x8] sm:$0xff]
  %v52 = vld [vmem:[%s0 + $0x10] sm:$0xff]
  %v53 = vld [vmem:[%s0 + $0x18] sm:$0xff]
  %v54 = vld [vmem:[%s0 + $0x20] sm:$0xff]
  %v55 = vld [vmem:[%s0 + $0x28] sm:$0xff]
  %v56 = vld [vmem:[%s0 + $0x30] sm:$0xff]
  %v57 = vld [vmem:[%s0 + $0x38] sm:$0xff]
  %v58 = vld [vmem:[%s0 + $0x40] sm:$0xff]
  %v59 = vld [vmem:[%s0 + $0x48] sm:$0xff]
  %v60 = vld [vmem:[%s0 + $0x50] sm:$0xff]
  %v61 = vld [vmem:[%s0 + $0x58] sm:$0xff]
  %v62 = vld [vmem:[%s0 + $0x60] sm:$0xff]
  %v63 = vld [vmem:[%s0 + $0x68] sm:$0xff]
  %v64 = vld [vmem:[%s0 + $0x70] sm:$0xff]
  %v65 = vld [vmem:[%s0 + $0x78] sm:$0xff]
  %v66 = vld [vmem:[%s1] sm:$0xf]
  %v67 = vld [vmem:[%s1 + $0x4] sm:$0xf]
  %v68 = vld [vmem:[%s1 + $0x8] sm:$0xf]
  %v69 = vld [vmem:[%s1 + $0xc] sm:$0xf]
  %v70 = vld [vmem:[%s1 + $0x10] sm:$0xf]
  %v71 = vld [vmem:[%s1 + $0x14] sm:$0xf]
  %v72 = vld [vmem:[%s1 + $0x18] sm:$0xf]
  %v73 = vld [vmem:[%s1 + $0x1c] sm:$0xf]
  %v74 = vld [vmem:[%s1 + $0x20] sm:$0xf]
  %v75 = vld [vmem:[%s1 + $0x24] sm:$0xf]
  %v76 = vld [vmem:[%s1 + $0x28] sm:$0xf]
  %v77 = vld [vmem:[%s1 + $0x2c] sm:$0xf]
  %v78 = vld [vmem:[%s1 + $0x30] sm:$0xf]
  %v79 = vld [vmem:[%s1 + $0x34] sm:$0xf]
  %v80 = vld [vmem:[%s1 + $0x38] sm:$0xf]
  %v81 = vld [vmem:[%s1 + $0x3c] sm:$0xf]
  %v82 = vld [vmem:[%s1 + $0x40] sm:$0xf]
  %v83 = vld [vmem:[%s1 + $0x44] sm:$0xf]
  %v84 = vld [vmem:[%s1 + $0x48] sm:$0xf]
  %v85 = vld [vmem:[%s1 + $0x4c] sm:$0xf]
  %v86 = vld [vmem:[%s1 + $0x50] sm:$0xf]
  %v87 = vld [vmem:[%s1 + $0x54] sm:$0xf]
  %v88 = vld [vmem:[%s1 + $0x58] sm:$0xf]
  %v89 = vld [vmem:[%s1 + $0x5c] sm:$0xf]
  %v90 = vld [vmem:[%s1 + $0x60] sm:$0xf]
  %v91 = vld [vmem:[%s1 + $0x64] sm:$0xf]
  %v92 = vld [vmem:[%s1 + $0x68] sm:$0xf]
  %v93 = vld [vmem:[%s1 + $0x6c] sm:$0xf]
  %v94 = vld [vmem:[%s1 + $0x70] sm:$0xf]
  %v95 = vld [vmem:[%s1 + $0x74] sm:$0xf]
  %v96 = vld [vmem:[%s1 + $0x78] sm:$0xf]
  %v97 = vld [vmem:[%s1 + $0x7c] sm:$0xf]
  %v114 = vunpack.c.l.b16 %v50
  %v115 = vunpack.c.h.b16 %v50
  %v116 = vunpack.c.l.b16 %v51
  %v117 = vunpack.c.h.b16 %v51
  %v118 = vunpack.c.l.b16 %v52
  %v119 = vunpack.c.h.b16 %v52
  %v120 = vunpack.c.l.b16 %v53
  %v121 = vunpack.c.h.b16 %v53
  %v122 = vunpack.c.l.b16 %v54
  %v123 = vunpack.c.h.b16 %v54
  %v124 = vunpack.c.l.b16 %v55
  %v125 = vunpack.c.h.b16 %v55
  %v126 = vunpack.c.l.b16 %v56
  %v127 = vunpack.c.h.b16 %v56
  %v128 = vunpack.c.l.b16 %v57
  %v129 = vunpack.c.h.b16 %v57
  %v130 = vunpack.c.l.b16 %v58
  %v131 = vunpack.c.h.b16 %v58
  %v132 = vunpack.c.l.b16 %v59
  %v133 = vunpack.c.h.b16 %v59
  %v134 = vunpack.c.l.b16 %v60
  %v135 = vunpack.c.h.b16 %v60
  %v136 = vunpack.c.l.b16 %v61
  %v137 = vunpack.c.h.b16 %v61
  %v138 = vunpack.c.l.b16 %v62
  %v139 = vunpack.c.h.b16 %v62
  %v140 = vunpack.c.l.b16 %v63
  %v141 = vunpack.c.h.b16 %v63
  %v142 = vunpack.c.l.b16 %v64
  %v143 = vunpack.c.h.b16 %v64
  %v144 = vunpack.c.l.b16 %v65
  %v145 = vunpack.c.h.b16 %v65
  %v146 = vpack.c.b16 %v116, %v114
  %v147 = vpack.c.b16 %v117, %v115
  %v148 = vpack.c.b16 %v120, %v118
  %v149 = vpack.c.b16 %v121, %v119
  %v150 = vpack.c.b16 %v124, %v122
  %v151 = vpack.c.b16 %v125, %v123
  %v152 = vpack.c.b16 %v128, %v126
  %v153 = vpack.c.b16 %v129, %v127
  %v154 = vpack.c.b16 %v132, %v130
  %v155 = vpack.c.b16 %v133, %v131
  %v156 = vpack.c.b16 %v136, %v134
  %v157 = vpack.c.b16 %v137, %v135
  %v158 = vpack.c.b16 %v140, %v138
  %v159 = vpack.c.b16 %v141, %v139
  %v160 = vpack.c.b16 %v144, %v142
  %v161 = vpack.c.b16 %v145, %v143
  %v210 = vunpack.c.l.b16 %v66
  %v211 = vunpack.c.l.b16 %v67
  %v212 = vunpack.c.l.b16 %v68
  %v213 = vunpack.c.l.b16 %v69
  %v214 = vunpack.c.l.b16 %v70
  %v215 = vunpack.c.l.b16 %v71
  %v216 = vunpack.c.l.b16 %v72
  %v217 = vunpack.c.l.b16 %v73
  %v218 = vunpack.c.l.b16 %v74
  %v219 = vunpack.c.l.b16 %v75
  %v220 = vunpack.c.l.b16 %v76
  %v221 = vunpack.c.l.b16 %v77
  %v222 = vunpack.c.l.b16 %v78
  %v223 = vunpack.c.l.b16 %v79
  %v224 = vunpack.c.l.b16 %v80
  %v225 = vunpack.c.l.b16 %v81
  %v226 = vunpack.c.l.b16 %v82
  %v227 = vunpack.c.l.b16 %v83
  %v228 = vunpack.c.l.b16 %v84
  %v229 = vunpack.c.l.b16 %v85
  %v230 = vunpack.c.l.b16 %v86
  %v231 = vunpack.c.l.b16 %v87
  %v232 = vunpack.c.l.b16 %v88
  %v233 = vunpack.c.l.b16 %v89
  %v234 = vunpack.c.l.b16 %v90
  %v235 = vunpack.c.l.b16 %v91
  %v236 = vunpack.c.l.b16 %v92
  %v237 = vunpack.c.l.b16 %v93
  %v238 = vunpack.c.l.b16 %v94
  %v239 = vunpack.c.l.b16 %v95
  %v240 = vunpack.c.l.b16 %v96
  %v241 = vunpack.c.l.b16 %v97
  %v242 = vpack.c.b16 %v211, %v210
  %v243 = vpack.c.b16 %v213, %v212
  %v244 = vpack.c.b16 %v215, %v214
  %v245 = vpack.c.b16 %v217, %v216
  %v246 = vpack.c.b16 %v219, %v218
  %v247 = vpack.c.b16 %v221, %v220
  %v248 = vpack.c.b16 %v223, %v222
  %v249 = vpack.c.b16 %v225, %v224
  %v250 = vpack.c.b16 %v227, %v226
  %v251 = vpack.c.b16 %v229, %v228
  %v252 = vpack.c.b16 %v231, %v230
  %v253 = vpack.c.b16 %v233, %v232
  %v254 = vpack.c.b16 %v235, %v234
  %v255 = vpack.c.b16 %v237, %v236
  %v256 = vpack.c.b16 %v239, %v238
  %v257 = vpack.c.b16 %v241, %v240
  %274 = vmatpush.bf16.msra.mxu0 %v249
  %275 = vmatpush.bf16.msra.mxu0 %v248
  %276 = vmatpush.bf16.msra.mxu0 %v247
  %277 = vmatpush.bf16.msra.mxu0 %v246
  %278 = vmatpush.bf16.msra.mxu0 %v245
  %279 = vmatpush.bf16.msra.mxu0 %v244
  %280 = vmatpush.bf16.msra.mxu0 %v243
  %281 = vmatpush.bf16.msra.mxu0 %v242
  %282 = vmatmul.bf16.gmra.mxu0 %v146
  %v283 = vpop.f32.mrf.mxu0
  %v284 = vadd.f32 0.0, %v283
  %v285 = vpop.f32.mrf.mxu0
  %v286 = vadd.f32 0.0, %v285
  %287 = vmatmul.bf16.gmra.mxu0 %v148
  %v288 = vpop.f32.mrf.mxu0
  %v289 = vadd.f32 0.0, %v288
  %v290 = vpop.f32.mrf.mxu0
  %v291 = vadd.f32 0.0, %v290
  %292 = vmatmul.bf16.gmra.mxu0 %v150
  %v293 = vpop.f32.mrf.mxu0
  %v294 = vadd.f32 0.0, %v293
  %v295 = vpop.f32.mrf.mxu0
  %v296 = vadd.f32 0.0, %v295
  %297 = vmatmul.bf16.gmra.mxu0 %v152
  %v298 = vpop.f32.mrf.mxu0
  %v299 = vadd.f32 0.0, %v298
  %v300 = vpop.f32.mrf.mxu0
  %v301 = vadd.f32 0.0, %v300
  %302 = vmatmul.bf16.gmra.mxu0 %v154
  %v303 = vpop.f32.mrf.mxu0
  %v304 = vadd.f32 0.0, %v303
  %v305 = vpop.f32.mrf.mxu0
  %v306 = vadd.f32 0.0, %v305
  %307 = vmatmul.bf16.gmra.mxu0 %v156
  %v308 = vpop.f32.mrf.mxu0
  %v309 = vadd.f32 0.0, %v308
  %v310 = vpop.f32.mrf.mxu0
  %v311 = vadd.f32 0.0, %v310
  %312 = vmatmul.bf16.gmra.mxu0 %v158
  %v313 = vpop.f32.mrf.mxu0
  %v314 = vadd.f32 0.0, %v313
  %v315 = vpop.f32.mrf.mxu0
  %v316 = vadd.f32 0.0, %v315
  %317 = vmatmul.bf16.gmra.mxu0 %v160
  %v318 = vpop.f32.mrf.mxu0
  %v319 = vadd.f32 0.0, %v318
  %v320 = vpop.f32.mrf.mxu0
  %v321 = vadd.f32 0.0, %v320
  %322 = vdwg.mxu0
  %323 = vmatpush.bf16.msra.mxu0 %v257
  %324 = vmatpush.bf16.msra.mxu0 %v256
  %325 = vmatpush.bf16.msra.mxu0 %v255
  %326 = vmatpush.bf16.msra.mxu0 %v254
  %327 = vmatpush.bf16.msra.mxu0 %v253
  %328 = vmatpush.bf16.msra.mxu0 %v252
  %329 = vmatpush.bf16.msra.mxu0 %v251
  %330 = vmatpush.bf16.msra.mxu0 %v250
  %331 = vmatmul.bf16.gmra.mxu0 %v147
  %v332 = vpop.f32.mrf.mxu0
  %v333 = vadd.f32 %v284, %v332
  %v334 = vpop.f32.mrf.mxu0
  %v335 = vadd.f32 %v286, %v334
  %336 = vmatmul.bf16.gmra.mxu0 %v149
  %v337 = vpop.f32.mrf.mxu0
  %v338 = vadd.f32 %v289, %v337
  %v339 = vpop.f32.mrf.mxu0
  %v340 = vadd.f32 %v291, %v339
  %341 = vmatmul.bf16.gmra.mxu0 %v151
  %v342 = vpop.f32.mrf.mxu0
  %v343 = vadd.f32 %v294, %v342
  %v344 = vpop.f32.mrf.mxu0
  %v345 = vadd.f32 %v296, %v344
  %346 = vmatmul.bf16.gmra.mxu0 %v153
  %v347 = vpop.f32.mrf.mxu0
  %v348 = vadd.f32 %v299, %v347
  %v349 = vpop.f32.mrf.mxu0
  %v350 = vadd.f32 %v301, %v349
  %351 = vmatmul.bf16.gmra.mxu0 %v155
  %v352 = vpop.f32.mrf.mxu0
  %v353 = vadd.f32 %v304, %v352
  %v354 = vpop.f32.mrf.mxu0
  %v355 = vadd.f32 %v306, %v354
  %356 = vmatmul.bf16.gmra.mxu0 %v157
  %v357 = vpop.f32.mrf.mxu0
  %v358 = vadd.f32 %v309, %v357
  %v359 = vpop.f32.mrf.mxu0
  %v360 = vadd.f32 %v311, %v359
  %361 = vmatmul.bf16.gmra.mxu0 %v159
  %v362 = vpop.f32.mrf.mxu0
  %v363 = vadd.f32 %v314, %v362
  %v364 = vpop.f32.mrf.mxu0
  %v365 = vadd.f32 %v316, %v364
  %366 = vmatmul.bf16.gmra.mxu0 %v161
  %v367 = vpop.f32.mrf.mxu0
  %v368 = vadd.f32 %v319, %v367
  %v369 = vpop.f32.mrf.mxu0
  %v370 = vadd.f32 %v321, %v369
  %371 = vdwg.mxu0
  %v372 = vadd.f32 %v34, %v333
  %v373 = vadd.f32 %v35, %v335
  %v374 = vadd.f32 %v36, %v338
  %v375 = vadd.f32 %v37, %v340
  %v376 = vadd.f32 %v38, %v343
  %v377 = vadd.f32 %v39, %v345
  %v378 = vadd.f32 %v40, %v348
  %v379 = vadd.f32 %v41, %v350
  %v380 = vadd.f32 %v42, %v353
  %v381 = vadd.f32 %v43, %v355
  %v382 = vadd.f32 %v44, %v358
  %v383 = vadd.f32 %v45, %v360
  %v384 = vadd.f32 %v46, %v363
  %v385 = vadd.f32 %v47, %v365
  %v386 = vadd.f32 %v48, %v368
  %v387 = vadd.f32 %v49, %v370
  %388 = vst [vmem:[#allocation2] sm:$0xff] %v372
  %389 = vst [vmem:[#allocation2 + $0x8] sm:$0xff] %v373
  %390 = vst [vmem:[#allocation2 + $0x10] sm:$0xff] %v374
  %391 = vst [vmem:[#allocation2 + $0x18] sm:$0xff] %v375
  %392 = vst [vmem:[#allocation2 + $0x20] sm:$0xff] %v376
  %393 = vst [vmem:[#allocation2 + $0x28] sm:$0xff] %v377
  %394 = vst [vmem:[#allocation2 + $0x30] sm:$0xff] %v378
  %395 = vst [vmem:[#allocation2 + $0x38] sm:$0xff] %v379
  %396 = vst [vmem:[#allocation2 + $0x40] sm:$0xff] %v380
  %397 = vst [vmem:[#allocation2 + $0x48] sm:$0xff] %v381
  %398 = vst [vmem:[#allocation2 + $0x50] sm:$0xff] %v382
  %399 = vst [vmem:[#allocation2 + $0x58] sm:$0xff] %v383
  %400 = vst [vmem:[#allocation2 + $0x60] sm:$0xff] %v384
  %401 = vst [vmem:[#allocation2 + $0x68] sm:$0xff] %v385
  %402 = vst [vmem:[#allocation2 + $0x70] sm:$0xff] %v386
  %403 = vst [vmem:[#allocation2 + $0x78] sm:$0xff] %v387
  // Predicated region
  $region18: #{generator_forward.92} parent=0 // pred_check
    %p404 = pneg %p14
  $region19: #{generator_forward.92} parent=0 // pred_check_branch
    %406 = sbr.rel (%p404) target = $region21
  $region20: #{generator_forward.92} parent=0 // pred_region
    %v407 = vld [vmem:[#allocation2] sm:$0xff]
    %v408 = vld [vmem:[#allocation2 + $0x8] sm:$0xff]
    %v409 = vld [vmem:[#allocation2 + $0x10] sm:$0xff]
    %v410 = vld [vmem:[#allocation2 + $0x18] sm:$0xff]
    %v411 = vld [vmem:[#allocation2 + $0x20] sm:$0xff]
    %v412 = vld [vmem:[#allocation2 + $0x28] sm:$0xff]
    %v413 = vld [vmem:[#allocation2 + $0x30] sm:$0xff]
    %v414 = vld [vmem:[#allocation2 + $0x38] sm:$0xff]
    %v415 = vld [vmem:[#allocation2 + $0x40] sm:$0xff]
    %v416 = vld [vmem:[#allocation2 + $0x48] sm:$0xff]
    %v417 = vld [vmem:[#allocation2 + $0x50] sm:$0xff]
    %v418 = vld [vmem:[#allocation2 + $0x58] sm:$0xff]
    %v419 = vld [vmem:[#allocation2 + $0x60] sm:$0xff]
    %v420 = vld [vmem:[#allocation2 + $0x68] sm:$0xff]
    %v421 = vld [vmem:[#allocation2 + $0x70] sm:$0xff]
    %v422 = vld [vmem:[#allocation2 + $0x78] sm:$0xff]
    %v423 = vld [vmem:[%s2] sm:$0x1]
    %v425 = vperm.slane %v423, 0
    %v427 = vadd.f32 %v407, %v425
    %v428 = vadd.f32 %v408, %v425
    %v429 = vadd.f32 %v409, %v425
    %v430 = vadd.f32 %v410, %v425
    %v431 = vadd.f32 %v411, %v425
    %v432 = vadd.f32 %v412, %v425
    %v433 = vadd.f32 %v413, %v425
    %v434 = vadd.f32 %v414, %v425
    %v435 = vadd.f32 %v415, %v425
    %v436 = vadd.f32 %v416, %v425
    %v437 = vadd.f32 %v417, %v425
    %v438 = vadd.f32 %v418, %v425
    %v439 = vadd.f32 %v419, %v425
    %v440 = vadd.f32 %v420, %v425
    %v441 = vadd.f32 %v421, %v425
    %v442 = vadd.f32 %v422, %v425
    %443 = vst [vmem:[%s3] sm:$0xff] %v427
    %444 = vst [vmem:[%s3 + $0x8] sm:$0xff] %v428
    %445 = vst [vmem:[%s3 + $0x10] sm:$0xff] %v429
    %446 = vst [vmem:[%s3 + $0x18] sm:$0xff] %v430
    %447 = vst [vmem:[%s3 + $0x20] sm:$0xff] %v431
    %448 = vst [vmem:[%s3 + $0x28] sm:$0xff] %v432
    %449 = vst [vmem:[%s3 + $0x30] sm:$0xff] %v433
    %450 = vst [vmem:[%s3 + $0x38] sm:$0xff] %v434
    %451 = vst [vmem:[%s3 + $0x40] sm:$0xff] %v435
    %452 = vst [vmem:[%s3 + $0x48] sm:$0xff] %v436
    %453 = vst [vmem:[%s3 + $0x50] sm:$0xff] %v437
    %454 = vst [vmem:[%s3 + $0x58] sm:$0xff] %v438
    %455 = vst [vmem:[%s3 + $0x60] sm:$0xff] %v439
    %456 = vst [vmem:[%s3 + $0x68] sm:$0xff] %v440
    %457 = vst [vmem:[%s3 + $0x70] sm:$0xff] %v441
    %458 = vst [vmem:[%s3 + $0x78] sm:$0xff] %v442
  $region21: #{generator_forward.92} parent=0 // pred_fallthru
    _
  // Predicated region
  $region22: #{generator_forward.92} parent=0 // pred_check
    _
  $region23: #{generator_forward.92} parent=0 // pred_check_branch
    %460 = sbr.rel (0) target = $region25
  $region24: #{generator_forward.92} parent=0 // pred_region
    _
  $region25: #{generator_forward.92} parent=0 // pred_fallthru
    _
  // Predicated region
  $region26: #{generator_forward.92} parent=0 // pred_check
    _
  $region27: #{generator_forward.92} parent=0 // pred_check_branch
    %462 = sbr.rel (0) target = $region29
  $region28: #{generator_forward.92} parent=0 // pred_region
    _
  $region29: #{generator_forward.92} parent=0 // pred_fallthru
    _

// kernel: generator_forward.91
$region0: #{generator_forward.91}
  #allocation0 [shape = 'u32[]', space=smem, size = 0x4, offset = 0x4, fixed_abs, tag = 'smem constant byte address 0x4 - core index']
  #allocation1 [shape = 'u32[72,128]{1,0:T(1,128)}', space=vmem, size = 0x9000, scoped, tag = 'internal scratch']
  #allocation2 [shape = 'f32[128,128]{1,0:T(8,128)}', space=vmem, size = 0x10000, scoped, tag = 'scratch operand']
  %s0 = inlined_call_operand.vmem [shape: bf16[128,128], index: 0, kind: input, shape index: {}]
  %s1 = inlined_call_operand.vmem [shape: bf16[128,128], index: 1, kind: input, shape index: {}]
  %s2 = inlined_call_operand.vmem [shape: f32[1,128], index: 2, kind: input, shape index: {}]
  %s3 = inlined_call_operand.vmem [shape: f32[128,128], index: 3, kind: output, shape index: {}]
  %s4 = sld [smem:[#allocation0]]
  $region30: #{generator_forward.91} parent=0
    _
  %s6 = ssub.s32 1, %s4
  %s7 = scalar_select 0, %s6, %s4
  // Predicated region
  $region2: #{generator_forward.91} parent=0 // pred_check
    _
  $region3: #{generator_forward.91} parent=0 // pred_check_branch
    %9 = sbr.rel (0) target = $region5
  $region4: #{generator_forward.91} parent=0 // pred_region
    _
  $region5: #{generator_forward.91} parent=0 // pred_fallthru
    _
  // Predicated region
  $region6: #{generator_forward.91} parent=0 // pred_check
    _
  $region7: #{generator_forward.91} parent=0 // pred_check_branch
    %11 = sbr.rel (0) target = $region9
  $region8: #{generator_forward.91} parent=0 // pred_region
    _
  $region9: #{generator_forward.91} parent=0 // pred_fallthru
    _
  // Predicated region
  $region10: #{generator_forward.91} parent=0 // pred_check
    _
  $region11: #{generator_forward.91} parent=0 // pred_check_branch
    %13 = sbr.rel (0) target = $region13
  $region12: #{generator_forward.91} parent=0 // pred_region
    _
  $region13: #{generator_forward.91} parent=0 // pred_fallthru
    _
  %p14 = scmp.eq.s32.totalorder 0, 0
  // Predicated region
  $region14: #{generator_forward.91} parent=0 // pred_check
    %p15 = pneg %p14
  $region15: #{generator_forward.91} parent=0 // pred_check_branch
    %17 = sbr.rel (%p15) target = $region17
  $region16: #{generator_forward.91} parent=0 // pred_region
    %18 = vst [vmem:[#allocation2] sm:$0xff] 0.0
    %19 = vst [vmem:[#allocation2 + $0x8] sm:$0xff] 0.0
    %20 = vst [vmem:[#allocation2 + $0x10] sm:$0xff] 0.0
    %21 = vst [vmem:[#allocation2 + $0x18] sm:$0xff] 0.0
    %22 = vst [vmem:[#allocation2 + $0x20] sm:$0xff] 0.0
    %23 = vst [vmem:[#allocation2 + $0x28] sm:$0xff] 0.0
    %24 = vst [vmem:[#allocation2 + $0x30] sm:$0xff] 0.0
    %25 = vst [vmem:[#allocation2 + $0x38] sm:$0xff] 0.0
    %26 = vst [vmem:[#allocation2 + $0x40] sm:$0xff] 0.0
    %27 = vst [vmem:[#allocation2 + $0x48] sm:$0xff] 0.0
    %28 = vst [vmem:[#allocation2 + $0x50] sm:$0xff] 0.0
    %29 = vst [vmem:[#allocation2 + $0x58] sm:$0xff] 0.0
    %30 = vst [vmem:[#allocation2 + $0x60] sm:$0xff] 0.0
    %31 = vst [vmem:[#allocation2 + $0x68] sm:$0xff] 0.0
    %32 = vst [vmem:[#allocation2 + $0x70] sm:$0xff] 0.0
    %33 = vst [vmem:[#allocation2 + $0x78] sm:$0xff] 0.0
  $region17: #{generator_forward.91} parent=0 // pred_fallthru
    _
  %v34 = vld [vmem:[#allocation2] sm:$0xff]
  %v35 = vld [vmem:[#allocation2 + $0x8] sm:$0xff]
  %v36 = vld [vmem:[#allocation2 + $0x10] sm:$0xff]
  %v37 = vld [vmem:[#allocation2 + $0x18] sm:$0xff]
  %v38 = vld [vmem:[#allocation2 + $0x20] sm:$0xff]
  %v39 = vld [vmem:[#allocation2 + $0x28] sm:$0xff]
  %v40 = vld [vmem:[#allocation2 + $0x30] sm:$0xff]
  %v41 = vld [vmem:[#allocation2 + $0x38] sm:$0xff]
  %v42 = vld [vmem:[#allocation2 + $0x40] sm:$0xff]
  %v43 = vld [vmem:[#allocation2 + $0x48] sm:$0xff]
  %v44 = vld [vmem:[#allocation2 + $0x50] sm:$0xff]
  %v45 = vld [vmem:[#allocation2 + $0x58] sm:$0xff]
  %v46 = vld [vmem:[#allocation2 + $0x60] sm:$0xff]
  %v47 = vld [vmem:[#allocation2 + $0x68] sm:$0xff]
  %v48 = vld [vmem:[#allocation2 + $0x70] sm:$0xff]
  %v49 = vld [vmem:[#allocation2 + $0x78] sm:$0xff]
  %v50 = vld [vmem:[%s0] sm:$0xf]
  %v51 = vld [vmem:[%s0 + $0x4] sm:$0xf]
  %v52 = vld [vmem:[%s0 + $0x8] sm:$0xf]
  %v53 = vld [vmem:[%s0 + $0xc] sm:$0xf]
  %v54 = vld [vmem:[%s0 + $0x10] sm:$0xf]
  %v55 = vld [vmem:[%s0 + $0x14] sm:$0xf]
  %v56 = vld [vmem:[%s0 + $0x18] sm:$0xf]
  %v57 = vld [vmem:[%s0 + $0x1c] sm:$0xf]
  %v58 = vld [vmem:[%s0 + $0x20] sm:$0xf]
  %v59 = vld [vmem:[%s0 + $0x24] sm:$0xf]
  %v60 = vld [vmem:[%s0 + $0x28] sm:$0xf]
  %v61 = vld [vmem:[%s0 + $0x2c] sm:$0xf]
  %v62 = vld [vmem:[%s0 + $0x30] sm:$0xf]
  %v63 = vld [vmem:[%s0 + $0x34] sm:$0xf]
  %v64 = vld [vmem:[%s0 + $0x38] sm:$0xf]
  %v65 = vld [vmem:[%s0 + $0x3c] sm:$0xf]
  %v66 = vld [vmem:[%s1] sm:$0xf]
  %v67 = vld [vmem:[%s1 + $0x4] sm:$0xf]
  %v68 = vld [vmem:[%s1 + $0x8] sm:$0xf]
  %v69 = vld [vmem:[%s1 + $0xc] sm:$0xf]
  %v70 = vld [vmem:[%s1 + $0x10] sm:$0xf]
  %v71 = vld [vmem:[%s1 + $0x14] sm:$0xf]
  %v72 = vld [vmem:[%s1 + $0x18] sm:$0xf]
  %v73 = vld [vmem:[%s1 + $0x1c] sm:$0xf]
  %v74 = vld [vmem:[%s1 + $0x20] sm:$0xf]
  %v75 = vld [vmem:[%s1 + $0x24] sm:$0xf]
  %v76 = vld [vmem:[%s1 + $0x28] sm:$0xf]
  %v77 = vld [vmem:[%s1 + $0x2c] sm:$0xf]
  %v78 = vld [vmem:[%s1 + $0x30] sm:$0xf]
  %v79 = vld [vmem:[%s1 + $0x34] sm:$0xf]
  %v80 = vld [vmem:[%s1 + $0x38] sm:$0xf]
  %v81 = vld [vmem:[%s1 + $0x3c] sm:$0xf]
  %v98 = vunpack.c.l.b16 %v50
  %v99 = vunpack.c.l.b16 %v51
  %v100 = vunpack.c.l.b16 %v52
  %v101 = vunpack.c.l.b16 %v53
  %v102 = vunpack.c.l.b16 %v54
  %v103 = vunpack.c.l.b16 %v55
  %v104 = vunpack.c.l.b16 %v56
  %v105 = vunpack.c.l.b16 %v57
  %v106 = vunpack.c.l.b16 %v58
  %v107 = vunpack.c.l.b16 %v59
  %v108 = vunpack.c.l.b16 %v60
  %v109 = vunpack.c.l.b16 %v61
  %v110 = vunpack.c.l.b16 %v62
  %v111 = vunpack.c.l.b16 %v63
  %v112 = vunpack.c.l.b16 %v64
  %v113 = vunpack.c.l.b16 %v65
  %v114 = vpack.c.b16 %v99, %v98
  %v115 = vpack.c.b16 %v101, %v100
  %v116 = vpack.c.b16 %v103, %v102
  %v117 = vpack.c.b16 %v105, %v104
  %v118 = vpack.c.b16 %v107, %v106
  %v119 = vpack.c.b16 %v109, %v108
  %v120 = vpack.c.b16 %v111, %v110
  %v121 = vpack.c.b16 %v113, %v112
  %v146 = vunpack.c.l.b16 %v66
  %v147 = vunpack.c.l.b16 %v67
  %v148 = vunpack.c.l.b16 %v68
  %v149 = vunpack.c.l.b16 %v69
  %v150 = vunpack.c.l.b16 %v70
  %v151 = vunpack.c.l.b16 %v71
  %v152 = vunpack.c.l.b16 %v72
  %v153 = vunpack.c.l.b16 %v73
  %v154 = vunpack.c.l.b16 %v74
  %v155 = vunpack.c.l.b16 %v75
  %v156 = vunpack.c.l.b16 %v76
  %v157 = vunpack.c.l.b16 %v77
  %v158 = vunpack.c.l.b16 %v78
  %v159 = vunpack.c.l.b16 %v79
  %v160 = vunpack.c.l.b16 %v80
  %v161 = vunpack.c.l.b16 %v81
  %v162 = vpack.c.b16 %v147, %v146
  %v163 = vpack.c.b16 %v149, %v148
  %v164 = vpack.c.b16 %v151, %v150
  %v165 = vpack.c.b16 %v153, %v152
  %v166 = vpack.c.b16 %v155, %v154
  %v167 = vpack.c.b16 %v157, %v156
  %v168 = vpack.c.b16 %v159, %v158
  %v169 = vpack.c.b16 %v161, %v160
  %178 = vmatpush.bf16.msra.mxu0 %v169
  %179 = vmatpush.bf16.msra.mxu0 %v168
  %180 = vmatpush.bf16.msra.mxu0 %v167
  %181 = vmatpush.bf16.msra.mxu0 %v166
  %182 = vmatpush.bf16.msra.mxu0 %v165
  %183 = vmatpush.bf16.msra.mxu0 %v164
  %184 = vmatpush.bf16.msra.mxu0 %v163
  %185 = vmatpush.bf16.msra.mxu0 %v162
  %186 = vmatmul.bf16.gmra.mxu0 %v114
  %v187 = vpop.f32.mrf.mxu0
  %v188 = vadd.f32 0.0, %v187
  %v189 = vpop.f32.mrf.mxu0
  %v190 = vadd.f32 0.0, %v189
  %191 = vmatmul.bf16.gmra.mxu0 %v115
  %v192 = vpop.f32.mrf.mxu0
  %v193 = vadd.f32 0.0, %v192
  %v194 = vpop.f32.mrf.mxu0
  %v195 = vadd.f32 0.0, %v194
  %196 = vmatmul.bf16.gmra.mxu0 %v116
  %v197 = vpop.f32.mrf.mxu0
  %v198 = vadd.f32 0.0, %v197
  %v199 = vpop.f32.mrf.mxu0
  %v200 = vadd.f32 0.0, %v199
  %201 = vmatmul.bf16.gmra.mxu0 %v117
  %v202 = vpop.f32.mrf.mxu0
  %v203 = vadd.f32 0.0, %v202
  %v204 = vpop.f32.mrf.mxu0
  %v205 = vadd.f32 0.0, %v204
  %206 = vmatmul.bf16.gmra.mxu0 %v118
  %v207 = vpop.f32.mrf.mxu0
  %v208 = vadd.f32 0.0, %v207
  %v209 = vpop.f32.mrf.mxu0
  %v210 = vadd.f32 0.0, %v209
  %211 = vmatmul.bf16.gmra.mxu0 %v119
  %v212 = vpop.f32.mrf.mxu0
  %v213 = vadd.f32 0.0, %v212
  %v214 = vpop.f32.mrf.mxu0
  %v215 = vadd.f32 0.0, %v214
  %216 = vmatmul.bf16.gmra.mxu0 %v120
  %v217 = vpop.f32.mrf.mxu0
  %v218 = vadd.f32 0.0, %v217
  %v219 = vpop.f32.mrf.mxu0
  %v220 = vadd.f32 0.0, %v219
  %221 = vmatmul.bf16.gmra.mxu0 %v121
  %v222 = vpop.f32.mrf.mxu0
  %v223 = vadd.f32 0.0, %v222
  %v224 = vpop.f32.mrf.mxu0
  %v225 = vadd.f32 0.0, %v224
  %226 = vdwg.mxu0
  %v227 = vadd.f32 %v34, %v188
  %v228 = vadd.f32 %v35, %v190
  %v229 = vadd.f32 %v36, %v193
  %v230 = vadd.f32 %v37, %v195
  %v231 = vadd.f32 %v38, %v198
  %v232 = vadd.f32 %v39, %v200
  %v233 = vadd.f32 %v40, %v203
  %v234 = vadd.f32 %v41, %v205
  %v235 = vadd.f32 %v42, %v208
  %v236 = vadd.f32 %v43, %v210
  %v237 = vadd.f32 %v44, %v213
  %v238 = vadd.f32 %v45, %v215
  %v239 = vadd.f32 %v46, %v218
  %v240 = vadd.f32 %v47, %v220
  %v241 = vadd.f32 %v48, %v223
  %v242 = vadd.f32 %v49, %v225
  %243 = vst [vmem:[#allocation2] sm:$0xff] %v227
  %244 = vst [vmem:[#allocation2 + $0x8] sm:$0xff] %v228
  %245 = vst [vmem:[#allocation2 + $0x10] sm:$0xff] %v229
  %246 = vst [vmem:[#allocation2 + $0x18] sm:$0xff] %v230
  %247 = vst [vmem:[#allocation2 + $0x20] sm:$0xff] %v231
  %248 = vst [vmem:[#allocation2 + $0x28] sm:$0xff] %v232
  %249 = vst [vmem:[#allocation2 + $0x30] sm:$0xff] %v233
  %250 = vst [vmem:[#allocation2 + $0x38] sm:$0xff] %v234
  %251 = vst [vmem:[#allocation2 + $0x40] sm:$0xff] %v235
  %252 = vst [vmem:[#allocation2 + $0x48] sm:$0xff] %v236
  %253 = vst [vmem:[#allocation2 + $0x50] sm:$0xff] %v237
  %254 = vst [vmem:[#allocation2 + $0x58] sm:$0xff] %v238
  %255 = vst [vmem:[#allocation2 + $0x60] sm:$0xff] %v239
  %256 = vst [vmem:[#allocation2 + $0x68] sm:$0xff] %v240
  %257 = vst [vmem:[#allocation2 + $0x70] sm:$0xff] %v241
  %258 = vst [vmem:[#allocation2 + $0x78] sm:$0xff] %v242
  // Predicated region
  $region18: #{generator_forward.91} parent=0 // pred_check
    %p259 = pneg %p14
  $region19: #{generator_forward.91} parent=0 // pred_check_branch
    %261 = sbr.rel (%p259) target = $region21
  $region20: #{generator_forward.91} parent=0 // pred_region
    %v262 = vld [vmem:[#allocation2] sm:$0xff]
    %v263 = vld [vmem:[#allocation2 + $0x8] sm:$0xff]
    %v264 = vld [vmem:[#allocation2 + $0x10] sm:$0xff]
    %v265 = vld [vmem:[#allocation2 + $0x18] sm:$0xff]
    %v266 = vld [vmem:[#allocation2 + $0x20] sm:$0xff]
    %v267 = vld [vmem:[#allocation2 + $0x28] sm:$0xff]
    %v268 = vld [vmem:[#allocation2 + $0x30] sm:$0xff]
    %v269 = vld [vmem:[#allocation2 + $0x38] sm:$0xff]
    %v270 = vld [vmem:[#allocation2 + $0x40] sm:$0xff]
    %v271 = vld [vmem:[#allocation2 + $0x48] sm:$0xff]
    %v272 = vld [vmem:[#allocation2 + $0x50] sm:$0xff]
    %v273 = vld [vmem:[#allocation2 + $0x58] sm:$0xff]
    %v274 = vld [vmem:[#allocation2 + $0x60] sm:$0xff]
    %v275 = vld [vmem:[#allocation2 + $0x68] sm:$0xff]
    %v276 = vld [vmem:[#allocation2 + $0x70] sm:$0xff]
    %v277 = vld [vmem:[#allocation2 + $0x78] sm:$0xff]
    %v278 = vld [vmem:[%s2] sm:$0x1]
    %v280 = vperm.slane %v278, 0
    %v282 = vadd.f32 %v262, %v280
    %v283 = vadd.f32 %v263, %v280
    %v284 = vadd.f32 %v264, %v280
    %v285 = vadd.f32 %v265, %v280
    %v286 = vadd.f32 %v266, %v280
    %v287 = vadd.f32 %v267, %v280
    %v288 = vadd.f32 %v268, %v280
    %v289 = vadd.f32 %v269, %v280
    %v290 = vadd.f32 %v270, %v280
    %v291 = vadd.f32 %v271, %v280
    %v292 = vadd.f32 %v272, %v280
    %v293 = vadd.f32 %v273, %v280
    %v294 = vadd.f32 %v274, %v280
    %v295 = vadd.f32 %v275, %v280
    %v296 = vadd.f32 %v276, %v280
    %v297 = vadd.f32 %v277, %v280
    %298 = vst [vmem:[%s3] sm:$0xff] %v282
    %299 = vst [vmem:[%s3 + $0x8] sm:$0xff] %v283
    %300 = vst [vmem:[%s3 + $0x10] sm:$0xff] %v284
    %301 = vst [vmem:[%s3 + $0x18] sm:$0xff] %v285
    %302 = vst [vmem:[%s3 + $0x20] sm:$0xff] %v286
    %303 = vst [vmem:[%s3 + $0x28] sm:$0xff] %v287
    %304 = vst [vmem:[%s3 + $0x30] sm:$0xff] %v288
    %305 = vst [vmem:[%s3 + $0x38] sm:$0xff] %v289
    %306 = vst [vmem:[%s3 + $0x40] sm:$0xff] %v290
    %307 = vst [vmem:[%s3 + $0x48] sm:$0xff] %v291
    %308 = vst [vmem:[%s3 + $0x50] sm:$0xff] %v292
    %309 = vst [vmem:[%s3 + $0x58] sm:$0xff] %v293
    %310 = vst [vmem:[%s3 + $0x60] sm:$0xff] %v294
    %311 = vst [vmem:[%s3 + $0x68] sm:$0xff] %v295
    %312 = vst [vmem:[%s3 + $0x70] sm:$0xff] %v296
    %313 = vst [vmem:[%s3 + $0x78] sm:$0xff] %v297
  $region21: #{generator_forward.91} parent=0 // pred_fallthru
    _
  // Predicated region
  $region22: #{generator_forward.91} parent=0 // pred_check
    _
  $region23: #{generator_forward.91} parent=0 // pred_check_branch
    %315 = sbr.rel (0) target = $region25
  $region24: #{generator_forward.91} parent=0 // pred_region
    _
  $region25: #{generator_forward.91} parent=0 // pred_fallthru
    _
  // Predicated region
  $region26: #{generator_forward.91} parent=0 // pred_check
    _
  $region27: #{generator_forward.91} parent=0 // pred_check_branch
    %317 = sbr.rel (0) target = $region29
  $region28: #{generator_forward.91} parent=0 // pred_region
    _
  $region29: #{generator_forward.91} parent=0 // pred_fallthru
    _

// kernel: generator_forward.94
$region0: #{generator_forward.94}
  #allocation0 [shape = 'u32[]', space=smem, size = 0x4, offset = 0x4, fixed_abs, tag = 'smem constant byte address 0x4 - core index']
  #allocation1 [shape = 'u32[72,128]{1,0:T(1,128)}', space=vmem, size = 0x9000, scoped, tag = 'internal scratch']
  #allocation2 [shape = 'f32[128,128]{1,0:T(8,128)}', space=vmem, size = 0x10000, scoped, tag = 'scratch operand']
  %s0 = inlined_call_operand.vmem [shape: bf16[128,512], index: 0, kind: input, shape index: {}]
  %s1 = inlined_call_operand.vmem [shape: bf16[512,128], index: 1, kind: input, shape index: {}]
  %s2 = inlined_call_operand.vmem [shape: f32[1,128], index: 2, kind: input, shape index: {}]
  %s3 = inlined_call_operand.vmem [shape: f32[128,128], index: 3, kind: output, shape index: {}]
  %s4 = sld [smem:[#allocation0]]
  $region30: #{generator_forward.94} parent=0
    _
  %s6 = ssub.s32 1, %s4
  %s7 = scalar_select 0, %s6, %s4
  // Predicated region
  $region2: #{generator_forward.94} parent=0 // pred_check
    _
  $region3: #{generator_forward.94} parent=0 // pred_check_branch
    %9 = sbr.rel (0) target = $region5
  $region4: #{generator_forward.94} parent=0 // pred_region
    _
  $region5: #{generator_forward.94} parent=0 // pred_fallthru
    _
  // Predicated region
  $region6: #{generator_forward.94} parent=0 // pred_check
    _
  $region7: #{generator_forward.94} parent=0 // pred_check_branch
    %11 = sbr.rel (0) target = $region9
  $region8: #{generator_forward.94} parent=0 // pred_region
    _
  $region9: #{generator_forward.94} parent=0 // pred_fallthru
    _
  // Predicated region
  $region10: #{generator_forward.94} parent=0 // pred_check
    _
  $region11: #{generator_forward.94} parent=0 // pred_check_branch
    %13 = sbr.rel (0) target = $region13
  $region12: #{generator_forward.94} parent=0 // pred_region
    _
  $region13: #{generator_forward.94} parent=0 // pred_fallthru
    _
  %p14 = scmp.eq.s32.totalorder 0, 0
  // Predicated region
  $region14: #{generator_forward.94} parent=0 // pred_check
    %p15 = pneg %p14
  $region15: #{generator_forward.94} parent=0 // pred_check_branch
    %17 = sbr.rel (%p15) target = $region17
  $region16: #{generator_forward.94} parent=0 // pred_region
    %18 = vst [vmem:[#allocation2] sm:$0xff] 0.0
    %19 = vst [vmem:[#allocation2 + $0x8] sm:$0xff] 0.0
    %20 = vst [vmem:[#allocation2 + $0x10] sm:$0xff] 0.0
    %21 = vst [vmem:[#allocation2 + $0x18] sm:$0xff] 0.0
    %22 = vst [vmem:[#allocation2 + $0x20] sm:$0xff] 0.0
    %23 = vst [vmem:[#allocation2 + $0x28] sm:$0xff] 0.0
    %24 = vst [vmem:[#allocation2 + $0x30] sm:$0xff] 0.0
    %25 = vst [vmem:[#allocation2 + $0x38] sm:$0xff] 0.0
    %26 = vst [vmem:[#allocation2 + $0x40] sm:$0xff] 0.0
    %27 = vst [vmem:[#allocation2 + $0x48] sm:$0xff] 0.0
    %28 = vst [vmem:[#allocation2 + $0x50] sm:$0xff] 0.0
    %29 = vst [vmem:[#allocation2 + $0x58] sm:$0xff] 0.0
    %30 = vst [vmem:[#allocation2 + $0x60] sm:$0xff] 0.0
    %31 = vst [vmem:[#allocation2 + $0x68] sm:$0xff] 0.0
    %32 = vst [vmem:[#allocation2 + $0x70] sm:$0xff] 0.0
    %33 = vst [vmem:[#allocation2 + $0x78] sm:$0xff] 0.0
  $region17: #{generator_forward.94} parent=0 // pred_fallthru
    _
  %v34 = vld [vmem:[#allocation2] sm:$0xff]
  %v35 = vld [vmem:[#allocation2 + $0x8] sm:$0xff]
  %v36 = vld [vmem:[#allocation2 + $0x10] sm:$0xff]
  %v37 = vld [vmem:[#allocation2 + $0x18] sm:$0xff]
  %v38 = vld [vmem:[#allocation2 + $0x20] sm:$0xff]
  %v39 = vld [vmem:[#allocation2 + $0x28] sm:$0xff]
  %v40 = vld [vmem:[#allocation2 + $0x30] sm:$0xff]
  %v41 = vld [vmem:[#allocation2 + $0x38] sm:$0xff]
  %v42 = vld [vmem:[#allocation2 + $0x40] sm:$0xff]
  %v43 = vld [vmem:[#allocation2 + $0x48] sm:$0xff]
  %v44 = vld [vmem:[#allocation2 + $0x50] sm:$0xff]
  %v45 = vld [vmem:[#allocation2 + $0x58] sm:$0xff]
  %v46 = vld [vmem:[#allocation2 + $0x60] sm:$0xff]
  %v47 = vld [vmem:[#allocation2 + $0x68] sm:$0xff]
  %v48 = vld [vmem:[#allocation2 + $0x70] sm:$0xff]
  %v49 = vld [vmem:[#allocation2 + $0x78] sm:$0xff]
  %v50 = vld [vmem:[%s0] sm:$0xff]
  %v51 = vld [vmem:[%s0 + $0x8] sm:$0xff]
  %v52 = vld [vmem:[%s0 + $0x10] sm:$0xff]
  %v53 = vld [vmem:[%s0 + $0x18] sm:$0xff]
  %v54 = vld [vmem:[%s0 + $0x20] sm:$0xff]
  %v55 = vld [vmem:[%s0 + $0x28] sm:$0xff]
  %v56 = vld [vmem:[%s0 + $0x30] sm:$0xff]
  %v57 = vld [vmem:[%s0 + $0x38] sm:$0xff]
  %v58 = vld [vmem:[%s0 + $0x40] sm:$0xff]
  %v59 = vld [vmem:[%s0 + $0x48] sm:$0xff]
  %v60 = vld [vmem:[%s0 + $0x50] sm:$0xff]
  %v61 = vld [vmem:[%s0 + $0x58] sm:$0xff]
  %v62 = vld [vmem:[%s0 + $0x60] sm:$0xff]
  %v63 = vld [vmem:[%s0 + $0x68] sm:$0xff]
  %v64 = vld [vmem:[%s0 + $0x70] sm:$0xff]
  %v65 = vld [vmem:[%s0 + $0x78] sm:$0xff]
  %v66 = vld [vmem:[%s0 + $0x80] sm:$0xff]
  %v67 = vld [vmem:[%s0 + $0x88] sm:$0xff]
  %v68 = vld [vmem:[%s0 + $0x90] sm:$0xff]
  %v69 = vld [vmem:[%s0 + $0x98] sm:$0xff]
  %v70 = vld [vmem:[%s0 + $0xa0] sm:$0xff]
  %v71 = vld [vmem:[%s0 + $0xa8] sm:$0xff]
  %v72 = vld [vmem:[%s0 + $0xb0] sm:$0xff]
  %v73 = vld [vmem:[%s0 + $0xb8] sm:$0xff]
  %v74 = vld [vmem:[%s0 + $0xc0] sm:$0xff]
  %v75 = vld [vmem:[%s0 + $0xc8] sm:$0xff]
  %v76 = vld [vmem:[%s0 + $0xd0] sm:$0xff]
  %v77 = vld [vmem:[%s0 + $0xd8] sm:$0xff]
  %v78 = vld [vmem:[%s0 + $0xe0] sm:$0xff]
  %v79 = vld [vmem:[%s0 + $0xe8] sm:$0xff]
  %v80 = vld [vmem:[%s0 + $0xf0] sm:$0xff]
  %v81 = vld [vmem:[%s0 + $0xf8] sm:$0xff]
  %v82 = vld [vmem:[%s1] sm:$0xf]
  %v83 = vld [vmem:[%s1 + $0x4] sm:$0xf]
  %v84 = vld [vmem:[%s1 + $0x8] sm:$0xf]
  %v85 = vld [vmem:[%s1 + $0xc] sm:$0xf]
  %v86 = vld [vmem:[%s1 + $0x10] sm:$0xf]
  %v87 = vld [vmem:[%s1 + $0x14] sm:$0xf]
  %v88 = vld [vmem:[%s1 + $0x18] sm:$0xf]
  %v89 = vld [vmem:[%s1 + $0x1c] sm:$0xf]
  %v90 = vld [vmem:[%s1 + $0x20] sm:$0xf]
  %v91 = vld [vmem:[%s1 + $0x24] sm:$0xf]
  %v92 = vld [vmem:[%s1 + $0x28] sm:$0xf]
  %v93 = vld [vmem:[%s1 + $0x2c] sm:$0xf]
  %v94 = vld [vmem:[%s1 + $0x30] sm:$0xf]
  %v95 = vld [vmem:[%s1 + $0x34] sm:$0xf]
  %v96 = vld [vmem:[%s1 + $0x38] sm:$0xf]
  %v97 = vld [vmem:[%s1 + $0x3c] sm:$0xf]
  %v98 = vld [vmem:[%s1 + $0x40] sm:$0xf]
  %v99 = vld [vmem:[%s1 + $0x44] sm:$0xf]
  %v100 = vld [vmem:[%s1 + $0x48] sm:$0xf]
  %v101 = vld [vmem:[%s1 + $0x4c] sm:$0xf]
  %v102 = vld [vmem:[%s1 + $0x50] sm:$0xf]
  %v103 = vld [vmem:[%s1 + $0x54] sm:$0xf]
  %v104 = vld [vmem:[%s1 + $0x58] sm:$0xf]
  %v105 = vld [vmem:[%s1 + $0x5c] sm:$0xf]
  %v106 = vld [vmem:[%s1 + $0x60] sm:$0xf]
  %v107 = vld [vmem:[%s1 + $0x64] sm:$0xf]
  %v108 = vld [vmem:[%s1 + $0x68] sm:$0xf]
  %v109 = vld [vmem:[%s1 + $0x6c] sm:$0xf]
  %v110 = vld [vmem:[%s1 + $0x70] sm:$0xf]
  %v111 = vld [vmem:[%s1 + $0x74] sm:$0xf]
  %v112 = vld [vmem:[%s1 + $0x78] sm:$0xf]
  %v113 = vld [vmem:[%s1 + $0x7c] sm:$0xf]
  %v114 = vld [vmem:[%s1 + $0x80] sm:$0xf]
  %v115 = vld [vmem:[%s1 + $0x84] sm:$0xf]
  %v116 = vld [vmem:[%s1 + $0x88] sm:$0xf]
  %v117 = vld [vmem:[%s1 + $0x8c] sm:$0xf]
  %v118 = vld [vmem:[%s1 + $0x90] sm:$0xf]
  %v119 = vld [vmem:[%s1 + $0x94] sm:$0xf]
  %v120 = vld [vmem:[%s1 + $0x98] sm:$0xf]
  %v121 = vld [vmem:[%s1 + $0x9c] sm:$0xf]
  %v122 = vld [vmem:[%s1 + $0xa0] sm:$0xf]
  %v123 = vld [vmem:[%s1 + $0xa4] sm:$0xf]
  %v124 = vld [vmem:[%s1 + $0xa8] sm:$0xf]
  %v125 = vld [vmem:[%s1 + $0xac] sm:$0xf]
  %v126 = vld [vmem:[%s1 + $0xb0] sm:$0xf]
  %v127 = vld [vmem:[%s1 + $0xb4] sm:$0xf]
  %v128 = vld [vmem:[%s1 + $0xb8] sm:$0xf]
  %v129 = vld [vmem:[%s1 + $0xbc] sm:$0xf]
  %v130 = vld [vmem:[%s1 + $0xc0] sm:$0xf]
  %v131 = vld [vmem:[%s1 + $0xc4] sm:$0xf]
  %v132 = vld [vmem:[%s1 + $0xc8] sm:$0xf]
  %v133 = vld [vmem:[%s1 + $0xcc] sm:$0xf]
  %v134 = vld [vmem:[%s1 + $0xd0] sm:$0xf]
  %v135 = vld [vmem:[%s1 + $0xd4] sm:$0xf]
  %v136 = vld [vmem:[%s1 + $0xd8] sm:$0xf]
  %v137 = vld [vmem:[%s1 + $0xdc] sm:$0xf]
  %v138 = vld [vmem:[%s1 + $0xe0] sm:$0xf]
  %v139 = vld [vmem:[%s1 + $0xe4] sm:$0xf]
  %v140 = vld [vmem:[%s1 + $0xe8] sm:$0xf]
  %v141 = vld [vmem:[%s1 + $0xec] sm:$0xf]
  %v142 = vld [vmem:[%s1 + $0xf0] sm:$0xf]
  %v143 = vld [vmem:[%s1 + $0xf4] sm:$0xf]
  %v144 = vld [vmem:[%s1 + $0xf8] sm:$0xf]
  %v145 = vld [vmem:[%s1 + $0xfc] sm:$0xf]
  %v178 = vunpack.c.l.b16 %v50
  %v179 = vunpack.c.h.b16 %v50
  %v180 = vunpack.c.l.b16 %v51
  %v181 = vunpack.c.h.b16 %v51
  %v182 = vunpack.c.l.b16 %v52
  %v183 = vunpack.c.h.b16 %v52
  %v184 = vunpack.c.l.b16 %v53
  %v185 = vunpack.c.h.b16 %v53
  %v186 = vunpack.c.l.b16 %v54
  %v187 = vunpack.c.h.b16 %v54
  %v188 = vunpack.c.l.b16 %v55
  %v189 = vunpack.c.h.b16 %v55
  %v190 = vunpack.c.l.b16 %v56
  %v191 = vunpack.c.h.b16 %v56
  %v192 = vunpack.c.l.b16 %v57
  %v193 = vunpack.c.h.b16 %v57
  %v194 = vunpack.c.l.b16 %v58
  %v195 = vunpack.c.h.b16 %v58
  %v196 = vunpack.c.l.b16 %v59
  %v197 = vunpack.c.h.b16 %v59
  %v198 = vunpack.c.l.b16 %v60
  %v199 = vunpack.c.h.b16 %v60
  %v200 = vunpack.c.l.b16 %v61
  %v201 = vunpack.c.h.b16 %v61
  %v202 = vunpack.c.l.b16 %v62
  %v203 = vunpack.c.h.b16 %v62
  %v204 = vunpack.c.l.b16 %v63
  %v205 = vunpack.c.h.b16 %v63
  %v206 = vunpack.c.l.b16 %v64
  %v207 = vunpack.c.h.b16 %v64
  %v208 = vunpack.c.l.b16 %v65
  %v209 = vunpack.c.h.b16 %v65
  %v210 = vunpack.c.l.b16 %v66
  %v211 = vunpack.c.h.b16 %v66
  %v212 = vunpack.c.l.b16 %v67
  %v213 = vunpack.c.h.b16 %v67
  %v214 = vunpack.c.l.b16 %v68
  %v215 = vunpack.c.h.b16 %v68
  %v216 = vunpack.c.l.b16 %v69
  %v217 = vunpack.c.h.b16 %v69
  %v218 = vunpack.c.l.b16 %v70
  %v219 = vunpack.c.h.b16 %v70
  %v220 = vunpack.c.l.b16 %v71
  %v221 = vunpack.c.h.b16 %v71
  %v222 = vunpack.c.l.b16 %v72
  %v223 = vunpack.c.h.b16 %v72
  %v224 = vunpack.c.l.b16 %v73
  %v225 = vunpack.c.h.b16 %v73
  %v226 = vunpack.c.l.b16 %v74
  %v227 = vunpack.c.h.b16 %v74
  %v228 = vunpack.c.l.b16 %v75
  %v229 = vunpack.c.h.b16 %v75
  %v230 = vunpack.c.l.b16 %v76
  %v231 = vunpack.c.h.b16 %v76
  %v232 = vunpack.c.l.b16 %v77
  %v233 = vunpack.c.h.b16 %v77
  %v234 = vunpack.c.l.b16 %v78
  %v235 = vunpack.c.h.b16 %v78
  %v236 = vunpack.c.l.b16 %v79
  %v237 = vunpack.c.h.b16 %v79
  %v238 = vunpack.c.l.b16 %v80
  %v239 = vunpack.c.h.b16 %v80
  %v240 = vunpack.c.l.b16 %v81
  %v241 = vunpack.c.h.b16 %v81
  %v242 = vpack.c.b16 %v182, %v178
  %v243 = vpack.c.b16 %v183, %v179
  %v244 = vpack.c.b16 %v184, %v180
  %v245 = vpack.c.b16 %v185, %v181
  %v246 = vpack.c.b16 %v190, %v186
  %v247 = vpack.c.b16 %v191, %v187
  %v248 = vpack.c.b16 %v192, %v188
  %v249 = vpack.c.b16 %v193, %v189
  %v250 = vpack.c.b16 %v198, %v194
  %v251 = vpack.c.b16 %v199, %v195
  %v252 = vpack.c.b16 %v200, %v196
  %v253 = vpack.c.b16 %v201, %v197
  %v254 = vpack.c.b16 %v206, %v202
  %v255 = vpack.c.b16 %v207, %v203
  %v256 = vpack.c.b16 %v208, %v204
  %v257 = vpack.c.b16 %v209, %v205
  %v258 = vpack.c.b16 %v214, %v210
  %v259 = vpack.c.b16 %v215, %v211
  %v260 = vpack.c.b16 %v216, %v212
  %v261 = vpack.c.b16 %v217, %v213
  %v262 = vpack.c.b16 %v222, %v218
  %v263 = vpack.c.b16 %v223, %v219
  %v264 = vpack.c.b16 %v224, %v220
  %v265 = vpack.c.b16 %v225, %v221
  %v266 = vpack.c.b16 %v230, %v226
  %v267 = vpack.c.b16 %v231, %v227
  %v268 = vpack.c.b16 %v232, %v228
  %v269 = vpack.c.b16 %v233, %v229
  %v270 = vpack.c.b16 %v238, %v234
  %v271 = vpack.c.b16 %v239, %v235
  %v272 = vpack.c.b16 %v240, %v236
  %v273 = vpack.c.b16 %v241, %v237
  %v370 = vunpack.c.l.b16 %v82
  %v371 = vunpack.c.l.b16 %v83
  %v372 = vunpack.c.l.b16 %v84
  %v373 = vunpack.c.l.b16 %v85
  %v374 = vunpack.c.l.b16 %v86
  %v375 = vunpack.c.l.b16 %v87
  %v376 = vunpack.c.l.b16 %v88
  %v377 = vunpack.c.l.b16 %v89
  %v378 = vunpack.c.l.b16 %v90
  %v379 = vunpack.c.l.b16 %v91
  %v380 = vunpack.c.l.b16 %v92
  %v381 = vunpack.c.l.b16 %v93
  %v382 = vunpack.c.l.b16 %v94
  %v383 = vunpack.c.l.b16 %v95
  %v384 = vunpack.c.l.b16 %v96
  %v385 = vunpack.c.l.b16 %v97
  %v386 = vunpack.c.l.b16 %v98
  %v387 = vunpack.c.l.b16 %v99
  %v388 = vunpack.c.l.b16 %v100
  %v389 = vunpack.c.l.b16 %v101
  %v390 = vunpack.c.l.b16 %v102
  %v391 = vunpack.c.l.b16 %v103
  %v392 = vunpack.c.l.b16 %v104
  %v393 = vunpack.c.l.b16 %v105
  %v394 = vunpack.c.l.b16 %v106
  %v395 = vunpack.c.l.b16 %v107
  %v396 = vunpack.c.l.b16 %v108
  %v397 = vunpack.c.l.b16 %v109
  %v398 = vunpack.c.l.b16 %v110
  %v399 = vunpack.c.l.b16 %v111
  %v400 = vunpack.c.l.b16 %v112
  %v401 = vunpack.c.l.b16 %v113
  %v402 = vunpack.c.l.b16 %v114
  %v403 = vunpack.c.l.b16 %v115
  %v404 = vunpack.c.l.b16 %v116
  %v405 = vunpack.c.l.b16 %v117
  %v406 = vunpack.c.l.b16 %v118
  %v407 = vunpack.c.l.b16 %v119
  %v408 = vunpack.c.l.b16 %v120
  %v409 = vunpack.c.l.b16 %v121
  %v410 = vunpack.c.l.b16 %v122
  %v411 = vunpack.c.l.b16 %v123
  %v412 = vunpack.c.l.b16 %v124
  %v413 = vunpack.c.l.b16 %v125
  %v414 = vunpack.c.l.b16 %v126
  %v415 = vunpack.c.l.b16 %v127
  %v416 = vunpack.c.l.b16 %v128
  %v417 = vunpack.c.l.b16 %v129
  %v418 = vunpack.c.l.b16 %v130
  %v419 = vunpack.c.l.b16 %v131
  %v420 = vunpack.c.l.b16 %v132
  %v421 = vunpack.c.l.b16 %v133
  %v422 = vunpack.c.l.b16 %v134
  %v423 = vunpack.c.l.b16 %v135
  %v424 = vunpack.c.l.b16 %v136
  %v425 = vunpack.c.l.b16 %v137
  %v426 = vunpack.c.l.b16 %v138
  %v427 = vunpack.c.l.b16 %v139
  %v428 = vunpack.c.l.b16 %v140
  %v429 = vunpack.c.l.b16 %v141
  %v430 = vunpack.c.l.b16 %v142
  %v431 = vunpack.c.l.b16 %v143
  %v432 = vunpack.c.l.b16 %v144
  %v433 = vunpack.c.l.b16 %v145
  %v434 = vpack.c.b16 %v371, %v370
  %v435 = vpack.c.b16 %v373, %v372
  %v436 = vpack.c.b16 %v375, %v374
  %v437 = vpack.c.b16 %v377, %v376
  %v438 = vpack.c.b16 %v379, %v378
  %v439 = vpack.c.b16 %v381, %v380
  %v440 = vpack.c.b16 %v383, %v382
  %v441 = vpack.c.b16 %v385, %v384
  %v442 = vpack.c.b16 %v387, %v386
  %v443 = vpack.c.b16 %v389, %v388
  %v444 = vpack.c.b16 %v391, %v390
  %v445 = vpack.c.b16 %v393, %v392
  %v446 = vpack.c.b16 %v395, %v394
  %v447 = vpack.c.b16 %v397, %v396
  %v448 = vpack.c.b16 %v399, %v398
  %v449 = vpack.c.b16 %v401, %v400
  %v450 = vpack.c.b16 %v403, %v402
  %v451 = vpack.c.b16 %v405, %v404
  %v452 = vpack.c.b16 %v407, %v406
  %v453 = vpack.c.b16 %v409, %v408
  %v454 = vpack.c.b16 %v411, %v410
  %v455 = vpack.c.b16 %v413, %v412
  %v456 = vpack.c.b16 %v415, %v414
  %v457 = vpack.c.b16 %v417, %v416
  %v458 = vpack.c.b16 %v419, %v418
  %v459 = vpack.c.b16 %v421, %v420
  %v460 = vpack.c.b16 %v423, %v422
  %v461 = vpack.c.b16 %v425, %v424
  %v462 = vpack.c.b16 %v427, %v426
  %v463 = vpack.c.b16 %v429, %v428
  %v464 = vpack.c.b16 %v431, %v430
  %v465 = vpack.c.b16 %v433, %v432
  %498 = vmatpush.bf16.msra.mxu0 %v441
  %499 = vmatpush.bf16.msra.mxu0 %v440
  %500 = vmatpush.bf16.msra.mxu0 %v439
  %501 = vmatpush.bf16.msra.mxu0 %v438
  %502 = vmatpush.bf16.msra.mxu0 %v437
  %503 = vmatpush.bf16.msra.mxu0 %v436
  %504 = vmatpush.bf16.msra.mxu0 %v435
  %505 = vmatpush.bf16.msra.mxu0 %v434
  %506 = vmatmul.bf16.gmra.mxu0 %v242
  %v507 = vpop.f32.mrf.mxu0
  %v508 = vadd.f32 0.0, %v507
  %v509 = vpop.f32.mrf.mxu0
  %v510 = vadd.f32 0.0, %v509
  %511 = vmatmul.bf16.gmra.mxu0 %v246
  %v512 = vpop.f32.mrf.mxu0
  %v513 = vadd.f32 0.0, %v512
  %v514 = vpop.f32.mrf.mxu0
  %v515 = vadd.f32 0.0, %v514
  %516 = vmatmul.bf16.gmra.mxu0 %v250
  %v517 = vpop.f32.mrf.mxu0
  %v518 = vadd.f32 0.0, %v517
  %v519 = vpop.f32.mrf.mxu0
  %v520 = vadd.f32 0.0, %v519
  %521 = vmatmul.bf16.gmra.mxu0 %v254
  %v522 = vpop.f32.mrf.mxu0
  %v523 = vadd.f32 0.0, %v522
  %v524 = vpop.f32.mrf.mxu0
  %v525 = vadd.f32 0.0, %v524
  %526 = vmatmul.bf16.gmra.mxu0 %v258
  %v527 = vpop.f32.mrf.mxu0
  %v528 = vadd.f32 0.0, %v527
  %v529 = vpop.f32.mrf.mxu0
  %v530 = vadd.f32 0.0, %v529
  %531 = vmatmul.bf16.gmra.mxu0 %v262
  %v532 = vpop.f32.mrf.mxu0
  %v533 = vadd.f32 0.0, %v532
  %v534 = vpop.f32.mrf.mxu0
  %v535 = vadd.f32 0.0, %v534
  %536 = vmatmul.bf16.gmra.mxu0 %v266
  %v537 = vpop.f32.mrf.mxu0
  %v538 = vadd.f32 0.0, %v537
  %v539 = vpop.f32.mrf.mxu0
  %v540 = vadd.f32 0.0, %v539
  %541 = vmatmul.bf16.gmra.mxu0 %v270
  %v542 = vpop.f32.mrf.mxu0
  %v543 = vadd.f32 0.0, %v542
  %v544 = vpop.f32.mrf.mxu0
  %v545 = vadd.f32 0.0, %v544
  %546 = vdwg.mxu0
  %547 = vmatpush.bf16.msra.mxu0 %v449
  %548 = vmatpush.bf16.msra.mxu0 %v448
  %549 = vmatpush.bf16.msra.mxu0 %v447
  %550 = vmatpush.bf16.msra.mxu0 %v446
  %551 = vmatpush.bf16.msra.mxu0 %v445
  %552 = vmatpush.bf16.msra.mxu0 %v444
  %553 = vmatpush.bf16.msra.mxu0 %v443
  %554 = vmatpush.bf16.msra.mxu0 %v442
  %555 = vmatmul.bf16.gmra.mxu0 %v243
  %v556 = vpop.f32.mrf.mxu0
  %v557 = vadd.f32 %v508, %v556
  %v558 = vpop.f32.mrf.mxu0
  %v559 = vadd.f32 %v510, %v558
  %560 = vmatmul.bf16.gmra.mxu0 %v247
  %v561 = vpop.f32.mrf.mxu0
  %v562 = vadd.f32 %v513, %v561
  %v563 = vpop.f32.mrf.mxu0
  %v564 = vadd.f32 %v515, %v563
  %565 = vmatmul.bf16.gmra.mxu0 %v251
  %v566 = vpop.f32.mrf.mxu0
  %v567 = vadd.f32 %v518, %v566
  %v568 = vpop.f32.mrf.mxu0
  %v569 = vadd.f32 %v520, %v568
  %570 = vmatmul.bf16.gmra.mxu0 %v255
  %v571 = vpop.f32.mrf.mxu0
  %v572 = vadd.f32 %v523, %v571
  %v573 = vpop.f32.mrf.mxu0
  %v574 = vadd.f32 %v525, %v573
  %575 = vmatmul.bf16.gmra.mxu0 %v259
  %v576 = vpop.f32.mrf.mxu0
  %v577 = vadd.f32 %v528, %v576
  %v578 = vpop.f32.mrf.mxu0
  %v579 = vadd.f32 %v530, %v578
  %580 = vmatmul.bf16.gmra.mxu0 %v263
  %v581 = vpop.f32.mrf.mxu0
  %v582 = vadd.f32 %v533, %v581
  %v583 = vpop.f32.mrf.mxu0
  %v584 = vadd.f32 %v535, %v583
  %585 = vmatmul.bf16.gmra.mxu0 %v267
  %v586 = vpop.f32.mrf.mxu0
  %v587 = vadd.f32 %v538, %v586
  %v588 = vpop.f32.mrf.mxu0
  %v589 = vadd.f32 %v540, %v588
  %590 = vmatmul.bf16.gmra.mxu0 %v271
  %v591 = vpop.f32.mrf.mxu0
  %v592 = vadd.f32 %v543, %v591
  %v593 = vpop.f32.mrf.mxu0
  %v594 = vadd.f32 %v545, %v593
  %595 = vdwg.mxu0
  %596 = vmatpush.bf16.msra.mxu0 %v457
  %597 = vmatpush.bf16.msra.mxu0 %v456
  %598 = vmatpush.bf16.msra.mxu0 %v455
  %599 = vmatpush.bf16.msra.mxu0 %v454
  %600 = vmatpush.bf16.msra.mxu0 %v453
  %601 = vmatpush.bf16.msra.mxu0 %v452
  %602 = vmatpush.bf16.msra.mxu0 %v451
  %603 = vmatpush.bf16.msra.mxu0 %v450
  %604 = vmatmul.bf16.gmra.mxu0 %v244
  %v605 = vpop.f32.mrf.mxu0
  %v606 = vadd.f32 %v557, %v605
  %v607 = vpop.f32.mrf.mxu0
  %v608 = vadd.f32 %v559, %v607
  %609 = vmatmul.bf16.gmra.mxu0 %v248
  %v610 = vpop.f32.mrf.mxu0
  %v611 = vadd.f32 %v562, %v610
  %v612 = vpop.f32.mrf.mxu0
  %v613 = vadd.f32 %v564, %v612
  %614 = vmatmul.bf16.gmra.mxu0 %v252
  %v615 = vpop.f32.mrf.mxu0
  %v616 = vadd.f32 %v567, %v615
  %v617 = vpop.f32.mrf.mxu0
  %v618 = vadd.f32 %v569, %v617
  %619 = vmatmul.bf16.gmra.mxu0 %v256
  %v620 = vpop.f32.mrf.mxu0
  %v621 = vadd.f32 %v572, %v620
  %v622 = vpop.f32.mrf.mxu0
  %v623 = vadd.f32 %v574, %v622
  %624 = vmatmul.bf16.gmra.mxu0 %v260
  %v625 = vpop.f32.mrf.mxu0
  %v626 = vadd.f32 %v577, %v625
  %v627 = vpop.f32.mrf.mxu0
  %v628 = vadd.f32 %v579, %v627
  %629 = vmatmul.bf16.gmra.mxu0 %v264
  %v630 = vpop.f32.mrf.mxu0
  %v631 = vadd.f32 %v582, %v630
  %v632 = vpop.f32.mrf.mxu0
  %v633 = vadd.f32 %v584, %v632
  %634 = vmatmul.bf16.gmra.mxu0 %v268
  %v635 = vpop.f32.mrf.mxu0
  %v636 = vadd.f32 %v587, %v635
  %v637 = vpop.f32.mrf.mxu0
  %v638 = vadd.f32 %v589, %v637
  %639 = vmatmul.bf16.gmra.mxu0 %v272
  %v640 = vpop.f32.mrf.mxu0
  %v641 = vadd.f32 %v592, %v640
  %v642 = vpop.f32.mrf.mxu0
  %v643 = vadd.f32 %v594, %v642
  %644 = vdwg.mxu0
  %645 = vmatpush.bf16.msra.mxu0 %v465
  %646 = vmatpush.bf16.msra.mxu0 %v464
  %647 = vmatpush.bf16.msra.mxu0 %v463
  %648 = vmatpush.bf16.msra.mxu0 %v462
  %649 = vmatpush.bf16.msra.mxu0 %v461
  %650 = vmatpush.bf16.msra.mxu0 %v460
  %651 = vmatpush.bf16.msra.mxu0 %v459
  %652 = vmatpush.bf16.msra.mxu0 %v458
  %653 = vmatmul.bf16.gmra.mxu0 %v245
  %v654 = vpop.f32.mrf.mxu0
  %v655 = vadd.f32 %v606, %v654
  %v656 = vpop.f32.mrf.mxu0
  %v657 = vadd.f32 %v608, %v656
  %658 = vmatmul.bf16.gmra.mxu0 %v249
  %v659 = vpop.f32.mrf.mxu0
  %v660 = vadd.f32 %v611, %v659
  %v661 = vpop.f32.mrf.mxu0
  %v662 = vadd.f32 %v613, %v661
  %663 = vmatmul.bf16.gmra.mxu0 %v253
  %v664 = vpop.f32.mrf.mxu0
  %v665 = vadd.f32 %v616, %v664
  %v666 = vpop.f32.mrf.mxu0
  %v667 = vadd.f32 %v618, %v666
  %668 = vmatmul.bf16.gmra.mxu0 %v257
  %v669 = vpop.f32.mrf.mxu0
  %v670 = vadd.f32 %v621, %v669
  %v671 = vpop.f32.mrf.mxu0
  %v672 = vadd.f32 %v623, %v671
  %673 = vmatmul.bf16.gmra.mxu0 %v261
  %v674 = vpop.f32.mrf.mxu0
  %v675 = vadd.f32 %v626, %v674
  %v676 = vpop.f32.mrf.mxu0
  %v677 = vadd.f32 %v628, %v676
  %678 = vmatmul.bf16.gmra.mxu0 %v265
  %v679 = vpop.f32.mrf.mxu0
  %v680 = vadd.f32 %v631, %v679
  %v681 = vpop.f32.mrf.mxu0
  %v682 = vadd.f32 %v633, %v681
  %683 = vmatmul.bf16.gmra.mxu0 %v269
  %v684 = vpop.f32.mrf.mxu0
  %v685 = vadd.f32 %v636, %v684
  %v686 = vpop.f32.mrf.mxu0
  %v687 = vadd.f32 %v638, %v686
  %688 = vmatmul.bf16.gmra.mxu0 %v273
  %v689 = vpop.f32.mrf.mxu0
  %v690 = vadd.f32 %v641, %v689
  %v691 = vpop.f32.mrf.mxu0
  %v692 = vadd.f32 %v643, %v691
  %693 = vdwg.mxu0
  %v694 = vadd.f32 %v34, %v655
  %v695 = vadd.f32 %v35, %v657
  %v696 = vadd.f32 %v36, %v660
  %v697 = vadd.f32 %v37, %v662
  %v698 = vadd.f32 %v38, %v665
  %v699 = vadd.f32 %v39, %v667
  %v700 = vadd.f32 %v40, %v670
  %v701 = vadd.f32 %v41, %v672
  %v702 = vadd.f32 %v42, %v675
  %v703 = vadd.f32 %v43, %v677
  %v704 = vadd.f32 %v44, %v680
  %v705 = vadd.f32 %v45, %v682
  %v706 = vadd.f32 %v46, %v685
  %v707 = vadd.f32 %v47, %v687
  %v708 = vadd.f32 %v48, %v690
  %v709 = vadd.f32 %v49, %v692
  %710 = vst [vmem:[#allocation2] sm:$0xff] %v694
  %711 = vst [vmem:[#allocation2 + $0x8] sm:$0xff] %v695
  %712 = vst [vmem:[#allocation2 + $0x10] sm:$0xff] %v696
  %713 = vst [vmem:[#allocation2 + $0x18] sm:$0xff] %v697
  %714 = vst [vmem:[#allocation2 + $0x20] sm:$0xff] %v698
  %715 = vst [vmem:[#allocation2 + $0x28] sm:$0xff] %v699
  %716 = vst [vmem:[#allocation2 + $0x30] sm:$0xff] %v700
  %717 = vst [vmem:[#allocation2 + $0x38] sm:$0xff] %v701
  %718 = vst [vmem:[#allocation2 + $0x40] sm:$0xff] %v702
  %719 = vst [vmem:[#allocation2 + $0x48] sm:$0xff] %v703
  %720 = vst [vmem:[#allocation2 + $0x50] sm:$0xff] %v704
  %721 = vst [vmem:[#allocation2 + $0x58] sm:$0xff] %v705
  %722 = vst [vmem:[#allocation2 + $0x60] sm:$0xff] %v706
  %723 = vst [vmem:[#allocation2 + $0x68] sm:$0xff] %v707
  %724 = vst [vmem:[#allocation2 + $0x70] sm:$0xff] %v708
  %725 = vst [vmem:[#allocation2 + $0x78] sm:$0xff] %v709
  // Predicated region
  $region18: #{generator_forward.94} parent=0 // pred_check
    %p726 = pneg %p14
  $region19: #{generator_forward.94} parent=0 // pred_check_branch
    %728 = sbr.rel (%p726) target = $region21
  $region20: #{generator_forward.94} parent=0 // pred_region
    %v729 = vld [vmem:[#allocation2] sm:$0xff]
    %v730 = vld [vmem:[#allocation2 + $0x8] sm:$0xff]
    %v731 = vld [vmem:[#allocation2 + $0x10] sm:$0xff]
    %v732 = vld [vmem:[#allocation2 + $0x18] sm:$0xff]
    %v733 = vld [vmem:[#allocation2 + $0x20] sm:$0xff]
    %v734 = vld [vmem:[#allocation2 + $0x28] sm:$0xff]
    %v735 = vld [vmem:[#allocation2 + $0x30] sm:$0xff]
    %v736 = vld [vmem:[#allocation2 + $0x38] sm:$0xff]
    %v737 = vld [vmem:[#allocation2 + $0x40] sm:$0xff]
    %v738 = vld [vmem:[#allocation2 + $0x48] sm:$0xff]
    %v739 = vld [vmem:[#allocation2 + $0x50] sm:$0xff]
    %v740 = vld [vmem:[#allocation2 + $0x58] sm:$0xff]
    %v741 = vld [vmem:[#allocation2 + $0x60] sm:$0xff]
    %v742 = vld [vmem:[#allocation2 + $0x68] sm:$0xff]
    %v743 = vld [vmem:[#allocation2 + $0x70] sm:$0xff]
    %v744 = vld [vmem:[#allocation2 + $0x78] sm:$0xff]
    %v745 = vld [vmem:[%s2] sm:$0x1]
    %v747 = vperm.slane %v745, 0
    %v749 = vadd.f32 %v729, %v747
    %v750 = vadd.f32 %v730, %v747
    %v751 = vadd.f32 %v731, %v747
    %v752 = vadd.f32 %v732, %v747
    %v753 = vadd.f32 %v733, %v747
    %v754 = vadd.f32 %v734, %v747
    %v755 = vadd.f32 %v735, %v747
    %v756 = vadd.f32 %v736, %v747
    %v757 = vadd.f32 %v737, %v747
    %v758 = vadd.f32 %v738, %v747
    %v759 = vadd.f32 %v739, %v747
    %v760 = vadd.f32 %v740, %v747
    %v761 = vadd.f32 %v741, %v747
    %v762 = vadd.f32 %v742, %v747
    %v763 = vadd.f32 %v743, %v747
    %v764 = vadd.f32 %v744, %v747
    %765 = vst [vmem:[%s3] sm:$0xff] %v749
    %766 = vst [vmem:[%s3 + $0x8] sm:$0xff] %v750
    %767 = vst [vmem:[%s3 + $0x10] sm:$0xff] %v751
    %768 = vst [vmem:[%s3 + $0x18] sm:$0xff] %v752
    %769 = vst [vmem:[%s3 + $0x20] sm:$0xff] %v753
    %770 = vst [vmem:[%s3 + $0x28] sm:$0xff] %v754
    %771 = vst [vmem:[%s3 + $0x30] sm:$0xff] %v755
    %772 = vst [vmem:[%s3 + $0x38] sm:$0xff] %v756
    %773 = vst [vmem:[%s3 + $0x40] sm:$0xff] %v757
    %774 = vst [vmem:[%s3 + $0x48] sm:$0xff] %v758
    %775 = vst [vmem:[%s3 + $0x50] sm:$0xff] %v759
    %776 = vst [vmem:[%s3 + $0x58] sm:$0xff] %v760
    %777 = vst [vmem:[%s3 + $0x60] sm:$0xff] %v761
    %778 = vst [vmem:[%s3 + $0x68] sm:$0xff] %v762
    %779 = vst [vmem:[%s3 + $0x70] sm:$0xff] %v763
    %780 = vst [vmem:[%s3 + $0x78] sm:$0xff] %v764
  $region21: #{generator_forward.94} parent=0 // pred_fallthru
    _
  // Predicated region
  $region22: #{generator_forward.94} parent=0 // pred_check
    _
  $region23: #{generator_forward.94} parent=0 // pred_check_branch
    %782 = sbr.rel (0) target = $region25
  $region24: #{generator_forward.94} parent=0 // pred_region
    _
  $region25: #{generator_forward.94} parent=0 // pred_fallthru
    _
  // Predicated region
  $region26: #{generator_forward.94} parent=0 // pred_check
    _
  $region27: #{generator_forward.94} parent=0 // pred_check_branch
    %784 = sbr.rel (0) target = $region29
  $region28: #{generator_forward.94} parent=0 // pred_region
    _
  $region29: #{generator_forward.94} parent=0 // pred_fallthru
    _

// kernel: generator_forward.95
$region0: #{generator_forward.95}
  #allocation0 [shape = 'u32[]', space=smem, size = 0x4, offset = 0x4, fixed_abs, tag = 'smem constant byte address 0x4 - core index']
  #allocation1 [shape = 'u32[72,128]{1,0:T(1,128)}', space=vmem, size = 0x9000, scoped, tag = 'internal scratch']
  #allocation2 [shape = 'f32[256,128]{1,0:T(8,128)}', space=vmem, size = 0x20000, scoped, tag = 'scratch operand']
  %s0 = inlined_call_operand.vmem [shape: bf16[512,3200], index: 0, kind: input, shape index: {}]
  %s1 = inlined_call_operand.vmem [shape: bf16[3200,128], index: 1, kind: input, shape index: {}]
  %s2 = inlined_call_operand.vmem [shape: f32[1,128], index: 2, kind: input, shape index: {}]
  %s3 = inlined_call_operand.vmem [shape: f32[512,128], index: 3, kind: output, shape index: {}]
  %s4 = sld [smem:[#allocation0]]
  $region94: #{generator_forward.95} parent=0
    _
  %s6 = ssub.s32 1, %s4
  %s7 = scalar_select 0, %s6, %s4
  $region1: #{generator_forward.95} parent=0
    #allocation3 [shape = 'u8[131072]{0}', space=vmem, size = 0x20000, scoped, tag = 'input window, operand 0']
    loop: start=0, step=1, limit=52
    $region2: #{generator_forward.95} parent=1 // loop_pre_header
      _
    $region3: #{generator_forward.95} parent=1 // loop_header
      %s9 = sphi 0, %s13
      %p10 = scmp.ge.s32.totalorder %s9, 52
      %s16 = sphi 0, %s35
      %s17 = sphi 0, %s31
      %s18 = sphi 0, %s27
      %s19 = sphi 0, %s16
      %s20 = sphi 0, %s17
      %s21 = sphi 0, %s18
      %s22 = sphi 0, %s19
      %s23 = sphi 0, %s20
      %s24 = sphi 0, %s21
      %s40 = sphi 0, %s42
      %s43 = sphi 0, %s40
      %s44 = sphi 0, %s43
      %s60 = sphi 0, %s44
      %s68 = sphi 0, %s70
      %s71 = sphi 0, %s68
      %s72 = sphi 0, %s71
      %s88 = sphi 0, %s72
      %s94 = sphi 0, %s96
      %s97 = sphi 0, %s94
      %s98 = sphi 0, %s97
      %s114 = sphi 0, %s98
      %s122 = sphi 0, %s124
      %s125 = sphi 0, %s122
      %s126 = sphi 0, %s125
      %s142 = sphi 0, %s126
    $region4: #{generator_forward.95} parent=1 // loop_header_branch
      %12 = sbr.rel (%p10) target = $region8
    $region5: #{generator_forward.95} parent=1 // loop_body
      %s14 = ssub.s32 %s9, 1
      %s15 = ssub.s32 %s9, 2
      %s25 = sadd.s32 1, %s18
      %p26 = scmp.ge.s32.totalorder %s25, 25
      %s27 = scalar_select %p26, 0, %s25
      %s28 = sadd.s32 1, %s17
      %s29 = scalar_select %p26, %s28, %s17
      %p30 = scmp.ge.s32.totalorder %s29, 1
      %s31 = scalar_select %p30, 0, %s29
      %s32 = sadd.s32 1, %s16
      %s33 = scalar_select %p30, %s32, %s16
      %p34 = scmp.ge.s32.totalorder %s33, 2
      %s35 = scalar_select %p34, 0, %s33
      %s36 = ssub.s32 %s16, %s35
      %s37 = ssub.s32 %s18, %s27
      %s38 = sor.u32 %s36, %s37
      %p39 = scmp.eq.s32.totalorder %s38, 0
      %s41 = sadd.s32 %s40, 1
      %s42 = scalar_select %p39, %s40, %s41
      %p45 = pneg %p39
      %p46 = scmp.eq.s32.totalorder %s9, 49
      %p47 = por %p45, %p46
      %p48 = scmp.ne.s32.totalorder %s40, %s43
      %p49 = scmp.eq.s32.totalorder %s9, 0
      %p50 = por %p48, %p49
      %p51 = scmp.ne.s32.totalorder %s40, %s43
      %p52 = scmp.eq.s32.totalorder %s14, 49
      %p53 = por %p51, %p52
      %p54 = scmp.ne.s32.totalorder %s43, %s44
      %p55 = scmp.eq.s32.totalorder %s14, 0
      %p56 = por %p54, %p55
      %p57 = scmp.ne.s32.totalorder %s43, %s44
      %p58 = scmp.eq.s32.totalorder %s15, 49
      %p59 = por %p57, %p58
      %p61 = scmp.ne.s32.totalorder %s44, %s60
      %p62 = scmp.eq.s32.totalorder %s15, 0
      %p63 = por %p61, %p62
      %s64 = ssub.s32 %s18, %s27
      %s65 = ssub.s32 %s17, %s31
      %s66 = sor.u32 %s64, %s65
      %p67 = scmp.eq.s32.totalorder %s66, 0
      %s69 = sadd.s32 %s68, 1
      %s70 = scalar_select %p67, %s68, %s69
      %p73 = pneg %p67
      %p74 = scmp.eq.s32.totalorder %s9, 49
      %p75 = por %p73, %p74
      %p76 = scmp.ne.s32.totalorder %s68, %s71
      %p77 = scmp.eq.s32.totalorder %s9, 0
      %p78 = por %p76, %p77
      %p79 = scmp.ne.s32.totalorder %s68, %s71
      %p80 = scmp.eq.s32.totalorder %s14, 49
      %p81 = por %p79, %p80
      %p82 = scmp.ne.s32.totalorder %s71, %s72
      %p83 = scmp.eq.s32.totalorder %s14, 0
      %p84 = por %p82, %p83
      %p85 = scmp.ne.s32.totalorder %s71, %s72
      %p86 = scmp.eq.s32.totalorder %s15, 49
      %p87 = por %p85, %p86
      %p89 = scmp.ne.s32.totalorder %s72, %s88
      %p90 = scmp.eq.s32.totalorder %s15, 0
      %p91 = por %p89, %p90
      %s92 = ssub.s32 %s17, %s31
      %p93 = scmp.eq.s32.totalorder %s92, 0
      %s95 = sadd.s32 %s94, 1
      %s96 = scalar_select %p93, %s94, %s95
      %p99 = pneg %p93
      %p100 = scmp.eq.s32.totalorder %s9, 49
      %p101 = por %p99, %p100
      %p102 = scmp.ne.s32.totalorder %s94, %s97
      %p103 = scmp.eq.s32.totalorder %s9, 0
      %p104 = por %p102, %p103
      %p105 = scmp.ne.s32.totalorder %s94, %s97
      %p106 = scmp.eq.s32.totalorder %s14, 49
      %p107 = por %p105, %p106
      %p108 = scmp.ne.s32.totalorder %s97, %s98
      %p109 = scmp.eq.s32.totalorder %s14, 0
      %p110 = por %p108, %p109
      %p111 = scmp.ne.s32.totalorder %s97, %s98
      %p112 = scmp.eq.s32.totalorder %s15, 49
      %p113 = por %p111, %p112
      %p115 = scmp.ne.s32.totalorder %s98, %s114
      %p116 = scmp.eq.s32.totalorder %s15, 0
      %p117 = por %p115, %p116
      %s118 = ssub.s32 %s16, %s35
      %s119 = ssub.s32 %s17, %s31
      %s120 = sor.u32 %s118, %s119
      %p121 = scmp.eq.s32.totalorder %s120, 0
      %s123 = sadd.s32 %s122, 1
      %s124 = scalar_select %p121, %s122, %s123
      %p127 = pneg %p121
      %p128 = scmp.eq.s32.totalorder %s9, 49
      %p129 = por %p127, %p128
      %p130 = scmp.ne.s32.totalorder %s122, %s125
      %p131 = scmp.eq.s32.totalorder %s9, 0
      %p132 = por %p130, %p131
      %p133 = scmp.ne.s32.totalorder %s122, %s125
      %p134 = scmp.eq.s32.totalorder %s14, 49
      %p135 = por %p133, %p134
      %p136 = scmp.ne.s32.totalorder %s125, %s126
      %p137 = scmp.eq.s32.totalorder %s14, 0
      %p138 = por %p136, %p137
      %p139 = scmp.ne.s32.totalorder %s125, %s126
      %p140 = scmp.eq.s32.totalorder %s15, 49
      %p141 = por %p139, %p140
      %p143 = scmp.ne.s32.totalorder %s126, %s142
      %p144 = scmp.eq.s32.totalorder %s15, 0
      %p145 = por %p143, %p144
      %p146 = scmp.le.s32.totalorder 1, %s9
      %p147 = scmp.lt.s32.totalorder %s9, 51
      %p148 = pnand %p146, %p147
      %p149 = pneg %p148
      // Predicated region
      $region9: #{generator_forward.95} parent=5 // pred_check
        _
      $region10: #{generator_forward.95} parent=5 // pred_check_branch
        %151 = sbr.rel (%p148) target = $region12
      $region11: #{generator_forward.95} parent=5 // pred_region
        %s152 = ssub.s32 %s9, 1
        // Predicated region
        $region13: #{generator_forward.95} parent=11 // pred_check
          %p153 = pneg %p110
        $region14: #{generator_forward.95} parent=11 // pred_check_branch
          %155 = sbr.rel (%p153) target = $region16
        $region15: #{generator_forward.95} parent=11 // pred_region
          %p156 = scmp.lt.s32.totalorder %s20, 0
          %s157 = scalar_select %p156, %s20, 0
          %s158 = scalar_lea.vmem %s2, %s157
        $region16: #{generator_forward.95} parent=11 // pred_fallthru
          _
      $region12: #{generator_forward.95} parent=5 // pred_fallthru
        _
      %p159 = scmp.lt.s32.totalorder %s9, 50
      // Predicated region
      $region17: #{generator_forward.95} parent=5 // pred_check
        %p160 = pneg %p159
      $region18: #{generator_forward.95} parent=5 // pred_check_branch
        %162 = sbr.rel (%p160) target = $region20
      $region19: #{generator_forward.95} parent=5 // pred_region
        // Predicated region
        $region21: #{generator_forward.95} parent=19 // pred_check
          %p163 = pneg %p50
        $region22: #{generator_forward.95} parent=19 // pred_check_branch
          %165 = sbr.rel (%p163) target = $region24
        $region23: #{generator_forward.95} parent=19 // pred_region
          %s166 = sand.u32 %s40, 1
          %s167 = sand.u32 %s40, 1
          %s168 = smul.addr %s167, 128
          %s169 = scalar_lea.vmem [#allocation3], %s168
          %s170 = smul.u32 32, %s16
          %s171 = smul.addr %s170, 25
          %s172 = sadd.s32 %s18, %s171
          %s173 = smul.addr %s172, 4
          %s174 = scalar_lea.vmem %s0, %s173
          // Predicated region
          $region25: #{generator_forward.95} parent=23 // pred_check
            _
          $region26: #{generator_forward.95} parent=23 // pred_check_branch
            %176 = sbr.rel (0) target = $region28
          $region27: #{generator_forward.95} parent=23 // pred_region
            // Predicated region
            $region29: #{generator_forward.95} parent=27 // pred_check
              _
            $region30: #{generator_forward.95} parent=27 // pred_check_branch
              %178 = sbr.rel target = $region32
            $region31: #{generator_forward.95} parent=27 // pred_region
              // Predicated region
              $region44: #{generator_forward.95} parent=31 // pred_check
                _
              $region45: #{generator_forward.95} parent=31 // pred_check_branch
                %256 = sbr.rel (0) target = $region47
              $region46: #{generator_forward.95} parent=31 // pred_region
                loop: start=0, step=1, limit=1
                $region48: #{generator_forward.95} parent=46 // loop_pre_header
                  _
                $region49: #{generator_forward.95} parent=46 // loop_header
                  %s258 = sphi 0, %s262
                  %p259 = scmp.ge.s32.totalorder %s258, 1
                  %s263 = sphi %s174, %s174
                  %s264 = sphi %s169, %s169
                $region50: #{generator_forward.95} parent=46 // loop_header_branch
                  %261 = sbr.rel (%p259) target = $region54
                $region51: #{generator_forward.95} parent=46 // loop_body
                  _
                $region52: #{generator_forward.95} parent=46 // loop_footer
                  %s262 = sadd.s32 1, %s258
                $region53: #{generator_forward.95} parent=46 // loop_footer_branch
                  %257 = sbr.rel target = $region49
                $region54: #{generator_forward.95} parent=46 // loop_exit
                  _
                %s266 = ssub.s32 16, 1
                loop: start=0, step=1, limit=1
                $region55: #{generator_forward.95} parent=46 // loop_pre_header
                  _
                $region56: #{generator_forward.95} parent=46 // loop_header
                  %s268 = sphi 0, %s272
                  %p269 = scmp.ge.s32.totalorder %s268, 1
                  %s273 = sphi %s174, %s174
                  %s274 = sphi %s169, %s169
                $region57: #{generator_forward.95} parent=46 // loop_header_branch
                  %271 = sbr.rel (%p269) target = $region61
                $region58: #{generator_forward.95} parent=46 // loop_body
                  %v275 = vld [vmem:[%s273] sm:%s266]
                  %276 = vst [vmem:[%s274] sm:%s266] %v275
                  %v277 = vld [vmem:[%s273 + $0x64] sm:%s266]
                  %278 = vst [vmem:[%s274 + $0x4] sm:%s266] %v277
                  %v279 = vld [vmem:[%s273 + $0xc8] sm:%s266]
                  %280 = vst [vmem:[%s274 + $0x8] sm:%s266] %v279
                  %v281 = vld [vmem:[%s273 + $0x12c] sm:%s266]
                  %282 = vst [vmem:[%s274 + $0xc] sm:%s266] %v281
                  %v283 = vld [vmem:[%s273 + $0x190] sm:%s266]
                  %284 = vst [vmem:[%s274 + $0x10] sm:%s266] %v283
                  %v285 = vld [vmem:[%s273 + $0x1f4] sm:%s266]
                  %286 = vst [vmem:[%s274 + $0x14] sm:%s266] %v285
                  %v287 = vld [vmem:[%s273 + $0x258] sm:%s266]
                  %288 = vst [vmem:[%s274 + $0x18] sm:%s266] %v287
                  %v289 = vld [vmem:[%s273 + $0x2bc] sm:%s266]
                  %290 = vst [vmem:[%s274 + $0x1c] sm:%s266] %v289
                  %v291 = vld [vmem:[%s273 + $0x320] sm:%s266]
                  %292 = vst [vmem:[%s274 + $0x20] sm:%s266] %v291
                  %v293 = vld [vmem:[%s273 + $0x384] sm:%s266]
                  %294 = vst [vmem:[%s274 + $0x24] sm:%s266] %v293
                  %v295 = vld [vmem:[%s273 + $0x3e8] sm:%s266]
                  %296 = vst [vmem:[%s274 + $0x28] sm:%s266] %v295
                  %v297 = vld [vmem:[%s273 + $0x44c] sm:%s266]
                  %298 = vst [vmem:[%s274 + $0x2c] sm:%s266] %v297
                  %v299 = vld [vmem:[%s273 + $0x4b0] sm:%s266]
                  %300 = vst [vmem:[%s274 + $0x30] sm:%s266] %v299
                  %v301 = vld [vmem:[%s273 + $0x514] sm:%s266]
                  %302 = vst [vmem:[%s274 + $0x34] sm:%s266] %v301
                  %v303 = vld [vmem:[%s273 + $0x578] sm:%s266]
                  %304 = vst [vmem:[%s274 + $0x38] sm:%s266] %v303
                  %v305 = vld [vmem:[%s273 + $0x5dc] sm:%s266]
                  %306 = vst [vmem:[%s274 + $0x3c] sm:%s266] %v305
                  %v307 = vld [vmem:[%s273 + $0x640] sm:%s266]
                  %308 = vst [vmem:[%s274 + $0x40] sm:%s266] %v307
                  %v309 = vld [vmem:[%s273 + $0x6a4] sm:%s266]
                  %310 = vst [vmem:[%s274 + $0x44] sm:%s266] %v309
                  %v311 = vld [vmem:[%s273 + $0x708] sm:%s266]
                  %312 = vst [vmem:[%s274 + $0x48] sm:%s266] %v311
                  %v313 = vld [vmem:[%s273 + $0x76c] sm:%s266]
                  %314 = vst [vmem:[%s274 + $0x4c] sm:%s266] %v313
                  %v315 = vld [vmem:[%s273 + $0x7d0] sm:%s266]
                  %316 = vst [vmem:[%s274 + $0x50] sm:%s266] %v315
                  %v317 = vld [vmem:[%s273 + $0x834] sm:%s266]
                  %318 = vst [vmem:[%s274 + $0x54] sm:%s266] %v317
                  %v319 = vld [vmem:[%s273 + $0x898] sm:%s266]
                  %320 = vst [vmem:[%s274 + $0x58] sm:%s266] %v319
                  %v321 = vld [vmem:[%s273 + $0x8fc] sm:%s266]
                  %322 = vst [vmem:[%s274 + $0x5c] sm:%s266] %v321
                  %v323 = vld [vmem:[%s273 + $0x960] sm:%s266]
                  %324 = vst [vmem:[%s274 + $0x60] sm:%s266] %v323
                  %v325 = vld [vmem:[%s273 + $0x9c4] sm:%s266]
                  %326 = vst [vmem:[%s274 + $0x64] sm:%s266] %v325
                  %v327 = vld [vmem:[%s273 + $0xa28] sm:%s266]
                  %328 = vst [vmem:[%s274 + $0x68] sm:%s266] %v327
                  %v329 = vld [vmem:[%s273 + $0xa8c] sm:%s266]
                  %330 = vst [vmem:[%s274 + $0x6c] sm:%s266] %v329
                  %v331 = vld [vmem:[%s273 + $0xaf0] sm:%s266]
                  %332 = vst [vmem:[%s274 + $0x70] sm:%s266] %v331
                  %v333 = vld [vmem:[%s273 + $0xb54] sm:%s266]
                  %334 = vst [vmem:[%s274 + $0x74] sm:%s266] %v333
                  %v335 = vld [vmem:[%s273 + $0xbb8] sm:%s266]
                  %336 = vst [vmem:[%s274 + $0x78] sm:%s266] %v335
                  %v337 = vld [vmem:[%s273 + $0xc1c] sm:%s266]
                  %338 = vst [vmem:[%s274 + $0x7c] sm:%s266] %v337
                $region59: #{generator_forward.95} parent=46 // loop_footer
                  %s272 = sadd.s32 1, %s268
                $region60: #{generator_forward.95} parent=46 // loop_footer_branch
                  %267 = sbr.rel target = $region56
                $region61: #{generator_forward.95} parent=46 // loop_exit
                  _
              $region47: #{generator_forward.95} parent=31 // pred_fallthru
                _
            $region32: #{generator_forward.95} parent=27 // pred_fallthru
              _
            // Predicated region
            $region33: #{generator_forward.95} parent=27 // pred_check
              _
            $region34: #{generator_forward.95} parent=27 // pred_check_branch
              %180 = sbr.rel (0) target = $region36
            $region35: #{generator_forward.95} parent=27 // pred_region
              %s182 = ssub.s32 16, 1
              loop: start=0, step=1, limit=1
              $region37: #{generator_forward.95} parent=35 // loop_pre_header
                _
              $region38: #{generator_forward.95} parent=35 // loop_header
                %s184 = sphi 0, %s188
                %p185 = scmp.ge.s32.totalorder %s184, 1
                %s189 = sphi %s174, %s174
                %s190 = sphi %s169, %s169
              $region39: #{generator_forward.95} parent=35 // loop_header_branch
                %187 = sbr.rel (%p185) target = $region43
              $region40: #{generator_forward.95} parent=35 // loop_body
                %v191 = vld [vmem:[%s189] sm:%s182]
                %192 = vst [vmem:[%s190] sm:%s182] %v191
                %v193 = vld [vmem:[%s189 + $0x64] sm:%s182]
                %194 = vst [vmem:[%s190 + $0x4] sm:%s182] %v193
                %v195 = vld [vmem:[%s189 + $0xc8] sm:%s182]
                %196 = vst [vmem:[%s190 + $0x8] sm:%s182] %v195
                %v197 = vld [vmem:[%s189 + $0x12c] sm:%s182]
                %198 = vst [vmem:[%s190 + $0xc] sm:%s182] %v197
                %v199 = vld [vmem:[%s189 + $0x190] sm:%s182]
                %200 = vst [vmem:[%s190 + $0x10] sm:%s182] %v199
                %v201 = vld [vmem:[%s189 + $0x1f4] sm:%s182]
                %202 = vst [vmem:[%s190 + $0x14] sm:%s182] %v201
                %v203 = vld [vmem:[%s189 + $0x258] sm:%s182]
                %204 = vst [vmem:[%s190 + $0x18] sm:%s182] %v203
                %v205 = vld [vmem:[%s189 + $0x2bc] sm:%s182]
                %206 = vst [vmem:[%s190 + $0x1c] sm:%s182] %v205
                %v207 = vld [vmem:[%s189 + $0x320] sm:%s182]
                %208 = vst [vmem:[%s190 + $0x20] sm:%s182] %v207
                %v209 = vld [vmem:[%s189 + $0x384] sm:%s182]
                %210 = vst [vmem:[%s190 + $0x24] sm:%s182] %v209
                %v211 = vld [vmem:[%s189 + $0x3e8] sm:%s182]
                %212 = vst [vmem:[%s190 + $0x28] sm:%s182] %v211
                %v213 = vld [vmem:[%s189 + $0x44c] sm:%s182]
                %214 = vst [vmem:[%s190 + $0x2c] sm:%s182] %v213
                %v215 = vld [vmem:[%s189 + $0x4b0] sm:%s182]
                %216 = vst [vmem:[%s190 + $0x30] sm:%s182] %v215
                %v217 = vld [vmem:[%s189 + $0x514] sm:%s182]
                %218 = vst [vmem:[%s190 + $0x34] sm:%s182] %v217
                %v219 = vld [vmem:[%s189 + $0x578] sm:%s182]
                %220 = vst [vmem:[%s190 + $0x38] sm:%s182] %v219
                %v221 = vld [vmem:[%s189 + $0x5dc] sm:%s182]
                %222 = vst [vmem:[%s190 + $0x3c] sm:%s182] %v221
                %v223 = vld [vmem:[%s189 + $0x640] sm:%s182]
                %224 = vst [vmem:[%s190 + $0x40] sm:%s182] %v223
                %v225 = vld [vmem:[%s189 + $0x6a4] sm:%s182]
                %226 = vst [vmem:[%s190 + $0x44] sm:%s182] %v225
                %v227 = vld [vmem:[%s189 + $0x708] sm:%s182]
                %228 = vst [vmem:[%s190 + $0x48] sm:%s182] %v227
                %v229 = vld [vmem:[%s189 + $0x76c] sm:%s182]
                %230 = vst [vmem:[%s190 + $0x4c] sm:%s182] %v229
                %v231 = vld [vmem:[%s189 + $0x7d0] sm:%s182]
                %232 = vst [vmem:[%s190 + $0x50] sm:%s182] %v231
                %v233 = vld [vmem:[%s189 + $0x834] sm:%s182]
                %234 = vst [vmem:[%s190 + $0x54] sm:%s182] %v233
                %v235 = vld [vmem:[%s189 + $0x898] sm:%s182]
                %236 = vst [vmem:[%s190 + $0x58] sm:%s182] %v235
                %v237 = vld [vmem:[%s189 + $0x8fc] sm:%s182]
                %238 = vst [vmem:[%s190 + $0x5c] sm:%s182] %v237
                %v239 = vld [vmem:[%s189 + $0x960] sm:%s182]
                %240 = vst [vmem:[%s190 + $0x60] sm:%s182] %v239
                %v241 = vld [vmem:[%s189 + $0x9c4] sm:%s182]
                %242 = vst [vmem:[%s190 + $0x64] sm:%s182] %v241
                %v243 = vld [vmem:[%s189 + $0xa28] sm:%s182]
                %244 = vst [vmem:[%s190 + $0x68] sm:%s182] %v243
                %v245 = vld [vmem:[%s189 + $0xa8c] sm:%s182]
                %246 = vst [vmem:[%s190 + $0x6c] sm:%s182] %v245
                %v247 = vld [vmem:[%s189 + $0xaf0] sm:%s182]
                %248 = vst [vmem:[%s190 + $0x70] sm:%s182] %v247
                %v249 = vld [vmem:[%s189 + $0xb54] sm:%s182]
                %250 = vst [vmem:[%s190 + $0x74] sm:%s182] %v249
                %v251 = vld [vmem:[%s189 + $0xbb8] sm:%s182]
                %252 = vst [vmem:[%s190 + $0x78] sm:%s182] %v251
                %v253 = vld [vmem:[%s189 + $0xc1c] sm:%s182]
                %254 = vst [vmem:[%s190 + $0x7c] sm:%s182] %v253
              $region41: #{generator_forward.95} parent=35 // loop_footer
                %s188 = sadd.s32 1, %s184
              $region42: #{generator_forward.95} parent=35 // loop_footer_branch
                %183 = sbr.rel target = $region38
              $region43: #{generator_forward.95} parent=35 // loop_exit
                _
            $region36: #{generator_forward.95} parent=27 // pred_fallthru
              _
          $region28: #{generator_forward.95} parent=23 // pred_fallthru
            _
          %339 = vnop
        $region24: #{generator_forward.95} parent=19 // pred_fallthru
          _
        // Predicated region
        $region62: #{generator_forward.95} parent=19 // pred_check
          %p340 = pneg %p78
        $region63: #{generator_forward.95} parent=19 // pred_check_branch
          %342 = sbr.rel (%p340) target = $region65
        $region64: #{generator_forward.95} parent=19 // pred_region
          %s343 = smul.u32 16, %s18
          %p344 = scmp.lt.s32.totalorder %s343, 399
          %s345 = scalar_select %p344, %s343, 399
          %p346 = scmp.lt.s32.totalorder %s17, 0
          %s347 = scalar_select %p346, %s17, 0
          %s348 = sadd.s32 %s347, %s345
          %s349 = smul.addr %s348, 4
          %s350 = scalar_lea.vmem %s1, %s349
          %s351 = smul.u32 16, %s18
        $region65: #{generator_forward.95} parent=19 // pred_fallthru
          _
      $region20: #{generator_forward.95} parent=5 // pred_fallthru
        _
      %p352 = scmp.le.s32.totalorder 1, %s9
      %p353 = scmp.lt.s32.totalorder %s9, 51
      %p354 = pnand %p352, %p353
      %p355 = pneg %p354
      // Predicated region
      $region66: #{generator_forward.95} parent=5 // pred_check
        _
      $region67: #{generator_forward.95} parent=5 // pred_check_branch
        %357 = sbr.rel (%p354) target = $region69
      $region68: #{generator_forward.95} parent=5 // pred_region
        %s358 = ssub.s32 %s9, 1
        %s359 = sand.u32 %s43, 1
        %s360 = sand.u32 %s43, 1
        %s361 = smul.addr %s360, 128
        %s362 = scalar_lea.vmem [#allocation3], %s361
        // Predicated region
        $region70: #{generator_forward.95} parent=68 // pred_check
          %p363 = pneg %p56
        $region71: #{generator_forward.95} parent=68 // pred_check_branch
          %365 = sbr.rel (%p363) target = $region73
        $region72: #{generator_forward.95} parent=68 // pred_region
          _
        $region73: #{generator_forward.95} parent=68 // pred_fallthru
          _
        %s366 = sand.u32 %s43, 1
        %s367 = sand.u32 %s43, 1
        %s368 = smul.addr %s367, 128
        %s369 = scalar_lea.vmem [#allocation3], %s368
        %p370 = pneg %p56
        %p371 = pneg %p53
        %s372 = smul.u32 16, %s21
        %p373 = scmp.lt.s32.totalorder %s372, 399
        %s374 = scalar_select %p373, %s372, 399
        %p375 = scmp.lt.s32.totalorder %s20, 0
        %s376 = scalar_select %p375, %s20, 0
        %s377 = sadd.s32 %s376, %s374
        %s378 = smul.addr %s377, 4
        %s379 = scalar_lea.vmem %s1, %s378
        %p380 = pneg %p84
        %p381 = pneg %p81
        %p382 = scmp.lt.s32.totalorder %s20, 0
        %s383 = scalar_select %p382, %s20, 0
        %s384 = scalar_lea.vmem %s2, %s383
        %p385 = pneg %p110
        %p386 = pneg %p107
        %p387 = pneg %p138
        %p388 = pneg %p135
        %s389 = smul.u32 32, %s19
        %p390 = scmp.lt.s32.totalorder %s389, 63
        %s391 = scalar_select %p390, %s389, 63
        %p392 = scmp.lt.s32.totalorder %s20, 0
        %s393 = scalar_select %p392, %s20, 0
        %s394 = sadd.s32 %s393, %s391
        %s395 = smul.addr %s394, 8
        %s396 = scalar_lea.vmem %s3, %s395
        %s397 = smul.u32 32, %s19
        %s398 = smul.u32 16, %s21
        %p399 = scmp.lt.s32.totalorder %s398, 399
        %s400 = scalar_select %p399, %s398, 399
        %p401 = scmp.lt.s32.totalorder %s20, 0
        %s402 = scalar_select %p401, %s20, 0
        %s403 = sadd.s32 %s402, %s400
        %s404 = smul.addr %s403, 4
        %s405 = scalar_lea.vmem %s1, %s404
        %s406 = smul.u32 16, %s21
        %p407 = scmp.lt.s32.totalorder %s20, 0
        %s408 = scalar_select %p407, %s20, 0
        %s409 = scalar_lea.vmem %s2, %s408
        %s410 = smul.u32 32, %s19
        %p411 = scmp.lt.s32.totalorder %s410, 63
        %s412 = scalar_select %p411, %s410, 63
        %p413 = scmp.lt.s32.totalorder %s20, 0
        %s414 = scalar_select %p413, %s20, 0
        %s415 = sadd.s32 %s414, %s412
        %s416 = smul.addr %s415, 8
        %s417 = scalar_lea.vmem %s3, %s416
        %s418 = smul.u32 32, %s19
        %p419 = scmp.eq.s32.totalorder %s21, 0
        // Predicated region
        $region74: #{generator_forward.95} parent=68 // pred_check
          %p420 = pneg %p419
        $region75: #{generator_forward.95} parent=68 // pred_check_branch
          %422 = sbr.rel (%p420) target = $region77
        $region76: #{generator_forward.95} parent=68 // pred_region
          %423 = vst [vmem:[#allocation2] sm:$0xff] 0.0
          %424 = vst [vmem:[#allocation2 + $0x8] sm:$0xff] 0.0
          %425 = vst [vmem:[#allocation2 + $0x10] sm:$0xff] 0.0
          %426 = vst [vmem:[#allocation2 + $0x18] sm:$0xff] 0.0
          %427 = vst [vmem:[#allocation2 + $0x20] sm:$0xff] 0.0
          %428 = vst [vmem:[#allocation2 + $0x28] sm:$0xff] 0.0
          %429 = vst [vmem:[#allocation2 + $0x30] sm:$0xff] 0.0
          %430 = vst [vmem:[#allocation2 + $0x38] sm:$0xff] 0.0
          %431 = vst [vmem:[#allocation2 + $0x40] sm:$0xff] 0.0
          %432 = vst [vmem:[#allocation2 + $0x48] sm:$0xff] 0.0
          %433 = vst [vmem:[#allocation2 + $0x50] sm:$0xff] 0.0
          %434 = vst [vmem:[#allocation2 + $0x58] sm:$0xff] 0.0
          %435 = vst [vmem:[#allocation2 + $0x60] sm:$0xff] 0.0
          %436 = vst [vmem:[#allocation2 + $0x68] sm:$0xff] 0.0
          %437 = vst [vmem:[#allocation2 + $0x70] sm:$0xff] 0.0
          %438 = vst [vmem:[#allocation2 + $0x78] sm:$0xff] 0.0
          %439 = vst [vmem:[#allocation2 + $0x80] sm:$0xff] 0.0
          %440 = vst [vmem:[#allocation2 + $0x88] sm:$0xff] 0.0
          %441 = vst [vmem:[#allocation2 + $0x90] sm:$0xff] 0.0
          %442 = vst [vmem:[#allocation2 + $0x98] sm:$0xff] 0.0
          %443 = vst [vmem:[#allocation2 + $0xa0] sm:$0xff] 0.0
          %444 = vst [vmem:[#allocation2 + $0xa8] sm:$0xff] 0.0
          %445 = vst [vmem:[#allocation2 + $0xb0] sm:$0xff] 0.0
          %446 = vst [vmem:[#allocation2 + $0xb8] sm:$0xff] 0.0
          %447 = vst [vmem:[#allocation2 + $0xc0] sm:$0xff] 0.0
          %448 = vst [vmem:[#allocation2 + $0xc8] sm:$0xff] 0.0
          %449 = vst [vmem:[#allocation2 + $0xd0] sm:$0xff] 0.0
          %450 = vst [vmem:[#allocation2 + $0xd8] sm:$0xff] 0.0
          %451 = vst [vmem:[#allocation2 + $0xe0] sm:$0xff] 0.0
          %452 = vst [vmem:[#allocation2 + $0xe8] sm:$0xff] 0.0
          %453 = vst [vmem:[#allocation2 + $0xf0] sm:$0xff] 0.0
          %454 = vst [vmem:[#allocation2 + $0xf8] sm:$0xff] 0.0
        $region77: #{generator_forward.95} parent=68 // pred_fallthru
          _
        %v455 = vld [vmem:[#allocation2] sm:$0xff]
        %v456 = vld [vmem:[#allocation2 + $0x8] sm:$0xff]
        %v457 = vld [vmem:[#allocation2 + $0x10] sm:$0xff]
        %v458 = vld [vmem:[#allocation2 + $0x18] sm:$0xff]
        %v459 = vld [vmem:[#allocation2 + $0x20] sm:$0xff]
        %v460 = vld [vmem:[#allocation2 + $0x28] sm:$0xff]
        %v461 = vld [vmem:[#allocation2 + $0x30] sm:$0xff]
        %v462 = vld [vmem:[#allocation2 + $0x38] sm:$0xff]
        %v463 = vld [vmem:[#allocation2 + $0x40] sm:$0xff]
        %v464 = vld [vmem:[#allocation2 + $0x48] sm:$0xff]
        %v465 = vld [vmem:[#allocation2 + $0x50] sm:$0xff]
        %v466 = vld [vmem:[#allocation2 + $0x58] sm:$0xff]
        %v467 = vld [vmem:[#allocation2 + $0x60] sm:$0xff]
        %v468 = vld [vmem:[#allocation2 + $0x68] sm:$0xff]
        %v469 = vld [vmem:[#allocation2 + $0x70] sm:$0xff]
        %v470 = vld [vmem:[#allocation2 + $0x78] sm:$0xff]
        %v471 = vld [vmem:[#allocation2 + $0x80] sm:$0xff]
        %v472 = vld [vmem:[#allocation2 + $0x88] sm:$0xff]
        %v473 = vld [vmem:[#allocation2 + $0x90] sm:$0xff]
        %v474 = vld [vmem:[#allocation2 + $0x98] sm:$0xff]
        %v475 = vld [vmem:[#allocation2 + $0xa0] sm:$0xff]
        %v476 = vld [vmem:[#allocation2 + $0xa8] sm:$0xff]
        %v477 = vld [vmem:[#allocation2 + $0xb0] sm:$0xff]
        %v478 = vld [vmem:[#allocation2 + $0xb8] sm:$0xff]
        %v479 = vld [vmem:[#allocation2 + $0xc0] sm:$0xff]
        %v480 = vld [vmem:[#allocation2 + $0xc8] sm:$0xff]
        %v481 = vld [vmem:[#allocation2 + $0xd0] sm:$0xff]
        %v482 = vld [vmem:[#allocation2 + $0xd8] sm:$0xff]
        %v483 = vld [vmem:[#allocation2 + $0xe0] sm:$0xff]
        %v484 = vld [vmem:[#allocation2 + $0xe8] sm:$0xff]
        %v485 = vld [vmem:[#allocation2 + $0xf0] sm:$0xff]
        %v486 = vld [vmem:[#allocation2 + $0xf8] sm:$0xff]
        %v487 = vld [vmem:[%s362] sm:$0xf]
        %v488 = vld [vmem:[%s362 + $0x4] sm:$0xf]
        %v489 = vld [vmem:[%s362 + $0x8] sm:$0xf]
        %v490 = vld [vmem:[%s362 + $0xc] sm:$0xf]
        %v491 = vld [vmem:[%s362 + $0x10] sm:$0xf]
        %v492 = vld [vmem:[%s362 + $0x14] sm:$0xf]
        %v493 = vld [vmem:[%s362 + $0x18] sm:$0xf]
        %v494 = vld [vmem:[%s362 + $0x1c] sm:$0xf]
        %v495 = vld [vmem:[%s362 + $0x20] sm:$0xf]
        %v496 = vld [vmem:[%s362 + $0x24] sm:$0xf]
        %v497 = vld [vmem:[%s362 + $0x28] sm:$0xf]
        %v498 = vld [vmem:[%s362 + $0x2c] sm:$0xf]
        %v499 = vld [vmem:[%s362 + $0x30] sm:$0xf]
        %v500 = vld [vmem:[%s362 + $0x34] sm:$0xf]
        %v501 = vld [vmem:[%s362 + $0x38] sm:$0xf]
        %v502 = vld [vmem:[%s362 + $0x3c] sm:$0xf]
        %v503 = vld [vmem:[%s362 + $0x40] sm:$0xf]
        %v504 = vld [vmem:[%s362 + $0x44] sm:$0xf]
        %v505 = vld [vmem:[%s362 + $0x48] sm:$0xf]
        %v506 = vld [vmem:[%s362 + $0x4c] sm:$0xf]
        %v507 = vld [vmem:[%s362 + $0x50] sm:$0xf]
        %v508 = vld [vmem:[%s362 + $0x54] sm:$0xf]
        %v509 = vld [vmem:[%s362 + $0x58] sm:$0xf]
        %v510 = vld [vmem:[%s362 + $0x5c] sm:$0xf]
        %v511 = vld [vmem:[%s362 + $0x60] sm:$0xf]
        %v512 = vld [vmem:[%s362 + $0x64] sm:$0xf]
        %v513 = vld [vmem:[%s362 + $0x68] sm:$0xf]
        %v514 = vld [vmem:[%s362 + $0x6c] sm:$0xf]
        %v515 = vld [vmem:[%s362 + $0x70] sm:$0xf]
        %v516 = vld [vmem:[%s362 + $0x74] sm:$0xf]
        %v517 = vld [vmem:[%s362 + $0x78] sm:$0xf]
        %v518 = vld [vmem:[%s362 + $0x7c] sm:$0xf]
        %v519 = vld [vmem:[%s405] sm:$0xf]
        %v520 = vld [vmem:[%s405 + $0x4] sm:$0xf]
        %v521 = vld [vmem:[%s405 + $0x8] sm:$0xf]
        %v522 = vld [vmem:[%s405 + $0xc] sm:$0xf]
        %v523 = vld [vmem:[%s405 + $0x10] sm:$0xf]
        %v524 = vld [vmem:[%s405 + $0x14] sm:$0xf]
        %v525 = vld [vmem:[%s405 + $0x18] sm:$0xf]
        %v526 = vld [vmem:[%s405 + $0x1c] sm:$0xf]
        %v527 = vld [vmem:[%s405 + $0x20] sm:$0xf]
        %v528 = vld [vmem:[%s405 + $0x24] sm:$0xf]
        %v529 = vld [vmem:[%s405 + $0x28] sm:$0xf]
        %v530 = vld [vmem:[%s405 + $0x2c] sm:$0xf]
        %v531 = vld [vmem:[%s405 + $0x30] sm:$0xf]
        %v532 = vld [vmem:[%s405 + $0x34] sm:$0xf]
        %v533 = vld [vmem:[%s405 + $0x38] sm:$0xf]
        %v534 = vld [vmem:[%s405 + $0x3c] sm:$0xf]
        %v567 = vunpack.c.l.b16 %v487
        %v568 = vunpack.c.l.b16 %v488
        %v569 = vunpack.c.l.b16 %v489
        %v570 = vunpack.c.l.b16 %v490
        %v571 = vunpack.c.l.b16 %v491
        %v572 = vunpack.c.l.b16 %v492
        %v573 = vunpack.c.l.b16 %v493
        %v574 = vunpack.c.l.b16 %v494
        %v575 = vunpack.c.l.b16 %v495
        %v576 = vunpack.c.l.b16 %v496
        %v577 = vunpack.c.l.b16 %v497
        %v578 = vunpack.c.l.b16 %v498
        %v579 = vunpack.c.l.b16 %v499
        %v580 = vunpack.c.l.b16 %v500
        %v581 = vunpack.c.l.b16 %v501
        %v582 = vunpack.c.l.b16 %v502
        %v583 = vunpack.c.l.b16 %v503
        %v584 = vunpack.c.l.b16 %v504
        %v585 = vunpack.c.l.b16 %v505
        %v586 = vunpack.c.l.b16 %v506
        %v587 = vunpack.c.l.b16 %v507
        %v588 = vunpack.c.l.b16 %v508
        %v589 = vunpack.c.l.b16 %v509
        %v590 = vunpack.c.l.b16 %v510
        %v591 = vunpack.c.l.b16 %v511
        %v592 = vunpack.c.l.b16 %v512
        %v593 = vunpack.c.l.b16 %v513
        %v594 = vunpack.c.l.b16 %v514
        %v595 = vunpack.c.l.b16 %v515
        %v596 = vunpack.c.l.b16 %v516
        %v597 = vunpack.c.l.b16 %v517
        %v598 = vunpack.c.l.b16 %v518
        %v599 = vpack.c.b16 %v568, %v567
        %v600 = vpack.c.b16 %v570, %v569
        %v601 = vpack.c.b16 %v572, %v571
        %v602 = vpack.c.b16 %v574, %v573
        %v603 = vpack.c.b16 %v576, %v575
        %v604 = vpack.c.b16 %v578, %v577
        %v605 = vpack.c.b16 %v580, %v579
        %v606 = vpack.c.b16 %v582, %v581
        %v607 = vpack.c.b16 %v584, %v583
        %v608 = vpack.c.b16 %v586, %v585
        %v609 = vpack.c.b16 %v588, %v587
        %v610 = vpack.c.b16 %v590, %v589
        %v611 = vpack.c.b16 %v592, %v591
        %v612 = vpack.c.b16 %v594, %v593
        %v613 = vpack.c.b16 %v596, %v595
        %v614 = vpack.c.b16 %v598, %v597
        %v647 = vunpack.c.l.b16 %v519
        %v648 = vunpack.c.l.b16 %v520
        %v649 = vunpack.c.l.b16 %v521
        %v650 = vunpack.c.l.b16 %v522
        %v651 = vunpack.c.l.b16 %v523
        %v652 = vunpack.c.l.b16 %v524
        %v653 = vunpack.c.l.b16 %v525
        %v654 = vunpack.c.l.b16 %v526
        %v655 = vunpack.c.l.b16 %v527
        %v656 = vunpack.c.l.b16 %v528
        %v657 = vunpack.c.l.b16 %v529
        %v658 = vunpack.c.l.b16 %v530
        %v659 = vunpack.c.l.b16 %v531
        %v660 = vunpack.c.l.b16 %v532
        %v661 = vunpack.c.l.b16 %v533
        %v662 = vunpack.c.l.b16 %v534
        %v663 = vpack.c.b16 %v648, %v647
        %v664 = vpack.c.b16 %v650, %v649
        %v665 = vpack.c.b16 %v652, %v651
        %v666 = vpack.c.b16 %v654, %v653
        %v667 = vpack.c.b16 %v656, %v655
        %v668 = vpack.c.b16 %v658, %v657
        %v669 = vpack.c.b16 %v660, %v659
        %v670 = vpack.c.b16 %v662, %v661
        %679 = vmatpush.bf16.msra.mxu0 %v670
        %680 = vmatpush.bf16.msra.mxu0 %v669
        %681 = vmatpush.bf16.msra.mxu0 %v668
        %682 = vmatpush.bf16.msra.mxu0 %v667
        %683 = vmatpush.bf16.msra.mxu0 %v666
        %684 = vmatpush.bf16.msra.mxu0 %v665
        %685 = vmatpush.bf16.msra.mxu0 %v664
        %686 = vmatpush.bf16.msra.mxu0 %v663
        %687 = vmatmul.bf16.gmra.mxu0 %v599
        %v688 = vpop.f32.mrf.mxu0
        %v689 = vadd.f32 0.0, %v688
        %v690 = vpop.f32.mrf.mxu0
        %v691 = vadd.f32 0.0, %v690
        %692 = vmatmul.bf16.gmra.mxu0 %v600
        %v693 = vpop.f32.mrf.mxu0
        %v694 = vadd.f32 0.0, %v693
        %v695 = vpop.f32.mrf.mxu0
        %v696 = vadd.f32 0.0, %v695
        %697 = vmatmul.bf16.gmra.mxu0 %v601
        %v698 = vpop.f32.mrf.mxu0
        %v699 = vadd.f32 0.0, %v698
        %v700 = vpop.f32.mrf.mxu0
        %v701 = vadd.f32 0.0, %v700
        %702 = vmatmul.bf16.gmra.mxu0 %v602
        %v703 = vpop.f32.mrf.mxu0
        %v704 = vadd.f32 0.0, %v703
        %v705 = vpop.f32.mrf.mxu0
        %v706 = vadd.f32 0.0, %v705
        %707 = vmatmul.bf16.gmra.mxu0 %v603
        %v708 = vpop.f32.mrf.mxu0
        %v709 = vadd.f32 0.0, %v708
        %v710 = vpop.f32.mrf.mxu0
        %v711 = vadd.f32 0.0, %v710
        %712 = vmatmul.bf16.gmra.mxu0 %v604
        %v713 = vpop.f32.mrf.mxu0
        %v714 = vadd.f32 0.0, %v713
        %v715 = vpop.f32.mrf.mxu0
        %v716 = vadd.f32 0.0, %v715
        %717 = vmatmul.bf16.gmra.mxu0 %v605
        %v718 = vpop.f32.mrf.mxu0
        %v719 = vadd.f32 0.0, %v718
        %v720 = vpop.f32.mrf.mxu0
        %v721 = vadd.f32 0.0, %v720
        %722 = vmatmul.bf16.gmra.mxu0 %v606
        %v723 = vpop.f32.mrf.mxu0
        %v724 = vadd.f32 0.0, %v723
        %v725 = vpop.f32.mrf.mxu0
        %v726 = vadd.f32 0.0, %v725
        %727 = vmatmul.bf16.gmra.mxu0 %v607
        %v728 = vpop.f32.mrf.mxu0
        %v729 = vadd.f32 0.0, %v728
        %v730 = vpop.f32.mrf.mxu0
        %v731 = vadd.f32 0.0, %v730
        %732 = vmatmul.bf16.gmra.mxu0 %v608
        %v733 = vpop.f32.mrf.mxu0
        %v734 = vadd.f32 0.0, %v733
        %v735 = vpop.f32.mrf.mxu0
        %v736 = vadd.f32 0.0, %v735
        %737 = vmatmul.bf16.gmra.mxu0 %v609
        %v738 = vpop.f32.mrf.mxu0
        %v739 = vadd.f32 0.0, %v738
        %v740 = vpop.f32.mrf.mxu0
        %v741 = vadd.f32 0.0, %v740
        %742 = vmatmul.bf16.gmra.mxu0 %v610
        %v743 = vpop.f32.mrf.mxu0
        %v744 = vadd.f32 0.0, %v743
        %v745 = vpop.f32.mrf.mxu0
        %v746 = vadd.f32 0.0, %v745
        %747 = vmatmul.bf16.gmra.mxu0 %v611
        %v748 = vpop.f32.mrf.mxu0
        %v749 = vadd.f32 0.0, %v748
        %v750 = vpop.f32.mrf.mxu0
        %v751 = vadd.f32 0.0, %v750
        %752 = vmatmul.bf16.gmra.mxu0 %v612
        %v753 = vpop.f32.mrf.mxu0
        %v754 = vadd.f32 0.0, %v753
        %v755 = vpop.f32.mrf.mxu0
        %v756 = vadd.f32 0.0, %v755
        %757 = vmatmul.bf16.gmra.mxu0 %v613
        %v758 = vpop.f32.mrf.mxu0
        %v759 = vadd.f32 0.0, %v758
        %v760 = vpop.f32.mrf.mxu0
        %v761 = vadd.f32 0.0, %v760
        %762 = vmatmul.bf16.gmra.mxu0 %v614
        %v763 = vpop.f32.mrf.mxu0
        %v764 = vadd.f32 0.0, %v763
        %v765 = vpop.f32.mrf.mxu0
        %v766 = vadd.f32 0.0, %v765
        %767 = vdwg.mxu0
        %v768 = vadd.f32 %v455, %v689
        %v769 = vadd.f32 %v456, %v691
        %v770 = vadd.f32 %v457, %v694
        %v771 = vadd.f32 %v458, %v696
        %v772 = vadd.f32 %v459, %v699
        %v773 = vadd.f32 %v460, %v701
        %v774 = vadd.f32 %v461, %v704
        %v775 = vadd.f32 %v462, %v706
        %v776 = vadd.f32 %v463, %v709
        %v777 = vadd.f32 %v464, %v711
        %v778 = vadd.f32 %v465, %v714
        %v779 = vadd.f32 %v466, %v716
        %v780 = vadd.f32 %v467, %v719
        %v781 = vadd.f32 %v468, %v721
        %v782 = vadd.f32 %v469, %v724
        %v783 = vadd.f32 %v470, %v726
        %v784 = vadd.f32 %v471, %v729
        %v785 = vadd.f32 %v472, %v731
        %v786 = vadd.f32 %v473, %v734
        %v787 = vadd.f32 %v474, %v736
        %v788 = vadd.f32 %v475, %v739
        %v789 = vadd.f32 %v476, %v741
        %v790 = vadd.f32 %v477, %v744
        %v791 = vadd.f32 %v478, %v746
        %v792 = vadd.f32 %v479, %v749
        %v793 = vadd.f32 %v480, %v751
        %v794 = vadd.f32 %v481, %v754
        %v795 = vadd.f32 %v482, %v756
        %v796 = vadd.f32 %v483, %v759
        %v797 = vadd.f32 %v484, %v761
        %v798 = vadd.f32 %v485, %v764
        %v799 = vadd.f32 %v486, %v766
        %800 = vst [vmem:[#allocation2] sm:$0xff] %v768
        %801 = vst [vmem:[#allocation2 + $0x8] sm:$0xff] %v769
        %802 = vst [vmem:[#allocation2 + $0x10] sm:$0xff] %v770
        %803 = vst [vmem:[#allocation2 + $0x18] sm:$0xff] %v771
        %804 = vst [vmem:[#allocation2 + $0x20] sm:$0xff] %v772
        %805 = vst [vmem:[#allocation2 + $0x28] sm:$0xff] %v773
        %806 = vst [vmem:[#allocation2 + $0x30] sm:$0xff] %v774
        %807 = vst [vmem:[#allocation2 + $0x38] sm:$0xff] %v775
        %808 = vst [vmem:[#allocation2 + $0x40] sm:$0xff] %v776
        %809 = vst [vmem:[#allocation2 + $0x48] sm:$0xff] %v777
        %810 = vst [vmem:[#allocation2 + $0x50] sm:$0xff] %v778
        %811 = vst [vmem:[#allocation2 + $0x58] sm:$0xff] %v779
        %812 = vst [vmem:[#allocation2 + $0x60] sm:$0xff] %v780
        %813 = vst [vmem:[#allocation2 + $0x68] sm:$0xff] %v781
        %814 = vst [vmem:[#allocation2 + $0x70] sm:$0xff] %v782
        %815 = vst [vmem:[#allocation2 + $0x78] sm:$0xff] %v783
        %816 = vst [vmem:[#allocation2 + $0x80] sm:$0xff] %v784
        %817 = vst [vmem:[#allocation2 + $0x88] sm:$0xff] %v785
        %818 = vst [vmem:[#allocation2 + $0x90] sm:$0xff] %v786
        %819 = vst [vmem:[#allocation2 + $0x98] sm:$0xff] %v787
        %820 = vst [vmem:[#allocation2 + $0xa0] sm:$0xff] %v788
        %821 = vst [vmem:[#allocation2 + $0xa8] sm:$0xff] %v789
        %822 = vst [vmem:[#allocation2 + $0xb0] sm:$0xff] %v790
        %823 = vst [vmem:[#allocation2 + $0xb8] sm:$0xff] %v791
        %824 = vst [vmem:[#allocation2 + $0xc0] sm:$0xff] %v792
        %825 = vst [vmem:[#allocation2 + $0xc8] sm:$0xff] %v793
        %826 = vst [vmem:[#allocation2 + $0xd0] sm:$0xff] %v794
        %827 = vst [vmem:[#allocation2 + $0xd8] sm:$0xff] %v795
        %828 = vst [vmem:[#allocation2 + $0xe0] sm:$0xff] %v796
        %829 = vst [vmem:[#allocation2 + $0xe8] sm:$0xff] %v797
        %830 = vst [vmem:[#allocation2 + $0xf0] sm:$0xff] %v798
        %831 = vst [vmem:[#allocation2 + $0xf8] sm:$0xff] %v799
        %p832 = scmp.eq.s32.totalorder %s21, 24
        // Predicated region
        $region78: #{generator_forward.95} parent=68 // pred_check
          %p833 = pneg %p832
        $region79: #{generator_forward.95} parent=68 // pred_check_branch
          %835 = sbr.rel (%p833) target = $region81
        $region80: #{generator_forward.95} parent=68 // pred_region
          %v836 = vld [vmem:[#allocation2] sm:$0xff]
          %v837 = vld [vmem:[#allocation2 + $0x8] sm:$0xff]
          %v838 = vld [vmem:[#allocation2 + $0x10] sm:$0xff]
          %v839 = vld [vmem:[#allocation2 + $0x18] sm:$0xff]
          %v840 = vld [vmem:[#allocation2 + $0x20] sm:$0xff]
          %v841 = vld [vmem:[#allocation2 + $0x28] sm:$0xff]
          %v842 = vld [vmem:[#allocation2 + $0x30] sm:$0xff]
          %v843 = vld [vmem:[#allocation2 + $0x38] sm:$0xff]
          %v844 = vld [vmem:[#allocation2 + $0x40] sm:$0xff]
          %v845 = vld [vmem:[#allocation2 + $0x48] sm:$0xff]
          %v846 = vld [vmem:[#allocation2 + $0x50] sm:$0xff]
          %v847 = vld [vmem:[#allocation2 + $0x58] sm:$0xff]
          %v848 = vld [vmem:[#allocation2 + $0x60] sm:$0xff]
          %v849 = vld [vmem:[#allocation2 + $0x68] sm:$0xff]
          %v850 = vld [vmem:[#allocation2 + $0x70] sm:$0xff]
          %v851 = vld [vmem:[#allocation2 + $0x78] sm:$0xff]
          %v852 = vld [vmem:[#allocation2 + $0x80] sm:$0xff]
          %v853 = vld [vmem:[#allocation2 + $0x88] sm:$0xff]
          %v854 = vld [vmem:[#allocation2 + $0x90] sm:$0xff]
          %v855 = vld [vmem:[#allocation2 + $0x98] sm:$0xff]
          %v856 = vld [vmem:[#allocation2 + $0xa0] sm:$0xff]
          %v857 = vld [vmem:[#allocation2 + $0xa8] sm:$0xff]
          %v858 = vld [vmem:[#allocation2 + $0xb0] sm:$0xff]
          %v859 = vld [vmem:[#allocation2 + $0xb8] sm:$0xff]
          %v860 = vld [vmem:[#allocation2 + $0xc0] sm:$0xff]
          %v861 = vld [vmem:[#allocation2 + $0xc8] sm:$0xff]
          %v862 = vld [vmem:[#allocation2 + $0xd0] sm:$0xff]
          %v863 = vld [vmem:[#allocation2 + $0xd8] sm:$0xff]
          %v864 = vld [vmem:[#allocation2 + $0xe0] sm:$0xff]
          %v865 = vld [vmem:[#allocation2 + $0xe8] sm:$0xff]
          %v866 = vld [vmem:[#allocation2 + $0xf0] sm:$0xff]
          %v867 = vld [vmem:[#allocation2 + $0xf8] sm:$0xff]
          %v868 = vld [vmem:[%s409] sm:$0x1]
          %v870 = vperm.slane %v868, 0
          %v872 = vadd.f32 %v836, %v870
          %v873 = vadd.f32 %v837, %v870
          %v874 = vadd.f32 %v838, %v870
          %v875 = vadd.f32 %v839, %v870
          %v876 = vadd.f32 %v840, %v870
          %v877 = vadd.f32 %v841, %v870
          %v878 = vadd.f32 %v842, %v870
          %v879 = vadd.f32 %v843, %v870
          %v880 = vadd.f32 %v844, %v870
          %v881 = vadd.f32 %v845, %v870
          %v882 = vadd.f32 %v846, %v870
          %v883 = vadd.f32 %v847, %v870
          %v884 = vadd.f32 %v848, %v870
          %v885 = vadd.f32 %v849, %v870
          %v886 = vadd.f32 %v850, %v870
          %v887 = vadd.f32 %v851, %v870
          %v888 = vadd.f32 %v852, %v870
          %v889 = vadd.f32 %v853, %v870
          %v890 = vadd.f32 %v854, %v870
          %v891 = vadd.f32 %v855, %v870
          %v892 = vadd.f32 %v856, %v870
          %v893 = vadd.f32 %v857, %v870
          %v894 = vadd.f32 %v858, %v870
          %v895 = vadd.f32 %v859, %v870
          %v896 = vadd.f32 %v860, %v870
          %v897 = vadd.f32 %v861, %v870
          %v898 = vadd.f32 %v862, %v870
          %v899 = vadd.f32 %v863, %v870
          %v900 = vadd.f32 %v864, %v870
          %v901 = vadd.f32 %v865, %v870
          %v902 = vadd.f32 %v866, %v870
          %v903 = vadd.f32 %v867, %v870
          %904 = vst [vmem:[%s417] sm:$0xff] %v872
          %905 = vst [vmem:[%s417 + $0x8] sm:$0xff] %v873
          %906 = vst [vmem:[%s417 + $0x10] sm:$0xff] %v874
          %907 = vst [vmem:[%s417 + $0x18] sm:$0xff] %v875
          %908 = vst [vmem:[%s417 + $0x20] sm:$0xff] %v876
          %909 = vst [vmem:[%s417 + $0x28] sm:$0xff] %v877
          %910 = vst [vmem:[%s417 + $0x30] sm:$0xff] %v878
          %911 = vst [vmem:[%s417 + $0x38] sm:$0xff] %v879
          %912 = vst [vmem:[%s417 + $0x40] sm:$0xff] %v880
          %913 = vst [vmem:[%s417 + $0x48] sm:$0xff] %v881
          %914 = vst [vmem:[%s417 + $0x50] sm:$0xff] %v882
          %915 = vst [vmem:[%s417 + $0x58] sm:$0xff] %v883
          %916 = vst [vmem:[%s417 + $0x60] sm:$0xff] %v884
          %917 = vst [vmem:[%s417 + $0x68] sm:$0xff] %v885
          %918 = vst [vmem:[%s417 + $0x70] sm:$0xff] %v886
          %919 = vst [vmem:[%s417 + $0x78] sm:$0xff] %v887
          %920 = vst [vmem:[%s417 + $0x80] sm:$0xff] %v888
          %921 = vst [vmem:[%s417 + $0x88] sm:$0xff] %v889
          %922 = vst [vmem:[%s417 + $0x90] sm:$0xff] %v890
          %923 = vst [vmem:[%s417 + $0x98] sm:$0xff] %v891
          %924 = vst [vmem:[%s417 + $0xa0] sm:$0xff] %v892
          %925 = vst [vmem:[%s417 + $0xa8] sm:$0xff] %v893
          %926 = vst [vmem:[%s417 + $0xb0] sm:$0xff] %v894
          %927 = vst [vmem:[%s417 + $0xb8] sm:$0xff] %v895
          %928 = vst [vmem:[%s417 + $0xc0] sm:$0xff] %v896
          %929 = vst [vmem:[%s417 + $0xc8] sm:$0xff] %v897
          %930 = vst [vmem:[%s417 + $0xd0] sm:$0xff] %v898
          %931 = vst [vmem:[%s417 + $0xd8] sm:$0xff] %v899
          %932 = vst [vmem:[%s417 + $0xe0] sm:$0xff] %v900
          %933 = vst [vmem:[%s417 + $0xe8] sm:$0xff] %v901
          %934 = vst [vmem:[%s417 + $0xf0] sm:$0xff] %v902
          %935 = vst [vmem:[%s417 + $0xf8] sm:$0xff] %v903
        $region81: #{generator_forward.95} parent=68 // pred_fallthru
          _
        %s936 = smul.u32 32, %s19
        %p937 = scmp.lt.s32.totalorder %s936, 63
        %s938 = scalar_select %p937, %s936, 63
        %p939 = scmp.lt.s32.totalorder %s20, 0
        %s940 = scalar_select %p939, %s20, 0
        %s941 = sadd.s32 %s940, %s938
        %s942 = smul.addr %s941, 8
        %s943 = scalar_lea.vmem %s3, %s942
        // Predicated region
        $region82: #{generator_forward.95} parent=68 // pred_check
          %p944 = pneg %p135
        $region83: #{generator_forward.95} parent=68 // pred_check_branch
          %946 = sbr.rel (%p944) target = $region85
        $region84: #{generator_forward.95} parent=68 // pred_region
          %s947 = smul.u32 32, %s19
        $region85: #{generator_forward.95} parent=68 // pred_fallthru
          _
      $region69: #{generator_forward.95} parent=5 // pred_fallthru
        _
      %p948 = scmp.le.s32.totalorder 2, %s9
      // Predicated region
      $region86: #{generator_forward.95} parent=5 // pred_check
        %p949 = pneg %p948
      $region87: #{generator_forward.95} parent=5 // pred_check_branch
        %951 = sbr.rel (%p949) target = $region89
      $region88: #{generator_forward.95} parent=5 // pred_region
        %s952 = ssub.s32 %s9, 2
        // Predicated region
        $region90: #{generator_forward.95} parent=88 // pred_check
          %p953 = pneg %p141
        $region91: #{generator_forward.95} parent=88 // pred_check_branch
          %955 = sbr.rel (%p953) target = $region93
        $region92: #{generator_forward.95} parent=88 // pred_region
          %s956 = smul.u32 32, %s22
          %p957 = scmp.lt.s32.totalorder %s956, 63
          %s958 = scalar_select %p957, %s956, 63
          %p959 = scmp.lt.s32.totalorder %s23, 0
          %s960 = scalar_select %p959, %s23, 0
          %s961 = sadd.s32 %s960, %s958
          %s962 = smul.addr %s961, 8
          %s963 = scalar_lea.vmem %s3, %s962
        $region93: #{generator_forward.95} parent=88 // pred_fallthru
          _
      $region89: #{generator_forward.95} parent=5 // pred_fallthru
        _
    $region6: #{generator_forward.95} parent=1 // loop_footer
      %s13 = sadd.s32 1, %s9
    $region7: #{generator_forward.95} parent=1 // loop_footer_branch
      %8 = sbr.rel target = $region3
    $region8: #{generator_forward.95} parent=1 // loop_exit
      _

</llo_original>
